<compile_context>
chip_gen: v7x
topology: tpu7x:2x2x1
jax: 0.10.0
libtpu: 0.0.40
codegen_flags: <defaults>
</compile_context>

<pallas_src>
import jax
import jax.numpy as jnp
from jax.experimental import pallas as pl
from jax.experimental.pallas import tpu as pltpu

TM = 256  # rows per grid step (multiple of 8; 256 matches v6e/v7x MXU width, fine on v5e)


# ----------------------------- Pallas kernels -----------------------------

def _enc1_kernel(p_ref, w_ref, b_ref, o_ref):
    """Conv3x3(1->64) + bias + ReLU + 2x2 max-pool for one TM-row block.

    p_ref: (4, TM, 18) bf16  parity-major patches; lanes = (w'-pair index j, conv tap k)
    w_ref: (18, 128)   bf16  block-diagonal conv weight (two copies of the 9x64 kernel)
    b_ref: (1, 128)    f32   bias tiled twice
    o_ref: (TM, 128)   bf16  lane-dense pooled output; lanes = (j, cout)
    """
    w = w_ref[...]
    # Max over the 4 pool offsets, one live f32 accumulator (bias/ReLU commute with the max).
    m = jnp.dot(p_ref[0], w, preferred_element_type=jnp.float32)
    for par in range(1, 4):
        m = jnp.maximum(m, jnp.dot(p_ref[par], w, preferred_element_type=jnp.float32))
    o_ref[...] = jnp.maximum(m + b_ref[...], 0.0).astype(o_ref.dtype)


def _enc2_dec_kernel(p_ref, w2_ref, b2_ref,
                     a1_ref, c1_ref, a2_ref, c2_ref,
                     a3_ref, c3_ref, a4_ref, c4_ref, o_ref):
    """Conv3x3(64->128)+ReLU+pool2 + full ConvT decoder + sigmoid for one TM-row block.

    p_ref : (4, TM, 576) bf16  parity-major im2col patches of the pool1 activations
    w2_ref: (576, 128)   bf16  conv2 weight (rows ordered (kh, kw, ci))
    a*_ref: block-diagonal decoder weights (bf16); c*_ref: matching tiled biases (f32)
    o_ref : (TM, 256)    bf16  rows=(n,h'',w''), lanes=(di1,dj1,di2,dj2,di3,dj3,di4,dj4)
    """
    w2 = w2_ref[...]
    m = jnp.dot(p_ref[0], w2, preferred_element_type=jnp.float32)
    for par in range(1, 4):
        m = jnp.maximum(m, jnp.dot(p_ref[par], w2, preferred_element_type=jnp.float32))
    t = jnp.maximum(m + b2_ref[...], 0.0)              # pooled encoder output (TM, 128) f32

    def dense(x_f32, a_ref, c_ref, act):
        y = jnp.dot(x_f32.astype(jnp.bfloat16), a_ref[...],
                    preferred_element_type=jnp.float32) + c_ref[...]
        return jnp.maximum(y, 0.0) if act == "relu" else jax.nn.sigmoid(y)

    t = dense(t, a1_ref, c1_ref, "relu")               # (TM, 256)   ConvT 128->64
    t = dense(t, a2_ref, c2_ref, "relu")               # (TM, 512)   ConvT  64->32
    t = dense(t, a3_ref, c3_ref, "relu")               # (TM, 1024)  ConvT  32->16
    t = dense(t, a4_ref, c4_ref, "sigmoid")            # (TM, 256)   ConvT  16->1 + Sigmoid
    o_ref[...] = t.astype(o_ref.dtype)


# ------------------------------ kernel wrappers ----------------------------

def _vmem_limit(block_bytes, const_bytes):
    # Explicit VMEM budget: 2x for default double-buffering of every BlockSpec plus headroom
    # for in-kernel f32 intermediates; capped below v7x's 64 MiB physical VMEM.
    # TODO(synk): single-buffer the constant weight specs (pipeline_mode=pl.Buffered(1)) to
    # reclaim the second weight buffer if TM is ever raised beyond 512.
    return int(min(64 << 20, 2 * block_bytes + 2 * const_bytes + (8 << 20)))


def _encoder1(patches, w1, b1, tm):
    m_pad = patches.shape[1]
    block_bytes = 4 * tm * 128 * 2 + tm * 128 * 2          # lane-padded patch block + out block
    const_bytes = 18 * 128 * 2 + 8 * 128 * 4
    cost = pl.CostEstimate(
        flops=int(2 * m_pad * 4 * 18 * 128),
        transcendentals=0,
        bytes_accessed=int(patches.size * 2 + 18 * 128 * 2 + 128 * 4 + m_pad * 128 * 2))
    return pl.pallas_call(
        _enc1_kernel,
        out_shape=jax.ShapeDtypeStruct((m_pad, 128), jnp.bfloat16),
        grid=(m_pad // tm,),
        in_specs=[
            pl.BlockSpec((4, tm, 18), lambda i: (0, i, 0)),
            pl.BlockSpec((18, 128), lambda i: (0, 0)),
            pl.BlockSpec((1, 128), lambda i: (0, 0)),
        ],
        out_specs=pl.BlockSpec((tm, 128), lambda i: (i, 0)),
        compiler_params=pltpu.CompilerParams(
            dimension_semantics=("parallel",),
            vmem_limit_bytes=_vmem_limit(block_bytes, const_bytes)),
        cost_estimate=cost,
    )(patches, w1, b1)


def _encoder2_decoder(patches2, p, tm):
    m_pad, k2 = patches2.shape[1], patches2.shape[2]
    block_bytes = 4 * tm * 640 * 2 + tm * 256 * 2          # 576 lanes pad to 640; bf16 output
    const_bytes = (2 * (576 * 128 + 128 * 256 + 256 * 512 + 512 * 1024 + 1024 * 256)
                   + 4 * 8 * (128 + 256 + 512 + 1024 + 256))
    dec_flops = 2 * (128 * 256 + 256 * 512 + 512 * 1024 + 1024 * 256)
    cost = pl.CostEstimate(
        flops=int(m_pad * (2 * 4 * 576 * 128 + dec_flops)),
        transcendentals=int(m_pad * 256),
        bytes_accessed=int(patches2.size * 2 + const_bytes + m_pad * 256 * 2))

    def const(shape):
        return pl.BlockSpec(shape, lambda i: (0,) * len(shape))

    return pl.pallas_call(
        _enc2_dec_kernel,
        out_shape=jax.ShapeDtypeStruct((m_pad, 256), jnp.bfloat16),
        grid=(m_pad // tm,),
        in_specs=[
            pl.BlockSpec((4, tm, k2), lambda i: (0, i, 0)),
            const((k2, 128)), const((1, 128)),
            const((128, 256)), const((1, 256)),
            const((256, 512)), const((1, 512)),
            const((512, 1024)), const((1, 1024)),
            const((1024, 256)), const((1, 256)),
        ],
        out_specs=pl.BlockSpec((tm, 256), lambda i: (i, 0)),
        compiler_params=pltpu.CompilerParams(
            dimension_semantics=("parallel",),
            vmem_limit_bytes=_vmem_limit(block_bytes, const_bytes)),
        cost_estimate=cost,
    )(patches2, p["w2"], p["b2"], p["a1"], p["c1"], p["a2"], p["c2"],
      p["a3"], p["c3"], p["a4"], p["c4"])


# ------------------------------ XLA glue -----------------------------------

def _pad_rows(p, m_pad):
    m = p.shape[1]
    if m == m_pad:
        return p
    return jnp.pad(p, ((0, 0), (0, m_pad - m), (0, 0)))


def _conv1_patches(x, H, W):
    """Parity-major, column-paired im2col of the raw (N,H,W) input.

    Returns (4, N*(H/2)*(W/4), 18) bf16: axis 0 = 2x2 pool offset (h0,w0); rows = (n, h', w'//2);
    lanes = (w'%2, tap).  Against an (18,128) block-diagonal weight this yields a fully
    lane-dense (rows, 128) pooled output with lanes = (w'%2, cout).
    """
    N = x.shape[0]
    H2, W2 = H // 2, W // 2
    xp = jnp.pad(x, ((0, 0), (1, 1), (1, 1)))
    taps = [xp[:, kh:kh + H, kw:kw + W] for kh in range(3) for kw in range(3)]
    p = jnp.stack(taps, axis=-1)                            # (N, H, W, 9), taps (kh, kw)
    p = p.reshape(N, H2, 2, W2 // 2, 2, 2, 9)               # (n, h', h0, q, j, w0, k)
    p = p.transpose(2, 5, 0, 1, 3, 4, 6)                    # (h0, w0, n, h', q, j, k)
    return p.reshape(4, N * H2 * (W2 // 2), 18).astype(jnp.bfloat16)


def _conv2_patches(h1, N, H2, W2):
    """Parity-major im2col of the pool1 output -> (4, N*(H2/2)*(W2/2), 576) bf16.
    Rows = (n, h'', w''); cols = (kh, kw, ci)."""
    H4, W4 = H2 // 2, W2 // 2
    xp = jnp.pad(h1, ((0, 0), (1, 1), (1, 1), (0, 0)))
    taps = [xp[:, kh:kh + H2, kw:kw + W2, :] for kh in range(3) for kw in range(3)]
    p = jnp.stack(taps, axis=3).reshape(N, H2, W2, 576)
    p = p.reshape(N, H4, 2, W4, 2, 576)
    p = p.transpose(2, 4, 0, 1, 3, 5)                       # (h0, w0, n, h'', w'', 576)
    return p.reshape(4, N * H4 * W4, 576)
    # TODO(synk): eliminate this ~9x HBM blowup by DMA-ing a haloed pool1 tile into VMEM and
    # accumulating the 9 conv taps in-kernel as shifted (TM,64)@(64,128) bf16 matmuls.


def _unscramble(y, N, H4, W4):
    """(N*H4*W4, 256) bf16 kernel output -> (N, 1, 16*H4, 16*W4) f32 NCHW.

    Lanes are the nested 2x2 ConvT sub-pixel offsets (di1,dj1,di2,dj2,di3,dj3,di4,dj4):
    h_out = 16*h'' + 8*di1 + 4*di2 + 2*di3 + di4 (same for w)."""
    y = y.reshape(N, H4, W4, 2, 2, 2, 2, 2, 2, 2, 2)
    y = y.transpose(0, 1, 3, 5, 7, 9, 2, 4, 6, 8, 10)
    return y.reshape(N, 1, H4 * 16, W4 * 16).astype(jnp.float32)


# ------------------------------ parameters ---------------------------------

def init_params(key):
    """Deterministic synthetic init (PyTorch-style uniform +-1/sqrt(fan_in)), already
    transformed into the kernels' layouts (bf16 matmul operands, f32 biases).
    Porting real weights: Conv2d (cout,cin,kh,kw) -> rows (kh,kw,ci); ConvTranspose2d
    (cin,cout,kh,kw) -> cols (di,dj,cout)."""
    def uconv(k, cin, cout):
        bound = (9 * cin) ** -0.5
        k1, k2 = jax.random.split(k)
        w = jax.random.uniform(k1, (3, 3, cin, cout), jnp.float32, -bound, bound)
        b = jax.random.uniform(k2, (cout,), jnp.float32, -bound, bound)
        return w.reshape(9 * cin, cout), b            # rows (kh, kw, ci)

    def udeconv(k, cin, cout):
        bound = (4 * cout) ** -0.5
        k1, k2 = jax.random.split(k)
        w = jax.random.uniform(k1, (cin, 2, 2, cout), jnp.float32, -bound, bound)
        b = jax.random.uniform(k2, (cout,), jnp.float32, -bound, bound)
        return w.reshape(cin, 4 * cout), b            # cols (di, dj, co)

    keys = jax.random.split(key, 6)
    w1, b1 = uconv(keys[0], 1, 64)
    w2, b2 = uconv(keys[1], 64, 128)
    d1, e1 = udeconv(keys[2], 128, 64)
    d2, e2 = udeconv(keys[3], 64, 32)
    d3, e3 = udeconv(keys[4], 32, 16)
    d4, e4 = udeconv(keys[5], 16, 1)

    # enc1: block-diagonal over the packed w'-pair so the pooled output is 128-lane dense.
    w1_bd = jnp.zeros((18, 128), jnp.float32)
    w1_bd = w1_bd.at[:9, :64].set(w1).at[9:, 64:].set(w1)
    b1_t = jnp.tile(b1, 2).reshape(1, 128)

    # Block-diagonal ("sub-pixel unrolled") decoder weights: ConvT(2x2, s2) never mixes
    # spatial positions, so keeping the nested 2x2 sub-pixel index in the lane axis turns
    # the decoder into 4 chained lane-dense matmuls with no in-kernel reshuffling.
    eye = lambda n: jnp.eye(n, dtype=jnp.float32)
    a1 = d1                                           # (128, 256)   cols (s1, c)
    a2 = jnp.kron(eye(4), d2)                         # (256, 512)   cols (s1, s2, c)
    a3 = jnp.kron(eye(16), d3)                        # (512, 1024)  cols (s1, s2, s3, c)
    a4 = jnp.kron(eye(64), d4)                        # (1024, 256)  cols (s1, s2, s3, s4)
    c1 = jnp.tile(e1, 4).reshape(1, 256)
    c2 = jnp.tile(e2, 16).reshape(1, 512)
    c3 = jnp.tile(e3, 64).reshape(1, 1024)
    c4 = jnp.tile(e4, 256).reshape(1, 256)

    bf = jnp.bfloat16
    return dict(
        w1=w1_bd.astype(bf), b1=b1_t,
        w2=w2.astype(bf), b2=b2.reshape(1, 128),
        a1=a1.astype(bf), c1=c1,
        a2=a2.astype(bf), c2=c2,
        a3=a3.astype(bf), c3=c3,
        a4=a4.astype(bf), c4=c4,
    )


# ------------------------------ forward pass --------------------------------

def forward(x_nchw, p, tm=TM):
    N, cin, H, W = x_nchw.shape
    assert cin == 1 and H % 4 == 0 and W % 4 == 0, (cin, H, W)
    x = x_nchw.reshape(N, H, W).astype(jnp.float32)
    H2, W2, H4, W4 = H // 2, W // 2, H // 4, W // 4

    # stage 1: Conv3x3(1->64) + ReLU + MaxPool2 (fused; lane-dense output)
    p1 = _conv1_patches(x, H, W)                               # (4, M1, 18) bf16
    m1 = p1.shape[1]
    m1p = pl.cdiv(m1, tm) * tm
    h1 = _encoder1(_pad_rows(p1, m1p), p["w1"], p["b1"], tm)[:m1]   # (M1, 128) bf16
    h1 = h1.reshape(N, H2, W2 // 2, 2, 64).reshape(N, H2, W2, 64)   # unpack (w'%2, c) lanes

    # stage 2: Conv3x3(64->128) + ReLU + MaxPool2 + 4-layer ConvT decoder + sigmoid (fused)
    p2 = _conv2_patches(h1, N, H2, W2)                         # (4, M2, 576) bf16
    m2 = p2.shape[1]
    m2p = pl.cdiv(m2, tm) * tm
    y = _encoder2_decoder(_pad_rows(p2, m2p), p, tm)[:m2]      # (M2, 256) bf16

    return _unscramble(y, N, H4, W4)                           # (N, 1, 4H, 4W) f32


if __name__ == "__main__":
    key = jax.random.PRNGKey(0)
    kp, kx = jax.random.split(key)
    params = init_params(kp)
    x = jax.random.normal(kx, (2, 1, 16, 16), jnp.float32)     # NCHW, single input channel
    y = jax.jit(forward)(x, params)
    jax.block_until_ready(y)
    assert y.shape == (2, 1, 64, 64), y.shape
    assert bool(jnp.all(jnp.isfinite(y)))
    assert bool(jnp.all((y >= 0.0) & (y <= 1.0)))              # sigmoid output range
    print("KERNEL_OK")
</pallas_src>

<mosaic_0001>
module attributes {stable_mosaic.version = 11 : i64} {
  func.func @_enc1_kernel(%arg0: i32, %arg1: memref<4x256x18xbf16, #tpu.memory_space<vmem>>, %arg2: memref<18x128xbf16, #tpu.memory_space<vmem>>, %arg3: memref<1x128xf32, #tpu.memory_space<vmem>>, %arg4: memref<256x128xbf16, #tpu.memory_space<vmem>>) attributes {dimension_semantics = [#tpu.dimension_semantics<parallel>], iteration_bounds = array<i64: 1>, scalar_prefetch = 0 : i64, scratch_operands = 0 : i64, tpu.core_type = #tpu.core_type<tc>, window_params = [{transform_indices = @transform_0, window_bounds = array<i64: 4, 256, 18>}, {pipeline_mode = #tpu.pipeline_mode<synchronous>, transform_indices = @transform_1, window_bounds = array<i64: 18, 128>}, {pipeline_mode = #tpu.pipeline_mode<synchronous>, transform_indices = @transform_2, window_bounds = array<i64: 1, 128>}, {transform_indices = @transform_3, window_bounds = array<i64: 256, 128>}]} {
    %c0 = arith.constant 0 : index
    %c0_0 = arith.constant 0 : index
    %0 = vector.load %arg2[%c0, %c0_0] : memref<18x128xbf16, #tpu.memory_space<vmem>>, vector<18x128xbf16>
    %c0_1 = arith.constant 0 : index
    %c0_2 = arith.constant 0 : index
    %c0_3 = arith.constant 0 : index
    %1 = vector.load %arg1[%c0_1, %c0_2, %c0_3] : memref<4x256x18xbf16, #tpu.memory_space<vmem>>, vector<1x256x18xbf16>
    %2 = vector.shape_cast %1 : vector<1x256x18xbf16> to vector<256x18xbf16>
    %cst = arith.constant dense<0.000000e+00> : vector<256x128xf32>
    %3 = tpu.matmul %2, %0, %cst {dimension_numbers = #tpu.dot_dimension_numbers<[1], [0], [0], [1], [0, 0, 1, 1], [], []>} : vector<256x18xbf16>, vector<18x128xbf16>, vector<256x128xf32> -> vector<256x128xf32>
    %c1 = arith.constant 1 : index
    %c0_4 = arith.constant 0 : index
    %c0_5 = arith.constant 0 : index
    %4 = vector.load %arg1[%c1, %c0_4, %c0_5] : memref<4x256x18xbf16, #tpu.memory_space<vmem>>, vector<1x256x18xbf16>
    %5 = vector.shape_cast %4 : vector<1x256x18xbf16> to vector<256x18xbf16>
    %cst_6 = arith.constant dense<0.000000e+00> : vector<256x128xf32>
    %6 = tpu.matmul %5, %0, %cst_6 {dimension_numbers = #tpu.dot_dimension_numbers<[1], [0], [0], [1], [0, 0, 1, 1], [], []>} : vector<256x18xbf16>, vector<18x128xbf16>, vector<256x128xf32> -> vector<256x128xf32>
    %7 = arith.maximumf %3, %6 : vector<256x128xf32>
    %c2 = arith.constant 2 : index
    %c0_7 = arith.constant 0 : index
    %c0_8 = arith.constant 0 : index
    %8 = vector.load %arg1[%c2, %c0_7, %c0_8] : memref<4x256x18xbf16, #tpu.memory_space<vmem>>, vector<1x256x18xbf16>
    %9 = vector.shape_cast %8 : vector<1x256x18xbf16> to vector<256x18xbf16>
    %cst_9 = arith.constant dense<0.000000e+00> : vector<256x128xf32>
    %10 = tpu.matmul %9, %0, %cst_9 {dimension_numbers = #tpu.dot_dimension_numbers<[1], [0], [0], [1], [0, 0, 1, 1], [], []>} : vector<256x18xbf16>, vector<18x128xbf16>, vector<256x128xf32> -> vector<256x128xf32>
    %11 = arith.maximumf %7, %10 : vector<256x128xf32>
    %c3 = arith.constant 3 : index
    %c0_10 = arith.constant 0 : index
    %c0_11 = arith.constant 0 : index
    %12 = vector.load %arg1[%c3, %c0_10, %c0_11] : memref<4x256x18xbf16, #tpu.memory_space<vmem>>, vector<1x256x18xbf16>
    %13 = vector.shape_cast %12 : vector<1x256x18xbf16> to vector<256x18xbf16>
    %cst_12 = arith.constant dense<0.000000e+00> : vector<256x128xf32>
    %14 = tpu.matmul %13, %0, %cst_12 {dimension_numbers = #tpu.dot_dimension_numbers<[1], [0], [0], [1], [0, 0, 1, 1], [], []>} : vector<256x18xbf16>, vector<18x128xbf16>, vector<256x128xf32> -> vector<256x128xf32>
    %15 = arith.maximumf %11, %14 : vector<256x128xf32>
    %c0_13 = arith.constant 0 : index
    %c0_14 = arith.constant 0 : index
    %16 = vector.load %arg3[%c0_13, %c0_14] : memref<1x128xf32, #tpu.memory_space<vmem>>, vector<1x128xf32>
    %17 = vector.broadcast %16 : vector<1x128xf32> to vector<256x128xf32>
    %18 = arith.addf %15, %17 : vector<256x128xf32>
    %cst_15 = arith.constant 0.000000e+00 : f32
    %19 = vector.broadcast %cst_15 : f32 to vector<256x128xf32>
    %20 = arith.maximumf %18, %19 : vector<256x128xf32>
    %21 = arith.truncf %20 : vector<256x128xf32> to vector<256x128xbf16>
    %c0_16 = arith.constant 0 : index
    %c0_17 = arith.constant 0 : index
    %22 = vector.load %arg4[%c0_16, %c0_17] : memref<256x128xbf16, #tpu.memory_space<vmem>>, vector<256x128xbf16>
    tpu.vector_store %arg4[%c0_16, %c0_17], %21 {strides = array<i32>} : memref<256x128xbf16, #tpu.memory_space<vmem>>, vector<256x128xbf16>,
    return
  }
  func.func @transform_0(%arg0: i32) -> (i32, i32, i32) {
    %c0_i32 = arith.constant 0 : i32
    %c0_i32_0 = arith.constant 0 : i32
    %c0_i32_1 = arith.constant 0 : i32
    return %c0_i32, %arg0, %c0_i32_0 : i32, i32, i32
  }
  func.func @transform_1(%arg0: i32) -> (i32, i32) {
    %c0_i32 = arith.constant 0 : i32
    %c0_i32_0 = arith.constant 0 : i32
    %c0_i32_1 = arith.constant 0 : i32
    return %c0_i32, %c0_i32_0 : i32, i32
  }
  func.func @transform_2(%arg0: i32) -> (i32, i32) {
    %c0_i32 = arith.constant 0 : i32
    %c0_i32_0 = arith.constant 0 : i32
    %c0_i32_1 = arith.constant 0 : i32
    return %c0_i32, %c0_i32_0 : i32, i32
  }
  func.func @transform_3(%arg0: i32) -> (i32, i32) {
    %c0_i32 = arith.constant 0 : i32
    %c0_i32_0 = arith.constant 0 : i32
    return %arg0, %c0_i32 : i32, i32
  }
}

module attributes {stable_mosaic.version = 11 : i64} {
  func.func @_enc2_dec_kernel(%arg0: i32, %arg1: memref<4x256x576xbf16, #tpu.memory_space<vmem>>, %arg2: memref<576x128xbf16, #tpu.memory_space<vmem>>, %arg3: memref<1x128xf32, #tpu.memory_space<vmem>>, %arg4: memref<128x256xbf16, #tpu.memory_space<vmem>>, %arg5: memref<1x256xf32, #tpu.memory_space<vmem>>, %arg6: memref<256x512xbf16, #tpu.memory_space<vmem>>, %arg7: memref<1x512xf32, #tpu.memory_space<vmem>>, %arg8: memref<512x1024xbf16, #tpu.memory_space<vmem>>, %arg9: memref<1x1024xf32, #tpu.memory_space<vmem>>, %arg10: memref<1024x256xbf16, #tpu.memory_space<vmem>>, %arg11: memref<1x256xf32, #tpu.memory_space<vmem>>, %arg12: memref<256x256xbf16, #tpu.memory_space<vmem>>) attributes {dimension_semantics = [#tpu.dimension_semantics<parallel>], iteration_bounds = array<i64: 1>, scalar_prefetch = 0 : i64, scratch_operands = 0 : i64, tpu.core_type = #tpu.core_type<tc>, window_params = [{transform_indices = @transform_0, window_bounds = array<i64: 4, 256, 576>}, {pipeline_mode = #tpu.pipeline_mode<synchronous>, transform_indices = @transform_1, window_bounds = array<i64: 576, 128>}, {pipeline_mode = #tpu.pipeline_mode<synchronous>, transform_indices = @transform_2, window_bounds = array<i64: 1, 128>}, {pipeline_mode = #tpu.pipeline_mode<synchronous>, transform_indices = @transform_3, window_bounds = array<i64: 128, 256>}, {pipeline_mode = #tpu.pipeline_mode<synchronous>, transform_indices = @transform_4, window_bounds = array<i64: 1, 256>}, {pipeline_mode = #tpu.pipeline_mode<synchronous>, transform_indices = @transform_5, window_bounds = array<i64: 256, 512>}, {pipeline_mode = #tpu.pipeline_mode<synchronous>, transform_indices = @transform_6, window_bounds = array<i64: 1, 512>}, {pipeline_mode = #tpu.pipeline_mode<synchronous>, transform_indices = @transform_7, window_bounds = array<i64: 512, 1024>}, {pipeline_mode = #tpu.pipeline_mode<synchronous>, transform_indices = @transform_8, window_bounds = array<i64: 1, 1024>}, {pipeline_mode = #tpu.pipeline_mode<synchronous>, transform_indices = @transform_9, window_bounds = array<i64: 1024, 256>}, {pipeline_mode = #tpu.pipeline_mode<synchronous>, transform_indices = @transform_10, window_bounds = array<i64: 1, 256>}, {transform_indices = @transform_11, window_bounds = array<i64: 256, 256>}]} {
    %c0 = arith.constant 0 : index
    %c0_0 = arith.constant 0 : index
    %0 = vector.load %arg2[%c0, %c0_0] : memref<576x128xbf16, #tpu.memory_space<vmem>>, vector<576x128xbf16>
    %c0_1 = arith.constant 0 : index
    %c0_2 = arith.constant 0 : index
    %c0_3 = arith.constant 0 : index
    %1 = vector.load %arg1[%c0_1, %c0_2, %c0_3] : memref<4x256x576xbf16, #tpu.memory_space<vmem>>, vector<1x256x576xbf16>
    %2 = vector.shape_cast %1 : vector<1x256x576xbf16> to vector<256x576xbf16>
    %cst = arith.constant dense<0.000000e+00> : vector<256x128xf32>
    %3 = tpu.matmul %2, %0, %cst {dimension_numbers = #tpu.dot_dimension_numbers<[1], [0], [0], [1], [0, 0, 1, 1], [], []>} : vector<256x576xbf16>, vector<576x128xbf16>, vector<256x128xf32> -> vector<256x128xf32>
    %c1 = arith.constant 1 : index
    %c0_4 = arith.constant 0 : index
    %c0_5 = arith.constant 0 : index
    %4 = vector.load %arg1[%c1, %c0_4, %c0_5] : memref<4x256x576xbf16, #tpu.memory_space<vmem>>, vector<1x256x576xbf16>
    %5 = vector.shape_cast %4 : vector<1x256x576xbf16> to vector<256x576xbf16>
    %cst_6 = arith.constant dense<0.000000e+00> : vector<256x128xf32>
    %6 = tpu.matmul %5, %0, %cst_6 {dimension_numbers = #tpu.dot_dimension_numbers<[1], [0], [0], [1], [0, 0, 1, 1], [], []>} : vector<256x576xbf16>, vector<576x128xbf16>, vector<256x128xf32> -> vector<256x128xf32>
    %7 = arith.maximumf %3, %6 : vector<256x128xf32>
    %c2 = arith.constant 2 : index
    %c0_7 = arith.constant 0 : index
    %c0_8 = arith.constant 0 : index
    %8 = vector.load %arg1[%c2, %c0_7, %c0_8] : memref<4x256x576xbf16, #tpu.memory_space<vmem>>, vector<1x256x576xbf16>
    %9 = vector.shape_cast %8 : vector<1x256x576xbf16> to vector<256x576xbf16>
    %cst_9 = arith.constant dense<0.000000e+00> : vector<256x128xf32>
    %10 = tpu.matmul %9, %0, %cst_9 {dimension_numbers = #tpu.dot_dimension_numbers<[1], [0], [0], [1], [0, 0, 1, 1], [], []>} : vector<256x576xbf16>, vector<576x128xbf16>, vector<256x128xf32> -> vector<256x128xf32>
    %11 = arith.maximumf %7, %10 : vector<256x128xf32>
    %c3 = arith.constant 3 : index
    %c0_10 = arith.constant 0 : index
    %c0_11 = arith.constant 0 : index
    %12 = vector.load %arg1[%c3, %c0_10, %c0_11] : memref<4x256x576xbf16, #tpu.memory_space<vmem>>, vector<1x256x576xbf16>
    %13 = vector.shape_cast %12 : vector<1x256x576xbf16> to vector<256x576xbf16>
    %cst_12 = arith.constant dense<0.000000e+00> : vector<256x128xf32>
    %14 = tpu.matmul %13, %0, %cst_12 {dimension_numbers = #tpu.dot_dimension_numbers<[1], [0], [0], [1], [0, 0, 1, 1], [], []>} : vector<256x576xbf16>, vector<576x128xbf16>, vector<256x128xf32> -> vector<256x128xf32>
    %15 = arith.maximumf %11, %14 : vector<256x128xf32>
    %c0_13 = arith.constant 0 : index
    %c0_14 = arith.constant 0 : index
    %16 = vector.load %arg3[%c0_13, %c0_14] : memref<1x128xf32, #tpu.memory_space<vmem>>, vector<1x128xf32>
    %17 = vector.broadcast %16 : vector<1x128xf32> to vector<256x128xf32>
    %18 = arith.addf %15, %17 : vector<256x128xf32>
    %cst_15 = arith.constant 0.000000e+00 : f32
    %19 = vector.broadcast %cst_15 : f32 to vector<256x128xf32>
    %20 = arith.maximumf %18, %19 : vector<256x128xf32>
    %21 = arith.truncf %20 : vector<256x128xf32> to vector<256x128xbf16>
    %c0_16 = arith.constant 0 : index
    %c0_17 = arith.constant 0 : index
    %22 = vector.load %arg4[%c0_16, %c0_17] : memref<128x256xbf16, #tpu.memory_space<vmem>>, vector<128x256xbf16>
    %cst_18 = arith.constant dense<0.000000e+00> : vector<256x256xf32>
    %23 = tpu.matmul %21, %22, %cst_18 {dimension_numbers = #tpu.dot_dimension_numbers<[1], [0], [0], [1], [0, 0, 1, 1], [], []>} : vector<256x128xbf16>, vector<128x256xbf16>, vector<256x256xf32> -> vector<256x256xf32>
    %c0_19 = arith.constant 0 : index
    %c0_20 = arith.constant 0 : index
    %24 = vector.load %arg5[%c0_19, %c0_20] : memref<1x256xf32, #tpu.memory_space<vmem>>, vector<1x256xf32>
    %25 = vector.broadcast %24 : vector<1x256xf32> to vector<256x256xf32>
    %26 = arith.addf %23, %25 : vector<256x256xf32>
    %cst_21 = arith.constant 0.000000e+00 : f32
    %27 = vector.broadcast %cst_21 : f32 to vector<256x256xf32>
    %28 = arith.maximumf %26, %27 : vector<256x256xf32>
    %29 = arith.truncf %28 : vector<256x256xf32> to vector<256x256xbf16>
    %c0_22 = arith.constant 0 : index
    %c0_23 = arith.constant 0 : index
    %30 = vector.load %arg6[%c0_22, %c0_23] : memref<256x512xbf16, #tpu.memory_space<vmem>>, vector<256x512xbf16>
    %cst_24 = arith.constant dense<0.000000e+00> : vector<256x512xf32>
    %31 = tpu.matmul %29, %30, %cst_24 {dimension_numbers = #tpu.dot_dimension_numbers<[1], [0], [0], [1], [0, 0, 1, 1], [], []>} : vector<256x256xbf16>, vector<256x512xbf16>, vector<256x512xf32> -> vector<256x512xf32>
    %c0_25 = arith.constant 0 : index
    %c0_26 = arith.constant 0 : index
    %32 = vector.load %arg7[%c0_25, %c0_26] : memref<1x512xf32, #tpu.memory_space<vmem>>, vector<1x512xf32>
    %33 = vector.broadcast %32 : vector<1x512xf32> to vector<256x512xf32>
    %34 = arith.addf %31, %33 : vector<256x512xf32>
    %cst_27 = arith.constant 0.000000e+00 : f32
    %35 = vector.broadcast %cst_27 : f32 to vector<256x512xf32>
    %36 = arith.maximumf %34, %35 : vector<256x512xf32>
    %37 = arith.truncf %36 : vector<256x512xf32> to vector<256x512xbf16>
    %c0_28 = arith.constant 0 : index
    %c0_29 = arith.constant 0 : index
    %38 = vector.load %arg8[%c0_28, %c0_29] : memref<512x1024xbf16, #tpu.memory_space<vmem>>, vector<512x1024xbf16>
    %cst_30 = arith.constant dense<0.000000e+00> : vector<256x1024xf32>
    %39 = tpu.matmul %37, %38, %cst_30 {dimension_numbers = #tpu.dot_dimension_numbers<[1], [0], [0], [1], [0, 0, 1, 1], [], []>} : vector<256x512xbf16>, vector<512x1024xbf16>, vector<256x1024xf32> -> vector<256x1024xf32>
    %c0_31 = arith.constant 0 : index
    %c0_32 = arith.constant 0 : index
    %40 = vector.load %arg9[%c0_31, %c0_32] : memref<1x1024xf32, #tpu.memory_space<vmem>>, vector<1x1024xf32>
    %41 = vector.broadcast %40 : vector<1x1024xf32> to vector<256x1024xf32>
    %42 = arith.addf %39, %41 : vector<256x1024xf32>
    %cst_33 = arith.constant 0.000000e+00 : f32
    %43 = vector.broadcast %cst_33 : f32 to vector<256x1024xf32>
    %44 = arith.maximumf %42, %43 : vector<256x1024xf32>
    %45 = arith.truncf %44 : vector<256x1024xf32> to vector<256x1024xbf16>
    %c0_34 = arith.constant 0 : index
    %c0_35 = arith.constant 0 : index
    %46 = vector.load %arg10[%c0_34, %c0_35] : memref<1024x256xbf16, #tpu.memory_space<vmem>>, vector<1024x256xbf16>
    %cst_36 = arith.constant dense<0.000000e+00> : vector<256x256xf32>
    %47 = tpu.matmul %45, %46, %cst_36 {dimension_numbers = #tpu.dot_dimension_numbers<[1], [0], [0], [1], [0, 0, 1, 1], [], []>} : vector<256x1024xbf16>, vector<1024x256xbf16>, vector<256x256xf32> -> vector<256x256xf32>
    %c0_37 = arith.constant 0 : index
    %c0_38 = arith.constant 0 : index
    %48 = vector.load %arg11[%c0_37, %c0_38] : memref<1x256xf32, #tpu.memory_space<vmem>>, vector<1x256xf32>
    %49 = vector.broadcast %48 : vector<1x256xf32> to vector<256x256xf32>
    %50 = arith.addf %47, %49 : vector<256x256xf32>
    %51 = arith.negf %50 : vector<256x256xf32>
    %52 = math.exp %51 : vector<256x256xf32>
    %cst_39 = arith.constant 1.000000e+00 : f32
    %53 = vector.broadcast %cst_39 : f32 to vector<256x256xf32>
    %54 = arith.addf %53, %52 : vector<256x256xf32>
    %55 = arith.divf %53, %54 : vector<256x256xf32>
    %56 = arith.truncf %55 : vector<256x256xf32> to vector<256x256xbf16>
    %c0_40 = arith.constant 0 : index
    %c0_41 = arith.constant 0 : index
    %57 = vector.load %arg12[%c0_40, %c0_41] : memref<256x256xbf16, #tpu.memory_space<vmem>>, vector<256x256xbf16>
    tpu.vector_store %arg12[%c0_40, %c0_41], %56 {strides = array<i32>} : memref<256x256xbf16, #tpu.memory_space<vmem>>, vector<256x256xbf16>,
    return
  }
  func.func @transform_0(%arg0: i32) -> (i32, i32, i32) {
    %c0_i32 = arith.constant 0 : i32
    %c0_i32_0 = arith.constant 0 : i32
    %c0_i32_1 = arith.constant 0 : i32
    return %c0_i32, %arg0, %c0_i32_0 : i32, i32, i32
  }
  func.func @transform_1(%arg0: i32) -> (i32, i32) {
    %c0_i32 = arith.constant 0 : i32
    %c0_i32_0 = arith.constant 0 : i32
    %c0_i32_1 = arith.constant 0 : i32
    return %c0_i32, %c0_i32_0 : i32, i32
  }
  func.func @transform_2(%arg0: i32) -> (i32, i32) {
    %c0_i32 = arith.constant 0 : i32
    %c0_i32_0 = arith.constant 0 : i32
    %c0_i32_1 = arith.constant 0 : i32
    return %c0_i32, %c0_i32_0 : i32, i32
  }
  func.func @transform_3(%arg0: i32) -> (i32, i32) {
    %c0_i32 = arith.constant 0 : i32
    %c0_i32_0 = arith.constant 0 : i32
    %c0_i32_1 = arith.constant 0 : i32
    return %c0_i32, %c0_i32_0 : i32, i32
  }
  func.func @transform_4(%arg0: i32) -> (i32, i32) {
    %c0_i32 = arith.constant 0 : i32
    %c0_i32_0 = arith.constant 0 : i32
    %c0_i32_1 = arith.constant 0 : i32
    return %c0_i32, %c0_i32_0 : i32, i32
  }
  func.func @transform_5(%arg0: i32) -> (i32, i32) {
    %c0_i32 = arith.constant 0 : i32
    %c0_i32_0 = arith.constant 0 : i32
    %c0_i32_1 = arith.constant 0 : i32
    return %c0_i32, %c0_i32_0 : i32, i32
  }
  func.func @transform_6(%arg0: i32) -> (i32, i32) {
    %c0_i32 = arith.constant 0 : i32
    %c0_i32_0 = arith.constant 0 : i32
    %c0_i32_1 = arith.constant 0 : i32
    return %c0_i32, %c0_i32_0 : i32, i32
  }
  func.func @transform_7(%arg0: i32) -> (i32, i32) {
    %c0_i32 = arith.constant 0 : i32
    %c0_i32_0 = arith.constant 0 : i32
    %c0_i32_1 = arith.constant 0 : i32
    return %c0_i32, %c0_i32_0 : i32, i32
  }
  func.func @transform_8(%arg0: i32) -> (i32, i32) {
    %c0_i32 = arith.constant 0 : i32
    %c0_i32_0 = arith.constant 0 : i32
    %c0_i32_1 = arith.constant 0 : i32
    return %c0_i32, %c0_i32_0 : i32, i32
  }
  func.func @transform_9(%arg0: i32) -> (i32, i32) {
    %c0_i32 = arith.constant 0 : i32
    %c0_i32_0 = arith.constant 0 : i32
    %c0_i32_1 = arith.constant 0 : i32
    return %c0_i32, %c0_i32_0 : i32, i32
  }
  func.func @transform_10(%arg0: i32) -> (i32, i32) {
    %c0_i32 = arith.constant 0 : i32
    %c0_i32_0 = arith.constant 0 : i32
    %c0_i32_1 = arith.constant 0 : i32
    return %c0_i32, %c0_i32_0 : i32, i32
  }
  func.func @transform_11(%arg0: i32) -> (i32, i32) {
    %c0_i32 = arith.constant 0 : i32
    %c0_i32_0 = arith.constant 0 : i32
    return %arg0, %c0_i32 : i32, i32
  }
}

</mosaic_0001>

<llo_original>
// kernel: forward.2
$region0: #{forward.2}
  #allocation0 [shape = 'u32[]', space=smem, size = 0x4, offset = 0x4, fixed_abs, tag = 'smem constant byte address 0x4 - core index']
  #allocation1 [shape = 'u32[144,128]{1,0:T(1,128)}', space=vmem, size = 0x12000, scoped, tag = 'internal scratch']
  %s0 = inlined_call_operand.vmem [shape: bf16[4,256,18], index: 0, kind: input, shape index: {}]
  %s1 = inlined_call_operand.vmem [shape: bf16[18,128], index: 1, kind: input, shape index: {}]
  %s2 = inlined_call_operand.vmem [shape: f32[1,128], index: 2, kind: input, shape index: {}]
  %s3 = inlined_call_operand.vmem [shape: bf16[256,128], index: 3, kind: output, shape index: {}]
  %s4 = sld [smem:[#allocation0]]
  $region22: #{forward.2} parent=0
    _
  %s6 = ssub.s32 1, %s4
  %s7 = scalar_select 0, %s6, %s4
  // Predicated region
  $region2: #{forward.2} parent=0 // pred_check
    _
  $region3: #{forward.2} parent=0 // pred_check_branch
    %9 = sbr.rel (0) target = $region5
  $region4: #{forward.2} parent=0 // pred_region
    _
  $region5: #{forward.2} parent=0 // pred_fallthru
    _
  // Predicated region
  $region6: #{forward.2} parent=0 // pred_check
    _
  $region7: #{forward.2} parent=0 // pred_check_branch
    %11 = sbr.rel (0) target = $region9
  $region8: #{forward.2} parent=0 // pred_region
    _
  $region9: #{forward.2} parent=0 // pred_fallthru
    _
  // Predicated region
  $region10: #{forward.2} parent=0 // pred_check
    _
  $region11: #{forward.2} parent=0 // pred_check_branch
    %13 = sbr.rel (0) target = $region13
  $region12: #{forward.2} parent=0 // pred_region
    _
  $region13: #{forward.2} parent=0 // pred_fallthru
    _
  %v15 = vld [vmem:[%s1] sm:$0xf]
  %v16 = vld [vmem:[%s1 + $0x4] sm:$0xf]
  %v17 = vld [vmem:[%s1 + $0x8] sm:$0x1]
  %v18 = vld [vmem:[%s0] sm:$0xf]
  %v19 = vld [vmem:[%s0 + $0x4] sm:$0xf]
  %v20 = vld [vmem:[%s0 + $0x8] sm:$0xf]
  %v21 = vld [vmem:[%s0 + $0xc] sm:$0xf]
  %v22 = vld [vmem:[%s0 + $0x10] sm:$0xf]
  %v23 = vld [vmem:[%s0 + $0x14] sm:$0xf]
  %v24 = vld [vmem:[%s0 + $0x18] sm:$0xf]
  %v25 = vld [vmem:[%s0 + $0x1c] sm:$0xf]
  %v26 = vld [vmem:[%s0 + $0x20] sm:$0xf]
  %v27 = vld [vmem:[%s0 + $0x24] sm:$0xf]
  %v28 = vld [vmem:[%s0 + $0x28] sm:$0xf]
  %v29 = vld [vmem:[%s0 + $0x2c] sm:$0xf]
  %v30 = vld [vmem:[%s0 + $0x30] sm:$0xf]
  %v31 = vld [vmem:[%s0 + $0x34] sm:$0xf]
  %v32 = vld [vmem:[%s0 + $0x38] sm:$0xf]
  %v33 = vld [vmem:[%s0 + $0x3c] sm:$0xf]
  %v34 = vld [vmem:[%s0 + $0x40] sm:$0xf]
  %v35 = vld [vmem:[%s0 + $0x44] sm:$0xf]
  %v36 = vld [vmem:[%s0 + $0x48] sm:$0xf]
  %v37 = vld [vmem:[%s0 + $0x4c] sm:$0xf]
  %v38 = vld [vmem:[%s0 + $0x50] sm:$0xf]
  %v39 = vld [vmem:[%s0 + $0x54] sm:$0xf]
  %v40 = vld [vmem:[%s0 + $0x58] sm:$0xf]
  %v41 = vld [vmem:[%s0 + $0x5c] sm:$0xf]
  %v42 = vld [vmem:[%s0 + $0x60] sm:$0xf]
  %v43 = vld [vmem:[%s0 + $0x64] sm:$0xf]
  %v44 = vld [vmem:[%s0 + $0x68] sm:$0xf]
  %v45 = vld [vmem:[%s0 + $0x6c] sm:$0xf]
  %v46 = vld [vmem:[%s0 + $0x70] sm:$0xf]
  %v47 = vld [vmem:[%s0 + $0x74] sm:$0xf]
  %v48 = vld [vmem:[%s0 + $0x78] sm:$0xf]
  %v49 = vld [vmem:[%s0 + $0x7c] sm:$0xf]
  %v82 = vunpack.c.l.b16 %v18
  %v83 = vunpack.c.l.b16 %v19
  %v84 = vunpack.c.l.b16 %v20
  %v85 = vunpack.c.l.b16 %v21
  %v86 = vunpack.c.l.b16 %v22
  %v87 = vunpack.c.l.b16 %v23
  %v88 = vunpack.c.l.b16 %v24
  %v89 = vunpack.c.l.b16 %v25
  %v90 = vunpack.c.l.b16 %v26
  %v91 = vunpack.c.l.b16 %v27
  %v92 = vunpack.c.l.b16 %v28
  %v93 = vunpack.c.l.b16 %v29
  %v94 = vunpack.c.l.b16 %v30
  %v95 = vunpack.c.l.b16 %v31
  %v96 = vunpack.c.l.b16 %v32
  %v97 = vunpack.c.l.b16 %v33
  %v98 = vunpack.c.l.b16 %v34
  %v99 = vunpack.c.l.b16 %v35
  %v100 = vunpack.c.l.b16 %v36
  %v101 = vunpack.c.l.b16 %v37
  %v102 = vunpack.c.l.b16 %v38
  %v103 = vunpack.c.l.b16 %v39
  %v104 = vunpack.c.l.b16 %v40
  %v105 = vunpack.c.l.b16 %v41
  %v106 = vunpack.c.l.b16 %v42
  %v107 = vunpack.c.l.b16 %v43
  %v108 = vunpack.c.l.b16 %v44
  %v109 = vunpack.c.l.b16 %v45
  %v110 = vunpack.c.l.b16 %v46
  %v111 = vunpack.c.l.b16 %v47
  %v112 = vunpack.c.l.b16 %v48
  %v113 = vunpack.c.l.b16 %v49
  %v114 = vpack.c.b16 %v83, %v82
  %v115 = vpack.c.b16 %v85, %v84
  %v116 = vpack.c.b16 %v87, %v86
  %v117 = vpack.c.b16 %v89, %v88
  %v118 = vpack.c.b16 %v91, %v90
  %v119 = vpack.c.b16 %v93, %v92
  %v120 = vpack.c.b16 %v95, %v94
  %v121 = vpack.c.b16 %v97, %v96
  %v122 = vpack.c.b16 %v99, %v98
  %v123 = vpack.c.b16 %v101, %v100
  %v124 = vpack.c.b16 %v103, %v102
  %v125 = vpack.c.b16 %v105, %v104
  %v126 = vpack.c.b16 %v107, %v106
  %v127 = vpack.c.b16 %v109, %v108
  %v128 = vpack.c.b16 %v111, %v110
  %v129 = vpack.c.b16 %v113, %v112
  %v133 = vunpack.c.l.b16 %v15
  %v134 = vunpack.c.l.b16 %v16
  %v135 = vunpack.c.l.b16 %v17
  %v136 = vpack.c.b16 %v134, %v133
  %v137 = vpack.c.b16 %v135, %v135
  %vm139 = vcmask 146432
  %v141 = vsel %vm139, %v114, 0
  %v144 = vsel %vm139, %v115, 0
  %v147 = vsel %vm139, %v116, 0
  %v150 = vsel %vm139, %v117, 0
  %v153 = vsel %vm139, %v118, 0
  %v156 = vsel %vm139, %v119, 0
  %v159 = vsel %vm139, %v120, 0
  %v162 = vsel %vm139, %v121, 0
  %v165 = vsel %vm139, %v122, 0
  %v168 = vsel %vm139, %v123, 0
  %v171 = vsel %vm139, %v124, 0
  %v174 = vsel %vm139, %v125, 0
  %v177 = vsel %vm139, %v126, 0
  %v180 = vsel %vm139, %v127, 0
  %v183 = vsel %vm139, %v128, 0
  %v186 = vsel %vm139, %v129, 0
  %vm188 = vcmask 1040384
  %v190 = vsel %vm188, %v137, 0
  %192 = vmatprep.subr.bf16.mxu0 0
  %193 = vmatpush1.bf16.msra.mxu0 %v136
  %194 = vmatprep.subr.bf16.mxu0 0
  %195 = vmatpush1.bf16.msra.mxu0 %v190
  %196 = vmatprep.subr.bf16.mxu0 0
  %197 = vmatpush1.bf16.msra.mxu0 0
  %198 = vmatprep.subr.bf16.mxu0 0
  %199 = vmatpush1.bf16.msra.mxu0 0
  %200 = vmatprep.subr.bf16.mxu0 0
  %201 = vmatpush1.bf16.msra.mxu0 0
  %202 = vmatprep.subr.bf16.mxu0 0
  %203 = vmatpush1.bf16.msra.mxu0 0
  %204 = vmatprep.subr.bf16.mxu0 0
  %205 = vmatpush1.bf16.msra.mxu0 0
  %206 = vmatprep.subr.bf16.mxu0 0
  %207 = vmatpush1.bf16.msra.mxu0 0
  %208 = vmatprep.subr.bf16.mxu0 0
  %209 = vmatpush1.bf16.msra.mxu0 0
  %210 = vmatprep.subr.bf16.mxu0 0
  %211 = vmatpush1.bf16.msra.mxu0 0
  %212 = vmatprep.subr.bf16.mxu0 0
  %213 = vmatpush1.bf16.msra.mxu0 0
  %214 = vmatprep.subr.bf16.mxu0 0
  %215 = vmatpush1.bf16.msra.mxu0 0
  %216 = vmatprep.subr.bf16.mxu0 0
  %217 = vmatpush1.bf16.msra.mxu0 0
  %218 = vmatprep.subr.bf16.mxu0 0
  %219 = vmatpush1.bf16.msra.mxu0 0
  %220 = vmatprep.subr.bf16.mxu0 0
  %221 = vmatpush1.bf16.msra.mxu0 0
  %222 = vmatprep.subr.bf16.mxu0 0
  %223 = vmatpush1.bf16.msra.mxu0 0
  %224 = vmatprep.mubr.bf16.mxu0 0
  %225 = vmatmul.mubr.bf16.gmra.mrb[0].mxu0 %v141
  %v226 = vpop.f32.mrb[0].mxu0
  %v227 = vadd.f32 0.0, %v226
  %v228 = vpop.f32.mrb[0].mxu0
  %v229 = vpop.f32.mrb[0].mxu0
  %v230 = vadd.f32 0.0, %v229
  %v231 = vpop.f32.mrb[0].mxu0
  %232 = vmatprep.mubr.bf16.mxu0 0
  %233 = vmatmul.mubr.bf16.gmra.mrb[0].mxu0 %v144
  %v234 = vpop.f32.mrb[0].mxu0
  %v235 = vadd.f32 0.0, %v234
  %v236 = vpop.f32.mrb[0].mxu0
  %v237 = vpop.f32.mrb[0].mxu0
  %v238 = vadd.f32 0.0, %v237
  %v239 = vpop.f32.mrb[0].mxu0
  %240 = vmatprep.mubr.bf16.mxu0 0
  %241 = vmatmul.mubr.bf16.gmra.mrb[0].mxu0 %v147
  %v242 = vpop.f32.mrb[0].mxu0
  %v243 = vadd.f32 0.0, %v242
  %v244 = vpop.f32.mrb[0].mxu0
  %v245 = vpop.f32.mrb[0].mxu0
  %v246 = vadd.f32 0.0, %v245
  %v247 = vpop.f32.mrb[0].mxu0
  %248 = vmatprep.mubr.bf16.mxu0 0
  %249 = vmatmul.mubr.bf16.gmra.mrb[0].mxu0 %v150
  %v250 = vpop.f32.mrb[0].mxu0
  %v251 = vadd.f32 0.0, %v250
  %v252 = vpop.f32.mrb[0].mxu0
  %v253 = vpop.f32.mrb[0].mxu0
  %v254 = vadd.f32 0.0, %v253
  %v255 = vpop.f32.mrb[0].mxu0
  %256 = vmatprep.mubr.bf16.mxu0 0
  %257 = vmatmul.mubr.bf16.gmra.mrb[0].mxu0 %v153
  %v258 = vpop.f32.mrb[0].mxu0
  %v259 = vadd.f32 0.0, %v258
  %v260 = vpop.f32.mrb[0].mxu0
  %v261 = vpop.f32.mrb[0].mxu0
  %v262 = vadd.f32 0.0, %v261
  %v263 = vpop.f32.mrb[0].mxu0
  %264 = vmatprep.mubr.bf16.mxu0 0
  %265 = vmatmul.mubr.bf16.gmra.mrb[0].mxu0 %v156
  %v266 = vpop.f32.mrb[0].mxu0
  %v267 = vadd.f32 0.0, %v266
  %v268 = vpop.f32.mrb[0].mxu0
  %v269 = vpop.f32.mrb[0].mxu0
  %v270 = vadd.f32 0.0, %v269
  %v271 = vpop.f32.mrb[0].mxu0
  %272 = vmatprep.mubr.bf16.mxu0 0
  %273 = vmatmul.mubr.bf16.gmra.mrb[0].mxu0 %v159
  %v274 = vpop.f32.mrb[0].mxu0
  %v275 = vadd.f32 0.0, %v274
  %v276 = vpop.f32.mrb[0].mxu0
  %v277 = vpop.f32.mrb[0].mxu0
  %v278 = vadd.f32 0.0, %v277
  %v279 = vpop.f32.mrb[0].mxu0
  %280 = vmatprep.mubr.bf16.mxu0 0
  %281 = vmatmul.mubr.bf16.gmra.mrb[0].mxu0 %v162
  %v282 = vpop.f32.mrb[0].mxu0
  %v283 = vadd.f32 0.0, %v282
  %v284 = vpop.f32.mrb[0].mxu0
  %v285 = vpop.f32.mrb[0].mxu0
  %v286 = vadd.f32 0.0, %v285
  %v287 = vpop.f32.mrb[0].mxu0
  %288 = vmatprep.mubr.bf16.mxu0 0
  %289 = vmatmul.mubr.bf16.gmra.mrb[0].mxu0 %v165
  %v290 = vpop.f32.mrb[0].mxu0
  %v291 = vadd.f32 0.0, %v290
  %v292 = vpop.f32.mrb[0].mxu0
  %v293 = vpop.f32.mrb[0].mxu0
  %v294 = vadd.f32 0.0, %v293
  %v295 = vpop.f32.mrb[0].mxu0
  %296 = vmatprep.mubr.bf16.mxu0 0
  %297 = vmatmul.mubr.bf16.gmra.mrb[0].mxu0 %v168
  %v298 = vpop.f32.mrb[0].mxu0
  %v299 = vadd.f32 0.0, %v298
  %v300 = vpop.f32.mrb[0].mxu0
  %v301 = vpop.f32.mrb[0].mxu0
  %v302 = vadd.f32 0.0, %v301
  %v303 = vpop.f32.mrb[0].mxu0
  %304 = vmatprep.mubr.bf16.mxu0 0
  %305 = vmatmul.mubr.bf16.gmra.mrb[0].mxu0 %v171
  %v306 = vpop.f32.mrb[0].mxu0
  %v307 = vadd.f32 0.0, %v306
  %v308 = vpop.f32.mrb[0].mxu0
  %v309 = vpop.f32.mrb[0].mxu0
  %v310 = vadd.f32 0.0, %v309
  %v311 = vpop.f32.mrb[0].mxu0
  %312 = vmatprep.mubr.bf16.mxu0 0
  %313 = vmatmul.mubr.bf16.gmra.mrb[0].mxu0 %v174
  %v314 = vpop.f32.mrb[0].mxu0
  %v315 = vadd.f32 0.0, %v314
  %v316 = vpop.f32.mrb[0].mxu0
  %v317 = vpop.f32.mrb[0].mxu0
  %v318 = vadd.f32 0.0, %v317
  %v319 = vpop.f32.mrb[0].mxu0
  %320 = vmatprep.mubr.bf16.mxu0 0
  %321 = vmatmul.mubr.bf16.gmra.mrb[0].mxu0 %v177
  %v322 = vpop.f32.mrb[0].mxu0
  %v323 = vadd.f32 0.0, %v322
  %v324 = vpop.f32.mrb[0].mxu0
  %v325 = vpop.f32.mrb[0].mxu0
  %v326 = vadd.f32 0.0, %v325
  %v327 = vpop.f32.mrb[0].mxu0
  %328 = vmatprep.mubr.bf16.mxu0 0
  %329 = vmatmul.mubr.bf16.gmra.mrb[0].mxu0 %v180
  %v330 = vpop.f32.mrb[0].mxu0
  %v331 = vadd.f32 0.0, %v330
  %v332 = vpop.f32.mrb[0].mxu0
  %v333 = vpop.f32.mrb[0].mxu0
  %v334 = vadd.f32 0.0, %v333
  %v335 = vpop.f32.mrb[0].mxu0
  %336 = vmatprep.mubr.bf16.mxu0 0
  %337 = vmatmul.mubr.bf16.gmra.mrb[0].mxu0 %v183
  %v338 = vpop.f32.mrb[0].mxu0
  %v339 = vadd.f32 0.0, %v338
  %v340 = vpop.f32.mrb[0].mxu0
  %v341 = vpop.f32.mrb[0].mxu0
  %v342 = vadd.f32 0.0, %v341
  %v343 = vpop.f32.mrb[0].mxu0
  %344 = vmatprep.mubr.bf16.mxu0 0
  %345 = vmatmul.mubr.bf16.gmra.mrb[0].mxu0 %v186
  %v346 = vpop.f32.mrb[0].mxu0
  %v347 = vadd.f32 0.0, %v346
  %v348 = vpop.f32.mrb[0].mxu0
  %v349 = vpop.f32.mrb[0].mxu0
  %v350 = vadd.f32 0.0, %v349
  %v351 = vpop.f32.mrb[0].mxu0
  %352 = vdwg.mxu0
  %s353 = scalar_lea.vmem %s0, 128
  %v354 = vld [vmem:[%s353] sm:$0xf]
  %v355 = vld [vmem:[%s353 + $0x4] sm:$0xf]
  %v356 = vld [vmem:[%s353 + $0x8] sm:$0xf]
  %v357 = vld [vmem:[%s353 + $0xc] sm:$0xf]
  %v358 = vld [vmem:[%s353 + $0x10] sm:$0xf]
  %v359 = vld [vmem:[%s353 + $0x14] sm:$0xf]
  %v360 = vld [vmem:[%s353 + $0x18] sm:$0xf]
  %v361 = vld [vmem:[%s353 + $0x1c] sm:$0xf]
  %v362 = vld [vmem:[%s353 + $0x20] sm:$0xf]
  %v363 = vld [vmem:[%s353 + $0x24] sm:$0xf]
  %v364 = vld [vmem:[%s353 + $0x28] sm:$0xf]
  %v365 = vld [vmem:[%s353 + $0x2c] sm:$0xf]
  %v366 = vld [vmem:[%s353 + $0x30] sm:$0xf]
  %v367 = vld [vmem:[%s353 + $0x34] sm:$0xf]
  %v368 = vld [vmem:[%s353 + $0x38] sm:$0xf]
  %v369 = vld [vmem:[%s353 + $0x3c] sm:$0xf]
  %v370 = vld [vmem:[%s353 + $0x40] sm:$0xf]
  %v371 = vld [vmem:[%s353 + $0x44] sm:$0xf]
  %v372 = vld [vmem:[%s353 + $0x48] sm:$0xf]
  %v373 = vld [vmem:[%s353 + $0x4c] sm:$0xf]
  %v374 = vld [vmem:[%s353 + $0x50] sm:$0xf]
  %v375 = vld [vmem:[%s353 + $0x54] sm:$0xf]
  %v376 = vld [vmem:[%s353 + $0x58] sm:$0xf]
  %v377 = vld [vmem:[%s353 + $0x5c] sm:$0xf]
  %v378 = vld [vmem:[%s353 + $0x60] sm:$0xf]
  %v379 = vld [vmem:[%s353 + $0x64] sm:$0xf]
  %v380 = vld [vmem:[%s353 + $0x68] sm:$0xf]
  %v381 = vld [vmem:[%s353 + $0x6c] sm:$0xf]
  %v382 = vld [vmem:[%s353 + $0x70] sm:$0xf]
  %v383 = vld [vmem:[%s353 + $0x74] sm:$0xf]
  %v384 = vld [vmem:[%s353 + $0x78] sm:$0xf]
  %v385 = vld [vmem:[%s353 + $0x7c] sm:$0xf]
  %v418 = vunpack.c.l.b16 %v354
  %v419 = vunpack.c.l.b16 %v355
  %v420 = vunpack.c.l.b16 %v356
  %v421 = vunpack.c.l.b16 %v357
  %v422 = vunpack.c.l.b16 %v358
  %v423 = vunpack.c.l.b16 %v359
  %v424 = vunpack.c.l.b16 %v360
  %v425 = vunpack.c.l.b16 %v361
  %v426 = vunpack.c.l.b16 %v362
  %v427 = vunpack.c.l.b16 %v363
  %v428 = vunpack.c.l.b16 %v364
  %v429 = vunpack.c.l.b16 %v365
  %v430 = vunpack.c.l.b16 %v366
  %v431 = vunpack.c.l.b16 %v367
  %v432 = vunpack.c.l.b16 %v368
  %v433 = vunpack.c.l.b16 %v369
  %v434 = vunpack.c.l.b16 %v370
  %v435 = vunpack.c.l.b16 %v371
  %v436 = vunpack.c.l.b16 %v372
  %v437 = vunpack.c.l.b16 %v373
  %v438 = vunpack.c.l.b16 %v374
  %v439 = vunpack.c.l.b16 %v375
  %v440 = vunpack.c.l.b16 %v376
  %v441 = vunpack.c.l.b16 %v377
  %v442 = vunpack.c.l.b16 %v378
  %v443 = vunpack.c.l.b16 %v379
  %v444 = vunpack.c.l.b16 %v380
  %v445 = vunpack.c.l.b16 %v381
  %v446 = vunpack.c.l.b16 %v382
  %v447 = vunpack.c.l.b16 %v383
  %v448 = vunpack.c.l.b16 %v384
  %v449 = vunpack.c.l.b16 %v385
  %v450 = vpack.c.b16 %v419, %v418
  %v451 = vpack.c.b16 %v421, %v420
  %v452 = vpack.c.b16 %v423, %v422
  %v453 = vpack.c.b16 %v425, %v424
  %v454 = vpack.c.b16 %v427, %v426
  %v455 = vpack.c.b16 %v429, %v428
  %v456 = vpack.c.b16 %v431, %v430
  %v457 = vpack.c.b16 %v433, %v432
  %v458 = vpack.c.b16 %v435, %v434
  %v459 = vpack.c.b16 %v437, %v436
  %v460 = vpack.c.b16 %v439, %v438
  %v461 = vpack.c.b16 %v441, %v440
  %v462 = vpack.c.b16 %v443, %v442
  %v463 = vpack.c.b16 %v445, %v444
  %v464 = vpack.c.b16 %v447, %v446
  %v465 = vpack.c.b16 %v449, %v448
  %v467 = vsel %vm139, %v450, 0
  %v470 = vsel %vm139, %v451, 0
  %v473 = vsel %vm139, %v452, 0
  %v476 = vsel %vm139, %v453, 0
  %v479 = vsel %vm139, %v454, 0
  %v482 = vsel %vm139, %v455, 0
  %v485 = vsel %vm139, %v456, 0
  %v488 = vsel %vm139, %v457, 0
  %v491 = vsel %vm139, %v458, 0
  %v494 = vsel %vm139, %v459, 0
  %v497 = vsel %vm139, %v460, 0
  %v500 = vsel %vm139, %v461, 0
  %v503 = vsel %vm139, %v462, 0
  %v506 = vsel %vm139, %v463, 0
  %v509 = vsel %vm139, %v464, 0
  %v512 = vsel %vm139, %v465, 0
  %514 = vmatprep.subr.bf16.mxu0 0
  %515 = vmatpush1.bf16.msra.mxu0 %v136
  %516 = vmatprep.subr.bf16.mxu0 0
  %517 = vmatpush1.bf16.msra.mxu0 %v190
  %518 = vmatprep.subr.bf16.mxu0 0
  %519 = vmatpush1.bf16.msra.mxu0 0
  %520 = vmatprep.subr.bf16.mxu0 0
  %521 = vmatpush1.bf16.msra.mxu0 0
  %522 = vmatprep.subr.bf16.mxu0 0
  %523 = vmatpush1.bf16.msra.mxu0 0
  %524 = vmatprep.subr.bf16.mxu0 0
  %525 = vmatpush1.bf16.msra.mxu0 0
  %526 = vmatprep.subr.bf16.mxu0 0
  %527 = vmatpush1.bf16.msra.mxu0 0
  %528 = vmatprep.subr.bf16.mxu0 0
  %529 = vmatpush1.bf16.msra.mxu0 0
  %530 = vmatprep.subr.bf16.mxu0 0
  %531 = vmatpush1.bf16.msra.mxu0 0
  %532 = vmatprep.subr.bf16.mxu0 0
  %533 = vmatpush1.bf16.msra.mxu0 0
  %534 = vmatprep.subr.bf16.mxu0 0
  %535 = vmatpush1.bf16.msra.mxu0 0
  %536 = vmatprep.subr.bf16.mxu0 0
  %537 = vmatpush1.bf16.msra.mxu0 0
  %538 = vmatprep.subr.bf16.mxu0 0
  %539 = vmatpush1.bf16.msra.mxu0 0
  %540 = vmatprep.subr.bf16.mxu0 0
  %541 = vmatpush1.bf16.msra.mxu0 0
  %542 = vmatprep.subr.bf16.mxu0 0
  %543 = vmatpush1.bf16.msra.mxu0 0
  %544 = vmatprep.subr.bf16.mxu0 0
  %545 = vmatpush1.bf16.msra.mxu0 0
  %546 = vmatprep.mubr.bf16.mxu0 0
  %547 = vmatmul.mubr.bf16.gmra.mrb[0].mxu0 %v467
  %v548 = vpop.f32.mrb[0].mxu0
  %v549 = vadd.f32 0.0, %v548
  %v550 = vpop.f32.mrb[0].mxu0
  %v551 = vpop.f32.mrb[0].mxu0
  %v552 = vadd.f32 0.0, %v551
  %v553 = vpop.f32.mrb[0].mxu0
  %554 = vmatprep.mubr.bf16.mxu0 0
  %555 = vmatmul.mubr.bf16.gmra.mrb[0].mxu0 %v470
  %v556 = vpop.f32.mrb[0].mxu0
  %v557 = vadd.f32 0.0, %v556
  %v558 = vpop.f32.mrb[0].mxu0
  %v559 = vpop.f32.mrb[0].mxu0
  %v560 = vadd.f32 0.0, %v559
  %v561 = vpop.f32.mrb[0].mxu0
  %562 = vmatprep.mubr.bf16.mxu0 0
  %563 = vmatmul.mubr.bf16.gmra.mrb[0].mxu0 %v473
  %v564 = vpop.f32.mrb[0].mxu0
  %v565 = vadd.f32 0.0, %v564
  %v566 = vpop.f32.mrb[0].mxu0
  %v567 = vpop.f32.mrb[0].mxu0
  %v568 = vadd.f32 0.0, %v567
  %v569 = vpop.f32.mrb[0].mxu0
  %570 = vmatprep.mubr.bf16.mxu0 0
  %571 = vmatmul.mubr.bf16.gmra.mrb[0].mxu0 %v476
  %v572 = vpop.f32.mrb[0].mxu0
  %v573 = vadd.f32 0.0, %v572
  %v574 = vpop.f32.mrb[0].mxu0
  %v575 = vpop.f32.mrb[0].mxu0
  %v576 = vadd.f32 0.0, %v575
  %v577 = vpop.f32.mrb[0].mxu0
  %578 = vmatprep.mubr.bf16.mxu0 0
  %579 = vmatmul.mubr.bf16.gmra.mrb[0].mxu0 %v479
  %v580 = vpop.f32.mrb[0].mxu0
  %v581 = vadd.f32 0.0, %v580
  %v582 = vpop.f32.mrb[0].mxu0
  %v583 = vpop.f32.mrb[0].mxu0
  %v584 = vadd.f32 0.0, %v583
  %v585 = vpop.f32.mrb[0].mxu0
  %586 = vmatprep.mubr.bf16.mxu0 0
  %587 = vmatmul.mubr.bf16.gmra.mrb[0].mxu0 %v482
  %v588 = vpop.f32.mrb[0].mxu0
  %v589 = vadd.f32 0.0, %v588
  %v590 = vpop.f32.mrb[0].mxu0
  %v591 = vpop.f32.mrb[0].mxu0
  %v592 = vadd.f32 0.0, %v591
  %v593 = vpop.f32.mrb[0].mxu0
  %594 = vmatprep.mubr.bf16.mxu0 0
  %595 = vmatmul.mubr.bf16.gmra.mrb[0].mxu0 %v485
  %v596 = vpop.f32.mrb[0].mxu0
  %v597 = vadd.f32 0.0, %v596
  %v598 = vpop.f32.mrb[0].mxu0
  %v599 = vpop.f32.mrb[0].mxu0
  %v600 = vadd.f32 0.0, %v599
  %v601 = vpop.f32.mrb[0].mxu0
  %602 = vmatprep.mubr.bf16.mxu0 0
  %603 = vmatmul.mubr.bf16.gmra.mrb[0].mxu0 %v488
  %v604 = vpop.f32.mrb[0].mxu0
  %v605 = vadd.f32 0.0, %v604
  %v606 = vpop.f32.mrb[0].mxu0
  %v607 = vpop.f32.mrb[0].mxu0
  %v608 = vadd.f32 0.0, %v607
  %v609 = vpop.f32.mrb[0].mxu0
  %610 = vmatprep.mubr.bf16.mxu0 0
  %611 = vmatmul.mubr.bf16.gmra.mrb[0].mxu0 %v491
  %v612 = vpop.f32.mrb[0].mxu0
  %v613 = vadd.f32 0.0, %v612
  %v614 = vpop.f32.mrb[0].mxu0
  %v615 = vpop.f32.mrb[0].mxu0
  %v616 = vadd.f32 0.0, %v615
  %v617 = vpop.f32.mrb[0].mxu0
  %618 = vmatprep.mubr.bf16.mxu0 0
  %619 = vmatmul.mubr.bf16.gmra.mrb[0].mxu0 %v494
  %v620 = vpop.f32.mrb[0].mxu0
  %v621 = vadd.f32 0.0, %v620
  %v622 = vpop.f32.mrb[0].mxu0
  %v623 = vpop.f32.mrb[0].mxu0
  %v624 = vadd.f32 0.0, %v623
  %v625 = vpop.f32.mrb[0].mxu0
  %626 = vmatprep.mubr.bf16.mxu0 0
  %627 = vmatmul.mubr.bf16.gmra.mrb[0].mxu0 %v497
  %v628 = vpop.f32.mrb[0].mxu0
  %v629 = vadd.f32 0.0, %v628
  %v630 = vpop.f32.mrb[0].mxu0
  %v631 = vpop.f32.mrb[0].mxu0
  %v632 = vadd.f32 0.0, %v631
  %v633 = vpop.f32.mrb[0].mxu0
  %634 = vmatprep.mubr.bf16.mxu0 0
  %635 = vmatmul.mubr.bf16.gmra.mrb[0].mxu0 %v500
  %v636 = vpop.f32.mrb[0].mxu0
  %v637 = vadd.f32 0.0, %v636
  %v638 = vpop.f32.mrb[0].mxu0
  %v639 = vpop.f32.mrb[0].mxu0
  %v640 = vadd.f32 0.0, %v639
  %v641 = vpop.f32.mrb[0].mxu0
  %642 = vmatprep.mubr.bf16.mxu0 0
  %643 = vmatmul.mubr.bf16.gmra.mrb[0].mxu0 %v503
  %v644 = vpop.f32.mrb[0].mxu0
  %v645 = vadd.f32 0.0, %v644
  %v646 = vpop.f32.mrb[0].mxu0
  %v647 = vpop.f32.mrb[0].mxu0
  %v648 = vadd.f32 0.0, %v647
  %v649 = vpop.f32.mrb[0].mxu0
  %650 = vmatprep.mubr.bf16.mxu0 0
  %651 = vmatmul.mubr.bf16.gmra.mrb[0].mxu0 %v506
  %v652 = vpop.f32.mrb[0].mxu0
  %v653 = vadd.f32 0.0, %v652
  %v654 = vpop.f32.mrb[0].mxu0
  %v655 = vpop.f32.mrb[0].mxu0
  %v656 = vadd.f32 0.0, %v655
  %v657 = vpop.f32.mrb[0].mxu0
  %658 = vmatprep.mubr.bf16.mxu0 0
  %659 = vmatmul.mubr.bf16.gmra.mrb[0].mxu0 %v509
  %v660 = vpop.f32.mrb[0].mxu0
  %v661 = vadd.f32 0.0, %v660
  %v662 = vpop.f32.mrb[0].mxu0
  %v663 = vpop.f32.mrb[0].mxu0
  %v664 = vadd.f32 0.0, %v663
  %v665 = vpop.f32.mrb[0].mxu0
  %666 = vmatprep.mubr.bf16.mxu0 0
  %667 = vmatmul.mubr.bf16.gmra.mrb[0].mxu0 %v512
  %v668 = vpop.f32.mrb[0].mxu0
  %v669 = vadd.f32 0.0, %v668
  %v670 = vpop.f32.mrb[0].mxu0
  %v671 = vpop.f32.mrb[0].mxu0
  %v672 = vadd.f32 0.0, %v671
  %v673 = vpop.f32.mrb[0].mxu0
  %674 = vdwg.mxu0
  %v675 = vmax.f32 %v227, %v549
  %v676 = vmax.f32 %v230, %v552
  %v677 = vmax.f32 %v235, %v557
  %v678 = vmax.f32 %v238, %v560
  %v679 = vmax.f32 %v243, %v565
  %v680 = vmax.f32 %v246, %v568
  %v681 = vmax.f32 %v251, %v573
  %v682 = vmax.f32 %v254, %v576
  %v683 = vmax.f32 %v259, %v581
  %v684 = vmax.f32 %v262, %v584
  %v685 = vmax.f32 %v267, %v589
  %v686 = vmax.f32 %v270, %v592
  %v687 = vmax.f32 %v275, %v597
  %v688 = vmax.f32 %v278, %v600
  %v689 = vmax.f32 %v283, %v605
  %v690 = vmax.f32 %v286, %v608
  %v691 = vmax.f32 %v291, %v613
  %v692 = vmax.f32 %v294, %v616
  %v693 = vmax.f32 %v299, %v621
  %v694 = vmax.f32 %v302, %v624
  %v695 = vmax.f32 %v307, %v629
  %v696 = vmax.f32 %v310, %v632
  %v697 = vmax.f32 %v315, %v637
  %v698 = vmax.f32 %v318, %v640
  %v699 = vmax.f32 %v323, %v645
  %v700 = vmax.f32 %v326, %v648
  %v701 = vmax.f32 %v331, %v653
  %v702 = vmax.f32 %v334, %v656
  %v703 = vmax.f32 %v339, %v661
  %v704 = vmax.f32 %v342, %v664
  %v705 = vmax.f32 %v347, %v669
  %v706 = vmax.f32 %v350, %v672
  %s707 = scalar_lea.vmem %s0, 256
  %v708 = vld [vmem:[%s707] sm:$0xf]
  %v709 = vld [vmem:[%s707 + $0x4] sm:$0xf]
  %v710 = vld [vmem:[%s707 + $0x8] sm:$0xf]
  %v711 = vld [vmem:[%s707 + $0xc] sm:$0xf]
  %v712 = vld [vmem:[%s707 + $0x10] sm:$0xf]
  %v713 = vld [vmem:[%s707 + $0x14] sm:$0xf]
  %v714 = vld [vmem:[%s707 + $0x18] sm:$0xf]
  %v715 = vld [vmem:[%s707 + $0x1c] sm:$0xf]
  %v716 = vld [vmem:[%s707 + $0x20] sm:$0xf]
  %v717 = vld [vmem:[%s707 + $0x24] sm:$0xf]
  %v718 = vld [vmem:[%s707 + $0x28] sm:$0xf]
  %v719 = vld [vmem:[%s707 + $0x2c] sm:$0xf]
  %v720 = vld [vmem:[%s707 + $0x30] sm:$0xf]
  %v721 = vld [vmem:[%s707 + $0x34] sm:$0xf]
  %v722 = vld [vmem:[%s707 + $0x38] sm:$0xf]
  %v723 = vld [vmem:[%s707 + $0x3c] sm:$0xf]
  %v724 = vld [vmem:[%s707 + $0x40] sm:$0xf]
  %v725 = vld [vmem:[%s707 + $0x44] sm:$0xf]
  %v726 = vld [vmem:[%s707 + $0x48] sm:$0xf]
  %v727 = vld [vmem:[%s707 + $0x4c] sm:$0xf]
  %v728 = vld [vmem:[%s707 + $0x50] sm:$0xf]
  %v729 = vld [vmem:[%s707 + $0x54] sm:$0xf]
  %v730 = vld [vmem:[%s707 + $0x58] sm:$0xf]
  %v731 = vld [vmem:[%s707 + $0x5c] sm:$0xf]
  %v732 = vld [vmem:[%s707 + $0x60] sm:$0xf]
  %v733 = vld [vmem:[%s707 + $0x64] sm:$0xf]
  %v734 = vld [vmem:[%s707 + $0x68] sm:$0xf]
  %v735 = vld [vmem:[%s707 + $0x6c] sm:$0xf]
  %v736 = vld [vmem:[%s707 + $0x70] sm:$0xf]
  %v737 = vld [vmem:[%s707 + $0x74] sm:$0xf]
  %v738 = vld [vmem:[%s707 + $0x78] sm:$0xf]
  %v739 = vld [vmem:[%s707 + $0x7c] sm:$0xf]
  %v772 = vunpack.c.l.b16 %v708
  %v773 = vunpack.c.l.b16 %v709
  %v774 = vunpack.c.l.b16 %v710
  %v775 = vunpack.c.l.b16 %v711
  %v776 = vunpack.c.l.b16 %v712
  %v777 = vunpack.c.l.b16 %v713
  %v778 = vunpack.c.l.b16 %v714
  %v779 = vunpack.c.l.b16 %v715
  %v780 = vunpack.c.l.b16 %v716
  %v781 = vunpack.c.l.b16 %v717
  %v782 = vunpack.c.l.b16 %v718
  %v783 = vunpack.c.l.b16 %v719
  %v784 = vunpack.c.l.b16 %v720
  %v785 = vunpack.c.l.b16 %v721
  %v786 = vunpack.c.l.b16 %v722
  %v787 = vunpack.c.l.b16 %v723
  %v788 = vunpack.c.l.b16 %v724
  %v789 = vunpack.c.l.b16 %v725
  %v790 = vunpack.c.l.b16 %v726
  %v791 = vunpack.c.l.b16 %v727
  %v792 = vunpack.c.l.b16 %v728
  %v793 = vunpack.c.l.b16 %v729
  %v794 = vunpack.c.l.b16 %v730
  %v795 = vunpack.c.l.b16 %v731
  %v796 = vunpack.c.l.b16 %v732
  %v797 = vunpack.c.l.b16 %v733
  %v798 = vunpack.c.l.b16 %v734
  %v799 = vunpack.c.l.b16 %v735
  %v800 = vunpack.c.l.b16 %v736
  %v801 = vunpack.c.l.b16 %v737
  %v802 = vunpack.c.l.b16 %v738
  %v803 = vunpack.c.l.b16 %v739
  %v804 = vpack.c.b16 %v773, %v772
  %v805 = vpack.c.b16 %v775, %v774
  %v806 = vpack.c.b16 %v777, %v776
  %v807 = vpack.c.b16 %v779, %v778
  %v808 = vpack.c.b16 %v781, %v780
  %v809 = vpack.c.b16 %v783, %v782
  %v810 = vpack.c.b16 %v785, %v784
  %v811 = vpack.c.b16 %v787, %v786
  %v812 = vpack.c.b16 %v789, %v788
  %v813 = vpack.c.b16 %v791, %v790
  %v814 = vpack.c.b16 %v793, %v792
  %v815 = vpack.c.b16 %v795, %v794
  %v816 = vpack.c.b16 %v797, %v796
  %v817 = vpack.c.b16 %v799, %v798
  %v818 = vpack.c.b16 %v801, %v800
  %v819 = vpack.c.b16 %v803, %v802
  %v821 = vsel %vm139, %v804, 0
  %v824 = vsel %vm139, %v805, 0
  %v827 = vsel %vm139, %v806, 0
  %v830 = vsel %vm139, %v807, 0
  %v833 = vsel %vm139, %v808, 0
  %v836 = vsel %vm139, %v809, 0
  %v839 = vsel %vm139, %v810, 0
  %v842 = vsel %vm139, %v811, 0
  %v845 = vsel %vm139, %v812, 0
  %v848 = vsel %vm139, %v813, 0
  %v851 = vsel %vm139, %v814, 0
  %v854 = vsel %vm139, %v815, 0
  %v857 = vsel %vm139, %v816, 0
  %v860 = vsel %vm139, %v817, 0
  %v863 = vsel %vm139, %v818, 0
  %v866 = vsel %vm139, %v819, 0
  %868 = vmatprep.subr.bf16.mxu0 0
  %869 = vmatpush1.bf16.msra.mxu0 %v136
  %870 = vmatprep.subr.bf16.mxu0 0
  %871 = vmatpush1.bf16.msra.mxu0 %v190
  %872 = vmatprep.subr.bf16.mxu0 0
  %873 = vmatpush1.bf16.msra.mxu0 0
  %874 = vmatprep.subr.bf16.mxu0 0
  %875 = vmatpush1.bf16.msra.mxu0 0
  %876 = vmatprep.subr.bf16.mxu0 0
  %877 = vmatpush1.bf16.msra.mxu0 0
  %878 = vmatprep.subr.bf16.mxu0 0
  %879 = vmatpush1.bf16.msra.mxu0 0
  %880 = vmatprep.subr.bf16.mxu0 0
  %881 = vmatpush1.bf16.msra.mxu0 0
  %882 = vmatprep.subr.bf16.mxu0 0
  %883 = vmatpush1.bf16.msra.mxu0 0
  %884 = vmatprep.subr.bf16.mxu0 0
  %885 = vmatpush1.bf16.msra.mxu0 0
  %886 = vmatprep.subr.bf16.mxu0 0
  %887 = vmatpush1.bf16.msra.mxu0 0
  %888 = vmatprep.subr.bf16.mxu0 0
  %889 = vmatpush1.bf16.msra.mxu0 0
  %890 = vmatprep.subr.bf16.mxu0 0
  %891 = vmatpush1.bf16.msra.mxu0 0
  %892 = vmatprep.subr.bf16.mxu0 0
  %893 = vmatpush1.bf16.msra.mxu0 0
  %894 = vmatprep.subr.bf16.mxu0 0
  %895 = vmatpush1.bf16.msra.mxu0 0
  %896 = vmatprep.subr.bf16.mxu0 0
  %897 = vmatpush1.bf16.msra.mxu0 0
  %898 = vmatprep.subr.bf16.mxu0 0
  %899 = vmatpush1.bf16.msra.mxu0 0
  %900 = vmatprep.mubr.bf16.mxu0 0
  %901 = vmatmul.mubr.bf16.gmra.mrb[0].mxu0 %v821
  %v902 = vpop.f32.mrb[0].mxu0
  %v903 = vadd.f32 0.0, %v902
  %v904 = vpop.f32.mrb[0].mxu0
  %v905 = vpop.f32.mrb[0].mxu0
  %v906 = vadd.f32 0.0, %v905
  %v907 = vpop.f32.mrb[0].mxu0
  %908 = vmatprep.mubr.bf16.mxu0 0
  %909 = vmatmul.mubr.bf16.gmra.mrb[0].mxu0 %v824
  %v910 = vpop.f32.mrb[0].mxu0
  %v911 = vadd.f32 0.0, %v910
  %v912 = vpop.f32.mrb[0].mxu0
  %v913 = vpop.f32.mrb[0].mxu0
  %v914 = vadd.f32 0.0, %v913
  %v915 = vpop.f32.mrb[0].mxu0
  %916 = vmatprep.mubr.bf16.mxu0 0
  %917 = vmatmul.mubr.bf16.gmra.mrb[0].mxu0 %v827
  %v918 = vpop.f32.mrb[0].mxu0
  %v919 = vadd.f32 0.0, %v918
  %v920 = vpop.f32.mrb[0].mxu0
  %v921 = vpop.f32.mrb[0].mxu0
  %v922 = vadd.f32 0.0, %v921
  %v923 = vpop.f32.mrb[0].mxu0
  %924 = vmatprep.mubr.bf16.mxu0 0
  %925 = vmatmul.mubr.bf16.gmra.mrb[0].mxu0 %v830
  %v926 = vpop.f32.mrb[0].mxu0
  %v927 = vadd.f32 0.0, %v926
  %v928 = vpop.f32.mrb[0].mxu0
  %v929 = vpop.f32.mrb[0].mxu0
  %v930 = vadd.f32 0.0, %v929
  %v931 = vpop.f32.mrb[0].mxu0
  %932 = vmatprep.mubr.bf16.mxu0 0
  %933 = vmatmul.mubr.bf16.gmra.mrb[0].mxu0 %v833
  %v934 = vpop.f32.mrb[0].mxu0
  %v935 = vadd.f32 0.0, %v934
  %v936 = vpop.f32.mrb[0].mxu0
  %v937 = vpop.f32.mrb[0].mxu0
  %v938 = vadd.f32 0.0, %v937
  %v939 = vpop.f32.mrb[0].mxu0
  %940 = vmatprep.mubr.bf16.mxu0 0
  %941 = vmatmul.mubr.bf16.gmra.mrb[0].mxu0 %v836
  %v942 = vpop.f32.mrb[0].mxu0
  %v943 = vadd.f32 0.0, %v942
  %v944 = vpop.f32.mrb[0].mxu0
  %v945 = vpop.f32.mrb[0].mxu0
  %v946 = vadd.f32 0.0, %v945
  %v947 = vpop.f32.mrb[0].mxu0
  %948 = vmatprep.mubr.bf16.mxu0 0
  %949 = vmatmul.mubr.bf16.gmra.mrb[0].mxu0 %v839
  %v950 = vpop.f32.mrb[0].mxu0
  %v951 = vadd.f32 0.0, %v950
  %v952 = vpop.f32.mrb[0].mxu0
  %v953 = vpop.f32.mrb[0].mxu0
  %v954 = vadd.f32 0.0, %v953
  %v955 = vpop.f32.mrb[0].mxu0
  %956 = vmatprep.mubr.bf16.mxu0 0
  %957 = vmatmul.mubr.bf16.gmra.mrb[0].mxu0 %v842
  %v958 = vpop.f32.mrb[0].mxu0
  %v959 = vadd.f32 0.0, %v958
  %v960 = vpop.f32.mrb[0].mxu0
  %v961 = vpop.f32.mrb[0].mxu0
  %v962 = vadd.f32 0.0, %v961
  %v963 = vpop.f32.mrb[0].mxu0
  %964 = vmatprep.mubr.bf16.mxu0 0
  %965 = vmatmul.mubr.bf16.gmra.mrb[0].mxu0 %v845
  %v966 = vpop.f32.mrb[0].mxu0
  %v967 = vadd.f32 0.0, %v966
  %v968 = vpop.f32.mrb[0].mxu0
  %v969 = vpop.f32.mrb[0].mxu0
  %v970 = vadd.f32 0.0, %v969
  %v971 = vpop.f32.mrb[0].mxu0
  %972 = vmatprep.mubr.bf16.mxu0 0
  %973 = vmatmul.mubr.bf16.gmra.mrb[0].mxu0 %v848
  %v974 = vpop.f32.mrb[0].mxu0
  %v975 = vadd.f32 0.0, %v974
  %v976 = vpop.f32.mrb[0].mxu0
  %v977 = vpop.f32.mrb[0].mxu0
  %v978 = vadd.f32 0.0, %v977
  %v979 = vpop.f32.mrb[0].mxu0
  %980 = vmatprep.mubr.bf16.mxu0 0
  %981 = vmatmul.mubr.bf16.gmra.mrb[0].mxu0 %v851
  %v982 = vpop.f32.mrb[0].mxu0
  %v983 = vadd.f32 0.0, %v982
  %v984 = vpop.f32.mrb[0].mxu0
  %v985 = vpop.f32.mrb[0].mxu0
  %v986 = vadd.f32 0.0, %v985
  %v987 = vpop.f32.mrb[0].mxu0
  %988 = vmatprep.mubr.bf16.mxu0 0
  %989 = vmatmul.mubr.bf16.gmra.mrb[0].mxu0 %v854
  %v990 = vpop.f32.mrb[0].mxu0
  %v991 = vadd.f32 0.0, %v990
  %v992 = vpop.f32.mrb[0].mxu0
  %v993 = vpop.f32.mrb[0].mxu0
  %v994 = vadd.f32 0.0, %v993
  %v995 = vpop.f32.mrb[0].mxu0
  %996 = vmatprep.mubr.bf16.mxu0 0
  %997 = vmatmul.mubr.bf16.gmra.mrb[0].mxu0 %v857
  %v998 = vpop.f32.mrb[0].mxu0
  %v999 = vadd.f32 0.0, %v998
  %v1000 = vpop.f32.mrb[0].mxu0
  %v1001 = vpop.f32.mrb[0].mxu0
  %v1002 = vadd.f32 0.0, %v1001
  %v1003 = vpop.f32.mrb[0].mxu0
  %1004 = vmatprep.mubr.bf16.mxu0 0
  %1005 = vmatmul.mubr.bf16.gmra.mrb[0].mxu0 %v860
  %v1006 = vpop.f32.mrb[0].mxu0
  %v1007 = vadd.f32 0.0, %v1006
  %v1008 = vpop.f32.mrb[0].mxu0
  %v1009 = vpop.f32.mrb[0].mxu0
  %v1010 = vadd.f32 0.0, %v1009
  %v1011 = vpop.f32.mrb[0].mxu0
  %1012 = vmatprep.mubr.bf16.mxu0 0
  %1013 = vmatmul.mubr.bf16.gmra.mrb[0].mxu0 %v863
  %v1014 = vpop.f32.mrb[0].mxu0
  %v1015 = vadd.f32 0.0, %v1014
  %v1016 = vpop.f32.mrb[0].mxu0
  %v1017 = vpop.f32.mrb[0].mxu0
  %v1018 = vadd.f32 0.0, %v1017
  %v1019 = vpop.f32.mrb[0].mxu0
  %1020 = vmatprep.mubr.bf16.mxu0 0
  %1021 = vmatmul.mubr.bf16.gmra.mrb[0].mxu0 %v866
  %v1022 = vpop.f32.mrb[0].mxu0
  %v1023 = vadd.f32 0.0, %v1022
  %v1024 = vpop.f32.mrb[0].mxu0
  %v1025 = vpop.f32.mrb[0].mxu0
  %v1026 = vadd.f32 0.0, %v1025
  %v1027 = vpop.f32.mrb[0].mxu0
  %1028 = vdwg.mxu0
  %v1029 = vmax.f32 %v675, %v903
  %v1030 = vmax.f32 %v676, %v906
  %v1031 = vmax.f32 %v677, %v911
  %v1032 = vmax.f32 %v678, %v914
  %v1033 = vmax.f32 %v679, %v919
  %v1034 = vmax.f32 %v680, %v922
  %v1035 = vmax.f32 %v681, %v927
  %v1036 = vmax.f32 %v682, %v930
  %v1037 = vmax.f32 %v683, %v935
  %v1038 = vmax.f32 %v684, %v938
  %v1039 = vmax.f32 %v685, %v943
  %v1040 = vmax.f32 %v686, %v946
  %v1041 = vmax.f32 %v687, %v951
  %v1042 = vmax.f32 %v688, %v954
  %v1043 = vmax.f32 %v689, %v959
  %v1044 = vmax.f32 %v690, %v962
  %v1045 = vmax.f32 %v691, %v967
  %v1046 = vmax.f32 %v692, %v970
  %v1047 = vmax.f32 %v693, %v975
  %v1048 = vmax.f32 %v694, %v978
  %v1049 = vmax.f32 %v695, %v983
  %v1050 = vmax.f32 %v696, %v986
  %v1051 = vmax.f32 %v697, %v991
  %v1052 = vmax.f32 %v698, %v994
  %v1053 = vmax.f32 %v699, %v999
  %v1054 = vmax.f32 %v700, %v1002
  %v1055 = vmax.f32 %v701, %v1007
  %v1056 = vmax.f32 %v702, %v1010
  %v1057 = vmax.f32 %v703, %v1015
  %v1058 = vmax.f32 %v704, %v1018
  %v1059 = vmax.f32 %v705, %v1023
  %v1060 = vmax.f32 %v706, %v1026
  %s1061 = scalar_lea.vmem %s0, 384
  %v1062 = vld [vmem:[%s1061] sm:$0xf]
  %v1063 = vld [vmem:[%s1061 + $0x4] sm:$0xf]
  %v1064 = vld [vmem:[%s1061 + $0x8] sm:$0xf]
  %v1065 = vld [vmem:[%s1061 + $0xc] sm:$0xf]
  %v1066 = vld [vmem:[%s1061 + $0x10] sm:$0xf]
  %v1067 = vld [vmem:[%s1061 + $0x14] sm:$0xf]
  %v1068 = vld [vmem:[%s1061 + $0x18] sm:$0xf]
  %v1069 = vld [vmem:[%s1061 + $0x1c] sm:$0xf]
  %v1070 = vld [vmem:[%s1061 + $0x20] sm:$0xf]
  %v1071 = vld [vmem:[%s1061 + $0x24] sm:$0xf]
  %v1072 = vld [vmem:[%s1061 + $0x28] sm:$0xf]
  %v1073 = vld [vmem:[%s1061 + $0x2c] sm:$0xf]
  %v1074 = vld [vmem:[%s1061 + $0x30] sm:$0xf]
  %v1075 = vld [vmem:[%s1061 + $0x34] sm:$0xf]
  %v1076 = vld [vmem:[%s1061 + $0x38] sm:$0xf]
  %v1077 = vld [vmem:[%s1061 + $0x3c] sm:$0xf]
  %v1078 = vld [vmem:[%s1061 + $0x40] sm:$0xf]
  %v1079 = vld [vmem:[%s1061 + $0x44] sm:$0xf]
  %v1080 = vld [vmem:[%s1061 + $0x48] sm:$0xf]
  %v1081 = vld [vmem:[%s1061 + $0x4c] sm:$0xf]
  %v1082 = vld [vmem:[%s1061 + $0x50] sm:$0xf]
  %v1083 = vld [vmem:[%s1061 + $0x54] sm:$0xf]
  %v1084 = vld [vmem:[%s1061 + $0x58] sm:$0xf]
  %v1085 = vld [vmem:[%s1061 + $0x5c] sm:$0xf]
  %v1086 = vld [vmem:[%s1061 + $0x60] sm:$0xf]
  %v1087 = vld [vmem:[%s1061 + $0x64] sm:$0xf]
  %v1088 = vld [vmem:[%s1061 + $0x68] sm:$0xf]
  %v1089 = vld [vmem:[%s1061 + $0x6c] sm:$0xf]
  %v1090 = vld [vmem:[%s1061 + $0x70] sm:$0xf]
  %v1091 = vld [vmem:[%s1061 + $0x74] sm:$0xf]
  %v1092 = vld [vmem:[%s1061 + $0x78] sm:$0xf]
  %v1093 = vld [vmem:[%s1061 + $0x7c] sm:$0xf]
  %v1126 = vunpack.c.l.b16 %v1062
  %v1127 = vunpack.c.l.b16 %v1063
  %v1128 = vunpack.c.l.b16 %v1064
  %v1129 = vunpack.c.l.b16 %v1065
  %v1130 = vunpack.c.l.b16 %v1066
  %v1131 = vunpack.c.l.b16 %v1067
  %v1132 = vunpack.c.l.b16 %v1068
  %v1133 = vunpack.c.l.b16 %v1069
  %v1134 = vunpack.c.l.b16 %v1070
  %v1135 = vunpack.c.l.b16 %v1071
  %v1136 = vunpack.c.l.b16 %v1072
  %v1137 = vunpack.c.l.b16 %v1073
  %v1138 = vunpack.c.l.b16 %v1074
  %v1139 = vunpack.c.l.b16 %v1075
  %v1140 = vunpack.c.l.b16 %v1076
  %v1141 = vunpack.c.l.b16 %v1077
  %v1142 = vunpack.c.l.b16 %v1078
  %v1143 = vunpack.c.l.b16 %v1079
  %v1144 = vunpack.c.l.b16 %v1080
  %v1145 = vunpack.c.l.b16 %v1081
  %v1146 = vunpack.c.l.b16 %v1082
  %v1147 = vunpack.c.l.b16 %v1083
  %v1148 = vunpack.c.l.b16 %v1084
  %v1149 = vunpack.c.l.b16 %v1085
  %v1150 = vunpack.c.l.b16 %v1086
  %v1151 = vunpack.c.l.b16 %v1087
  %v1152 = vunpack.c.l.b16 %v1088
  %v1153 = vunpack.c.l.b16 %v1089
  %v1154 = vunpack.c.l.b16 %v1090
  %v1155 = vunpack.c.l.b16 %v1091
  %v1156 = vunpack.c.l.b16 %v1092
  %v1157 = vunpack.c.l.b16 %v1093
  %v1158 = vpack.c.b16 %v1127, %v1126
  %v1159 = vpack.c.b16 %v1129, %v1128
  %v1160 = vpack.c.b16 %v1131, %v1130
  %v1161 = vpack.c.b16 %v1133, %v1132
  %v1162 = vpack.c.b16 %v1135, %v1134
  %v1163 = vpack.c.b16 %v1137, %v1136
  %v1164 = vpack.c.b16 %v1139, %v1138
  %v1165 = vpack.c.b16 %v1141, %v1140
  %v1166 = vpack.c.b16 %v1143, %v1142
  %v1167 = vpack.c.b16 %v1145, %v1144
  %v1168 = vpack.c.b16 %v1147, %v1146
  %v1169 = vpack.c.b16 %v1149, %v1148
  %v1170 = vpack.c.b16 %v1151, %v1150
  %v1171 = vpack.c.b16 %v1153, %v1152
  %v1172 = vpack.c.b16 %v1155, %v1154
  %v1173 = vpack.c.b16 %v1157, %v1156
  %v1175 = vsel %vm139, %v1158, 0
  %v1178 = vsel %vm139, %v1159, 0
  %v1181 = vsel %vm139, %v1160, 0
  %v1184 = vsel %vm139, %v1161, 0
  %v1187 = vsel %vm139, %v1162, 0
  %v1190 = vsel %vm139, %v1163, 0
  %v1193 = vsel %vm139, %v1164, 0
  %v1196 = vsel %vm139, %v1165, 0
  %v1199 = vsel %vm139, %v1166, 0
  %v1202 = vsel %vm139, %v1167, 0
  %v1205 = vsel %vm139, %v1168, 0
  %v1208 = vsel %vm139, %v1169, 0
  %v1211 = vsel %vm139, %v1170, 0
  %v1214 = vsel %vm139, %v1171, 0
  %v1217 = vsel %vm139, %v1172, 0
  %v1220 = vsel %vm139, %v1173, 0
  %1222 = vmatprep.subr.bf16.mxu0 0
  %1223 = vmatpush1.bf16.msra.mxu0 %v136
  %1224 = vmatprep.subr.bf16.mxu0 0
  %1225 = vmatpush1.bf16.msra.mxu0 %v190
  %1226 = vmatprep.subr.bf16.mxu0 0
  %1227 = vmatpush1.bf16.msra.mxu0 0
  %1228 = vmatprep.subr.bf16.mxu0 0
  %1229 = vmatpush1.bf16.msra.mxu0 0
  %1230 = vmatprep.subr.bf16.mxu0 0
  %1231 = vmatpush1.bf16.msra.mxu0 0
  %1232 = vmatprep.subr.bf16.mxu0 0
  %1233 = vmatpush1.bf16.msra.mxu0 0
  %1234 = vmatprep.subr.bf16.mxu0 0
  %1235 = vmatpush1.bf16.msra.mxu0 0
  %1236 = vmatprep.subr.bf16.mxu0 0
  %1237 = vmatpush1.bf16.msra.mxu0 0
  %1238 = vmatprep.subr.bf16.mxu0 0
  %1239 = vmatpush1.bf16.msra.mxu0 0
  %1240 = vmatprep.subr.bf16.mxu0 0
  %1241 = vmatpush1.bf16.msra.mxu0 0
  %1242 = vmatprep.subr.bf16.mxu0 0
  %1243 = vmatpush1.bf16.msra.mxu0 0
  %1244 = vmatprep.subr.bf16.mxu0 0
  %1245 = vmatpush1.bf16.msra.mxu0 0
  %1246 = vmatprep.subr.bf16.mxu0 0
  %1247 = vmatpush1.bf16.msra.mxu0 0
  %1248 = vmatprep.subr.bf16.mxu0 0
  %1249 = vmatpush1.bf16.msra.mxu0 0
  %1250 = vmatprep.subr.bf16.mxu0 0
  %1251 = vmatpush1.bf16.msra.mxu0 0
  %1252 = vmatprep.subr.bf16.mxu0 0
  %1253 = vmatpush1.bf16.msra.mxu0 0
  %1254 = vmatprep.mubr.bf16.mxu0 0
  %1255 = vmatmul.mubr.bf16.gmra.mrb[0].mxu0 %v1175
  %v1256 = vpop.f32.mrb[0].mxu0
  %v1257 = vadd.f32 0.0, %v1256
  %v1258 = vpop.f32.mrb[0].mxu0
  %v1259 = vpop.f32.mrb[0].mxu0
  %v1260 = vadd.f32 0.0, %v1259
  %v1261 = vpop.f32.mrb[0].mxu0
  %1262 = vmatprep.mubr.bf16.mxu0 0
  %1263 = vmatmul.mubr.bf16.gmra.mrb[0].mxu0 %v1178
  %v1264 = vpop.f32.mrb[0].mxu0
  %v1265 = vadd.f32 0.0, %v1264
  %v1266 = vpop.f32.mrb[0].mxu0
  %v1267 = vpop.f32.mrb[0].mxu0
  %v1268 = vadd.f32 0.0, %v1267
  %v1269 = vpop.f32.mrb[0].mxu0
  %1270 = vmatprep.mubr.bf16.mxu0 0
  %1271 = vmatmul.mubr.bf16.gmra.mrb[0].mxu0 %v1181
  %v1272 = vpop.f32.mrb[0].mxu0
  %v1273 = vadd.f32 0.0, %v1272
  %v1274 = vpop.f32.mrb[0].mxu0
  %v1275 = vpop.f32.mrb[0].mxu0
  %v1276 = vadd.f32 0.0, %v1275
  %v1277 = vpop.f32.mrb[0].mxu0
  %1278 = vmatprep.mubr.bf16.mxu0 0
  %1279 = vmatmul.mubr.bf16.gmra.mrb[0].mxu0 %v1184
  %v1280 = vpop.f32.mrb[0].mxu0
  %v1281 = vadd.f32 0.0, %v1280
  %v1282 = vpop.f32.mrb[0].mxu0
  %v1283 = vpop.f32.mrb[0].mxu0
  %v1284 = vadd.f32 0.0, %v1283
  %v1285 = vpop.f32.mrb[0].mxu0
  %1286 = vmatprep.mubr.bf16.mxu0 0
  %1287 = vmatmul.mubr.bf16.gmra.mrb[0].mxu0 %v1187
  %v1288 = vpop.f32.mrb[0].mxu0
  %v1289 = vadd.f32 0.0, %v1288
  %v1290 = vpop.f32.mrb[0].mxu0
  %v1291 = vpop.f32.mrb[0].mxu0
  %v1292 = vadd.f32 0.0, %v1291
  %v1293 = vpop.f32.mrb[0].mxu0
  %1294 = vmatprep.mubr.bf16.mxu0 0
  %1295 = vmatmul.mubr.bf16.gmra.mrb[0].mxu0 %v1190
  %v1296 = vpop.f32.mrb[0].mxu0
  %v1297 = vadd.f32 0.0, %v1296
  %v1298 = vpop.f32.mrb[0].mxu0
  %v1299 = vpop.f32.mrb[0].mxu0
  %v1300 = vadd.f32 0.0, %v1299
  %v1301 = vpop.f32.mrb[0].mxu0
  %1302 = vmatprep.mubr.bf16.mxu0 0
  %1303 = vmatmul.mubr.bf16.gmra.mrb[0].mxu0 %v1193
  %v1304 = vpop.f32.mrb[0].mxu0
  %v1305 = vadd.f32 0.0, %v1304
  %v1306 = vpop.f32.mrb[0].mxu0
  %v1307 = vpop.f32.mrb[0].mxu0
  %v1308 = vadd.f32 0.0, %v1307
  %v1309 = vpop.f32.mrb[0].mxu0
  %1310 = vmatprep.mubr.bf16.mxu0 0
  %1311 = vmatmul.mubr.bf16.gmra.mrb[0].mxu0 %v1196
  %v1312 = vpop.f32.mrb[0].mxu0
  %v1313 = vadd.f32 0.0, %v1312
  %v1314 = vpop.f32.mrb[0].mxu0
  %v1315 = vpop.f32.mrb[0].mxu0
  %v1316 = vadd.f32 0.0, %v1315
  %v1317 = vpop.f32.mrb[0].mxu0
  %1318 = vmatprep.mubr.bf16.mxu0 0
  %1319 = vmatmul.mubr.bf16.gmra.mrb[0].mxu0 %v1199
  %v1320 = vpop.f32.mrb[0].mxu0
  %v1321 = vadd.f32 0.0, %v1320
  %v1322 = vpop.f32.mrb[0].mxu0
  %v1323 = vpop.f32.mrb[0].mxu0
  %v1324 = vadd.f32 0.0, %v1323
  %v1325 = vpop.f32.mrb[0].mxu0
  %1326 = vmatprep.mubr.bf16.mxu0 0
  %1327 = vmatmul.mubr.bf16.gmra.mrb[0].mxu0 %v1202
  %v1328 = vpop.f32.mrb[0].mxu0
  %v1329 = vadd.f32 0.0, %v1328
  %v1330 = vpop.f32.mrb[0].mxu0
  %v1331 = vpop.f32.mrb[0].mxu0
  %v1332 = vadd.f32 0.0, %v1331
  %v1333 = vpop.f32.mrb[0].mxu0
  %1334 = vmatprep.mubr.bf16.mxu0 0
  %1335 = vmatmul.mubr.bf16.gmra.mrb[0].mxu0 %v1205
  %v1336 = vpop.f32.mrb[0].mxu0
  %v1337 = vadd.f32 0.0, %v1336
  %v1338 = vpop.f32.mrb[0].mxu0
  %v1339 = vpop.f32.mrb[0].mxu0
  %v1340 = vadd.f32 0.0, %v1339
  %v1341 = vpop.f32.mrb[0].mxu0
  %1342 = vmatprep.mubr.bf16.mxu0 0
  %1343 = vmatmul.mubr.bf16.gmra.mrb[0].mxu0 %v1208
  %v1344 = vpop.f32.mrb[0].mxu0
  %v1345 = vadd.f32 0.0, %v1344
  %v1346 = vpop.f32.mrb[0].mxu0
  %v1347 = vpop.f32.mrb[0].mxu0
  %v1348 = vadd.f32 0.0, %v1347
  %v1349 = vpop.f32.mrb[0].mxu0
  %1350 = vmatprep.mubr.bf16.mxu0 0
  %1351 = vmatmul.mubr.bf16.gmra.mrb[0].mxu0 %v1211
  %v1352 = vpop.f32.mrb[0].mxu0
  %v1353 = vadd.f32 0.0, %v1352
  %v1354 = vpop.f32.mrb[0].mxu0
  %v1355 = vpop.f32.mrb[0].mxu0
  %v1356 = vadd.f32 0.0, %v1355
  %v1357 = vpop.f32.mrb[0].mxu0
  %1358 = vmatprep.mubr.bf16.mxu0 0
  %1359 = vmatmul.mubr.bf16.gmra.mrb[0].mxu0 %v1214
  %v1360 = vpop.f32.mrb[0].mxu0
  %v1361 = vadd.f32 0.0, %v1360
  %v1362 = vpop.f32.mrb[0].mxu0
  %v1363 = vpop.f32.mrb[0].mxu0
  %v1364 = vadd.f32 0.0, %v1363
  %v1365 = vpop.f32.mrb[0].mxu0
  %1366 = vmatprep.mubr.bf16.mxu0 0
  %1367 = vmatmul.mubr.bf16.gmra.mrb[0].mxu0 %v1217
  %v1368 = vpop.f32.mrb[0].mxu0
  %v1369 = vadd.f32 0.0, %v1368
  %v1370 = vpop.f32.mrb[0].mxu0
  %v1371 = vpop.f32.mrb[0].mxu0
  %v1372 = vadd.f32 0.0, %v1371
  %v1373 = vpop.f32.mrb[0].mxu0
  %1374 = vmatprep.mubr.bf16.mxu0 0
  %1375 = vmatmul.mubr.bf16.gmra.mrb[0].mxu0 %v1220
  %v1376 = vpop.f32.mrb[0].mxu0
  %v1377 = vadd.f32 0.0, %v1376
  %v1378 = vpop.f32.mrb[0].mxu0
  %v1379 = vpop.f32.mrb[0].mxu0
  %v1380 = vadd.f32 0.0, %v1379
  %v1381 = vpop.f32.mrb[0].mxu0
  %1382 = vdwg.mxu0
  %v1383 = vmax.f32 %v1029, %v1257
  %v1384 = vmax.f32 %v1030, %v1260
  %v1385 = vmax.f32 %v1031, %v1265
  %v1386 = vmax.f32 %v1032, %v1268
  %v1387 = vmax.f32 %v1033, %v1273
  %v1388 = vmax.f32 %v1034, %v1276
  %v1389 = vmax.f32 %v1035, %v1281
  %v1390 = vmax.f32 %v1036, %v1284
  %v1391 = vmax.f32 %v1037, %v1289
  %v1392 = vmax.f32 %v1038, %v1292
  %v1393 = vmax.f32 %v1039, %v1297
  %v1394 = vmax.f32 %v1040, %v1300
  %v1395 = vmax.f32 %v1041, %v1305
  %v1396 = vmax.f32 %v1042, %v1308
  %v1397 = vmax.f32 %v1043, %v1313
  %v1398 = vmax.f32 %v1044, %v1316
  %v1399 = vmax.f32 %v1045, %v1321
  %v1400 = vmax.f32 %v1046, %v1324
  %v1401 = vmax.f32 %v1047, %v1329
  %v1402 = vmax.f32 %v1048, %v1332
  %v1403 = vmax.f32 %v1049, %v1337
  %v1404 = vmax.f32 %v1050, %v1340
  %v1405 = vmax.f32 %v1051, %v1345
  %v1406 = vmax.f32 %v1052, %v1348
  %v1407 = vmax.f32 %v1053, %v1353
  %v1408 = vmax.f32 %v1054, %v1356
  %v1409 = vmax.f32 %v1055, %v1361
  %v1410 = vmax.f32 %v1056, %v1364
  %v1411 = vmax.f32 %v1057, %v1369
  %v1412 = vmax.f32 %v1058, %v1372
  %v1413 = vmax.f32 %v1059, %v1377
  %v1414 = vmax.f32 %v1060, %v1380
  %v1415 = vld [vmem:[%s2] sm:$0x1]
  %v1417 = vlaneseq
  %v1418 = vshrl.u32 %v1417, 7
  %v1419 = vsub.s32 0, %v1418
  %v1420 = vrot.slane %v1415, %v1419
  %v1422 = vadd.f32 %v1383, %v1420
  %v1423 = vadd.f32 %v1384, %v1420
  %v1424 = vadd.f32 %v1385, %v1420
  %v1425 = vadd.f32 %v1386, %v1420
  %v1426 = vadd.f32 %v1387, %v1420
  %v1427 = vadd.f32 %v1388, %v1420
  %v1428 = vadd.f32 %v1389, %v1420
  %v1429 = vadd.f32 %v1390, %v1420
  %v1430 = vadd.f32 %v1391, %v1420
  %v1431 = vadd.f32 %v1392, %v1420
  %v1432 = vadd.f32 %v1393, %v1420
  %v1433 = vadd.f32 %v1394, %v1420
  %v1434 = vadd.f32 %v1395, %v1420
  %v1435 = vadd.f32 %v1396, %v1420
  %v1436 = vadd.f32 %v1397, %v1420
  %v1437 = vadd.f32 %v1398, %v1420
  %v1438 = vadd.f32 %v1399, %v1420
  %v1439 = vadd.f32 %v1400, %v1420
  %v1440 = vadd.f32 %v1401, %v1420
  %v1441 = vadd.f32 %v1402, %v1420
  %v1442 = vadd.f32 %v1403, %v1420
  %v1443 = vadd.f32 %v1404, %v1420
  %v1444 = vadd.f32 %v1405, %v1420
  %v1445 = vadd.f32 %v1406, %v1420
  %v1446 = vadd.f32 %v1407, %v1420
  %v1447 = vadd.f32 %v1408, %v1420
  %v1448 = vadd.f32 %v1409, %v1420
  %v1449 = vadd.f32 %v1410, %v1420
  %v1450 = vadd.f32 %v1411, %v1420
  %v1451 = vadd.f32 %v1412, %v1420
  %v1452 = vadd.f32 %v1413, %v1420
  %v1453 = vadd.f32 %v1414, %v1420
  %v1454 = vmax.f32 %v1422, 0.0
  %v1455 = vmax.f32 %v1423, 0.0
  %v1456 = vmax.f32 %v1424, 0.0
  %v1457 = vmax.f32 %v1425, 0.0
  %v1458 = vmax.f32 %v1426, 0.0
  %v1459 = vmax.f32 %v1427, 0.0
  %v1460 = vmax.f32 %v1428, 0.0
  %v1461 = vmax.f32 %v1429, 0.0
  %v1462 = vmax.f32 %v1430, 0.0
  %v1463 = vmax.f32 %v1431, 0.0
  %v1464 = vmax.f32 %v1432, 0.0
  %v1465 = vmax.f32 %v1433, 0.0
  %v1466 = vmax.f32 %v1434, 0.0
  %v1467 = vmax.f32 %v1435, 0.0
  %v1468 = vmax.f32 %v1436, 0.0
  %v1469 = vmax.f32 %v1437, 0.0
  %v1470 = vmax.f32 %v1438, 0.0
  %v1471 = vmax.f32 %v1439, 0.0
  %v1472 = vmax.f32 %v1440, 0.0
  %v1473 = vmax.f32 %v1441, 0.0
  %v1474 = vmax.f32 %v1442, 0.0
  %v1475 = vmax.f32 %v1443, 0.0
  %v1476 = vmax.f32 %v1444, 0.0
  %v1477 = vmax.f32 %v1445, 0.0
  %v1478 = vmax.f32 %v1446, 0.0
  %v1479 = vmax.f32 %v1447, 0.0
  %v1480 = vmax.f32 %v1448, 0.0
  %v1481 = vmax.f32 %v1449, 0.0
  %v1482 = vmax.f32 %v1450, 0.0
  %v1483 = vmax.f32 %v1451, 0.0
  %v1484 = vmax.f32 %v1452, 0.0
  %v1485 = vmax.f32 %v1453, 0.0
  %v1486 = vpack.c.bf16 %v1455, %v1454
  %v1487 = vpack.c.bf16 %v1457, %v1456
  %v1488 = vpack.c.bf16 %v1459, %v1458
  %v1489 = vpack.c.bf16 %v1461, %v1460
  %v1490 = vpack.c.bf16 %v1463, %v1462
  %v1491 = vpack.c.bf16 %v1465, %v1464
  %v1492 = vpack.c.bf16 %v1467, %v1466
  %v1493 = vpack.c.bf16 %v1469, %v1468
  %v1494 = vpack.c.bf16 %v1471, %v1470
  %v1495 = vpack.c.bf16 %v1473, %v1472
  %v1496 = vpack.c.bf16 %v1475, %v1474
  %v1497 = vpack.c.bf16 %v1477, %v1476
  %v1498 = vpack.c.bf16 %v1479, %v1478
  %v1499 = vpack.c.bf16 %v1481, %v1480
  %v1500 = vpack.c.bf16 %v1483, %v1482
  %v1501 = vpack.c.bf16 %v1485, %v1484
  %v1518 = vunpack.c.l.b16 %v1486
  %v1519 = vunpack.c.h.b16 %v1486
  %v1520 = vunpack.c.l.b16 %v1487
  %v1521 = vunpack.c.h.b16 %v1487
  %v1522 = vunpack.c.l.b16 %v1488
  %v1523 = vunpack.c.h.b16 %v1488
  %v1524 = vunpack.c.l.b16 %v1489
  %v1525 = vunpack.c.h.b16 %v1489
  %v1526 = vunpack.c.l.b16 %v1490
  %v1527 = vunpack.c.h.b16 %v1490
  %v1528 = vunpack.c.l.b16 %v1491
  %v1529 = vunpack.c.h.b16 %v1491
  %v1530 = vunpack.c.l.b16 %v1492
  %v1531 = vunpack.c.h.b16 %v1492
  %v1532 = vunpack.c.l.b16 %v1493
  %v1533 = vunpack.c.h.b16 %v1493
  %v1534 = vunpack.c.l.b16 %v1494
  %v1535 = vunpack.c.h.b16 %v1494
  %v1536 = vunpack.c.l.b16 %v1495
  %v1537 = vunpack.c.h.b16 %v1495
  %v1538 = vunpack.c.l.b16 %v1496
  %v1539 = vunpack.c.h.b16 %v1496
  %v1540 = vunpack.c.l.b16 %v1497
  %v1541 = vunpack.c.h.b16 %v1497
  %v1542 = vunpack.c.l.b16 %v1498
  %v1543 = vunpack.c.h.b16 %v1498
  %v1544 = vunpack.c.l.b16 %v1499
  %v1545 = vunpack.c.h.b16 %v1499
  %v1546 = vunpack.c.l.b16 %v1500
  %v1547 = vunpack.c.h.b16 %v1500
  %v1548 = vunpack.c.l.b16 %v1501
  %v1549 = vunpack.c.h.b16 %v1501
  %v1550 = vpack.c.b16 %v1518, %v1518
  %v1551 = vpack.c.b16 %v1519, %v1519
  %v1552 = vpack.c.b16 %v1520, %v1520
  %v1553 = vpack.c.b16 %v1521, %v1521
  %v1554 = vpack.c.b16 %v1522, %v1522
  %v1555 = vpack.c.b16 %v1523, %v1523
  %v1556 = vpack.c.b16 %v1524, %v1524
  %v1557 = vpack.c.b16 %v1525, %v1525
  %v1558 = vpack.c.b16 %v1526, %v1526
  %v1559 = vpack.c.b16 %v1527, %v1527
  %v1560 = vpack.c.b16 %v1528, %v1528
  %v1561 = vpack.c.b16 %v1529, %v1529
  %v1562 = vpack.c.b16 %v1530, %v1530
  %v1563 = vpack.c.b16 %v1531, %v1531
  %v1564 = vpack.c.b16 %v1532, %v1532
  %v1565 = vpack.c.b16 %v1533, %v1533
  %v1566 = vpack.c.b16 %v1534, %v1534
  %v1567 = vpack.c.b16 %v1535, %v1535
  %v1568 = vpack.c.b16 %v1536, %v1536
  %v1569 = vpack.c.b16 %v1537, %v1537
  %v1570 = vpack.c.b16 %v1538, %v1538
  %v1571 = vpack.c.b16 %v1539, %v1539
  %v1572 = vpack.c.b16 %v1540, %v1540
  %v1573 = vpack.c.b16 %v1541, %v1541
  %v1574 = vpack.c.b16 %v1542, %v1542
  %v1575 = vpack.c.b16 %v1543, %v1543
  %v1576 = vpack.c.b16 %v1544, %v1544
  %v1577 = vpack.c.b16 %v1545, %v1545
  %v1578 = vpack.c.b16 %v1546, %v1546
  %v1579 = vpack.c.b16 %v1547, %v1547
  %v1580 = vpack.c.b16 %v1548, %v1548
  %v1581 = vpack.c.b16 %v1549, %v1549
  %1614 = vst [vmem:[%s3] sm:$0xf] %v1550
  %1615 = vst [vmem:[%s3 + $0x4] sm:$0xf] %v1551
  %1616 = vst [vmem:[%s3 + $0x8] sm:$0xf] %v1552
  %1617 = vst [vmem:[%s3 + $0xc] sm:$0xf] %v1553
  %1618 = vst [vmem:[%s3 + $0x10] sm:$0xf] %v1554
  %1619 = vst [vmem:[%s3 + $0x14] sm:$0xf] %v1555
  %1620 = vst [vmem:[%s3 + $0x18] sm:$0xf] %v1556
  %1621 = vst [vmem:[%s3 + $0x1c] sm:$0xf] %v1557
  %1622 = vst [vmem:[%s3 + $0x20] sm:$0xf] %v1558
  %1623 = vst [vmem:[%s3 + $0x24] sm:$0xf] %v1559
  %1624 = vst [vmem:[%s3 + $0x28] sm:$0xf] %v1560
  %1625 = vst [vmem:[%s3 + $0x2c] sm:$0xf] %v1561
  %1626 = vst [vmem:[%s3 + $0x30] sm:$0xf] %v1562
  %1627 = vst [vmem:[%s3 + $0x34] sm:$0xf] %v1563
  %1628 = vst [vmem:[%s3 + $0x38] sm:$0xf] %v1564
  %1629 = vst [vmem:[%s3 + $0x3c] sm:$0xf] %v1565
  %1630 = vst [vmem:[%s3 + $0x40] sm:$0xf] %v1566
  %1631 = vst [vmem:[%s3 + $0x44] sm:$0xf] %v1567
  %1632 = vst [vmem:[%s3 + $0x48] sm:$0xf] %v1568
  %1633 = vst [vmem:[%s3 + $0x4c] sm:$0xf] %v1569
  %1634 = vst [vmem:[%s3 + $0x50] sm:$0xf] %v1570
  %1635 = vst [vmem:[%s3 + $0x54] sm:$0xf] %v1571
  %1636 = vst [vmem:[%s3 + $0x58] sm:$0xf] %v1572
  %1637 = vst [vmem:[%s3 + $0x5c] sm:$0xf] %v1573
  %1638 = vst [vmem:[%s3 + $0x60] sm:$0xf] %v1574
  %1639 = vst [vmem:[%s3 + $0x64] sm:$0xf] %v1575
  %1640 = vst [vmem:[%s3 + $0x68] sm:$0xf] %v1576
  %1641 = vst [vmem:[%s3 + $0x6c] sm:$0xf] %v1577
  %1642 = vst [vmem:[%s3 + $0x70] sm:$0xf] %v1578
  %1643 = vst [vmem:[%s3 + $0x74] sm:$0xf] %v1579
  %1644 = vst [vmem:[%s3 + $0x78] sm:$0xf] %v1580
  %1645 = vst [vmem:[%s3 + $0x7c] sm:$0xf] %v1581
  // Predicated region
  $region14: #{forward.2} parent=0 // pred_check
    _
  $region15: #{forward.2} parent=0 // pred_check_branch
    %1647 = sbr.rel (0) target = $region17
  $region16: #{forward.2} parent=0 // pred_region
    _
  $region17: #{forward.2} parent=0 // pred_fallthru
    _
  // Predicated region
  $region18: #{forward.2} parent=0 // pred_check
    _
  $region19: #{forward.2} parent=0 // pred_check_branch
    %1649 = sbr.rel (0) target = $region21
  $region20: #{forward.2} parent=0 // pred_region
    _
  $region21: #{forward.2} parent=0 // pred_fallthru
    _

// kernel: forward.3
$region0: #{forward.3}
  #allocation0 [shape = 'u32[]', space=smem, size = 0x4, offset = 0x4, fixed_abs, tag = 'smem constant byte address 0x4 - core index']
  #allocation1 [shape = 'u32[144,128]{1,0:T(1,128)}', space=vmem, size = 0x12000, scoped, tag = 'internal scratch']
  %s0 = inlined_call_operand.vmem [shape: bf16[4,256,576], index: 0, kind: input, shape index: {}]
  %s1 = inlined_call_operand.vmem [shape: bf16[576,128], index: 1, kind: input, shape index: {}]
  %s2 = inlined_call_operand.vmem [shape: f32[1,128], index: 2, kind: input, shape index: {}]
  %s3 = inlined_call_operand.vmem [shape: bf16[128,256], index: 3, kind: input, shape index: {}]
  %s4 = inlined_call_operand.vmem [shape: f32[1,256], index: 4, kind: input, shape index: {}]
  %s5 = inlined_call_operand.vmem [shape: bf16[256,512], index: 5, kind: input, shape index: {}]
  %s6 = inlined_call_operand.vmem [shape: f32[1,512], index: 6, kind: input, shape index: {}]
  %s7 = inlined_call_operand.vmem [shape: bf16[512,1024], index: 7, kind: input, shape index: {}]
  %s8 = inlined_call_operand.vmem [shape: f32[1,1024], index: 8, kind: input, shape index: {}]
  %s9 = inlined_call_operand.vmem [shape: bf16[1024,256], index: 9, kind: input, shape index: {}]
  %s10 = inlined_call_operand.vmem [shape: f32[1,256], index: 10, kind: input, shape index: {}]
  %s11 = inlined_call_operand.vmem [shape: bf16[256,256], index: 11, kind: output, shape index: {}]
  %s12 = sld [smem:[#allocation0]]
  $region54: #{forward.3} parent=0
    _
  %s14 = ssub.s32 1, %s12
  %s15 = scalar_select 0, %s14, %s12
  // Predicated region
  $region2: #{forward.3} parent=0 // pred_check
    _
  $region3: #{forward.3} parent=0 // pred_check_branch
    %17 = sbr.rel (0) target = $region5
  $region4: #{forward.3} parent=0 // pred_region
    _
  $region5: #{forward.3} parent=0 // pred_fallthru
    _
  // Predicated region
  $region6: #{forward.3} parent=0 // pred_check
    _
  $region7: #{forward.3} parent=0 // pred_check_branch
    %19 = sbr.rel (0) target = $region9
  $region8: #{forward.3} parent=0 // pred_region
    _
  $region9: #{forward.3} parent=0 // pred_fallthru
    _
  // Predicated region
  $region10: #{forward.3} parent=0 // pred_check
    _
  $region11: #{forward.3} parent=0 // pred_check_branch
    %21 = sbr.rel (0) target = $region13
  $region12: #{forward.3} parent=0 // pred_region
    _
  $region13: #{forward.3} parent=0 // pred_fallthru
    _
  // Predicated region
  $region14: #{forward.3} parent=0 // pred_check
    _
  $region15: #{forward.3} parent=0 // pred_check_branch
    %23 = sbr.rel (0) target = $region17
  $region16: #{forward.3} parent=0 // pred_region
    _
  $region17: #{forward.3} parent=0 // pred_fallthru
    _
  // Predicated region
  $region18: #{forward.3} parent=0 // pred_check
    _
  $region19: #{forward.3} parent=0 // pred_check_branch
    %25 = sbr.rel (0) target = $region21
  $region20: #{forward.3} parent=0 // pred_region
    _
  $region21: #{forward.3} parent=0 // pred_fallthru
    _
  // Predicated region
  $region22: #{forward.3} parent=0 // pred_check
    _
  $region23: #{forward.3} parent=0 // pred_check_branch
    %27 = sbr.rel (0) target = $region25
  $region24: #{forward.3} parent=0 // pred_region
    _
  $region25: #{forward.3} parent=0 // pred_fallthru
    _
  // Predicated region
  $region26: #{forward.3} parent=0 // pred_check
    _
  $region27: #{forward.3} parent=0 // pred_check_branch
    %29 = sbr.rel (0) target = $region29
  $region28: #{forward.3} parent=0 // pred_region
    _
  $region29: #{forward.3} parent=0 // pred_fallthru
    _
  // Predicated region
  $region30: #{forward.3} parent=0 // pred_check
    _
  $region31: #{forward.3} parent=0 // pred_check_branch
    %31 = sbr.rel (0) target = $region33
  $region32: #{forward.3} parent=0 // pred_region
    _
  $region33: #{forward.3} parent=0 // pred_fallthru
    _
  // Predicated region
  $region34: #{forward.3} parent=0 // pred_check
    _
  $region35: #{forward.3} parent=0 // pred_check_branch
    %33 = sbr.rel (0) target = $region37
  $region36: #{forward.3} parent=0 // pred_region
    _
  $region37: #{forward.3} parent=0 // pred_fallthru
    _
  // Predicated region
  $region38: #{forward.3} parent=0 // pred_check
    _
  $region39: #{forward.3} parent=0 // pred_check_branch
    %35 = sbr.rel (0) target = $region41
  $region40: #{forward.3} parent=0 // pred_region
    _
  $region41: #{forward.3} parent=0 // pred_fallthru
    _
  // Predicated region
  $region42: #{forward.3} parent=0 // pred_check
    _
  $region43: #{forward.3} parent=0 // pred_check_branch
    %37 = sbr.rel (0) target = $region45
  $region44: #{forward.3} parent=0 // pred_region
    _
  $region45: #{forward.3} parent=0 // pred_fallthru
    _
  %v39 = vld [vmem:[%s1] sm:$0xf]
  %v40 = vld [vmem:[%s1 + $0x4] sm:$0xf]
  %v41 = vld [vmem:[%s1 + $0x8] sm:$0xf]
  %v42 = vld [vmem:[%s1 + $0xc] sm:$0xf]
  %v43 = vld [vmem:[%s1 + $0x10] sm:$0xf]
  %v44 = vld [vmem:[%s1 + $0x14] sm:$0xf]
  %v45 = vld [vmem:[%s1 + $0x18] sm:$0xf]
  %v46 = vld [vmem:[%s1 + $0x1c] sm:$0xf]
  %v47 = vld [vmem:[%s1 + $0x20] sm:$0xf]
  %v48 = vld [vmem:[%s1 + $0x24] sm:$0xf]
  %v49 = vld [vmem:[%s1 + $0x28] sm:$0xf]
  %v50 = vld [vmem:[%s1 + $0x2c] sm:$0xf]
  %v51 = vld [vmem:[%s1 + $0x30] sm:$0xf]
  %v52 = vld [vmem:[%s1 + $0x34] sm:$0xf]
  %v53 = vld [vmem:[%s1 + $0x38] sm:$0xf]
  %v54 = vld [vmem:[%s1 + $0x3c] sm:$0xf]
  %v55 = vld [vmem:[%s1 + $0x40] sm:$0xf]
  %v56 = vld [vmem:[%s1 + $0x44] sm:$0xf]
  %v57 = vld [vmem:[%s1 + $0x48] sm:$0xf]
  %v58 = vld [vmem:[%s1 + $0x4c] sm:$0xf]
  %v59 = vld [vmem:[%s1 + $0x50] sm:$0xf]
  %v60 = vld [vmem:[%s1 + $0x54] sm:$0xf]
  %v61 = vld [vmem:[%s1 + $0x58] sm:$0xf]
  %v62 = vld [vmem:[%s1 + $0x5c] sm:$0xf]
  %v63 = vld [vmem:[%s1 + $0x60] sm:$0xf]
  %v64 = vld [vmem:[%s1 + $0x64] sm:$0xf]
  %v65 = vld [vmem:[%s1 + $0x68] sm:$0xf]
  %v66 = vld [vmem:[%s1 + $0x6c] sm:$0xf]
  %v67 = vld [vmem:[%s1 + $0x70] sm:$0xf]
  %v68 = vld [vmem:[%s1 + $0x74] sm:$0xf]
  %v69 = vld [vmem:[%s1 + $0x78] sm:$0xf]
  %v70 = vld [vmem:[%s1 + $0x7c] sm:$0xf]
  %v71 = vld [vmem:[%s1 + $0x80] sm:$0xf]
  %v72 = vld [vmem:[%s1 + $0x84] sm:$0xf]
  %v73 = vld [vmem:[%s1 + $0x88] sm:$0xf]
  %v74 = vld [vmem:[%s1 + $0x8c] sm:$0xf]
  %v75 = vld [vmem:[%s1 + $0x90] sm:$0xf]
  %v76 = vld [vmem:[%s1 + $0x94] sm:$0xf]
  %v77 = vld [vmem:[%s1 + $0x98] sm:$0xf]
  %v78 = vld [vmem:[%s1 + $0x9c] sm:$0xf]
  %v79 = vld [vmem:[%s1 + $0xa0] sm:$0xf]
  %v80 = vld [vmem:[%s1 + $0xa4] sm:$0xf]
  %v81 = vld [vmem:[%s1 + $0xa8] sm:$0xf]
  %v82 = vld [vmem:[%s1 + $0xac] sm:$0xf]
  %v83 = vld [vmem:[%s1 + $0xb0] sm:$0xf]
  %v84 = vld [vmem:[%s1 + $0xb4] sm:$0xf]
  %v85 = vld [vmem:[%s1 + $0xb8] sm:$0xf]
  %v86 = vld [vmem:[%s1 + $0xbc] sm:$0xf]
  %v87 = vld [vmem:[%s1 + $0xc0] sm:$0xf]
  %v88 = vld [vmem:[%s1 + $0xc4] sm:$0xf]
  %v89 = vld [vmem:[%s1 + $0xc8] sm:$0xf]
  %v90 = vld [vmem:[%s1 + $0xcc] sm:$0xf]
  %v91 = vld [vmem:[%s1 + $0xd0] sm:$0xf]
  %v92 = vld [vmem:[%s1 + $0xd4] sm:$0xf]
  %v93 = vld [vmem:[%s1 + $0xd8] sm:$0xf]
  %v94 = vld [vmem:[%s1 + $0xdc] sm:$0xf]
  %v95 = vld [vmem:[%s1 + $0xe0] sm:$0xf]
  %v96 = vld [vmem:[%s1 + $0xe4] sm:$0xf]
  %v97 = vld [vmem:[%s1 + $0xe8] sm:$0xf]
  %v98 = vld [vmem:[%s1 + $0xec] sm:$0xf]
  %v99 = vld [vmem:[%s1 + $0xf0] sm:$0xf]
  %v100 = vld [vmem:[%s1 + $0xf4] sm:$0xf]
  %v101 = vld [vmem:[%s1 + $0xf8] sm:$0xf]
  %v102 = vld [vmem:[%s1 + $0xfc] sm:$0xf]
  %v103 = vld [vmem:[%s1 + $0x100] sm:$0xf]
  %v104 = vld [vmem:[%s1 + $0x104] sm:$0xf]
  %v105 = vld [vmem:[%s1 + $0x108] sm:$0xf]
  %v106 = vld [vmem:[%s1 + $0x10c] sm:$0xf]
  %v107 = vld [vmem:[%s1 + $0x110] sm:$0xf]
  %v108 = vld [vmem:[%s1 + $0x114] sm:$0xf]
  %v109 = vld [vmem:[%s1 + $0x118] sm:$0xf]
  %v110 = vld [vmem:[%s1 + $0x11c] sm:$0xf]
  %v111 = vld [vmem:[%s0] sm:$0xff]
  %v112 = vld [vmem:[%s0 + $0x8] sm:$0xff]
  %v113 = vld [vmem:[%s0 + $0x10] sm:$0xf]
  %v114 = vld [vmem:[%s0 + $0x14] sm:$0xff]
  %v115 = vld [vmem:[%s0 + $0x1c] sm:$0xff]
  %v116 = vld [vmem:[%s0 + $0x24] sm:$0xf]
  %v117 = vld [vmem:[%s0 + $0x28] sm:$0xff]
  %v118 = vld [vmem:[%s0 + $0x30] sm:$0xff]
  %v119 = vld [vmem:[%s0 + $0x38] sm:$0xf]
  %v120 = vld [vmem:[%s0 + $0x3c] sm:$0xff]
  %v121 = vld [vmem:[%s0 + $0x44] sm:$0xff]
  %v122 = vld [vmem:[%s0 + $0x4c] sm:$0xf]
  %v123 = vld [vmem:[%s0 + $0x50] sm:$0xff]
  %v124 = vld [vmem:[%s0 + $0x58] sm:$0xff]
  %v125 = vld [vmem:[%s0 + $0x60] sm:$0xf]
  %v126 = vld [vmem:[%s0 + $0x64] sm:$0xff]
  %v127 = vld [vmem:[%s0 + $0x6c] sm:$0xff]
  %v128 = vld [vmem:[%s0 + $0x74] sm:$0xf]
  %v129 = vld [vmem:[%s0 + $0x78] sm:$0xff]
  %v130 = vld [vmem:[%s0 + $0x80] sm:$0xff]
  %v131 = vld [vmem:[%s0 + $0x88] sm:$0xf]
  %v132 = vld [vmem:[%s0 + $0x8c] sm:$0xff]
  %v133 = vld [vmem:[%s0 + $0x94] sm:$0xff]
  %v134 = vld [vmem:[%s0 + $0x9c] sm:$0xf]
  %v135 = vld [vmem:[%s0 + $0xa0] sm:$0xff]
  %v136 = vld [vmem:[%s0 + $0xa8] sm:$0xff]
  %v137 = vld [vmem:[%s0 + $0xb0] sm:$0xf]
  %v138 = vld [vmem:[%s0 + $0xb4] sm:$0xff]
  %v139 = vld [vmem:[%s0 + $0xbc] sm:$0xff]
  %v140 = vld [vmem:[%s0 + $0xc4] sm:$0xf]
  %v141 = vld [vmem:[%s0 + $0xc8] sm:$0xff]
  %v142 = vld [vmem:[%s0 + $0xd0] sm:$0xff]
  %v143 = vld [vmem:[%s0 + $0xd8] sm:$0xf]
  %v144 = vld [vmem:[%s0 + $0xdc] sm:$0xff]
  %v145 = vld [vmem:[%s0 + $0xe4] sm:$0xff]
  %v146 = vld [vmem:[%s0 + $0xec] sm:$0xf]
  %v147 = vld [vmem:[%s0 + $0xf0] sm:$0xff]
  %v148 = vld [vmem:[%s0 + $0xf8] sm:$0xff]
  %v149 = vld [vmem:[%s0 + $0x100] sm:$0xf]
  %v150 = vld [vmem:[%s0 + $0x104] sm:$0xff]
  %v151 = vld [vmem:[%s0 + $0x10c] sm:$0xff]
  %v152 = vld [vmem:[%s0 + $0x114] sm:$0xf]
  %v153 = vld [vmem:[%s0 + $0x118] sm:$0xff]
  %v154 = vld [vmem:[%s0 + $0x120] sm:$0xff]
  %v155 = vld [vmem:[%s0 + $0x128] sm:$0xf]
  %v156 = vld [vmem:[%s0 + $0x12c] sm:$0xff]
  %v157 = vld [vmem:[%s0 + $0x134] sm:$0xff]
  %v158 = vld [vmem:[%s0 + $0x13c] sm:$0xf]
  %v159 = vld [vmem:[%s0 + $0x140] sm:$0xff]
  %v160 = vld [vmem:[%s0 + $0x148] sm:$0xff]
  %v161 = vld [vmem:[%s0 + $0x150] sm:$0xf]
  %v162 = vld [vmem:[%s0 + $0x154] sm:$0xff]
  %v163 = vld [vmem:[%s0 + $0x15c] sm:$0xff]
  %v164 = vld [vmem:[%s0 + $0x164] sm:$0xf]
  %v165 = vld [vmem:[%s0 + $0x168] sm:$0xff]
  %v166 = vld [vmem:[%s0 + $0x170] sm:$0xff]
  %v167 = vld [vmem:[%s0 + $0x178] sm:$0xf]
  %v168 = vld [vmem:[%s0 + $0x17c] sm:$0xff]
  %v169 = vld [vmem:[%s0 + $0x184] sm:$0xff]
  %v170 = vld [vmem:[%s0 + $0x18c] sm:$0xf]
  %v171 = vld [vmem:[%s0 + $0x190] sm:$0xff]
  %v172 = vld [vmem:[%s0 + $0x198] sm:$0xff]
  %v173 = vld [vmem:[%s0 + $0x1a0] sm:$0xf]
  %v174 = vld [vmem:[%s0 + $0x1a4] sm:$0xff]
  %v175 = vld [vmem:[%s0 + $0x1ac] sm:$0xff]
  %v176 = vld [vmem:[%s0 + $0x1b4] sm:$0xf]
  %v177 = vld [vmem:[%s0 + $0x1b8] sm:$0xff]
  %v178 = vld [vmem:[%s0 + $0x1c0] sm:$0xff]
  %v179 = vld [vmem:[%s0 + $0x1c8] sm:$0xf]
  %v180 = vld [vmem:[%s0 + $0x1cc] sm:$0xff]
  %v181 = vld [vmem:[%s0 + $0x1d4] sm:$0xff]
  %v182 = vld [vmem:[%s0 + $0x1dc] sm:$0xf]
  %v183 = vld [vmem:[%s0 + $0x1e0] sm:$0xff]
  %v184 = vld [vmem:[%s0 + $0x1e8] sm:$0xff]
  %v185 = vld [vmem:[%s0 + $0x1f0] sm:$0xf]
  %v186 = vld [vmem:[%s0 + $0x1f4] sm:$0xff]
  %v187 = vld [vmem:[%s0 + $0x1fc] sm:$0xff]
  %v188 = vld [vmem:[%s0 + $0x204] sm:$0xf]
  %v189 = vld [vmem:[%s0 + $0x208] sm:$0xff]
  %v190 = vld [vmem:[%s0 + $0x210] sm:$0xff]
  %v191 = vld [vmem:[%s0 + $0x218] sm:$0xf]
  %v192 = vld [vmem:[%s0 + $0x21c] sm:$0xff]
  %v193 = vld [vmem:[%s0 + $0x224] sm:$0xff]
  %v194 = vld [vmem:[%s0 + $0x22c] sm:$0xf]
  %v195 = vld [vmem:[%s0 + $0x230] sm:$0xff]
  %v196 = vld [vmem:[%s0 + $0x238] sm:$0xff]
  %v197 = vld [vmem:[%s0 + $0x240] sm:$0xf]
  %v198 = vld [vmem:[%s0 + $0x244] sm:$0xff]
  %v199 = vld [vmem:[%s0 + $0x24c] sm:$0xff]
  %v200 = vld [vmem:[%s0 + $0x254] sm:$0xf]
  %v201 = vld [vmem:[%s0 + $0x258] sm:$0xff]
  %v202 = vld [vmem:[%s0 + $0x260] sm:$0xff]
  %v203 = vld [vmem:[%s0 + $0x268] sm:$0xf]
  %v204 = vld [vmem:[%s0 + $0x26c] sm:$0xff]
  %v205 = vld [vmem:[%s0 + $0x274] sm:$0xff]
  %v206 = vld [vmem:[%s0 + $0x27c] sm:$0xf]
  %v303 = vunpack.c.l.b16 %v111
  %v304 = vunpack.c.h.b16 %v111
  %v305 = vunpack.c.l.b16 %v112
  %v306 = vunpack.c.h.b16 %v112
  %v307 = vunpack.c.l.b16 %v113
  %v308 = vunpack.c.l.b16 %v114
  %v309 = vunpack.c.h.b16 %v114
  %v310 = vunpack.c.l.b16 %v115
  %v311 = vunpack.c.h.b16 %v115
  %v312 = vunpack.c.l.b16 %v116
  %v313 = vunpack.c.l.b16 %v117
  %v314 = vunpack.c.h.b16 %v117
  %v315 = vunpack.c.l.b16 %v118
  %v316 = vunpack.c.h.b16 %v118
  %v317 = vunpack.c.l.b16 %v119
  %v318 = vunpack.c.l.b16 %v120
  %v319 = vunpack.c.h.b16 %v120
  %v320 = vunpack.c.l.b16 %v121
  %v321 = vunpack.c.h.b16 %v121
  %v322 = vunpack.c.l.b16 %v122
  %v323 = vunpack.c.l.b16 %v123
  %v324 = vunpack.c.h.b16 %v123
  %v325 = vunpack.c.l.b16 %v124
  %v326 = vunpack.c.h.b16 %v124
  %v327 = vunpack.c.l.b16 %v125
  %v328 = vunpack.c.l.b16 %v126
  %v329 = vunpack.c.h.b16 %v126
  %v330 = vunpack.c.l.b16 %v127
  %v331 = vunpack.c.h.b16 %v127
  %v332 = vunpack.c.l.b16 %v128
  %v333 = vunpack.c.l.b16 %v129
  %v334 = vunpack.c.h.b16 %v129
  %v335 = vunpack.c.l.b16 %v130
  %v336 = vunpack.c.h.b16 %v130
  %v337 = vunpack.c.l.b16 %v131
  %v338 = vunpack.c.l.b16 %v132
  %v339 = vunpack.c.h.b16 %v132
  %v340 = vunpack.c.l.b16 %v133
  %v341 = vunpack.c.h.b16 %v133
  %v342 = vunpack.c.l.b16 %v134
  %v343 = vunpack.c.l.b16 %v135
  %v344 = vunpack.c.h.b16 %v135
  %v345 = vunpack.c.l.b16 %v136
  %v346 = vunpack.c.h.b16 %v136
  %v347 = vunpack.c.l.b16 %v137
  %v348 = vunpack.c.l.b16 %v138
  %v349 = vunpack.c.h.b16 %v138
  %v350 = vunpack.c.l.b16 %v139
  %v351 = vunpack.c.h.b16 %v139
  %v352 = vunpack.c.l.b16 %v140
  %v353 = vunpack.c.l.b16 %v141
  %v354 = vunpack.c.h.b16 %v141
  %v355 = vunpack.c.l.b16 %v142
  %v356 = vunpack.c.h.b16 %v142
  %v357 = vunpack.c.l.b16 %v143
  %v358 = vunpack.c.l.b16 %v144
  %v359 = vunpack.c.h.b16 %v144
  %v360 = vunpack.c.l.b16 %v145
  %v361 = vunpack.c.h.b16 %v145
  %v362 = vunpack.c.l.b16 %v146
  %v363 = vunpack.c.l.b16 %v147
  %v364 = vunpack.c.h.b16 %v147
  %v365 = vunpack.c.l.b16 %v148
  %v366 = vunpack.c.h.b16 %v148
  %v367 = vunpack.c.l.b16 %v149
  %v368 = vunpack.c.l.b16 %v150
  %v369 = vunpack.c.h.b16 %v150
  %v370 = vunpack.c.l.b16 %v151
  %v371 = vunpack.c.h.b16 %v151
  %v372 = vunpack.c.l.b16 %v152
  %v373 = vunpack.c.l.b16 %v153
  %v374 = vunpack.c.h.b16 %v153
  %v375 = vunpack.c.l.b16 %v154
  %v376 = vunpack.c.h.b16 %v154
  %v377 = vunpack.c.l.b16 %v155
  %v378 = vunpack.c.l.b16 %v156
  %v379 = vunpack.c.h.b16 %v156
  %v380 = vunpack.c.l.b16 %v157
  %v381 = vunpack.c.h.b16 %v157
  %v382 = vunpack.c.l.b16 %v158
  %v383 = vunpack.c.l.b16 %v159
  %v384 = vunpack.c.h.b16 %v159
  %v385 = vunpack.c.l.b16 %v160
  %v386 = vunpack.c.h.b16 %v160
  %v387 = vunpack.c.l.b16 %v161
  %v388 = vunpack.c.l.b16 %v162
  %v389 = vunpack.c.h.b16 %v162
  %v390 = vunpack.c.l.b16 %v163
  %v391 = vunpack.c.h.b16 %v163
  %v392 = vunpack.c.l.b16 %v164
  %v393 = vunpack.c.l.b16 %v165
  %v394 = vunpack.c.h.b16 %v165
  %v395 = vunpack.c.l.b16 %v166
  %v396 = vunpack.c.h.b16 %v166
  %v397 = vunpack.c.l.b16 %v167
  %v398 = vunpack.c.l.b16 %v168
  %v399 = vunpack.c.h.b16 %v168
  %v400 = vunpack.c.l.b16 %v169
  %v401 = vunpack.c.h.b16 %v169
  %v402 = vunpack.c.l.b16 %v170
  %v403 = vunpack.c.l.b16 %v171
  %v404 = vunpack.c.h.b16 %v171
  %v405 = vunpack.c.l.b16 %v172
  %v406 = vunpack.c.h.b16 %v172
  %v407 = vunpack.c.l.b16 %v173
  %v408 = vunpack.c.l.b16 %v174
  %v409 = vunpack.c.h.b16 %v174
  %v410 = vunpack.c.l.b16 %v175
  %v411 = vunpack.c.h.b16 %v175
  %v412 = vunpack.c.l.b16 %v176
  %v413 = vunpack.c.l.b16 %v177
  %v414 = vunpack.c.h.b16 %v177
  %v415 = vunpack.c.l.b16 %v178
  %v416 = vunpack.c.h.b16 %v178
  %v417 = vunpack.c.l.b16 %v179
  %v418 = vunpack.c.l.b16 %v180
  %v419 = vunpack.c.h.b16 %v180
  %v420 = vunpack.c.l.b16 %v181
  %v421 = vunpack.c.h.b16 %v181
  %v422 = vunpack.c.l.b16 %v182
  %v423 = vunpack.c.l.b16 %v183
  %v424 = vunpack.c.h.b16 %v183
  %v425 = vunpack.c.l.b16 %v184
  %v426 = vunpack.c.h.b16 %v184
  %v427 = vunpack.c.l.b16 %v185
  %v428 = vunpack.c.l.b16 %v186
  %v429 = vunpack.c.h.b16 %v186
  %v430 = vunpack.c.l.b16 %v187
  %v431 = vunpack.c.h.b16 %v187
  %v432 = vunpack.c.l.b16 %v188
  %v433 = vunpack.c.l.b16 %v189
  %v434 = vunpack.c.h.b16 %v189
  %v435 = vunpack.c.l.b16 %v190
  %v436 = vunpack.c.h.b16 %v190
  %v437 = vunpack.c.l.b16 %v191
  %v438 = vunpack.c.l.b16 %v192
  %v439 = vunpack.c.h.b16 %v192
  %v440 = vunpack.c.l.b16 %v193
  %v441 = vunpack.c.h.b16 %v193
  %v442 = vunpack.c.l.b16 %v194
  %v443 = vunpack.c.l.b16 %v195
  %v444 = vunpack.c.h.b16 %v195
  %v445 = vunpack.c.l.b16 %v196
  %v446 = vunpack.c.h.b16 %v196
  %v447 = vunpack.c.l.b16 %v197
  %v448 = vunpack.c.l.b16 %v198
  %v449 = vunpack.c.h.b16 %v198
  %v450 = vunpack.c.l.b16 %v199
  %v451 = vunpack.c.h.b16 %v199
  %v452 = vunpack.c.l.b16 %v200
  %v453 = vunpack.c.l.b16 %v201
  %v454 = vunpack.c.h.b16 %v201
  %v455 = vunpack.c.l.b16 %v202
  %v456 = vunpack.c.h.b16 %v202
  %v457 = vunpack.c.l.b16 %v203
  %v458 = vunpack.c.l.b16 %v204
  %v459 = vunpack.c.h.b16 %v204
  %v460 = vunpack.c.l.b16 %v205
  %v461 = vunpack.c.h.b16 %v205
  %v462 = vunpack.c.l.b16 %v206
  %v463 = vpack.c.b16 %v308, %v303
  %v464 = vpack.c.b16 %v309, %v304
  %v465 = vpack.c.b16 %v310, %v305
  %v466 = vpack.c.b16 %v311, %v306
  %v467 = vpack.c.b16 %v312, %v307
  %v468 = vpack.c.b16 %v318, %v313
  %v469 = vpack.c.b16 %v319, %v314
  %v470 = vpack.c.b16 %v320, %v315
  %v471 = vpack.c.b16 %v321, %v316
  %v472 = vpack.c.b16 %v322, %v317
  %v473 = vpack.c.b16 %v328, %v323
  %v474 = vpack.c.b16 %v329, %v324
  %v475 = vpack.c.b16 %v330, %v325
  %v476 = vpack.c.b16 %v331, %v326
  %v477 = vpack.c.b16 %v332, %v327
  %v478 = vpack.c.b16 %v338, %v333
  %v479 = vpack.c.b16 %v339, %v334
  %v480 = vpack.c.b16 %v340, %v335
  %v481 = vpack.c.b16 %v341, %v336
  %v482 = vpack.c.b16 %v342, %v337
  %v483 = vpack.c.b16 %v348, %v343
  %v484 = vpack.c.b16 %v349, %v344
  %v485 = vpack.c.b16 %v350, %v345
  %v486 = vpack.c.b16 %v351, %v346
  %v487 = vpack.c.b16 %v352, %v347
  %v488 = vpack.c.b16 %v358, %v353
  %v489 = vpack.c.b16 %v359, %v354
  %v490 = vpack.c.b16 %v360, %v355
  %v491 = vpack.c.b16 %v361, %v356
  %v492 = vpack.c.b16 %v362, %v357
  %v493 = vpack.c.b16 %v368, %v363
  %v494 = vpack.c.b16 %v369, %v364
  %v495 = vpack.c.b16 %v370, %v365
  %v496 = vpack.c.b16 %v371, %v366
  %v497 = vpack.c.b16 %v372, %v367
  %v498 = vpack.c.b16 %v378, %v373
  %v499 = vpack.c.b16 %v379, %v374
  %v500 = vpack.c.b16 %v380, %v375
  %v501 = vpack.c.b16 %v381, %v376
  %v502 = vpack.c.b16 %v382, %v377
  %v503 = vpack.c.b16 %v388, %v383
  %v504 = vpack.c.b16 %v389, %v384
  %v505 = vpack.c.b16 %v390, %v385
  %v506 = vpack.c.b16 %v391, %v386
  %v507 = vpack.c.b16 %v392, %v387
  %v508 = vpack.c.b16 %v398, %v393
  %v509 = vpack.c.b16 %v399, %v394
  %v510 = vpack.c.b16 %v400, %v395
  %v511 = vpack.c.b16 %v401, %v396
  %v512 = vpack.c.b16 %v402, %v397
  %v513 = vpack.c.b16 %v408, %v403
  %v514 = vpack.c.b16 %v409, %v404
  %v515 = vpack.c.b16 %v410, %v405
  %v516 = vpack.c.b16 %v411, %v406
  %v517 = vpack.c.b16 %v412, %v407
  %v518 = vpack.c.b16 %v418, %v413
  %v519 = vpack.c.b16 %v419, %v414
  %v520 = vpack.c.b16 %v420, %v415
  %v521 = vpack.c.b16 %v421, %v416
  %v522 = vpack.c.b16 %v422, %v417
  %v523 = vpack.c.b16 %v428, %v423
  %v524 = vpack.c.b16 %v429, %v424
  %v525 = vpack.c.b16 %v430, %v425
  %v526 = vpack.c.b16 %v431, %v426
  %v527 = vpack.c.b16 %v432, %v427
  %v528 = vpack.c.b16 %v438, %v433
  %v529 = vpack.c.b16 %v439, %v434
  %v530 = vpack.c.b16 %v440, %v435
  %v531 = vpack.c.b16 %v441, %v436
  %v532 = vpack.c.b16 %v442, %v437
  %v533 = vpack.c.b16 %v448, %v443
  %v534 = vpack.c.b16 %v449, %v444
  %v535 = vpack.c.b16 %v450, %v445
  %v536 = vpack.c.b16 %v451, %v446
  %v537 = vpack.c.b16 %v452, %v447
  %v538 = vpack.c.b16 %v458, %v453
  %v539 = vpack.c.b16 %v459, %v454
  %v540 = vpack.c.b16 %v460, %v455
  %v541 = vpack.c.b16 %v461, %v456
  %v542 = vpack.c.b16 %v462, %v457
  %v679 = vunpack.c.l.b16 %v39
  %v680 = vunpack.c.l.b16 %v40
  %v681 = vunpack.c.l.b16 %v41
  %v682 = vunpack.c.l.b16 %v42
  %v683 = vunpack.c.l.b16 %v43
  %v684 = vunpack.c.l.b16 %v44
  %v685 = vunpack.c.l.b16 %v45
  %v686 = vunpack.c.l.b16 %v46
  %v687 = vunpack.c.l.b16 %v47
  %v688 = vunpack.c.l.b16 %v48
  %v689 = vunpack.c.l.b16 %v49
  %v690 = vunpack.c.l.b16 %v50
  %v691 = vunpack.c.l.b16 %v51
  %v692 = vunpack.c.l.b16 %v52
  %v693 = vunpack.c.l.b16 %v53
  %v694 = vunpack.c.l.b16 %v54
  %v695 = vunpack.c.l.b16 %v55
  %v696 = vunpack.c.l.b16 %v56
  %v697 = vunpack.c.l.b16 %v57
  %v698 = vunpack.c.l.b16 %v58
  %v699 = vunpack.c.l.b16 %v59
  %v700 = vunpack.c.l.b16 %v60
  %v701 = vunpack.c.l.b16 %v61
  %v702 = vunpack.c.l.b16 %v62
  %v703 = vunpack.c.l.b16 %v63
  %v704 = vunpack.c.l.b16 %v64
  %v705 = vunpack.c.l.b16 %v65
  %v706 = vunpack.c.l.b16 %v66
  %v707 = vunpack.c.l.b16 %v67
  %v708 = vunpack.c.l.b16 %v68
  %v709 = vunpack.c.l.b16 %v69
  %v710 = vunpack.c.l.b16 %v70
  %v711 = vunpack.c.l.b16 %v71
  %v712 = vunpack.c.l.b16 %v72
  %v713 = vunpack.c.l.b16 %v73
  %v714 = vunpack.c.l.b16 %v74
  %v715 = vunpack.c.l.b16 %v75
  %v716 = vunpack.c.l.b16 %v76
  %v717 = vunpack.c.l.b16 %v77
  %v718 = vunpack.c.l.b16 %v78
  %v719 = vunpack.c.l.b16 %v79
  %v720 = vunpack.c.l.b16 %v80
  %v721 = vunpack.c.l.b16 %v81
  %v722 = vunpack.c.l.b16 %v82
  %v723 = vunpack.c.l.b16 %v83
  %v724 = vunpack.c.l.b16 %v84
  %v725 = vunpack.c.l.b16 %v85
  %v726 = vunpack.c.l.b16 %v86
  %v727 = vunpack.c.l.b16 %v87
  %v728 = vunpack.c.l.b16 %v88
  %v729 = vunpack.c.l.b16 %v89
  %v730 = vunpack.c.l.b16 %v90
  %v731 = vunpack.c.l.b16 %v91
  %v732 = vunpack.c.l.b16 %v92
  %v733 = vunpack.c.l.b16 %v93
  %v734 = vunpack.c.l.b16 %v94
  %v735 = vunpack.c.l.b16 %v95
  %v736 = vunpack.c.l.b16 %v96
  %v737 = vunpack.c.l.b16 %v97
  %v738 = vunpack.c.l.b16 %v98
  %v739 = vunpack.c.l.b16 %v99
  %v740 = vunpack.c.l.b16 %v100
  %v741 = vunpack.c.l.b16 %v101
  %v742 = vunpack.c.l.b16 %v102
  %v743 = vunpack.c.l.b16 %v103
  %v744 = vunpack.c.l.b16 %v104
  %v745 = vunpack.c.l.b16 %v105
  %v746 = vunpack.c.l.b16 %v106
  %v747 = vunpack.c.l.b16 %v107
  %v748 = vunpack.c.l.b16 %v108
  %v749 = vunpack.c.l.b16 %v109
  %v750 = vunpack.c.l.b16 %v110
  %v751 = vpack.c.b16 %v680, %v679
  %v752 = vpack.c.b16 %v682, %v681
  %v753 = vpack.c.b16 %v684, %v683
  %v754 = vpack.c.b16 %v686, %v685
  %v755 = vpack.c.b16 %v688, %v687
  %v756 = vpack.c.b16 %v690, %v689
  %v757 = vpack.c.b16 %v692, %v691
  %v758 = vpack.c.b16 %v694, %v693
  %v759 = vpack.c.b16 %v696, %v695
  %v760 = vpack.c.b16 %v698, %v697
  %v761 = vpack.c.b16 %v700, %v699
  %v762 = vpack.c.b16 %v702, %v701
  %v763 = vpack.c.b16 %v704, %v703
  %v764 = vpack.c.b16 %v706, %v705
  %v765 = vpack.c.b16 %v708, %v707
  %v766 = vpack.c.b16 %v710, %v709
  %v767 = vpack.c.b16 %v712, %v711
  %v768 = vpack.c.b16 %v714, %v713
  %v769 = vpack.c.b16 %v716, %v715
  %v770 = vpack.c.b16 %v718, %v717
  %v771 = vpack.c.b16 %v720, %v719
  %v772 = vpack.c.b16 %v722, %v721
  %v773 = vpack.c.b16 %v724, %v723
  %v774 = vpack.c.b16 %v726, %v725
  %v775 = vpack.c.b16 %v728, %v727
  %v776 = vpack.c.b16 %v730, %v729
  %v777 = vpack.c.b16 %v732, %v731
  %v778 = vpack.c.b16 %v734, %v733
  %v779 = vpack.c.b16 %v736, %v735
  %v780 = vpack.c.b16 %v738, %v737
  %v781 = vpack.c.b16 %v740, %v739
  %v782 = vpack.c.b16 %v742, %v741
  %v783 = vpack.c.b16 %v744, %v743
  %v784 = vpack.c.b16 %v746, %v745
  %v785 = vpack.c.b16 %v748, %v747
  %v786 = vpack.c.b16 %v750, %v749
  %vm823 = vcmask 523264
  %v825 = vsel %vm823, %v467, 0
  %v828 = vsel %vm823, %v472, 0
  %v831 = vsel %vm823, %v477, 0
  %v834 = vsel %vm823, %v482, 0
  %v837 = vsel %vm823, %v487, 0
  %v840 = vsel %vm823, %v492, 0
  %v843 = vsel %vm823, %v497, 0
  %v846 = vsel %vm823, %v502, 0
  %v849 = vsel %vm823, %v507, 0
  %v852 = vsel %vm823, %v512, 0
  %v855 = vsel %vm823, %v517, 0
  %v858 = vsel %vm823, %v522, 0
  %v861 = vsel %vm823, %v527, 0
  %v864 = vsel %vm823, %v532, 0
  %v867 = vsel %vm823, %v537, 0
  %v870 = vsel %vm823, %v542, 0
  %872 = vmatprep.subr.bf16.mxu0 0
  %873 = vmatpush1.bf16.msra.mxu0 %v751
  %874 = vmatprep.subr.bf16.mxu0 0
  %875 = vmatpush1.bf16.msra.mxu0 %v752
  %876 = vmatprep.subr.bf16.mxu0 0
  %877 = vmatpush1.bf16.msra.mxu0 %v753
  %878 = vmatprep.subr.bf16.mxu0 0
  %879 = vmatpush1.bf16.msra.mxu0 %v754
  %880 = vmatprep.subr.bf16.mxu0 0
  %881 = vmatpush1.bf16.msra.mxu0 %v755
  %882 = vmatprep.subr.bf16.mxu0 0
  %883 = vmatpush1.bf16.msra.mxu0 %v756
  %884 = vmatprep.subr.bf16.mxu0 0
  %885 = vmatpush1.bf16.msra.mxu0 %v757
  %886 = vmatprep.subr.bf16.mxu0 0
  %887 = vmatpush1.bf16.msra.mxu0 %v758
  %888 = vmatprep.subr.bf16.mxu0 0
  %889 = vmatpush1.bf16.msra.mxu0 %v759
  %890 = vmatprep.subr.bf16.mxu0 0
  %891 = vmatpush1.bf16.msra.mxu0 %v760
  %892 = vmatprep.subr.bf16.mxu0 0
  %893 = vmatpush1.bf16.msra.mxu0 %v761
  %894 = vmatprep.subr.bf16.mxu0 0
  %895 = vmatpush1.bf16.msra.mxu0 %v762
  %896 = vmatprep.subr.bf16.mxu0 0
  %897 = vmatpush1.bf16.msra.mxu0 %v763
  %898 = vmatprep.subr.bf16.mxu0 0
  %899 = vmatpush1.bf16.msra.mxu0 %v764
  %900 = vmatprep.subr.bf16.mxu0 0
  %901 = vmatpush1.bf16.msra.mxu0 %v765
  %902 = vmatprep.subr.bf16.mxu0 0
  %903 = vmatpush1.bf16.msra.mxu0 %v766
  %904 = vmatprep.mubr.bf16.mxu0 %v464
  %905 = vmatmul.mubr.bf16.gmra.mrb[0].mxu0 %v463
  %v906 = vpop.f32.mrb[0].mxu0
  %v907 = vadd.f32 0.0, %v906
  %v908 = vpop.f32.mrb[0].mxu0
  %v909 = vpop.f32.mrb[0].mxu0
  %v910 = vadd.f32 0.0, %v909
  %v911 = vpop.f32.mrb[0].mxu0
  %912 = vmatprep.mubr.bf16.mxu0 %v469
  %913 = vmatmul.mubr.bf16.gmra.mrb[0].mxu0 %v468
  %v914 = vpop.f32.mrb[0].mxu0
  %v915 = vadd.f32 0.0, %v914
  %v916 = vpop.f32.mrb[0].mxu0
  %v917 = vpop.f32.mrb[0].mxu0
  %v918 = vadd.f32 0.0, %v917
  %v919 = vpop.f32.mrb[0].mxu0
  %920 = vmatprep.mubr.bf16.mxu0 %v474
  %921 = vmatmul.mubr.bf16.gmra.mrb[0].mxu0 %v473
  %v922 = vpop.f32.mrb[0].mxu0
  %v923 = vadd.f32 0.0, %v922
  %v924 = vpop.f32.mrb[0].mxu0
  %v925 = vpop.f32.mrb[0].mxu0
  %v926 = vadd.f32 0.0, %v925
  %v927 = vpop.f32.mrb[0].mxu0
  %928 = vmatprep.mubr.bf16.mxu0 %v479
  %929 = vmatmul.mubr.bf16.gmra.mrb[0].mxu0 %v478
  %v930 = vpop.f32.mrb[0].mxu0
  %v931 = vadd.f32 0.0, %v930
  %v932 = vpop.f32.mrb[0].mxu0
  %v933 = vpop.f32.mrb[0].mxu0
  %v934 = vadd.f32 0.0, %v933
  %v935 = vpop.f32.mrb[0].mxu0
  %936 = vmatprep.mubr.bf16.mxu0 %v484
  %937 = vmatmul.mubr.bf16.gmra.mrb[0].mxu0 %v483
  %v938 = vpop.f32.mrb[0].mxu0
  %v939 = vadd.f32 0.0, %v938
  %v940 = vpop.f32.mrb[0].mxu0
  %v941 = vpop.f32.mrb[0].mxu0
  %v942 = vadd.f32 0.0, %v941
  %v943 = vpop.f32.mrb[0].mxu0
  %944 = vmatprep.mubr.bf16.mxu0 %v489
  %945 = vmatmul.mubr.bf16.gmra.mrb[0].mxu0 %v488
  %v946 = vpop.f32.mrb[0].mxu0
  %v947 = vadd.f32 0.0, %v946
  %v948 = vpop.f32.mrb[0].mxu0
  %v949 = vpop.f32.mrb[0].mxu0
  %v950 = vadd.f32 0.0, %v949
  %v951 = vpop.f32.mrb[0].mxu0
  %952 = vmatprep.mubr.bf16.mxu0 %v494
  %953 = vmatmul.mubr.bf16.gmra.mrb[0].mxu0 %v493
  %v954 = vpop.f32.mrb[0].mxu0
  %v955 = vadd.f32 0.0, %v954
  %v956 = vpop.f32.mrb[0].mxu0
  %v957 = vpop.f32.mrb[0].mxu0
  %v958 = vadd.f32 0.0, %v957
  %v959 = vpop.f32.mrb[0].mxu0
  %960 = vmatprep.mubr.bf16.mxu0 %v499
  %961 = vmatmul.mubr.bf16.gmra.mrb[0].mxu0 %v498
  %v962 = vpop.f32.mrb[0].mxu0
  %v963 = vadd.f32 0.0, %v962
  %v964 = vpop.f32.mrb[0].mxu0
  %v965 = vpop.f32.mrb[0].mxu0
  %v966 = vadd.f32 0.0, %v965
  %v967 = vpop.f32.mrb[0].mxu0
  %968 = vmatprep.mubr.bf16.mxu0 %v504
  %969 = vmatmul.mubr.bf16.gmra.mrb[0].mxu0 %v503
  %v970 = vpop.f32.mrb[0].mxu0
  %v971 = vadd.f32 0.0, %v970
  %v972 = vpop.f32.mrb[0].mxu0
  %v973 = vpop.f32.mrb[0].mxu0
  %v974 = vadd.f32 0.0, %v973
  %v975 = vpop.f32.mrb[0].mxu0
  %976 = vmatprep.mubr.bf16.mxu0 %v509
  %977 = vmatmul.mubr.bf16.gmra.mrb[0].mxu0 %v508
  %v978 = vpop.f32.mrb[0].mxu0
  %v979 = vadd.f32 0.0, %v978
  %v980 = vpop.f32.mrb[0].mxu0
  %v981 = vpop.f32.mrb[0].mxu0
  %v982 = vadd.f32 0.0, %v981
  %v983 = vpop.f32.mrb[0].mxu0
  %984 = vmatprep.mubr.bf16.mxu0 %v514
  %985 = vmatmul.mubr.bf16.gmra.mrb[0].mxu0 %v513
  %v986 = vpop.f32.mrb[0].mxu0
  %v987 = vadd.f32 0.0, %v986
  %v988 = vpop.f32.mrb[0].mxu0
  %v989 = vpop.f32.mrb[0].mxu0
  %v990 = vadd.f32 0.0, %v989
  %v991 = vpop.f32.mrb[0].mxu0
  %992 = vmatprep.mubr.bf16.mxu0 %v519
  %993 = vmatmul.mubr.bf16.gmra.mrb[0].mxu0 %v518
  %v994 = vpop.f32.mrb[0].mxu0
  %v995 = vadd.f32 0.0, %v994
  %v996 = vpop.f32.mrb[0].mxu0
  %v997 = vpop.f32.mrb[0].mxu0
  %v998 = vadd.f32 0.0, %v997
  %v999 = vpop.f32.mrb[0].mxu0
  %1000 = vmatprep.mubr.bf16.mxu0 %v524
  %1001 = vmatmul.mubr.bf16.gmra.mrb[0].mxu0 %v523
  %v1002 = vpop.f32.mrb[0].mxu0
  %v1003 = vadd.f32 0.0, %v1002
  %v1004 = vpop.f32.mrb[0].mxu0
  %v1005 = vpop.f32.mrb[0].mxu0
  %v1006 = vadd.f32 0.0, %v1005
  %v1007 = vpop.f32.mrb[0].mxu0
  %1008 = vmatprep.mubr.bf16.mxu0 %v529
  %1009 = vmatmul.mubr.bf16.gmra.mrb[0].mxu0 %v528
  %v1010 = vpop.f32.mrb[0].mxu0
  %v1011 = vadd.f32 0.0, %v1010
  %v1012 = vpop.f32.mrb[0].mxu0
  %v1013 = vpop.f32.mrb[0].mxu0
  %v1014 = vadd.f32 0.0, %v1013
  %v1015 = vpop.f32.mrb[0].mxu0
  %1016 = vmatprep.mubr.bf16.mxu0 %v534
  %1017 = vmatmul.mubr.bf16.gmra.mrb[0].mxu0 %v533
  %v1018 = vpop.f32.mrb[0].mxu0
  %v1019 = vadd.f32 0.0, %v1018
  %v1020 = vpop.f32.mrb[0].mxu0
  %v1021 = vpop.f32.mrb[0].mxu0
  %v1022 = vadd.f32 0.0, %v1021
  %v1023 = vpop.f32.mrb[0].mxu0
  %1024 = vmatprep.mubr.bf16.mxu0 %v539
  %1025 = vmatmul.mubr.bf16.gmra.mrb[0].mxu0 %v538
  %v1026 = vpop.f32.mrb[0].mxu0
  %v1027 = vadd.f32 0.0, %v1026
  %v1028 = vpop.f32.mrb[0].mxu0
  %v1029 = vpop.f32.mrb[0].mxu0
  %v1030 = vadd.f32 0.0, %v1029
  %v1031 = vpop.f32.mrb[0].mxu0
  %1032 = vdwg.mxu0
  %1033 = vmatprep.subr.bf16.mxu0 0
  %1034 = vmatpush1.bf16.msra.mxu0 %v767
  %1035 = vmatprep.subr.bf16.mxu0 0
  %1036 = vmatpush1.bf16.msra.mxu0 %v768
  %1037 = vmatprep.subr.bf16.mxu0 0
  %1038 = vmatpush1.bf16.msra.mxu0 %v769
  %1039 = vmatprep.subr.bf16.mxu0 0
  %1040 = vmatpush1.bf16.msra.mxu0 %v770
  %1041 = vmatprep.subr.bf16.mxu0 0
  %1042 = vmatpush1.bf16.msra.mxu0 %v771
  %1043 = vmatprep.subr.bf16.mxu0 0
  %1044 = vmatpush1.bf16.msra.mxu0 %v772
  %1045 = vmatprep.subr.bf16.mxu0 0
  %1046 = vmatpush1.bf16.msra.mxu0 %v773
  %1047 = vmatprep.subr.bf16.mxu0 0
  %1048 = vmatpush1.bf16.msra.mxu0 %v774
  %1049 = vmatprep.subr.bf16.mxu0 0
  %1050 = vmatpush1.bf16.msra.mxu0 %v775
  %1051 = vmatprep.subr.bf16.mxu0 0
  %1052 = vmatpush1.bf16.msra.mxu0 %v776
  %1053 = vmatprep.subr.bf16.mxu0 0
  %1054 = vmatpush1.bf16.msra.mxu0 %v777
  %1055 = vmatprep.subr.bf16.mxu0 0
  %1056 = vmatpush1.bf16.msra.mxu0 %v778
  %1057 = vmatprep.subr.bf16.mxu0 0
  %1058 = vmatpush1.bf16.msra.mxu0 %v779
  %1059 = vmatprep.subr.bf16.mxu0 0
  %1060 = vmatpush1.bf16.msra.mxu0 %v780
  %1061 = vmatprep.subr.bf16.mxu0 0
  %1062 = vmatpush1.bf16.msra.mxu0 %v781
  %1063 = vmatprep.subr.bf16.mxu0 0
  %1064 = vmatpush1.bf16.msra.mxu0 %v782
  %1065 = vmatprep.mubr.bf16.mxu0 %v466
  %1066 = vmatmul.mubr.bf16.gmra.mrb[0].mxu0 %v465
  %v1067 = vpop.f32.mrb[0].mxu0
  %v1068 = vadd.f32 %v907, %v1067
  %v1069 = vpop.f32.mrb[0].mxu0
  %v1070 = vpop.f32.mrb[0].mxu0
  %v1071 = vadd.f32 %v910, %v1070
  %v1072 = vpop.f32.mrb[0].mxu0
  %1073 = vmatprep.mubr.bf16.mxu0 %v471
  %1074 = vmatmul.mubr.bf16.gmra.mrb[0].mxu0 %v470
  %v1075 = vpop.f32.mrb[0].mxu0
  %v1076 = vadd.f32 %v915, %v1075
  %v1077 = vpop.f32.mrb[0].mxu0
  %v1078 = vpop.f32.mrb[0].mxu0
  %v1079 = vadd.f32 %v918, %v1078
  %v1080 = vpop.f32.mrb[0].mxu0
  %1081 = vmatprep.mubr.bf16.mxu0 %v476
  %1082 = vmatmul.mubr.bf16.gmra.mrb[0].mxu0 %v475
  %v1083 = vpop.f32.mrb[0].mxu0
  %v1084 = vadd.f32 %v923, %v1083
  %v1085 = vpop.f32.mrb[0].mxu0
  %v1086 = vpop.f32.mrb[0].mxu0
  %v1087 = vadd.f32 %v926, %v1086
  %v1088 = vpop.f32.mrb[0].mxu0
  %1089 = vmatprep.mubr.bf16.mxu0 %v481
  %1090 = vmatmul.mubr.bf16.gmra.mrb[0].mxu0 %v480
  %v1091 = vpop.f32.mrb[0].mxu0
  %v1092 = vadd.f32 %v931, %v1091
  %v1093 = vpop.f32.mrb[0].mxu0
  %v1094 = vpop.f32.mrb[0].mxu0
  %v1095 = vadd.f32 %v934, %v1094
  %v1096 = vpop.f32.mrb[0].mxu0
  %1097 = vmatprep.mubr.bf16.mxu0 %v486
  %1098 = vmatmul.mubr.bf16.gmra.mrb[0].mxu0 %v485
  %v1099 = vpop.f32.mrb[0].mxu0
  %v1100 = vadd.f32 %v939, %v1099
  %v1101 = vpop.f32.mrb[0].mxu0
  %v1102 = vpop.f32.mrb[0].mxu0
  %v1103 = vadd.f32 %v942, %v1102
  %v1104 = vpop.f32.mrb[0].mxu0
  %1105 = vmatprep.mubr.bf16.mxu0 %v491
  %1106 = vmatmul.mubr.bf16.gmra.mrb[0].mxu0 %v490
  %v1107 = vpop.f32.mrb[0].mxu0
  %v1108 = vadd.f32 %v947, %v1107
  %v1109 = vpop.f32.mrb[0].mxu0
  %v1110 = vpop.f32.mrb[0].mxu0
  %v1111 = vadd.f32 %v950, %v1110
  %v1112 = vpop.f32.mrb[0].mxu0
  %1113 = vmatprep.mubr.bf16.mxu0 %v496
  %1114 = vmatmul.mubr.bf16.gmra.mrb[0].mxu0 %v495
  %v1115 = vpop.f32.mrb[0].mxu0
  %v1116 = vadd.f32 %v955, %v1115
  %v1117 = vpop.f32.mrb[0].mxu0
  %v1118 = vpop.f32.mrb[0].mxu0
  %v1119 = vadd.f32 %v958, %v1118
  %v1120 = vpop.f32.mrb[0].mxu0
  %1121 = vmatprep.mubr.bf16.mxu0 %v501
  %1122 = vmatmul.mubr.bf16.gmra.mrb[0].mxu0 %v500
  %v1123 = vpop.f32.mrb[0].mxu0
  %v1124 = vadd.f32 %v963, %v1123
  %v1125 = vpop.f32.mrb[0].mxu0
  %v1126 = vpop.f32.mrb[0].mxu0
  %v1127 = vadd.f32 %v966, %v1126
  %v1128 = vpop.f32.mrb[0].mxu0
  %1129 = vmatprep.mubr.bf16.mxu0 %v506
  %1130 = vmatmul.mubr.bf16.gmra.mrb[0].mxu0 %v505
  %v1131 = vpop.f32.mrb[0].mxu0
  %v1132 = vadd.f32 %v971, %v1131
  %v1133 = vpop.f32.mrb[0].mxu0
  %v1134 = vpop.f32.mrb[0].mxu0
  %v1135 = vadd.f32 %v974, %v1134
  %v1136 = vpop.f32.mrb[0].mxu0
  %1137 = vmatprep.mubr.bf16.mxu0 %v511
  %1138 = vmatmul.mubr.bf16.gmra.mrb[0].mxu0 %v510
  %v1139 = vpop.f32.mrb[0].mxu0
  %v1140 = vadd.f32 %v979, %v1139
  %v1141 = vpop.f32.mrb[0].mxu0
  %v1142 = vpop.f32.mrb[0].mxu0
  %v1143 = vadd.f32 %v982, %v1142
  %v1144 = vpop.f32.mrb[0].mxu0
  %1145 = vmatprep.mubr.bf16.mxu0 %v516
  %1146 = vmatmul.mubr.bf16.gmra.mrb[0].mxu0 %v515
  %v1147 = vpop.f32.mrb[0].mxu0
  %v1148 = vadd.f32 %v987, %v1147
  %v1149 = vpop.f32.mrb[0].mxu0
  %v1150 = vpop.f32.mrb[0].mxu0
  %v1151 = vadd.f32 %v990, %v1150
  %v1152 = vpop.f32.mrb[0].mxu0
  %1153 = vmatprep.mubr.bf16.mxu0 %v521
  %1154 = vmatmul.mubr.bf16.gmra.mrb[0].mxu0 %v520
  %v1155 = vpop.f32.mrb[0].mxu0
  %v1156 = vadd.f32 %v995, %v1155
  %v1157 = vpop.f32.mrb[0].mxu0
  %v1158 = vpop.f32.mrb[0].mxu0
  %v1159 = vadd.f32 %v998, %v1158
  %v1160 = vpop.f32.mrb[0].mxu0
  %1161 = vmatprep.mubr.bf16.mxu0 %v526
  %1162 = vmatmul.mubr.bf16.gmra.mrb[0].mxu0 %v525
  %v1163 = vpop.f32.mrb[0].mxu0
  %v1164 = vadd.f32 %v1003, %v1163
  %v1165 = vpop.f32.mrb[0].mxu0
  %v1166 = vpop.f32.mrb[0].mxu0
  %v1167 = vadd.f32 %v1006, %v1166
  %v1168 = vpop.f32.mrb[0].mxu0
  %1169 = vmatprep.mubr.bf16.mxu0 %v531
  %1170 = vmatmul.mubr.bf16.gmra.mrb[0].mxu0 %v530
  %v1171 = vpop.f32.mrb[0].mxu0
  %v1172 = vadd.f32 %v1011, %v1171
  %v1173 = vpop.f32.mrb[0].mxu0
  %v1174 = vpop.f32.mrb[0].mxu0
  %v1175 = vadd.f32 %v1014, %v1174
  %v1176 = vpop.f32.mrb[0].mxu0
  %1177 = vmatprep.mubr.bf16.mxu0 %v536
  %1178 = vmatmul.mubr.bf16.gmra.mrb[0].mxu0 %v535
  %v1179 = vpop.f32.mrb[0].mxu0
  %v1180 = vadd.f32 %v1019, %v1179
  %v1181 = vpop.f32.mrb[0].mxu0
  %v1182 = vpop.f32.mrb[0].mxu0
  %v1183 = vadd.f32 %v1022, %v1182
  %v1184 = vpop.f32.mrb[0].mxu0
  %1185 = vmatprep.mubr.bf16.mxu0 %v541
  %1186 = vmatmul.mubr.bf16.gmra.mrb[0].mxu0 %v540
  %v1187 = vpop.f32.mrb[0].mxu0
  %v1188 = vadd.f32 %v1027, %v1187
  %v1189 = vpop.f32.mrb[0].mxu0
  %v1190 = vpop.f32.mrb[0].mxu0
  %v1191 = vadd.f32 %v1030, %v1190
  %v1192 = vpop.f32.mrb[0].mxu0
  %1193 = vdwg.mxu0
  %1194 = vmatprep.subr.bf16.mxu0 0
  %1195 = vmatpush1.bf16.msra.mxu0 %v783
  %1196 = vmatprep.subr.bf16.mxu0 0
  %1197 = vmatpush1.bf16.msra.mxu0 %v784
  %1198 = vmatprep.subr.bf16.mxu0 0
  %1199 = vmatpush1.bf16.msra.mxu0 %v785
  %1200 = vmatprep.subr.bf16.mxu0 0
  %1201 = vmatpush1.bf16.msra.mxu0 %v786
  %1202 = vmatprep.subr.bf16.mxu0 0
  %1203 = vmatpush1.bf16.msra.mxu0 0
  %1204 = vmatprep.subr.bf16.mxu0 0
  %1205 = vmatpush1.bf16.msra.mxu0 0
  %1206 = vmatprep.subr.bf16.mxu0 0
  %1207 = vmatpush1.bf16.msra.mxu0 0
  %1208 = vmatprep.subr.bf16.mxu0 0
  %1209 = vmatpush1.bf16.msra.mxu0 0
  %1210 = vmatprep.subr.bf16.mxu0 0
  %1211 = vmatpush1.bf16.msra.mxu0 0
  %1212 = vmatprep.subr.bf16.mxu0 0
  %1213 = vmatpush1.bf16.msra.mxu0 0
  %1214 = vmatprep.subr.bf16.mxu0 0
  %1215 = vmatpush1.bf16.msra.mxu0 0
  %1216 = vmatprep.subr.bf16.mxu0 0
  %1217 = vmatpush1.bf16.msra.mxu0 0
  %1218 = vmatprep.subr.bf16.mxu0 0
  %1219 = vmatpush1.bf16.msra.mxu0 0
  %1220 = vmatprep.subr.bf16.mxu0 0
  %1221 = vmatpush1.bf16.msra.mxu0 0
  %1222 = vmatprep.subr.bf16.mxu0 0
  %1223 = vmatpush1.bf16.msra.mxu0 0
  %1224 = vmatprep.subr.bf16.mxu0 0
  %1225 = vmatpush1.bf16.msra.mxu0 0
  %1226 = vmatprep.mubr.bf16.mxu0 0
  %1227 = vmatmul.mubr.bf16.gmra.mrb[0].mxu0 %v825
  %v1228 = vpop.f32.mrb[0].mxu0
  %v1229 = vadd.f32 %v1068, %v1228
  %v1230 = vpop.f32.mrb[0].mxu0
  %v1231 = vpop.f32.mrb[0].mxu0
  %v1232 = vadd.f32 %v1071, %v1231
  %v1233 = vpop.f32.mrb[0].mxu0
  %1234 = vmatprep.mubr.bf16.mxu0 0
  %1235 = vmatmul.mubr.bf16.gmra.mrb[0].mxu0 %v828
  %v1236 = vpop.f32.mrb[0].mxu0
  %v1237 = vadd.f32 %v1076, %v1236
  %v1238 = vpop.f32.mrb[0].mxu0
  %v1239 = vpop.f32.mrb[0].mxu0
  %v1240 = vadd.f32 %v1079, %v1239
  %v1241 = vpop.f32.mrb[0].mxu0
  %1242 = vmatprep.mubr.bf16.mxu0 0
  %1243 = vmatmul.mubr.bf16.gmra.mrb[0].mxu0 %v831
  %v1244 = vpop.f32.mrb[0].mxu0
  %v1245 = vadd.f32 %v1084, %v1244
  %v1246 = vpop.f32.mrb[0].mxu0
  %v1247 = vpop.f32.mrb[0].mxu0
  %v1248 = vadd.f32 %v1087, %v1247
  %v1249 = vpop.f32.mrb[0].mxu0
  %1250 = vmatprep.mubr.bf16.mxu0 0
  %1251 = vmatmul.mubr.bf16.gmra.mrb[0].mxu0 %v834
  %v1252 = vpop.f32.mrb[0].mxu0
  %v1253 = vadd.f32 %v1092, %v1252
  %v1254 = vpop.f32.mrb[0].mxu0
  %v1255 = vpop.f32.mrb[0].mxu0
  %v1256 = vadd.f32 %v1095, %v1255
  %v1257 = vpop.f32.mrb[0].mxu0
  %1258 = vmatprep.mubr.bf16.mxu0 0
  %1259 = vmatmul.mubr.bf16.gmra.mrb[0].mxu0 %v837
  %v1260 = vpop.f32.mrb[0].mxu0
  %v1261 = vadd.f32 %v1100, %v1260
  %v1262 = vpop.f32.mrb[0].mxu0
  %v1263 = vpop.f32.mrb[0].mxu0
  %v1264 = vadd.f32 %v1103, %v1263
  %v1265 = vpop.f32.mrb[0].mxu0
  %1266 = vmatprep.mubr.bf16.mxu0 0
  %1267 = vmatmul.mubr.bf16.gmra.mrb[0].mxu0 %v840
  %v1268 = vpop.f32.mrb[0].mxu0
  %v1269 = vadd.f32 %v1108, %v1268
  %v1270 = vpop.f32.mrb[0].mxu0
  %v1271 = vpop.f32.mrb[0].mxu0
  %v1272 = vadd.f32 %v1111, %v1271
  %v1273 = vpop.f32.mrb[0].mxu0
  %1274 = vmatprep.mubr.bf16.mxu0 0
  %1275 = vmatmul.mubr.bf16.gmra.mrb[0].mxu0 %v843
  %v1276 = vpop.f32.mrb[0].mxu0
  %v1277 = vadd.f32 %v1116, %v1276
  %v1278 = vpop.f32.mrb[0].mxu0
  %v1279 = vpop.f32.mrb[0].mxu0
  %v1280 = vadd.f32 %v1119, %v1279
  %v1281 = vpop.f32.mrb[0].mxu0
  %1282 = vmatprep.mubr.bf16.mxu0 0
  %1283 = vmatmul.mubr.bf16.gmra.mrb[0].mxu0 %v846
  %v1284 = vpop.f32.mrb[0].mxu0
  %v1285 = vadd.f32 %v1124, %v1284
  %v1286 = vpop.f32.mrb[0].mxu0
  %v1287 = vpop.f32.mrb[0].mxu0
  %v1288 = vadd.f32 %v1127, %v1287
  %v1289 = vpop.f32.mrb[0].mxu0
  %1290 = vmatprep.mubr.bf16.mxu0 0
  %1291 = vmatmul.mubr.bf16.gmra.mrb[0].mxu0 %v849
  %v1292 = vpop.f32.mrb[0].mxu0
  %v1293 = vadd.f32 %v1132, %v1292
  %v1294 = vpop.f32.mrb[0].mxu0
  %v1295 = vpop.f32.mrb[0].mxu0
  %v1296 = vadd.f32 %v1135, %v1295
  %v1297 = vpop.f32.mrb[0].mxu0
  %1298 = vmatprep.mubr.bf16.mxu0 0
  %1299 = vmatmul.mubr.bf16.gmra.mrb[0].mxu0 %v852
  %v1300 = vpop.f32.mrb[0].mxu0
  %v1301 = vadd.f32 %v1140, %v1300
  %v1302 = vpop.f32.mrb[0].mxu0
  %v1303 = vpop.f32.mrb[0].mxu0
  %v1304 = vadd.f32 %v1143, %v1303
  %v1305 = vpop.f32.mrb[0].mxu0
  %1306 = vmatprep.mubr.bf16.mxu0 0
  %1307 = vmatmul.mubr.bf16.gmra.mrb[0].mxu0 %v855
  %v1308 = vpop.f32.mrb[0].mxu0
  %v1309 = vadd.f32 %v1148, %v1308
  %v1310 = vpop.f32.mrb[0].mxu0
  %v1311 = vpop.f32.mrb[0].mxu0
  %v1312 = vadd.f32 %v1151, %v1311
  %v1313 = vpop.f32.mrb[0].mxu0
  %1314 = vmatprep.mubr.bf16.mxu0 0
  %1315 = vmatmul.mubr.bf16.gmra.mrb[0].mxu0 %v858
  %v1316 = vpop.f32.mrb[0].mxu0
  %v1317 = vadd.f32 %v1156, %v1316
  %v1318 = vpop.f32.mrb[0].mxu0
  %v1319 = vpop.f32.mrb[0].mxu0
  %v1320 = vadd.f32 %v1159, %v1319
  %v1321 = vpop.f32.mrb[0].mxu0
  %1322 = vmatprep.mubr.bf16.mxu0 0
  %1323 = vmatmul.mubr.bf16.gmra.mrb[0].mxu0 %v861
  %v1324 = vpop.f32.mrb[0].mxu0
  %v1325 = vadd.f32 %v1164, %v1324
  %v1326 = vpop.f32.mrb[0].mxu0
  %v1327 = vpop.f32.mrb[0].mxu0
  %v1328 = vadd.f32 %v1167, %v1327
  %v1329 = vpop.f32.mrb[0].mxu0
  %1330 = vmatprep.mubr.bf16.mxu0 0
  %1331 = vmatmul.mubr.bf16.gmra.mrb[0].mxu0 %v864
  %v1332 = vpop.f32.mrb[0].mxu0
  %v1333 = vadd.f32 %v1172, %v1332
  %v1334 = vpop.f32.mrb[0].mxu0
  %v1335 = vpop.f32.mrb[0].mxu0
  %v1336 = vadd.f32 %v1175, %v1335
  %v1337 = vpop.f32.mrb[0].mxu0
  %1338 = vmatprep.mubr.bf16.mxu0 0
  %1339 = vmatmul.mubr.bf16.gmra.mrb[0].mxu0 %v867
  %v1340 = vpop.f32.mrb[0].mxu0
  %v1341 = vadd.f32 %v1180, %v1340
  %v1342 = vpop.f32.mrb[0].mxu0
  %v1343 = vpop.f32.mrb[0].mxu0
  %v1344 = vadd.f32 %v1183, %v1343
  %v1345 = vpop.f32.mrb[0].mxu0
  %1346 = vmatprep.mubr.bf16.mxu0 0
  %1347 = vmatmul.mubr.bf16.gmra.mrb[0].mxu0 %v870
  %v1348 = vpop.f32.mrb[0].mxu0
  %v1349 = vadd.f32 %v1188, %v1348
  %v1350 = vpop.f32.mrb[0].mxu0
  %v1351 = vpop.f32.mrb[0].mxu0
  %v1352 = vadd.f32 %v1191, %v1351
  %v1353 = vpop.f32.mrb[0].mxu0
  %1354 = vdwg.mxu0
  %s1355 = scalar_lea.vmem %s0, 640
  %v1356 = vld [vmem:[%s1355] sm:$0xff]
  %v1357 = vld [vmem:[%s1355 + $0x8] sm:$0xff]
  %v1358 = vld [vmem:[%s1355 + $0x10] sm:$0xf]
  %v1359 = vld [vmem:[%s1355 + $0x14] sm:$0xff]
  %v1360 = vld [vmem:[%s1355 + $0x1c] sm:$0xff]
  %v1361 = vld [vmem:[%s1355 + $0x24] sm:$0xf]
  %v1362 = vld [vmem:[%s1355 + $0x28] sm:$0xff]
  %v1363 = vld [vmem:[%s1355 + $0x30] sm:$0xff]
  %v1364 = vld [vmem:[%s1355 + $0x38] sm:$0xf]
  %v1365 = vld [vmem:[%s1355 + $0x3c] sm:$0xff]
  %v1366 = vld [vmem:[%s1355 + $0x44] sm:$0xff]
  %v1367 = vld [vmem:[%s1355 + $0x4c] sm:$0xf]
  %v1368 = vld [vmem:[%s1355 + $0x50] sm:$0xff]
  %v1369 = vld [vmem:[%s1355 + $0x58] sm:$0xff]
  %v1370 = vld [vmem:[%s1355 + $0x60] sm:$0xf]
  %v1371 = vld [vmem:[%s1355 + $0x64] sm:$0xff]
  %v1372 = vld [vmem:[%s1355 + $0x6c] sm:$0xff]
  %v1373 = vld [vmem:[%s1355 + $0x74] sm:$0xf]
  %v1374 = vld [vmem:[%s1355 + $0x78] sm:$0xff]
  %v1375 = vld [vmem:[%s1355 + $0x80] sm:$0xff]
  %v1376 = vld [vmem:[%s1355 + $0x88] sm:$0xf]
  %v1377 = vld [vmem:[%s1355 + $0x8c] sm:$0xff]
  %v1378 = vld [vmem:[%s1355 + $0x94] sm:$0xff]
  %v1379 = vld [vmem:[%s1355 + $0x9c] sm:$0xf]
  %v1380 = vld [vmem:[%s1355 + $0xa0] sm:$0xff]
  %v1381 = vld [vmem:[%s1355 + $0xa8] sm:$0xff]
  %v1382 = vld [vmem:[%s1355 + $0xb0] sm:$0xf]
  %v1383 = vld [vmem:[%s1355 + $0xb4] sm:$0xff]
  %v1384 = vld [vmem:[%s1355 + $0xbc] sm:$0xff]
  %v1385 = vld [vmem:[%s1355 + $0xc4] sm:$0xf]
  %v1386 = vld [vmem:[%s1355 + $0xc8] sm:$0xff]
  %v1387 = vld [vmem:[%s1355 + $0xd0] sm:$0xff]
  %v1388 = vld [vmem:[%s1355 + $0xd8] sm:$0xf]
  %v1389 = vld [vmem:[%s1355 + $0xdc] sm:$0xff]
  %v1390 = vld [vmem:[%s1355 + $0xe4] sm:$0xff]
  %v1391 = vld [vmem:[%s1355 + $0xec] sm:$0xf]
  %v1392 = vld [vmem:[%s1355 + $0xf0] sm:$0xff]
  %v1393 = vld [vmem:[%s1355 + $0xf8] sm:$0xff]
  %v1394 = vld [vmem:[%s1355 + $0x100] sm:$0xf]
  %v1395 = vld [vmem:[%s1355 + $0x104] sm:$0xff]
  %v1396 = vld [vmem:[%s1355 + $0x10c] sm:$0xff]
  %v1397 = vld [vmem:[%s1355 + $0x114] sm:$0xf]
  %v1398 = vld [vmem:[%s1355 + $0x118] sm:$0xff]
  %v1399 = vld [vmem:[%s1355 + $0x120] sm:$0xff]
  %v1400 = vld [vmem:[%s1355 + $0x128] sm:$0xf]
  %v1401 = vld [vmem:[%s1355 + $0x12c] sm:$0xff]
  %v1402 = vld [vmem:[%s1355 + $0x134] sm:$0xff]
  %v1403 = vld [vmem:[%s1355 + $0x13c] sm:$0xf]
  %v1404 = vld [vmem:[%s1355 + $0x140] sm:$0xff]
  %v1405 = vld [vmem:[%s1355 + $0x148] sm:$0xff]
  %v1406 = vld [vmem:[%s1355 + $0x150] sm:$0xf]
  %v1407 = vld [vmem:[%s1355 + $0x154] sm:$0xff]
  %v1408 = vld [vmem:[%s1355 + $0x15c] sm:$0xff]
  %v1409 = vld [vmem:[%s1355 + $0x164] sm:$0xf]
  %v1410 = vld [vmem:[%s1355 + $0x168] sm:$0xff]
  %v1411 = vld [vmem:[%s1355 + $0x170] sm:$0xff]
  %v1412 = vld [vmem:[%s1355 + $0x178] sm:$0xf]
  %v1413 = vld [vmem:[%s1355 + $0x17c] sm:$0xff]
  %v1414 = vld [vmem:[%s1355 + $0x184] sm:$0xff]
  %v1415 = vld [vmem:[%s1355 + $0x18c] sm:$0xf]
  %v1416 = vld [vmem:[%s1355 + $0x190] sm:$0xff]
  %v1417 = vld [vmem:[%s1355 + $0x198] sm:$0xff]
  %v1418 = vld [vmem:[%s1355 + $0x1a0] sm:$0xf]
  %v1419 = vld [vmem:[%s1355 + $0x1a4] sm:$0xff]
  %v1420 = vld [vmem:[%s1355 + $0x1ac] sm:$0xff]
  %v1421 = vld [vmem:[%s1355 + $0x1b4] sm:$0xf]
  %v1422 = vld [vmem:[%s1355 + $0x1b8] sm:$0xff]
  %v1423 = vld [vmem:[%s1355 + $0x1c0] sm:$0xff]
  %v1424 = vld [vmem:[%s1355 + $0x1c8] sm:$0xf]
  %v1425 = vld [vmem:[%s1355 + $0x1cc] sm:$0xff]
  %v1426 = vld [vmem:[%s1355 + $0x1d4] sm:$0xff]
  %v1427 = vld [vmem:[%s1355 + $0x1dc] sm:$0xf]
  %v1428 = vld [vmem:[%s1355 + $0x1e0] sm:$0xff]
  %v1429 = vld [vmem:[%s1355 + $0x1e8] sm:$0xff]
  %v1430 = vld [vmem:[%s1355 + $0x1f0] sm:$0xf]
  %v1431 = vld [vmem:[%s1355 + $0x1f4] sm:$0xff]
  %v1432 = vld [vmem:[%s1355 + $0x1fc] sm:$0xff]
  %v1433 = vld [vmem:[%s1355 + $0x204] sm:$0xf]
  %v1434 = vld [vmem:[%s1355 + $0x208] sm:$0xff]
  %v1435 = vld [vmem:[%s1355 + $0x210] sm:$0xff]
  %v1436 = vld [vmem:[%s1355 + $0x218] sm:$0xf]
  %v1437 = vld [vmem:[%s1355 + $0x21c] sm:$0xff]
  %v1438 = vld [vmem:[%s1355 + $0x224] sm:$0xff]
  %v1439 = vld [vmem:[%s1355 + $0x22c] sm:$0xf]
  %v1440 = vld [vmem:[%s1355 + $0x230] sm:$0xff]
  %v1441 = vld [vmem:[%s1355 + $0x238] sm:$0xff]
  %v1442 = vld [vmem:[%s1355 + $0x240] sm:$0xf]
  %v1443 = vld [vmem:[%s1355 + $0x244] sm:$0xff]
  %v1444 = vld [vmem:[%s1355 + $0x24c] sm:$0xff]
  %v1445 = vld [vmem:[%s1355 + $0x254] sm:$0xf]
  %v1446 = vld [vmem:[%s1355 + $0x258] sm:$0xff]
  %v1447 = vld [vmem:[%s1355 + $0x260] sm:$0xff]
  %v1448 = vld [vmem:[%s1355 + $0x268] sm:$0xf]
  %v1449 = vld [vmem:[%s1355 + $0x26c] sm:$0xff]
  %v1450 = vld [vmem:[%s1355 + $0x274] sm:$0xff]
  %v1451 = vld [vmem:[%s1355 + $0x27c] sm:$0xf]
  %v1548 = vunpack.c.l.b16 %v1356
  %v1549 = vunpack.c.h.b16 %v1356
  %v1550 = vunpack.c.l.b16 %v1357
  %v1551 = vunpack.c.h.b16 %v1357
  %v1552 = vunpack.c.l.b16 %v1358
  %v1553 = vunpack.c.l.b16 %v1359
  %v1554 = vunpack.c.h.b16 %v1359
  %v1555 = vunpack.c.l.b16 %v1360
  %v1556 = vunpack.c.h.b16 %v1360
  %v1557 = vunpack.c.l.b16 %v1361
  %v1558 = vunpack.c.l.b16 %v1362
  %v1559 = vunpack.c.h.b16 %v1362
  %v1560 = vunpack.c.l.b16 %v1363
  %v1561 = vunpack.c.h.b16 %v1363
  %v1562 = vunpack.c.l.b16 %v1364
  %v1563 = vunpack.c.l.b16 %v1365
  %v1564 = vunpack.c.h.b16 %v1365
  %v1565 = vunpack.c.l.b16 %v1366
  %v1566 = vunpack.c.h.b16 %v1366
  %v1567 = vunpack.c.l.b16 %v1367
  %v1568 = vunpack.c.l.b16 %v1368
  %v1569 = vunpack.c.h.b16 %v1368
  %v1570 = vunpack.c.l.b16 %v1369
  %v1571 = vunpack.c.h.b16 %v1369
  %v1572 = vunpack.c.l.b16 %v1370
  %v1573 = vunpack.c.l.b16 %v1371
  %v1574 = vunpack.c.h.b16 %v1371
  %v1575 = vunpack.c.l.b16 %v1372
  %v1576 = vunpack.c.h.b16 %v1372
  %v1577 = vunpack.c.l.b16 %v1373
  %v1578 = vunpack.c.l.b16 %v1374
  %v1579 = vunpack.c.h.b16 %v1374
  %v1580 = vunpack.c.l.b16 %v1375
  %v1581 = vunpack.c.h.b16 %v1375
  %v1582 = vunpack.c.l.b16 %v1376
  %v1583 = vunpack.c.l.b16 %v1377
  %v1584 = vunpack.c.h.b16 %v1377
  %v1585 = vunpack.c.l.b16 %v1378
  %v1586 = vunpack.c.h.b16 %v1378
  %v1587 = vunpack.c.l.b16 %v1379
  %v1588 = vunpack.c.l.b16 %v1380
  %v1589 = vunpack.c.h.b16 %v1380
  %v1590 = vunpack.c.l.b16 %v1381
  %v1591 = vunpack.c.h.b16 %v1381
  %v1592 = vunpack.c.l.b16 %v1382
  %v1593 = vunpack.c.l.b16 %v1383
  %v1594 = vunpack.c.h.b16 %v1383
  %v1595 = vunpack.c.l.b16 %v1384
  %v1596 = vunpack.c.h.b16 %v1384
  %v1597 = vunpack.c.l.b16 %v1385
  %v1598 = vunpack.c.l.b16 %v1386
  %v1599 = vunpack.c.h.b16 %v1386
  %v1600 = vunpack.c.l.b16 %v1387
  %v1601 = vunpack.c.h.b16 %v1387
  %v1602 = vunpack.c.l.b16 %v1388
  %v1603 = vunpack.c.l.b16 %v1389
  %v1604 = vunpack.c.h.b16 %v1389
  %v1605 = vunpack.c.l.b16 %v1390
  %v1606 = vunpack.c.h.b16 %v1390
  %v1607 = vunpack.c.l.b16 %v1391
  %v1608 = vunpack.c.l.b16 %v1392
  %v1609 = vunpack.c.h.b16 %v1392
  %v1610 = vunpack.c.l.b16 %v1393
  %v1611 = vunpack.c.h.b16 %v1393
  %v1612 = vunpack.c.l.b16 %v1394
  %v1613 = vunpack.c.l.b16 %v1395
  %v1614 = vunpack.c.h.b16 %v1395
  %v1615 = vunpack.c.l.b16 %v1396
  %v1616 = vunpack.c.h.b16 %v1396
  %v1617 = vunpack.c.l.b16 %v1397
  %v1618 = vunpack.c.l.b16 %v1398
  %v1619 = vunpack.c.h.b16 %v1398
  %v1620 = vunpack.c.l.b16 %v1399
  %v1621 = vunpack.c.h.b16 %v1399
  %v1622 = vunpack.c.l.b16 %v1400
  %v1623 = vunpack.c.l.b16 %v1401
  %v1624 = vunpack.c.h.b16 %v1401
  %v1625 = vunpack.c.l.b16 %v1402
  %v1626 = vunpack.c.h.b16 %v1402
  %v1627 = vunpack.c.l.b16 %v1403
  %v1628 = vunpack.c.l.b16 %v1404
  %v1629 = vunpack.c.h.b16 %v1404
  %v1630 = vunpack.c.l.b16 %v1405
  %v1631 = vunpack.c.h.b16 %v1405
  %v1632 = vunpack.c.l.b16 %v1406
  %v1633 = vunpack.c.l.b16 %v1407
  %v1634 = vunpack.c.h.b16 %v1407
  %v1635 = vunpack.c.l.b16 %v1408
  %v1636 = vunpack.c.h.b16 %v1408
  %v1637 = vunpack.c.l.b16 %v1409
  %v1638 = vunpack.c.l.b16 %v1410
  %v1639 = vunpack.c.h.b16 %v1410
  %v1640 = vunpack.c.l.b16 %v1411
  %v1641 = vunpack.c.h.b16 %v1411
  %v1642 = vunpack.c.l.b16 %v1412
  %v1643 = vunpack.c.l.b16 %v1413
  %v1644 = vunpack.c.h.b16 %v1413
  %v1645 = vunpack.c.l.b16 %v1414
  %v1646 = vunpack.c.h.b16 %v1414
  %v1647 = vunpack.c.l.b16 %v1415
  %v1648 = vunpack.c.l.b16 %v1416
  %v1649 = vunpack.c.h.b16 %v1416
  %v1650 = vunpack.c.l.b16 %v1417
  %v1651 = vunpack.c.h.b16 %v1417
  %v1652 = vunpack.c.l.b16 %v1418
  %v1653 = vunpack.c.l.b16 %v1419
  %v1654 = vunpack.c.h.b16 %v1419
  %v1655 = vunpack.c.l.b16 %v1420
  %v1656 = vunpack.c.h.b16 %v1420
  %v1657 = vunpack.c.l.b16 %v1421
  %v1658 = vunpack.c.l.b16 %v1422
  %v1659 = vunpack.c.h.b16 %v1422
  %v1660 = vunpack.c.l.b16 %v1423
  %v1661 = vunpack.c.h.b16 %v1423
  %v1662 = vunpack.c.l.b16 %v1424
  %v1663 = vunpack.c.l.b16 %v1425
  %v1664 = vunpack.c.h.b16 %v1425
  %v1665 = vunpack.c.l.b16 %v1426
  %v1666 = vunpack.c.h.b16 %v1426
  %v1667 = vunpack.c.l.b16 %v1427
  %v1668 = vunpack.c.l.b16 %v1428
  %v1669 = vunpack.c.h.b16 %v1428
  %v1670 = vunpack.c.l.b16 %v1429
  %v1671 = vunpack.c.h.b16 %v1429
  %v1672 = vunpack.c.l.b16 %v1430
  %v1673 = vunpack.c.l.b16 %v1431
  %v1674 = vunpack.c.h.b16 %v1431
  %v1675 = vunpack.c.l.b16 %v1432
  %v1676 = vunpack.c.h.b16 %v1432
  %v1677 = vunpack.c.l.b16 %v1433
  %v1678 = vunpack.c.l.b16 %v1434
  %v1679 = vunpack.c.h.b16 %v1434
  %v1680 = vunpack.c.l.b16 %v1435
  %v1681 = vunpack.c.h.b16 %v1435
  %v1682 = vunpack.c.l.b16 %v1436
  %v1683 = vunpack.c.l.b16 %v1437
  %v1684 = vunpack.c.h.b16 %v1437
  %v1685 = vunpack.c.l.b16 %v1438
  %v1686 = vunpack.c.h.b16 %v1438
  %v1687 = vunpack.c.l.b16 %v1439
  %v1688 = vunpack.c.l.b16 %v1440
  %v1689 = vunpack.c.h.b16 %v1440
  %v1690 = vunpack.c.l.b16 %v1441
  %v1691 = vunpack.c.h.b16 %v1441
  %v1692 = vunpack.c.l.b16 %v1442
  %v1693 = vunpack.c.l.b16 %v1443
  %v1694 = vunpack.c.h.b16 %v1443
  %v1695 = vunpack.c.l.b16 %v1444
  %v1696 = vunpack.c.h.b16 %v1444
  %v1697 = vunpack.c.l.b16 %v1445
  %v1698 = vunpack.c.l.b16 %v1446
  %v1699 = vunpack.c.h.b16 %v1446
  %v1700 = vunpack.c.l.b16 %v1447
  %v1701 = vunpack.c.h.b16 %v1447
  %v1702 = vunpack.c.l.b16 %v1448
  %v1703 = vunpack.c.l.b16 %v1449
  %v1704 = vunpack.c.h.b16 %v1449
  %v1705 = vunpack.c.l.b16 %v1450
  %v1706 = vunpack.c.h.b16 %v1450
  %v1707 = vunpack.c.l.b16 %v1451
  %v1708 = vpack.c.b16 %v1553, %v1548
  %v1709 = vpack.c.b16 %v1554, %v1549
  %v1710 = vpack.c.b16 %v1555, %v1550
  %v1711 = vpack.c.b16 %v1556, %v1551
  %v1712 = vpack.c.b16 %v1557, %v1552
  %v1713 = vpack.c.b16 %v1563, %v1558
  %v1714 = vpack.c.b16 %v1564, %v1559
  %v1715 = vpack.c.b16 %v1565, %v1560
  %v1716 = vpack.c.b16 %v1566, %v1561
  %v1717 = vpack.c.b16 %v1567, %v1562
  %v1718 = vpack.c.b16 %v1573, %v1568
  %v1719 = vpack.c.b16 %v1574, %v1569
  %v1720 = vpack.c.b16 %v1575, %v1570
  %v1721 = vpack.c.b16 %v1576, %v1571
  %v1722 = vpack.c.b16 %v1577, %v1572
  %v1723 = vpack.c.b16 %v1583, %v1578
  %v1724 = vpack.c.b16 %v1584, %v1579
  %v1725 = vpack.c.b16 %v1585, %v1580
  %v1726 = vpack.c.b16 %v1586, %v1581
  %v1727 = vpack.c.b16 %v1587, %v1582
  %v1728 = vpack.c.b16 %v1593, %v1588
  %v1729 = vpack.c.b16 %v1594, %v1589
  %v1730 = vpack.c.b16 %v1595, %v1590
  %v1731 = vpack.c.b16 %v1596, %v1591
  %v1732 = vpack.c.b16 %v1597, %v1592
  %v1733 = vpack.c.b16 %v1603, %v1598
  %v1734 = vpack.c.b16 %v1604, %v1599
  %v1735 = vpack.c.b16 %v1605, %v1600
  %v1736 = vpack.c.b16 %v1606, %v1601
  %v1737 = vpack.c.b16 %v1607, %v1602
  %v1738 = vpack.c.b16 %v1613, %v1608
  %v1739 = vpack.c.b16 %v1614, %v1609
  %v1740 = vpack.c.b16 %v1615, %v1610
  %v1741 = vpack.c.b16 %v1616, %v1611
  %v1742 = vpack.c.b16 %v1617, %v1612
  %v1743 = vpack.c.b16 %v1623, %v1618
  %v1744 = vpack.c.b16 %v1624, %v1619
  %v1745 = vpack.c.b16 %v1625, %v1620
  %v1746 = vpack.c.b16 %v1626, %v1621
  %v1747 = vpack.c.b16 %v1627, %v1622
  %v1748 = vpack.c.b16 %v1633, %v1628
  %v1749 = vpack.c.b16 %v1634, %v1629
  %v1750 = vpack.c.b16 %v1635, %v1630
  %v1751 = vpack.c.b16 %v1636, %v1631
  %v1752 = vpack.c.b16 %v1637, %v1632
  %v1753 = vpack.c.b16 %v1643, %v1638
  %v1754 = vpack.c.b16 %v1644, %v1639
  %v1755 = vpack.c.b16 %v1645, %v1640
  %v1756 = vpack.c.b16 %v1646, %v1641
  %v1757 = vpack.c.b16 %v1647, %v1642
  %v1758 = vpack.c.b16 %v1653, %v1648
  %v1759 = vpack.c.b16 %v1654, %v1649
  %v1760 = vpack.c.b16 %v1655, %v1650
  %v1761 = vpack.c.b16 %v1656, %v1651
  %v1762 = vpack.c.b16 %v1657, %v1652
  %v1763 = vpack.c.b16 %v1663, %v1658
  %v1764 = vpack.c.b16 %v1664, %v1659
  %v1765 = vpack.c.b16 %v1665, %v1660
  %v1766 = vpack.c.b16 %v1666, %v1661
  %v1767 = vpack.c.b16 %v1667, %v1662
  %v1768 = vpack.c.b16 %v1673, %v1668
  %v1769 = vpack.c.b16 %v1674, %v1669
  %v1770 = vpack.c.b16 %v1675, %v1670
  %v1771 = vpack.c.b16 %v1676, %v1671
  %v1772 = vpack.c.b16 %v1677, %v1672
  %v1773 = vpack.c.b16 %v1683, %v1678
  %v1774 = vpack.c.b16 %v1684, %v1679
  %v1775 = vpack.c.b16 %v1685, %v1680
  %v1776 = vpack.c.b16 %v1686, %v1681
  %v1777 = vpack.c.b16 %v1687, %v1682
  %v1778 = vpack.c.b16 %v1693, %v1688
  %v1779 = vpack.c.b16 %v1694, %v1689
  %v1780 = vpack.c.b16 %v1695, %v1690
  %v1781 = vpack.c.b16 %v1696, %v1691
  %v1782 = vpack.c.b16 %v1697, %v1692
  %v1783 = vpack.c.b16 %v1703, %v1698
  %v1784 = vpack.c.b16 %v1704, %v1699
  %v1785 = vpack.c.b16 %v1705, %v1700
  %v1786 = vpack.c.b16 %v1706, %v1701
  %v1787 = vpack.c.b16 %v1707, %v1702
  %v1853 = vsel %vm823, %v1712, 0
  %v1856 = vsel %vm823, %v1717, 0
  %v1859 = vsel %vm823, %v1722, 0
  %v1862 = vsel %vm823, %v1727, 0
  %v1865 = vsel %vm823, %v1732, 0
  %v1868 = vsel %vm823, %v1737, 0
  %v1871 = vsel %vm823, %v1742, 0
  %v1874 = vsel %vm823, %v1747, 0
  %v1877 = vsel %vm823, %v1752, 0
  %v1880 = vsel %vm823, %v1757, 0
  %v1883 = vsel %vm823, %v1762, 0
  %v1886 = vsel %vm823, %v1767, 0
  %v1889 = vsel %vm823, %v1772, 0
  %v1892 = vsel %vm823, %v1777, 0
  %v1895 = vsel %vm823, %v1782, 0
  %v1898 = vsel %vm823, %v1787, 0
  %1900 = vmatprep.subr.bf16.mxu0 0
  %1901 = vmatpush1.bf16.msra.mxu0 %v751
  %1902 = vmatprep.subr.bf16.mxu0 0
  %1903 = vmatpush1.bf16.msra.mxu0 %v752
  %1904 = vmatprep.subr.bf16.mxu0 0
  %1905 = vmatpush1.bf16.msra.mxu0 %v753
  %1906 = vmatprep.subr.bf16.mxu0 0
  %1907 = vmatpush1.bf16.msra.mxu0 %v754
  %1908 = vmatprep.subr.bf16.mxu0 0
  %1909 = vmatpush1.bf16.msra.mxu0 %v755
  %1910 = vmatprep.subr.bf16.mxu0 0
  %1911 = vmatpush1.bf16.msra.mxu0 %v756
  %1912 = vmatprep.subr.bf16.mxu0 0
  %1913 = vmatpush1.bf16.msra.mxu0 %v757
  %1914 = vmatprep.subr.bf16.mxu0 0
  %1915 = vmatpush1.bf16.msra.mxu0 %v758
  %1916 = vmatprep.subr.bf16.mxu0 0
  %1917 = vmatpush1.bf16.msra.mxu0 %v759
  %1918 = vmatprep.subr.bf16.mxu0 0
  %1919 = vmatpush1.bf16.msra.mxu0 %v760
  %1920 = vmatprep.subr.bf16.mxu0 0
  %1921 = vmatpush1.bf16.msra.mxu0 %v761
  %1922 = vmatprep.subr.bf16.mxu0 0
  %1923 = vmatpush1.bf16.msra.mxu0 %v762
  %1924 = vmatprep.subr.bf16.mxu0 0
  %1925 = vmatpush1.bf16.msra.mxu0 %v763
  %1926 = vmatprep.subr.bf16.mxu0 0
  %1927 = vmatpush1.bf16.msra.mxu0 %v764
  %1928 = vmatprep.subr.bf16.mxu0 0
  %1929 = vmatpush1.bf16.msra.mxu0 %v765
  %1930 = vmatprep.subr.bf16.mxu0 0
  %1931 = vmatpush1.bf16.msra.mxu0 %v766
  %1932 = vmatprep.mubr.bf16.mxu0 %v1709
  %1933 = vmatmul.mubr.bf16.gmra.mrb[0].mxu0 %v1708
  %v1934 = vpop.f32.mrb[0].mxu0
  %v1935 = vadd.f32 0.0, %v1934
  %v1936 = vpop.f32.mrb[0].mxu0
  %v1937 = vpop.f32.mrb[0].mxu0
  %v1938 = vadd.f32 0.0, %v1937
  %v1939 = vpop.f32.mrb[0].mxu0
  %1940 = vmatprep.mubr.bf16.mxu0 %v1714
  %1941 = vmatmul.mubr.bf16.gmra.mrb[0].mxu0 %v1713
  %v1942 = vpop.f32.mrb[0].mxu0
  %v1943 = vadd.f32 0.0, %v1942
  %v1944 = vpop.f32.mrb[0].mxu0
  %v1945 = vpop.f32.mrb[0].mxu0
  %v1946 = vadd.f32 0.0, %v1945
  %v1947 = vpop.f32.mrb[0].mxu0
  %1948 = vmatprep.mubr.bf16.mxu0 %v1719
  %1949 = vmatmul.mubr.bf16.gmra.mrb[0].mxu0 %v1718
  %v1950 = vpop.f32.mrb[0].mxu0
  %v1951 = vadd.f32 0.0, %v1950
  %v1952 = vpop.f32.mrb[0].mxu0
  %v1953 = vpop.f32.mrb[0].mxu0
  %v1954 = vadd.f32 0.0, %v1953
  %v1955 = vpop.f32.mrb[0].mxu0
  %1956 = vmatprep.mubr.bf16.mxu0 %v1724
  %1957 = vmatmul.mubr.bf16.gmra.mrb[0].mxu0 %v1723
  %v1958 = vpop.f32.mrb[0].mxu0
  %v1959 = vadd.f32 0.0, %v1958
  %v1960 = vpop.f32.mrb[0].mxu0
  %v1961 = vpop.f32.mrb[0].mxu0
  %v1962 = vadd.f32 0.0, %v1961
  %v1963 = vpop.f32.mrb[0].mxu0
  %1964 = vmatprep.mubr.bf16.mxu0 %v1729
  %1965 = vmatmul.mubr.bf16.gmra.mrb[0].mxu0 %v1728
  %v1966 = vpop.f32.mrb[0].mxu0
  %v1967 = vadd.f32 0.0, %v1966
  %v1968 = vpop.f32.mrb[0].mxu0
  %v1969 = vpop.f32.mrb[0].mxu0
  %v1970 = vadd.f32 0.0, %v1969
  %v1971 = vpop.f32.mrb[0].mxu0
  %1972 = vmatprep.mubr.bf16.mxu0 %v1734
  %1973 = vmatmul.mubr.bf16.gmra.mrb[0].mxu0 %v1733
  %v1974 = vpop.f32.mrb[0].mxu0
  %v1975 = vadd.f32 0.0, %v1974
  %v1976 = vpop.f32.mrb[0].mxu0
  %v1977 = vpop.f32.mrb[0].mxu0
  %v1978 = vadd.f32 0.0, %v1977
  %v1979 = vpop.f32.mrb[0].mxu0
  %1980 = vmatprep.mubr.bf16.mxu0 %v1739
  %1981 = vmatmul.mubr.bf16.gmra.mrb[0].mxu0 %v1738
  %v1982 = vpop.f32.mrb[0].mxu0
  %v1983 = vadd.f32 0.0, %v1982
  %v1984 = vpop.f32.mrb[0].mxu0
  %v1985 = vpop.f32.mrb[0].mxu0
  %v1986 = vadd.f32 0.0, %v1985
  %v1987 = vpop.f32.mrb[0].mxu0
  %1988 = vmatprep.mubr.bf16.mxu0 %v1744
  %1989 = vmatmul.mubr.bf16.gmra.mrb[0].mxu0 %v1743
  %v1990 = vpop.f32.mrb[0].mxu0
  %v1991 = vadd.f32 0.0, %v1990
  %v1992 = vpop.f32.mrb[0].mxu0
  %v1993 = vpop.f32.mrb[0].mxu0
  %v1994 = vadd.f32 0.0, %v1993
  %v1995 = vpop.f32.mrb[0].mxu0
  %1996 = vmatprep.mubr.bf16.mxu0 %v1749
  %1997 = vmatmul.mubr.bf16.gmra.mrb[0].mxu0 %v1748
  %v1998 = vpop.f32.mrb[0].mxu0
  %v1999 = vadd.f32 0.0, %v1998
  %v2000 = vpop.f32.mrb[0].mxu0
  %v2001 = vpop.f32.mrb[0].mxu0
  %v2002 = vadd.f32 0.0, %v2001
  %v2003 = vpop.f32.mrb[0].mxu0
  %2004 = vmatprep.mubr.bf16.mxu0 %v1754
  %2005 = vmatmul.mubr.bf16.gmra.mrb[0].mxu0 %v1753
  %v2006 = vpop.f32.mrb[0].mxu0
  %v2007 = vadd.f32 0.0, %v2006
  %v2008 = vpop.f32.mrb[0].mxu0
  %v2009 = vpop.f32.mrb[0].mxu0
  %v2010 = vadd.f32 0.0, %v2009
  %v2011 = vpop.f32.mrb[0].mxu0
  %2012 = vmatprep.mubr.bf16.mxu0 %v1759
  %2013 = vmatmul.mubr.bf16.gmra.mrb[0].mxu0 %v1758
  %v2014 = vpop.f32.mrb[0].mxu0
  %v2015 = vadd.f32 0.0, %v2014
  %v2016 = vpop.f32.mrb[0].mxu0
  %v2017 = vpop.f32.mrb[0].mxu0
  %v2018 = vadd.f32 0.0, %v2017
  %v2019 = vpop.f32.mrb[0].mxu0
  %2020 = vmatprep.mubr.bf16.mxu0 %v1764
  %2021 = vmatmul.mubr.bf16.gmra.mrb[0].mxu0 %v1763
  %v2022 = vpop.f32.mrb[0].mxu0
  %v2023 = vadd.f32 0.0, %v2022
  %v2024 = vpop.f32.mrb[0].mxu0
  %v2025 = vpop.f32.mrb[0].mxu0
  %v2026 = vadd.f32 0.0, %v2025
  %v2027 = vpop.f32.mrb[0].mxu0
  %2028 = vmatprep.mubr.bf16.mxu0 %v1769
  %2029 = vmatmul.mubr.bf16.gmra.mrb[0].mxu0 %v1768
  %v2030 = vpop.f32.mrb[0].mxu0
  %v2031 = vadd.f32 0.0, %v2030
  %v2032 = vpop.f32.mrb[0].mxu0
  %v2033 = vpop.f32.mrb[0].mxu0
  %v2034 = vadd.f32 0.0, %v2033
  %v2035 = vpop.f32.mrb[0].mxu0
  %2036 = vmatprep.mubr.bf16.mxu0 %v1774
  %2037 = vmatmul.mubr.bf16.gmra.mrb[0].mxu0 %v1773
  %v2038 = vpop.f32.mrb[0].mxu0
  %v2039 = vadd.f32 0.0, %v2038
  %v2040 = vpop.f32.mrb[0].mxu0
  %v2041 = vpop.f32.mrb[0].mxu0
  %v2042 = vadd.f32 0.0, %v2041
  %v2043 = vpop.f32.mrb[0].mxu0
  %2044 = vmatprep.mubr.bf16.mxu0 %v1779
  %2045 = vmatmul.mubr.bf16.gmra.mrb[0].mxu0 %v1778
  %v2046 = vpop.f32.mrb[0].mxu0
  %v2047 = vadd.f32 0.0, %v2046
  %v2048 = vpop.f32.mrb[0].mxu0
  %v2049 = vpop.f32.mrb[0].mxu0
  %v2050 = vadd.f32 0.0, %v2049
  %v2051 = vpop.f32.mrb[0].mxu0
  %2052 = vmatprep.mubr.bf16.mxu0 %v1784
  %2053 = vmatmul.mubr.bf16.gmra.mrb[0].mxu0 %v1783
  %v2054 = vpop.f32.mrb[0].mxu0
  %v2055 = vadd.f32 0.0, %v2054
  %v2056 = vpop.f32.mrb[0].mxu0
  %v2057 = vpop.f32.mrb[0].mxu0
  %v2058 = vadd.f32 0.0, %v2057
  %v2059 = vpop.f32.mrb[0].mxu0
  %2060 = vdwg.mxu0
  %2061 = vmatprep.subr.bf16.mxu0 0
  %2062 = vmatpush1.bf16.msra.mxu0 %v767
  %2063 = vmatprep.subr.bf16.mxu0 0
  %2064 = vmatpush1.bf16.msra.mxu0 %v768
  %2065 = vmatprep.subr.bf16.mxu0 0
  %2066 = vmatpush1.bf16.msra.mxu0 %v769
  %2067 = vmatprep.subr.bf16.mxu0 0
  %2068 = vmatpush1.bf16.msra.mxu0 %v770
  %2069 = vmatprep.subr.bf16.mxu0 0
  %2070 = vmatpush1.bf16.msra.mxu0 %v771
  %2071 = vmatprep.subr.bf16.mxu0 0
  %2072 = vmatpush1.bf16.msra.mxu0 %v772
  %2073 = vmatprep.subr.bf16.mxu0 0
  %2074 = vmatpush1.bf16.msra.mxu0 %v773
  %2075 = vmatprep.subr.bf16.mxu0 0
  %2076 = vmatpush1.bf16.msra.mxu0 %v774
  %2077 = vmatprep.subr.bf16.mxu0 0
  %2078 = vmatpush1.bf16.msra.mxu0 %v775
  %2079 = vmatprep.subr.bf16.mxu0 0
  %2080 = vmatpush1.bf16.msra.mxu0 %v776
  %2081 = vmatprep.subr.bf16.mxu0 0
  %2082 = vmatpush1.bf16.msra.mxu0 %v777
  %2083 = vmatprep.subr.bf16.mxu0 0
  %2084 = vmatpush1.bf16.msra.mxu0 %v778
  %2085 = vmatprep.subr.bf16.mxu0 0
  %2086 = vmatpush1.bf16.msra.mxu0 %v779
  %2087 = vmatprep.subr.bf16.mxu0 0
  %2088 = vmatpush1.bf16.msra.mxu0 %v780
  %2089 = vmatprep.subr.bf16.mxu0 0
  %2090 = vmatpush1.bf16.msra.mxu0 %v781
  %2091 = vmatprep.subr.bf16.mxu0 0
  %2092 = vmatpush1.bf16.msra.mxu0 %v782
  %2093 = vmatprep.mubr.bf16.mxu0 %v1711
  %2094 = vmatmul.mubr.bf16.gmra.mrb[0].mxu0 %v1710
  %v2095 = vpop.f32.mrb[0].mxu0
  %v2096 = vadd.f32 %v1935, %v2095
  %v2097 = vpop.f32.mrb[0].mxu0
  %v2098 = vpop.f32.mrb[0].mxu0
  %v2099 = vadd.f32 %v1938, %v2098
  %v2100 = vpop.f32.mrb[0].mxu0
  %2101 = vmatprep.mubr.bf16.mxu0 %v1716
  %2102 = vmatmul.mubr.bf16.gmra.mrb[0].mxu0 %v1715
  %v2103 = vpop.f32.mrb[0].mxu0
  %v2104 = vadd.f32 %v1943, %v2103
  %v2105 = vpop.f32.mrb[0].mxu0
  %v2106 = vpop.f32.mrb[0].mxu0
  %v2107 = vadd.f32 %v1946, %v2106
  %v2108 = vpop.f32.mrb[0].mxu0
  %2109 = vmatprep.mubr.bf16.mxu0 %v1721
  %2110 = vmatmul.mubr.bf16.gmra.mrb[0].mxu0 %v1720
  %v2111 = vpop.f32.mrb[0].mxu0
  %v2112 = vadd.f32 %v1951, %v2111
  %v2113 = vpop.f32.mrb[0].mxu0
  %v2114 = vpop.f32.mrb[0].mxu0
  %v2115 = vadd.f32 %v1954, %v2114
  %v2116 = vpop.f32.mrb[0].mxu0
  %2117 = vmatprep.mubr.bf16.mxu0 %v1726
  %2118 = vmatmul.mubr.bf16.gmra.mrb[0].mxu0 %v1725
  %v2119 = vpop.f32.mrb[0].mxu0
  %v2120 = vadd.f32 %v1959, %v2119
  %v2121 = vpop.f32.mrb[0].mxu0
  %v2122 = vpop.f32.mrb[0].mxu0
  %v2123 = vadd.f32 %v1962, %v2122
  %v2124 = vpop.f32.mrb[0].mxu0
  %2125 = vmatprep.mubr.bf16.mxu0 %v1731
  %2126 = vmatmul.mubr.bf16.gmra.mrb[0].mxu0 %v1730
  %v2127 = vpop.f32.mrb[0].mxu0
  %v2128 = vadd.f32 %v1967, %v2127
  %v2129 = vpop.f32.mrb[0].mxu0
  %v2130 = vpop.f32.mrb[0].mxu0
  %v2131 = vadd.f32 %v1970, %v2130
  %v2132 = vpop.f32.mrb[0].mxu0
  %2133 = vmatprep.mubr.bf16.mxu0 %v1736
  %2134 = vmatmul.mubr.bf16.gmra.mrb[0].mxu0 %v1735
  %v2135 = vpop.f32.mrb[0].mxu0
  %v2136 = vadd.f32 %v1975, %v2135
  %v2137 = vpop.f32.mrb[0].mxu0
  %v2138 = vpop.f32.mrb[0].mxu0
  %v2139 = vadd.f32 %v1978, %v2138
  %v2140 = vpop.f32.mrb[0].mxu0
  %2141 = vmatprep.mubr.bf16.mxu0 %v1741
  %2142 = vmatmul.mubr.bf16.gmra.mrb[0].mxu0 %v1740
  %v2143 = vpop.f32.mrb[0].mxu0
  %v2144 = vadd.f32 %v1983, %v2143
  %v2145 = vpop.f32.mrb[0].mxu0
  %v2146 = vpop.f32.mrb[0].mxu0
  %v2147 = vadd.f32 %v1986, %v2146
  %v2148 = vpop.f32.mrb[0].mxu0
  %2149 = vmatprep.mubr.bf16.mxu0 %v1746
  %2150 = vmatmul.mubr.bf16.gmra.mrb[0].mxu0 %v1745
  %v2151 = vpop.f32.mrb[0].mxu0
  %v2152 = vadd.f32 %v1991, %v2151
  %v2153 = vpop.f32.mrb[0].mxu0
  %v2154 = vpop.f32.mrb[0].mxu0
  %v2155 = vadd.f32 %v1994, %v2154
  %v2156 = vpop.f32.mrb[0].mxu0
  %2157 = vmatprep.mubr.bf16.mxu0 %v1751
  %2158 = vmatmul.mubr.bf16.gmra.mrb[0].mxu0 %v1750
  %v2159 = vpop.f32.mrb[0].mxu0
  %v2160 = vadd.f32 %v1999, %v2159
  %v2161 = vpop.f32.mrb[0].mxu0
  %v2162 = vpop.f32.mrb[0].mxu0
  %v2163 = vadd.f32 %v2002, %v2162
  %v2164 = vpop.f32.mrb[0].mxu0
  %2165 = vmatprep.mubr.bf16.mxu0 %v1756
  %2166 = vmatmul.mubr.bf16.gmra.mrb[0].mxu0 %v1755
  %v2167 = vpop.f32.mrb[0].mxu0
  %v2168 = vadd.f32 %v2007, %v2167
  %v2169 = vpop.f32.mrb[0].mxu0
  %v2170 = vpop.f32.mrb[0].mxu0
  %v2171 = vadd.f32 %v2010, %v2170
  %v2172 = vpop.f32.mrb[0].mxu0
  %2173 = vmatprep.mubr.bf16.mxu0 %v1761
  %2174 = vmatmul.mubr.bf16.gmra.mrb[0].mxu0 %v1760
  %v2175 = vpop.f32.mrb[0].mxu0
  %v2176 = vadd.f32 %v2015, %v2175
  %v2177 = vpop.f32.mrb[0].mxu0
  %v2178 = vpop.f32.mrb[0].mxu0
  %v2179 = vadd.f32 %v2018, %v2178
  %v2180 = vpop.f32.mrb[0].mxu0
  %2181 = vmatprep.mubr.bf16.mxu0 %v1766
  %2182 = vmatmul.mubr.bf16.gmra.mrb[0].mxu0 %v1765
  %v2183 = vpop.f32.mrb[0].mxu0
  %v2184 = vadd.f32 %v2023, %v2183
  %v2185 = vpop.f32.mrb[0].mxu0
  %v2186 = vpop.f32.mrb[0].mxu0
  %v2187 = vadd.f32 %v2026, %v2186
  %v2188 = vpop.f32.mrb[0].mxu0
  %2189 = vmatprep.mubr.bf16.mxu0 %v1771
  %2190 = vmatmul.mubr.bf16.gmra.mrb[0].mxu0 %v1770
  %v2191 = vpop.f32.mrb[0].mxu0
  %v2192 = vadd.f32 %v2031, %v2191
  %v2193 = vpop.f32.mrb[0].mxu0
  %v2194 = vpop.f32.mrb[0].mxu0
  %v2195 = vadd.f32 %v2034, %v2194
  %v2196 = vpop.f32.mrb[0].mxu0
  %2197 = vmatprep.mubr.bf16.mxu0 %v1776
  %2198 = vmatmul.mubr.bf16.gmra.mrb[0].mxu0 %v1775
  %v2199 = vpop.f32.mrb[0].mxu0
  %v2200 = vadd.f32 %v2039, %v2199
  %v2201 = vpop.f32.mrb[0].mxu0
  %v2202 = vpop.f32.mrb[0].mxu0
  %v2203 = vadd.f32 %v2042, %v2202
  %v2204 = vpop.f32.mrb[0].mxu0
  %2205 = vmatprep.mubr.bf16.mxu0 %v1781
  %2206 = vmatmul.mubr.bf16.gmra.mrb[0].mxu0 %v1780
  %v2207 = vpop.f32.mrb[0].mxu0
  %v2208 = vadd.f32 %v2047, %v2207
  %v2209 = vpop.f32.mrb[0].mxu0
  %v2210 = vpop.f32.mrb[0].mxu0
  %v2211 = vadd.f32 %v2050, %v2210
  %v2212 = vpop.f32.mrb[0].mxu0
  %2213 = vmatprep.mubr.bf16.mxu0 %v1786
  %2214 = vmatmul.mubr.bf16.gmra.mrb[0].mxu0 %v1785
  %v2215 = vpop.f32.mrb[0].mxu0
  %v2216 = vadd.f32 %v2055, %v2215
  %v2217 = vpop.f32.mrb[0].mxu0
  %v2218 = vpop.f32.mrb[0].mxu0
  %v2219 = vadd.f32 %v2058, %v2218
  %v2220 = vpop.f32.mrb[0].mxu0
  %2221 = vdwg.mxu0
  %2222 = vmatprep.subr.bf16.mxu0 0
  %2223 = vmatpush1.bf16.msra.mxu0 %v783
  %2224 = vmatprep.subr.bf16.mxu0 0
  %2225 = vmatpush1.bf16.msra.mxu0 %v784
  %2226 = vmatprep.subr.bf16.mxu0 0
  %2227 = vmatpush1.bf16.msra.mxu0 %v785
  %2228 = vmatprep.subr.bf16.mxu0 0
  %2229 = vmatpush1.bf16.msra.mxu0 %v786
  %2230 = vmatprep.subr.bf16.mxu0 0
  %2231 = vmatpush1.bf16.msra.mxu0 0
  %2232 = vmatprep.subr.bf16.mxu0 0
  %2233 = vmatpush1.bf16.msra.mxu0 0
  %2234 = vmatprep.subr.bf16.mxu0 0
  %2235 = vmatpush1.bf16.msra.mxu0 0
  %2236 = vmatprep.subr.bf16.mxu0 0
  %2237 = vmatpush1.bf16.msra.mxu0 0
  %2238 = vmatprep.subr.bf16.mxu0 0
  %2239 = vmatpush1.bf16.msra.mxu0 0
  %2240 = vmatprep.subr.bf16.mxu0 0
  %2241 = vmatpush1.bf16.msra.mxu0 0
  %2242 = vmatprep.subr.bf16.mxu0 0
  %2243 = vmatpush1.bf16.msra.mxu0 0
  %2244 = vmatprep.subr.bf16.mxu0 0
  %2245 = vmatpush1.bf16.msra.mxu0 0
  %2246 = vmatprep.subr.bf16.mxu0 0
  %2247 = vmatpush1.bf16.msra.mxu0 0
  %2248 = vmatprep.subr.bf16.mxu0 0
  %2249 = vmatpush1.bf16.msra.mxu0 0
  %2250 = vmatprep.subr.bf16.mxu0 0
  %2251 = vmatpush1.bf16.msra.mxu0 0
  %2252 = vmatprep.subr.bf16.mxu0 0
  %2253 = vmatpush1.bf16.msra.mxu0 0
  %2254 = vmatprep.mubr.bf16.mxu0 0
  %2255 = vmatmul.mubr.bf16.gmra.mrb[0].mxu0 %v1853
  %v2256 = vpop.f32.mrb[0].mxu0
  %v2257 = vadd.f32 %v2096, %v2256
  %v2258 = vpop.f32.mrb[0].mxu0
  %v2259 = vpop.f32.mrb[0].mxu0
  %v2260 = vadd.f32 %v2099, %v2259
  %v2261 = vpop.f32.mrb[0].mxu0
  %2262 = vmatprep.mubr.bf16.mxu0 0
  %2263 = vmatmul.mubr.bf16.gmra.mrb[0].mxu0 %v1856
  %v2264 = vpop.f32.mrb[0].mxu0
  %v2265 = vadd.f32 %v2104, %v2264
  %v2266 = vpop.f32.mrb[0].mxu0
  %v2267 = vpop.f32.mrb[0].mxu0
  %v2268 = vadd.f32 %v2107, %v2267
  %v2269 = vpop.f32.mrb[0].mxu0
  %2270 = vmatprep.mubr.bf16.mxu0 0
  %2271 = vmatmul.mubr.bf16.gmra.mrb[0].mxu0 %v1859
  %v2272 = vpop.f32.mrb[0].mxu0
  %v2273 = vadd.f32 %v2112, %v2272
  %v2274 = vpop.f32.mrb[0].mxu0
  %v2275 = vpop.f32.mrb[0].mxu0
  %v2276 = vadd.f32 %v2115, %v2275
  %v2277 = vpop.f32.mrb[0].mxu0
  %2278 = vmatprep.mubr.bf16.mxu0 0
  %2279 = vmatmul.mubr.bf16.gmra.mrb[0].mxu0 %v1862
  %v2280 = vpop.f32.mrb[0].mxu0
  %v2281 = vadd.f32 %v2120, %v2280
  %v2282 = vpop.f32.mrb[0].mxu0
  %v2283 = vpop.f32.mrb[0].mxu0
  %v2284 = vadd.f32 %v2123, %v2283
  %v2285 = vpop.f32.mrb[0].mxu0
  %2286 = vmatprep.mubr.bf16.mxu0 0
  %2287 = vmatmul.mubr.bf16.gmra.mrb[0].mxu0 %v1865
  %v2288 = vpop.f32.mrb[0].mxu0
  %v2289 = vadd.f32 %v2128, %v2288
  %v2290 = vpop.f32.mrb[0].mxu0
  %v2291 = vpop.f32.mrb[0].mxu0
  %v2292 = vadd.f32 %v2131, %v2291
  %v2293 = vpop.f32.mrb[0].mxu0
  %2294 = vmatprep.mubr.bf16.mxu0 0
  %2295 = vmatmul.mubr.bf16.gmra.mrb[0].mxu0 %v1868
  %v2296 = vpop.f32.mrb[0].mxu0
  %v2297 = vadd.f32 %v2136, %v2296
  %v2298 = vpop.f32.mrb[0].mxu0
  %v2299 = vpop.f32.mrb[0].mxu0
  %v2300 = vadd.f32 %v2139, %v2299
  %v2301 = vpop.f32.mrb[0].mxu0
  %2302 = vmatprep.mubr.bf16.mxu0 0
  %2303 = vmatmul.mubr.bf16.gmra.mrb[0].mxu0 %v1871
  %v2304 = vpop.f32.mrb[0].mxu0
  %v2305 = vadd.f32 %v2144, %v2304
  %v2306 = vpop.f32.mrb[0].mxu0
  %v2307 = vpop.f32.mrb[0].mxu0
  %v2308 = vadd.f32 %v2147, %v2307
  %v2309 = vpop.f32.mrb[0].mxu0
  %2310 = vmatprep.mubr.bf16.mxu0 0
  %2311 = vmatmul.mubr.bf16.gmra.mrb[0].mxu0 %v1874
  %v2312 = vpop.f32.mrb[0].mxu0
  %v2313 = vadd.f32 %v2152, %v2312
  %v2314 = vpop.f32.mrb[0].mxu0
  %v2315 = vpop.f32.mrb[0].mxu0
  %v2316 = vadd.f32 %v2155, %v2315
  %v2317 = vpop.f32.mrb[0].mxu0
  %2318 = vmatprep.mubr.bf16.mxu0 0
  %2319 = vmatmul.mubr.bf16.gmra.mrb[0].mxu0 %v1877
  %v2320 = vpop.f32.mrb[0].mxu0
  %v2321 = vadd.f32 %v2160, %v2320
  %v2322 = vpop.f32.mrb[0].mxu0
  %v2323 = vpop.f32.mrb[0].mxu0
  %v2324 = vadd.f32 %v2163, %v2323
  %v2325 = vpop.f32.mrb[0].mxu0
  %2326 = vmatprep.mubr.bf16.mxu0 0
  %2327 = vmatmul.mubr.bf16.gmra.mrb[0].mxu0 %v1880
  %v2328 = vpop.f32.mrb[0].mxu0
  %v2329 = vadd.f32 %v2168, %v2328
  %v2330 = vpop.f32.mrb[0].mxu0
  %v2331 = vpop.f32.mrb[0].mxu0
  %v2332 = vadd.f32 %v2171, %v2331
  %v2333 = vpop.f32.mrb[0].mxu0
  %2334 = vmatprep.mubr.bf16.mxu0 0
  %2335 = vmatmul.mubr.bf16.gmra.mrb[0].mxu0 %v1883
  %v2336 = vpop.f32.mrb[0].mxu0
  %v2337 = vadd.f32 %v2176, %v2336
  %v2338 = vpop.f32.mrb[0].mxu0
  %v2339 = vpop.f32.mrb[0].mxu0
  %v2340 = vadd.f32 %v2179, %v2339
  %v2341 = vpop.f32.mrb[0].mxu0
  %2342 = vmatprep.mubr.bf16.mxu0 0
  %2343 = vmatmul.mubr.bf16.gmra.mrb[0].mxu0 %v1886
  %v2344 = vpop.f32.mrb[0].mxu0
  %v2345 = vadd.f32 %v2184, %v2344
  %v2346 = vpop.f32.mrb[0].mxu0
  %v2347 = vpop.f32.mrb[0].mxu0
  %v2348 = vadd.f32 %v2187, %v2347
  %v2349 = vpop.f32.mrb[0].mxu0
  %2350 = vmatprep.mubr.bf16.mxu0 0
  %2351 = vmatmul.mubr.bf16.gmra.mrb[0].mxu0 %v1889
  %v2352 = vpop.f32.mrb[0].mxu0
  %v2353 = vadd.f32 %v2192, %v2352
  %v2354 = vpop.f32.mrb[0].mxu0
  %v2355 = vpop.f32.mrb[0].mxu0
  %v2356 = vadd.f32 %v2195, %v2355
  %v2357 = vpop.f32.mrb[0].mxu0
  %2358 = vmatprep.mubr.bf16.mxu0 0
  %2359 = vmatmul.mubr.bf16.gmra.mrb[0].mxu0 %v1892
  %v2360 = vpop.f32.mrb[0].mxu0
  %v2361 = vadd.f32 %v2200, %v2360
  %v2362 = vpop.f32.mrb[0].mxu0
  %v2363 = vpop.f32.mrb[0].mxu0
  %v2364 = vadd.f32 %v2203, %v2363
  %v2365 = vpop.f32.mrb[0].mxu0
  %2366 = vmatprep.mubr.bf16.mxu0 0
  %2367 = vmatmul.mubr.bf16.gmra.mrb[0].mxu0 %v1895
  %v2368 = vpop.f32.mrb[0].mxu0
  %v2369 = vadd.f32 %v2208, %v2368
  %v2370 = vpop.f32.mrb[0].mxu0
  %v2371 = vpop.f32.mrb[0].mxu0
  %v2372 = vadd.f32 %v2211, %v2371
  %v2373 = vpop.f32.mrb[0].mxu0
  %2374 = vmatprep.mubr.bf16.mxu0 0
  %2375 = vmatmul.mubr.bf16.gmra.mrb[0].mxu0 %v1898
  %v2376 = vpop.f32.mrb[0].mxu0
  %v2377 = vadd.f32 %v2216, %v2376
  %v2378 = vpop.f32.mrb[0].mxu0
  %v2379 = vpop.f32.mrb[0].mxu0
  %v2380 = vadd.f32 %v2219, %v2379
  %v2381 = vpop.f32.mrb[0].mxu0
  %2382 = vdwg.mxu0
  %v2383 = vmax.f32 %v1229, %v2257
  %v2384 = vmax.f32 %v1232, %v2260
  %v2385 = vmax.f32 %v1237, %v2265
  %v2386 = vmax.f32 %v1240, %v2268
  %v2387 = vmax.f32 %v1245, %v2273
  %v2388 = vmax.f32 %v1248, %v2276
  %v2389 = vmax.f32 %v1253, %v2281
  %v2390 = vmax.f32 %v1256, %v2284
  %v2391 = vmax.f32 %v1261, %v2289
  %v2392 = vmax.f32 %v1264, %v2292
  %v2393 = vmax.f32 %v1269, %v2297
  %v2394 = vmax.f32 %v1272, %v2300
  %v2395 = vmax.f32 %v1277, %v2305
  %v2396 = vmax.f32 %v1280, %v2308
  %v2397 = vmax.f32 %v1285, %v2313
  %v2398 = vmax.f32 %v1288, %v2316
  %v2399 = vmax.f32 %v1293, %v2321
  %v2400 = vmax.f32 %v1296, %v2324
  %v2401 = vmax.f32 %v1301, %v2329
  %v2402 = vmax.f32 %v1304, %v2332
  %v2403 = vmax.f32 %v1309, %v2337
  %v2404 = vmax.f32 %v1312, %v2340
  %v2405 = vmax.f32 %v1317, %v2345
  %v2406 = vmax.f32 %v1320, %v2348
  %v2407 = vmax.f32 %v1325, %v2353
  %v2408 = vmax.f32 %v1328, %v2356
  %v2409 = vmax.f32 %v1333, %v2361
  %v2410 = vmax.f32 %v1336, %v2364
  %v2411 = vmax.f32 %v1341, %v2369
  %v2412 = vmax.f32 %v1344, %v2372
  %v2413 = vmax.f32 %v1349, %v2377
  %v2414 = vmax.f32 %v1352, %v2380
  %s2415 = scalar_lea.vmem %s0, 1280
  %v2416 = vld [vmem:[%s2415] sm:$0xff]
  %v2417 = vld [vmem:[%s2415 + $0x8] sm:$0xff]
  %v2418 = vld [vmem:[%s2415 + $0x10] sm:$0xf]
  %v2419 = vld [vmem:[%s2415 + $0x14] sm:$0xff]
  %v2420 = vld [vmem:[%s2415 + $0x1c] sm:$0xff]
  %v2421 = vld [vmem:[%s2415 + $0x24] sm:$0xf]
  %v2422 = vld [vmem:[%s2415 + $0x28] sm:$0xff]
  %v2423 = vld [vmem:[%s2415 + $0x30] sm:$0xff]
  %v2424 = vld [vmem:[%s2415 + $0x38] sm:$0xf]
  %v2425 = vld [vmem:[%s2415 + $0x3c] sm:$0xff]
  %v2426 = vld [vmem:[%s2415 + $0x44] sm:$0xff]
  %v2427 = vld [vmem:[%s2415 + $0x4c] sm:$0xf]
  %v2428 = vld [vmem:[%s2415 + $0x50] sm:$0xff]
  %v2429 = vld [vmem:[%s2415 + $0x58] sm:$0xff]
  %v2430 = vld [vmem:[%s2415 + $0x60] sm:$0xf]
  %v2431 = vld [vmem:[%s2415 + $0x64] sm:$0xff]
  %v2432 = vld [vmem:[%s2415 + $0x6c] sm:$0xff]
  %v2433 = vld [vmem:[%s2415 + $0x74] sm:$0xf]
  %v2434 = vld [vmem:[%s2415 + $0x78] sm:$0xff]
  %v2435 = vld [vmem:[%s2415 + $0x80] sm:$0xff]
  %v2436 = vld [vmem:[%s2415 + $0x88] sm:$0xf]
  %v2437 = vld [vmem:[%s2415 + $0x8c] sm:$0xff]
  %v2438 = vld [vmem:[%s2415 + $0x94] sm:$0xff]
  %v2439 = vld [vmem:[%s2415 + $0x9c] sm:$0xf]
  %v2440 = vld [vmem:[%s2415 + $0xa0] sm:$0xff]
  %v2441 = vld [vmem:[%s2415 + $0xa8] sm:$0xff]
  %v2442 = vld [vmem:[%s2415 + $0xb0] sm:$0xf]
  %v2443 = vld [vmem:[%s2415 + $0xb4] sm:$0xff]
  %v2444 = vld [vmem:[%s2415 + $0xbc] sm:$0xff]
  %v2445 = vld [vmem:[%s2415 + $0xc4] sm:$0xf]
  %v2446 = vld [vmem:[%s2415 + $0xc8] sm:$0xff]
  %v2447 = vld [vmem:[%s2415 + $0xd0] sm:$0xff]
  %v2448 = vld [vmem:[%s2415 + $0xd8] sm:$0xf]
  %v2449 = vld [vmem:[%s2415 + $0xdc] sm:$0xff]
  %v2450 = vld [vmem:[%s2415 + $0xe4] sm:$0xff]
  %v2451 = vld [vmem:[%s2415 + $0xec] sm:$0xf]
  %v2452 = vld [vmem:[%s2415 + $0xf0] sm:$0xff]
  %v2453 = vld [vmem:[%s2415 + $0xf8] sm:$0xff]
  %v2454 = vld [vmem:[%s2415 + $0x100] sm:$0xf]
  %v2455 = vld [vmem:[%s2415 + $0x104] sm:$0xff]
  %v2456 = vld [vmem:[%s2415 + $0x10c] sm:$0xff]
  %v2457 = vld [vmem:[%s2415 + $0x114] sm:$0xf]
  %v2458 = vld [vmem:[%s2415 + $0x118] sm:$0xff]
  %v2459 = vld [vmem:[%s2415 + $0x120] sm:$0xff]
  %v2460 = vld [vmem:[%s2415 + $0x128] sm:$0xf]
  %v2461 = vld [vmem:[%s2415 + $0x12c] sm:$0xff]
  %v2462 = vld [vmem:[%s2415 + $0x134] sm:$0xff]
  %v2463 = vld [vmem:[%s2415 + $0x13c] sm:$0xf]
  %v2464 = vld [vmem:[%s2415 + $0x140] sm:$0xff]
  %v2465 = vld [vmem:[%s2415 + $0x148] sm:$0xff]
  %v2466 = vld [vmem:[%s2415 + $0x150] sm:$0xf]
  %v2467 = vld [vmem:[%s2415 + $0x154] sm:$0xff]
  %v2468 = vld [vmem:[%s2415 + $0x15c] sm:$0xff]
  %v2469 = vld [vmem:[%s2415 + $0x164] sm:$0xf]
  %v2470 = vld [vmem:[%s2415 + $0x168] sm:$0xff]
  %v2471 = vld [vmem:[%s2415 + $0x170] sm:$0xff]
  %v2472 = vld [vmem:[%s2415 + $0x178] sm:$0xf]
  %v2473 = vld [vmem:[%s2415 + $0x17c] sm:$0xff]
  %v2474 = vld [vmem:[%s2415 + $0x184] sm:$0xff]
  %v2475 = vld [vmem:[%s2415 + $0x18c] sm:$0xf]
  %v2476 = vld [vmem:[%s2415 + $0x190] sm:$0xff]
  %v2477 = vld [vmem:[%s2415 + $0x198] sm:$0xff]
  %v2478 = vld [vmem:[%s2415 + $0x1a0] sm:$0xf]
  %v2479 = vld [vmem:[%s2415 + $0x1a4] sm:$0xff]
  %v2480 = vld [vmem:[%s2415 + $0x1ac] sm:$0xff]
  %v2481 = vld [vmem:[%s2415 + $0x1b4] sm:$0xf]
  %v2482 = vld [vmem:[%s2415 + $0x1b8] sm:$0xff]
  %v2483 = vld [vmem:[%s2415 + $0x1c0] sm:$0xff]
  %v2484 = vld [vmem:[%s2415 + $0x1c8] sm:$0xf]
  %v2485 = vld [vmem:[%s2415 + $0x1cc] sm:$0xff]
  %v2486 = vld [vmem:[%s2415 + $0x1d4] sm:$0xff]
  %v2487 = vld [vmem:[%s2415 + $0x1dc] sm:$0xf]
  %v2488 = vld [vmem:[%s2415 + $0x1e0] sm:$0xff]
  %v2489 = vld [vmem:[%s2415 + $0x1e8] sm:$0xff]
  %v2490 = vld [vmem:[%s2415 + $0x1f0] sm:$0xf]
  %v2491 = vld [vmem:[%s2415 + $0x1f4] sm:$0xff]
  %v2492 = vld [vmem:[%s2415 + $0x1fc] sm:$0xff]
  %v2493 = vld [vmem:[%s2415 + $0x204] sm:$0xf]
  %v2494 = vld [vmem:[%s2415 + $0x208] sm:$0xff]
  %v2495 = vld [vmem:[%s2415 + $0x210] sm:$0xff]
  %v2496 = vld [vmem:[%s2415 + $0x218] sm:$0xf]
  %v2497 = vld [vmem:[%s2415 + $0x21c] sm:$0xff]
  %v2498 = vld [vmem:[%s2415 + $0x224] sm:$0xff]
  %v2499 = vld [vmem:[%s2415 + $0x22c] sm:$0xf]
  %v2500 = vld [vmem:[%s2415 + $0x230] sm:$0xff]
  %v2501 = vld [vmem:[%s2415 + $0x238] sm:$0xff]
  %v2502 = vld [vmem:[%s2415 + $0x240] sm:$0xf]
  %v2503 = vld [vmem:[%s2415 + $0x244] sm:$0xff]
  %v2504 = vld [vmem:[%s2415 + $0x24c] sm:$0xff]
  %v2505 = vld [vmem:[%s2415 + $0x254] sm:$0xf]
  %v2506 = vld [vmem:[%s2415 + $0x258] sm:$0xff]
  %v2507 = vld [vmem:[%s2415 + $0x260] sm:$0xff]
  %v2508 = vld [vmem:[%s2415 + $0x268] sm:$0xf]
  %v2509 = vld [vmem:[%s2415 + $0x26c] sm:$0xff]
  %v2510 = vld [vmem:[%s2415 + $0x274] sm:$0xff]
  %v2511 = vld [vmem:[%s2415 + $0x27c] sm:$0xf]
  %v2608 = vunpack.c.l.b16 %v2416
  %v2609 = vunpack.c.h.b16 %v2416
  %v2610 = vunpack.c.l.b16 %v2417
  %v2611 = vunpack.c.h.b16 %v2417
  %v2612 = vunpack.c.l.b16 %v2418
  %v2613 = vunpack.c.l.b16 %v2419
  %v2614 = vunpack.c.h.b16 %v2419
  %v2615 = vunpack.c.l.b16 %v2420
  %v2616 = vunpack.c.h.b16 %v2420
  %v2617 = vunpack.c.l.b16 %v2421
  %v2618 = vunpack.c.l.b16 %v2422
  %v2619 = vunpack.c.h.b16 %v2422
  %v2620 = vunpack.c.l.b16 %v2423
  %v2621 = vunpack.c.h.b16 %v2423
  %v2622 = vunpack.c.l.b16 %v2424
  %v2623 = vunpack.c.l.b16 %v2425
  %v2624 = vunpack.c.h.b16 %v2425
  %v2625 = vunpack.c.l.b16 %v2426
  %v2626 = vunpack.c.h.b16 %v2426
  %v2627 = vunpack.c.l.b16 %v2427
  %v2628 = vunpack.c.l.b16 %v2428
  %v2629 = vunpack.c.h.b16 %v2428
  %v2630 = vunpack.c.l.b16 %v2429
  %v2631 = vunpack.c.h.b16 %v2429
  %v2632 = vunpack.c.l.b16 %v2430
  %v2633 = vunpack.c.l.b16 %v2431
  %v2634 = vunpack.c.h.b16 %v2431
  %v2635 = vunpack.c.l.b16 %v2432
  %v2636 = vunpack.c.h.b16 %v2432
  %v2637 = vunpack.c.l.b16 %v2433
  %v2638 = vunpack.c.l.b16 %v2434
  %v2639 = vunpack.c.h.b16 %v2434
  %v2640 = vunpack.c.l.b16 %v2435
  %v2641 = vunpack.c.h.b16 %v2435
  %v2642 = vunpack.c.l.b16 %v2436
  %v2643 = vunpack.c.l.b16 %v2437
  %v2644 = vunpack.c.h.b16 %v2437
  %v2645 = vunpack.c.l.b16 %v2438
  %v2646 = vunpack.c.h.b16 %v2438
  %v2647 = vunpack.c.l.b16 %v2439
  %v2648 = vunpack.c.l.b16 %v2440
  %v2649 = vunpack.c.h.b16 %v2440
  %v2650 = vunpack.c.l.b16 %v2441
  %v2651 = vunpack.c.h.b16 %v2441
  %v2652 = vunpack.c.l.b16 %v2442
  %v2653 = vunpack.c.l.b16 %v2443
  %v2654 = vunpack.c.h.b16 %v2443
  %v2655 = vunpack.c.l.b16 %v2444
  %v2656 = vunpack.c.h.b16 %v2444
  %v2657 = vunpack.c.l.b16 %v2445
  %v2658 = vunpack.c.l.b16 %v2446
  %v2659 = vunpack.c.h.b16 %v2446
  %v2660 = vunpack.c.l.b16 %v2447
  %v2661 = vunpack.c.h.b16 %v2447
  %v2662 = vunpack.c.l.b16 %v2448
  %v2663 = vunpack.c.l.b16 %v2449
  %v2664 = vunpack.c.h.b16 %v2449
  %v2665 = vunpack.c.l.b16 %v2450
  %v2666 = vunpack.c.h.b16 %v2450
  %v2667 = vunpack.c.l.b16 %v2451
  %v2668 = vunpack.c.l.b16 %v2452
  %v2669 = vunpack.c.h.b16 %v2452
  %v2670 = vunpack.c.l.b16 %v2453
  %v2671 = vunpack.c.h.b16 %v2453
  %v2672 = vunpack.c.l.b16 %v2454
  %v2673 = vunpack.c.l.b16 %v2455
  %v2674 = vunpack.c.h.b16 %v2455
  %v2675 = vunpack.c.l.b16 %v2456
  %v2676 = vunpack.c.h.b16 %v2456
  %v2677 = vunpack.c.l.b16 %v2457
  %v2678 = vunpack.c.l.b16 %v2458
  %v2679 = vunpack.c.h.b16 %v2458
  %v2680 = vunpack.c.l.b16 %v2459
  %v2681 = vunpack.c.h.b16 %v2459
  %v2682 = vunpack.c.l.b16 %v2460
  %v2683 = vunpack.c.l.b16 %v2461
  %v2684 = vunpack.c.h.b16 %v2461
  %v2685 = vunpack.c.l.b16 %v2462
  %v2686 = vunpack.c.h.b16 %v2462
  %v2687 = vunpack.c.l.b16 %v2463
  %v2688 = vunpack.c.l.b16 %v2464
  %v2689 = vunpack.c.h.b16 %v2464
  %v2690 = vunpack.c.l.b16 %v2465
  %v2691 = vunpack.c.h.b16 %v2465
  %v2692 = vunpack.c.l.b16 %v2466
  %v2693 = vunpack.c.l.b16 %v2467
  %v2694 = vunpack.c.h.b16 %v2467
  %v2695 = vunpack.c.l.b16 %v2468
  %v2696 = vunpack.c.h.b16 %v2468
  %v2697 = vunpack.c.l.b16 %v2469
  %v2698 = vunpack.c.l.b16 %v2470
  %v2699 = vunpack.c.h.b16 %v2470
  %v2700 = vunpack.c.l.b16 %v2471
  %v2701 = vunpack.c.h.b16 %v2471
  %v2702 = vunpack.c.l.b16 %v2472
  %v2703 = vunpack.c.l.b16 %v2473
  %v2704 = vunpack.c.h.b16 %v2473
  %v2705 = vunpack.c.l.b16 %v2474
  %v2706 = vunpack.c.h.b16 %v2474
  %v2707 = vunpack.c.l.b16 %v2475
  %v2708 = vunpack.c.l.b16 %v2476
  %v2709 = vunpack.c.h.b16 %v2476
  %v2710 = vunpack.c.l.b16 %v2477
  %v2711 = vunpack.c.h.b16 %v2477
  %v2712 = vunpack.c.l.b16 %v2478
  %v2713 = vunpack.c.l.b16 %v2479
  %v2714 = vunpack.c.h.b16 %v2479
  %v2715 = vunpack.c.l.b16 %v2480
  %v2716 = vunpack.c.h.b16 %v2480
  %v2717 = vunpack.c.l.b16 %v2481
  %v2718 = vunpack.c.l.b16 %v2482
  %v2719 = vunpack.c.h.b16 %v2482
  %v2720 = vunpack.c.l.b16 %v2483
  %v2721 = vunpack.c.h.b16 %v2483
  %v2722 = vunpack.c.l.b16 %v2484
  %v2723 = vunpack.c.l.b16 %v2485
  %v2724 = vunpack.c.h.b16 %v2485
  %v2725 = vunpack.c.l.b16 %v2486
  %v2726 = vunpack.c.h.b16 %v2486
  %v2727 = vunpack.c.l.b16 %v2487
  %v2728 = vunpack.c.l.b16 %v2488
  %v2729 = vunpack.c.h.b16 %v2488
  %v2730 = vunpack.c.l.b16 %v2489
  %v2731 = vunpack.c.h.b16 %v2489
  %v2732 = vunpack.c.l.b16 %v2490
  %v2733 = vunpack.c.l.b16 %v2491
  %v2734 = vunpack.c.h.b16 %v2491
  %v2735 = vunpack.c.l.b16 %v2492
  %v2736 = vunpack.c.h.b16 %v2492
  %v2737 = vunpack.c.l.b16 %v2493
  %v2738 = vunpack.c.l.b16 %v2494
  %v2739 = vunpack.c.h.b16 %v2494
  %v2740 = vunpack.c.l.b16 %v2495
  %v2741 = vunpack.c.h.b16 %v2495
  %v2742 = vunpack.c.l.b16 %v2496
  %v2743 = vunpack.c.l.b16 %v2497
  %v2744 = vunpack.c.h.b16 %v2497
  %v2745 = vunpack.c.l.b16 %v2498
  %v2746 = vunpack.c.h.b16 %v2498
  %v2747 = vunpack.c.l.b16 %v2499
  %v2748 = vunpack.c.l.b16 %v2500
  %v2749 = vunpack.c.h.b16 %v2500
  %v2750 = vunpack.c.l.b16 %v2501
  %v2751 = vunpack.c.h.b16 %v2501
  %v2752 = vunpack.c.l.b16 %v2502
  %v2753 = vunpack.c.l.b16 %v2503
  %v2754 = vunpack.c.h.b16 %v2503
  %v2755 = vunpack.c.l.b16 %v2504
  %v2756 = vunpack.c.h.b16 %v2504
  %v2757 = vunpack.c.l.b16 %v2505
  %v2758 = vunpack.c.l.b16 %v2506
  %v2759 = vunpack.c.h.b16 %v2506
  %v2760 = vunpack.c.l.b16 %v2507
  %v2761 = vunpack.c.h.b16 %v2507
  %v2762 = vunpack.c.l.b16 %v2508
  %v2763 = vunpack.c.l.b16 %v2509
  %v2764 = vunpack.c.h.b16 %v2509
  %v2765 = vunpack.c.l.b16 %v2510
  %v2766 = vunpack.c.h.b16 %v2510
  %v2767 = vunpack.c.l.b16 %v2511
  %v2768 = vpack.c.b16 %v2613, %v2608
  %v2769 = vpack.c.b16 %v2614, %v2609
  %v2770 = vpack.c.b16 %v2615, %v2610
  %v2771 = vpack.c.b16 %v2616, %v2611
  %v2772 = vpack.c.b16 %v2617, %v2612
  %v2773 = vpack.c.b16 %v2623, %v2618
  %v2774 = vpack.c.b16 %v2624, %v2619
  %v2775 = vpack.c.b16 %v2625, %v2620
  %v2776 = vpack.c.b16 %v2626, %v2621
  %v2777 = vpack.c.b16 %v2627, %v2622
  %v2778 = vpack.c.b16 %v2633, %v2628
  %v2779 = vpack.c.b16 %v2634, %v2629
  %v2780 = vpack.c.b16 %v2635, %v2630
  %v2781 = vpack.c.b16 %v2636, %v2631
  %v2782 = vpack.c.b16 %v2637, %v2632
  %v2783 = vpack.c.b16 %v2643, %v2638
  %v2784 = vpack.c.b16 %v2644, %v2639
  %v2785 = vpack.c.b16 %v2645, %v2640
  %v2786 = vpack.c.b16 %v2646, %v2641
  %v2787 = vpack.c.b16 %v2647, %v2642
  %v2788 = vpack.c.b16 %v2653, %v2648
  %v2789 = vpack.c.b16 %v2654, %v2649
  %v2790 = vpack.c.b16 %v2655, %v2650
  %v2791 = vpack.c.b16 %v2656, %v2651
  %v2792 = vpack.c.b16 %v2657, %v2652
  %v2793 = vpack.c.b16 %v2663, %v2658
  %v2794 = vpack.c.b16 %v2664, %v2659
  %v2795 = vpack.c.b16 %v2665, %v2660
  %v2796 = vpack.c.b16 %v2666, %v2661
  %v2797 = vpack.c.b16 %v2667, %v2662
  %v2798 = vpack.c.b16 %v2673, %v2668
  %v2799 = vpack.c.b16 %v2674, %v2669
  %v2800 = vpack.c.b16 %v2675, %v2670
  %v2801 = vpack.c.b16 %v2676, %v2671
  %v2802 = vpack.c.b16 %v2677, %v2672
  %v2803 = vpack.c.b16 %v2683, %v2678
  %v2804 = vpack.c.b16 %v2684, %v2679
  %v2805 = vpack.c.b16 %v2685, %v2680
  %v2806 = vpack.c.b16 %v2686, %v2681
  %v2807 = vpack.c.b16 %v2687, %v2682
  %v2808 = vpack.c.b16 %v2693, %v2688
  %v2809 = vpack.c.b16 %v2694, %v2689
  %v2810 = vpack.c.b16 %v2695, %v2690
  %v2811 = vpack.c.b16 %v2696, %v2691
  %v2812 = vpack.c.b16 %v2697, %v2692
  %v2813 = vpack.c.b16 %v2703, %v2698
  %v2814 = vpack.c.b16 %v2704, %v2699
  %v2815 = vpack.c.b16 %v2705, %v2700
  %v2816 = vpack.c.b16 %v2706, %v2701
  %v2817 = vpack.c.b16 %v2707, %v2702
  %v2818 = vpack.c.b16 %v2713, %v2708
  %v2819 = vpack.c.b16 %v2714, %v2709
  %v2820 = vpack.c.b16 %v2715, %v2710
  %v2821 = vpack.c.b16 %v2716, %v2711
  %v2822 = vpack.c.b16 %v2717, %v2712
  %v2823 = vpack.c.b16 %v2723, %v2718
  %v2824 = vpack.c.b16 %v2724, %v2719
  %v2825 = vpack.c.b16 %v2725, %v2720
  %v2826 = vpack.c.b16 %v2726, %v2721
  %v2827 = vpack.c.b16 %v2727, %v2722
  %v2828 = vpack.c.b16 %v2733, %v2728
  %v2829 = vpack.c.b16 %v2734, %v2729
  %v2830 = vpack.c.b16 %v2735, %v2730
  %v2831 = vpack.c.b16 %v2736, %v2731
  %v2832 = vpack.c.b16 %v2737, %v2732
  %v2833 = vpack.c.b16 %v2743, %v2738
  %v2834 = vpack.c.b16 %v2744, %v2739
  %v2835 = vpack.c.b16 %v2745, %v2740
  %v2836 = vpack.c.b16 %v2746, %v2741
  %v2837 = vpack.c.b16 %v2747, %v2742
  %v2838 = vpack.c.b16 %v2753, %v2748
  %v2839 = vpack.c.b16 %v2754, %v2749
  %v2840 = vpack.c.b16 %v2755, %v2750
  %v2841 = vpack.c.b16 %v2756, %v2751
  %v2842 = vpack.c.b16 %v2757, %v2752
  %v2843 = vpack.c.b16 %v2763, %v2758
  %v2844 = vpack.c.b16 %v2764, %v2759
  %v2845 = vpack.c.b16 %v2765, %v2760
  %v2846 = vpack.c.b16 %v2766, %v2761
  %v2847 = vpack.c.b16 %v2767, %v2762
  %v2913 = vsel %vm823, %v2772, 0
  %v2916 = vsel %vm823, %v2777, 0
  %v2919 = vsel %vm823, %v2782, 0
  %v2922 = vsel %vm823, %v2787, 0
  %v2925 = vsel %vm823, %v2792, 0
  %v2928 = vsel %vm823, %v2797, 0
  %v2931 = vsel %vm823, %v2802, 0
  %v2934 = vsel %vm823, %v2807, 0
  %v2937 = vsel %vm823, %v2812, 0
  %v2940 = vsel %vm823, %v2817, 0
  %v2943 = vsel %vm823, %v2822, 0
  %v2946 = vsel %vm823, %v2827, 0
  %v2949 = vsel %vm823, %v2832, 0
  %v2952 = vsel %vm823, %v2837, 0
  %v2955 = vsel %vm823, %v2842, 0
  %v2958 = vsel %vm823, %v2847, 0
  %2960 = vmatprep.subr.bf16.mxu0 0
  %2961 = vmatpush1.bf16.msra.mxu0 %v751
  %2962 = vmatprep.subr.bf16.mxu0 0
  %2963 = vmatpush1.bf16.msra.mxu0 %v752
  %2964 = vmatprep.subr.bf16.mxu0 0
  %2965 = vmatpush1.bf16.msra.mxu0 %v753
  %2966 = vmatprep.subr.bf16.mxu0 0
  %2967 = vmatpush1.bf16.msra.mxu0 %v754
  %2968 = vmatprep.subr.bf16.mxu0 0
  %2969 = vmatpush1.bf16.msra.mxu0 %v755
  %2970 = vmatprep.subr.bf16.mxu0 0
  %2971 = vmatpush1.bf16.msra.mxu0 %v756
  %2972 = vmatprep.subr.bf16.mxu0 0
  %2973 = vmatpush1.bf16.msra.mxu0 %v757
  %2974 = vmatprep.subr.bf16.mxu0 0
  %2975 = vmatpush1.bf16.msra.mxu0 %v758
  %2976 = vmatprep.subr.bf16.mxu0 0
  %2977 = vmatpush1.bf16.msra.mxu0 %v759
  %2978 = vmatprep.subr.bf16.mxu0 0
  %2979 = vmatpush1.bf16.msra.mxu0 %v760
  %2980 = vmatprep.subr.bf16.mxu0 0
  %2981 = vmatpush1.bf16.msra.mxu0 %v761
  %2982 = vmatprep.subr.bf16.mxu0 0
  %2983 = vmatpush1.bf16.msra.mxu0 %v762
  %2984 = vmatprep.subr.bf16.mxu0 0
  %2985 = vmatpush1.bf16.msra.mxu0 %v763
  %2986 = vmatprep.subr.bf16.mxu0 0
  %2987 = vmatpush1.bf16.msra.mxu0 %v764
  %2988 = vmatprep.subr.bf16.mxu0 0
  %2989 = vmatpush1.bf16.msra.mxu0 %v765
  %2990 = vmatprep.subr.bf16.mxu0 0
  %2991 = vmatpush1.bf16.msra.mxu0 %v766
  %2992 = vmatprep.mubr.bf16.mxu0 %v2769
  %2993 = vmatmul.mubr.bf16.gmra.mrb[0].mxu0 %v2768
  %v2994 = vpop.f32.mrb[0].mxu0
  %v2995 = vadd.f32 0.0, %v2994
  %v2996 = vpop.f32.mrb[0].mxu0
  %v2997 = vpop.f32.mrb[0].mxu0
  %v2998 = vadd.f32 0.0, %v2997
  %v2999 = vpop.f32.mrb[0].mxu0
  %3000 = vmatprep.mubr.bf16.mxu0 %v2774
  %3001 = vmatmul.mubr.bf16.gmra.mrb[0].mxu0 %v2773
  %v3002 = vpop.f32.mrb[0].mxu0
  %v3003 = vadd.f32 0.0, %v3002
  %v3004 = vpop.f32.mrb[0].mxu0
  %v3005 = vpop.f32.mrb[0].mxu0
  %v3006 = vadd.f32 0.0, %v3005
  %v3007 = vpop.f32.mrb[0].mxu0
  %3008 = vmatprep.mubr.bf16.mxu0 %v2779
  %3009 = vmatmul.mubr.bf16.gmra.mrb[0].mxu0 %v2778
  %v3010 = vpop.f32.mrb[0].mxu0
  %v3011 = vadd.f32 0.0, %v3010
  %v3012 = vpop.f32.mrb[0].mxu0
  %v3013 = vpop.f32.mrb[0].mxu0
  %v3014 = vadd.f32 0.0, %v3013
  %v3015 = vpop.f32.mrb[0].mxu0
  %3016 = vmatprep.mubr.bf16.mxu0 %v2784
  %3017 = vmatmul.mubr.bf16.gmra.mrb[0].mxu0 %v2783
  %v3018 = vpop.f32.mrb[0].mxu0
  %v3019 = vadd.f32 0.0, %v3018
  %v3020 = vpop.f32.mrb[0].mxu0
  %v3021 = vpop.f32.mrb[0].mxu0
  %v3022 = vadd.f32 0.0, %v3021
  %v3023 = vpop.f32.mrb[0].mxu0
  %3024 = vmatprep.mubr.bf16.mxu0 %v2789
  %3025 = vmatmul.mubr.bf16.gmra.mrb[0].mxu0 %v2788
  %v3026 = vpop.f32.mrb[0].mxu0
  %v3027 = vadd.f32 0.0, %v3026
  %v3028 = vpop.f32.mrb[0].mxu0
  %v3029 = vpop.f32.mrb[0].mxu0
  %v3030 = vadd.f32 0.0, %v3029
  %v3031 = vpop.f32.mrb[0].mxu0
  %3032 = vmatprep.mubr.bf16.mxu0 %v2794
  %3033 = vmatmul.mubr.bf16.gmra.mrb[0].mxu0 %v2793
  %v3034 = vpop.f32.mrb[0].mxu0
  %v3035 = vadd.f32 0.0, %v3034
  %v3036 = vpop.f32.mrb[0].mxu0
  %v3037 = vpop.f32.mrb[0].mxu0
  %v3038 = vadd.f32 0.0, %v3037
  %v3039 = vpop.f32.mrb[0].mxu0
  %3040 = vmatprep.mubr.bf16.mxu0 %v2799
  %3041 = vmatmul.mubr.bf16.gmra.mrb[0].mxu0 %v2798
  %v3042 = vpop.f32.mrb[0].mxu0
  %v3043 = vadd.f32 0.0, %v3042
  %v3044 = vpop.f32.mrb[0].mxu0
  %v3045 = vpop.f32.mrb[0].mxu0
  %v3046 = vadd.f32 0.0, %v3045
  %v3047 = vpop.f32.mrb[0].mxu0
  %3048 = vmatprep.mubr.bf16.mxu0 %v2804
  %3049 = vmatmul.mubr.bf16.gmra.mrb[0].mxu0 %v2803
  %v3050 = vpop.f32.mrb[0].mxu0
  %v3051 = vadd.f32 0.0, %v3050
  %v3052 = vpop.f32.mrb[0].mxu0
  %v3053 = vpop.f32.mrb[0].mxu0
  %v3054 = vadd.f32 0.0, %v3053
  %v3055 = vpop.f32.mrb[0].mxu0
  %3056 = vmatprep.mubr.bf16.mxu0 %v2809
  %3057 = vmatmul.mubr.bf16.gmra.mrb[0].mxu0 %v2808
  %v3058 = vpop.f32.mrb[0].mxu0
  %v3059 = vadd.f32 0.0, %v3058
  %v3060 = vpop.f32.mrb[0].mxu0
  %v3061 = vpop.f32.mrb[0].mxu0
  %v3062 = vadd.f32 0.0, %v3061
  %v3063 = vpop.f32.mrb[0].mxu0
  %3064 = vmatprep.mubr.bf16.mxu0 %v2814
  %3065 = vmatmul.mubr.bf16.gmra.mrb[0].mxu0 %v2813
  %v3066 = vpop.f32.mrb[0].mxu0
  %v3067 = vadd.f32 0.0, %v3066
  %v3068 = vpop.f32.mrb[0].mxu0
  %v3069 = vpop.f32.mrb[0].mxu0
  %v3070 = vadd.f32 0.0, %v3069
  %v3071 = vpop.f32.mrb[0].mxu0
  %3072 = vmatprep.mubr.bf16.mxu0 %v2819
  %3073 = vmatmul.mubr.bf16.gmra.mrb[0].mxu0 %v2818
  %v3074 = vpop.f32.mrb[0].mxu0
  %v3075 = vadd.f32 0.0, %v3074
  %v3076 = vpop.f32.mrb[0].mxu0
  %v3077 = vpop.f32.mrb[0].mxu0
  %v3078 = vadd.f32 0.0, %v3077
  %v3079 = vpop.f32.mrb[0].mxu0
  %3080 = vmatprep.mubr.bf16.mxu0 %v2824
  %3081 = vmatmul.mubr.bf16.gmra.mrb[0].mxu0 %v2823
  %v3082 = vpop.f32.mrb[0].mxu0
  %v3083 = vadd.f32 0.0, %v3082
  %v3084 = vpop.f32.mrb[0].mxu0
  %v3085 = vpop.f32.mrb[0].mxu0
  %v3086 = vadd.f32 0.0, %v3085
  %v3087 = vpop.f32.mrb[0].mxu0
  %3088 = vmatprep.mubr.bf16.mxu0 %v2829
  %3089 = vmatmul.mubr.bf16.gmra.mrb[0].mxu0 %v2828
  %v3090 = vpop.f32.mrb[0].mxu0
  %v3091 = vadd.f32 0.0, %v3090
  %v3092 = vpop.f32.mrb[0].mxu0
  %v3093 = vpop.f32.mrb[0].mxu0
  %v3094 = vadd.f32 0.0, %v3093
  %v3095 = vpop.f32.mrb[0].mxu0
  %3096 = vmatprep.mubr.bf16.mxu0 %v2834
  %3097 = vmatmul.mubr.bf16.gmra.mrb[0].mxu0 %v2833
  %v3098 = vpop.f32.mrb[0].mxu0
  %v3099 = vadd.f32 0.0, %v3098
  %v3100 = vpop.f32.mrb[0].mxu0
  %v3101 = vpop.f32.mrb[0].mxu0
  %v3102 = vadd.f32 0.0, %v3101
  %v3103 = vpop.f32.mrb[0].mxu0
  %3104 = vmatprep.mubr.bf16.mxu0 %v2839
  %3105 = vmatmul.mubr.bf16.gmra.mrb[0].mxu0 %v2838
  %v3106 = vpop.f32.mrb[0].mxu0
  %v3107 = vadd.f32 0.0, %v3106
  %v3108 = vpop.f32.mrb[0].mxu0
  %v3109 = vpop.f32.mrb[0].mxu0
  %v3110 = vadd.f32 0.0, %v3109
  %v3111 = vpop.f32.mrb[0].mxu0
  %3112 = vmatprep.mubr.bf16.mxu0 %v2844
  %3113 = vmatmul.mubr.bf16.gmra.mrb[0].mxu0 %v2843
  %v3114 = vpop.f32.mrb[0].mxu0
  %v3115 = vadd.f32 0.0, %v3114
  %v3116 = vpop.f32.mrb[0].mxu0
  %v3117 = vpop.f32.mrb[0].mxu0
  %v3118 = vadd.f32 0.0, %v3117
  %v3119 = vpop.f32.mrb[0].mxu0
  %3120 = vdwg.mxu0
  %3121 = vmatprep.subr.bf16.mxu0 0
  %3122 = vmatpush1.bf16.msra.mxu0 %v767
  %3123 = vmatprep.subr.bf16.mxu0 0
  %3124 = vmatpush1.bf16.msra.mxu0 %v768
  %3125 = vmatprep.subr.bf16.mxu0 0
  %3126 = vmatpush1.bf16.msra.mxu0 %v769
  %3127 = vmatprep.subr.bf16.mxu0 0
  %3128 = vmatpush1.bf16.msra.mxu0 %v770
  %3129 = vmatprep.subr.bf16.mxu0 0
  %3130 = vmatpush1.bf16.msra.mxu0 %v771
  %3131 = vmatprep.subr.bf16.mxu0 0
  %3132 = vmatpush1.bf16.msra.mxu0 %v772
  %3133 = vmatprep.subr.bf16.mxu0 0
  %3134 = vmatpush1.bf16.msra.mxu0 %v773
  %3135 = vmatprep.subr.bf16.mxu0 0
  %3136 = vmatpush1.bf16.msra.mxu0 %v774
  %3137 = vmatprep.subr.bf16.mxu0 0
  %3138 = vmatpush1.bf16.msra.mxu0 %v775
  %3139 = vmatprep.subr.bf16.mxu0 0
  %3140 = vmatpush1.bf16.msra.mxu0 %v776
  %3141 = vmatprep.subr.bf16.mxu0 0
  %3142 = vmatpush1.bf16.msra.mxu0 %v777
  %3143 = vmatprep.subr.bf16.mxu0 0
  %3144 = vmatpush1.bf16.msra.mxu0 %v778
  %3145 = vmatprep.subr.bf16.mxu0 0
  %3146 = vmatpush1.bf16.msra.mxu0 %v779
  %3147 = vmatprep.subr.bf16.mxu0 0
  %3148 = vmatpush1.bf16.msra.mxu0 %v780
  %3149 = vmatprep.subr.bf16.mxu0 0
  %3150 = vmatpush1.bf16.msra.mxu0 %v781
  %3151 = vmatprep.subr.bf16.mxu0 0
  %3152 = vmatpush1.bf16.msra.mxu0 %v782
  %3153 = vmatprep.mubr.bf16.mxu0 %v2771
  %3154 = vmatmul.mubr.bf16.gmra.mrb[0].mxu0 %v2770
  %v3155 = vpop.f32.mrb[0].mxu0
  %v3156 = vadd.f32 %v2995, %v3155
  %v3157 = vpop.f32.mrb[0].mxu0
  %v3158 = vpop.f32.mrb[0].mxu0
  %v3159 = vadd.f32 %v2998, %v3158
  %v3160 = vpop.f32.mrb[0].mxu0
  %3161 = vmatprep.mubr.bf16.mxu0 %v2776
  %3162 = vmatmul.mubr.bf16.gmra.mrb[0].mxu0 %v2775
  %v3163 = vpop.f32.mrb[0].mxu0
  %v3164 = vadd.f32 %v3003, %v3163
  %v3165 = vpop.f32.mrb[0].mxu0
  %v3166 = vpop.f32.mrb[0].mxu0
  %v3167 = vadd.f32 %v3006, %v3166
  %v3168 = vpop.f32.mrb[0].mxu0
  %3169 = vmatprep.mubr.bf16.mxu0 %v2781
  %3170 = vmatmul.mubr.bf16.gmra.mrb[0].mxu0 %v2780
  %v3171 = vpop.f32.mrb[0].mxu0
  %v3172 = vadd.f32 %v3011, %v3171
  %v3173 = vpop.f32.mrb[0].mxu0
  %v3174 = vpop.f32.mrb[0].mxu0
  %v3175 = vadd.f32 %v3014, %v3174
  %v3176 = vpop.f32.mrb[0].mxu0
  %3177 = vmatprep.mubr.bf16.mxu0 %v2786
  %3178 = vmatmul.mubr.bf16.gmra.mrb[0].mxu0 %v2785
  %v3179 = vpop.f32.mrb[0].mxu0
  %v3180 = vadd.f32 %v3019, %v3179
  %v3181 = vpop.f32.mrb[0].mxu0
  %v3182 = vpop.f32.mrb[0].mxu0
  %v3183 = vadd.f32 %v3022, %v3182
  %v3184 = vpop.f32.mrb[0].mxu0
  %3185 = vmatprep.mubr.bf16.mxu0 %v2791
  %3186 = vmatmul.mubr.bf16.gmra.mrb[0].mxu0 %v2790
  %v3187 = vpop.f32.mrb[0].mxu0
  %v3188 = vadd.f32 %v3027, %v3187
  %v3189 = vpop.f32.mrb[0].mxu0
  %v3190 = vpop.f32.mrb[0].mxu0
  %v3191 = vadd.f32 %v3030, %v3190
  %v3192 = vpop.f32.mrb[0].mxu0
  %3193 = vmatprep.mubr.bf16.mxu0 %v2796
  %3194 = vmatmul.mubr.bf16.gmra.mrb[0].mxu0 %v2795
  %v3195 = vpop.f32.mrb[0].mxu0
  %v3196 = vadd.f32 %v3035, %v3195
  %v3197 = vpop.f32.mrb[0].mxu0
  %v3198 = vpop.f32.mrb[0].mxu0
  %v3199 = vadd.f32 %v3038, %v3198
  %v3200 = vpop.f32.mrb[0].mxu0
  %3201 = vmatprep.mubr.bf16.mxu0 %v2801
  %3202 = vmatmul.mubr.bf16.gmra.mrb[0].mxu0 %v2800
  %v3203 = vpop.f32.mrb[0].mxu0
  %v3204 = vadd.f32 %v3043, %v3203
  %v3205 = vpop.f32.mrb[0].mxu0
  %v3206 = vpop.f32.mrb[0].mxu0
  %v3207 = vadd.f32 %v3046, %v3206
  %v3208 = vpop.f32.mrb[0].mxu0
  %3209 = vmatprep.mubr.bf16.mxu0 %v2806
  %3210 = vmatmul.mubr.bf16.gmra.mrb[0].mxu0 %v2805
  %v3211 = vpop.f32.mrb[0].mxu0
  %v3212 = vadd.f32 %v3051, %v3211
  %v3213 = vpop.f32.mrb[0].mxu0
  %v3214 = vpop.f32.mrb[0].mxu0
  %v3215 = vadd.f32 %v3054, %v3214
  %v3216 = vpop.f32.mrb[0].mxu0
  %3217 = vmatprep.mubr.bf16.mxu0 %v2811
  %3218 = vmatmul.mubr.bf16.gmra.mrb[0].mxu0 %v2810
  %v3219 = vpop.f32.mrb[0].mxu0
  %v3220 = vadd.f32 %v3059, %v3219
  %v3221 = vpop.f32.mrb[0].mxu0
  %v3222 = vpop.f32.mrb[0].mxu0
  %v3223 = vadd.f32 %v3062, %v3222
  %v3224 = vpop.f32.mrb[0].mxu0
  %3225 = vmatprep.mubr.bf16.mxu0 %v2816
  %3226 = vmatmul.mubr.bf16.gmra.mrb[0].mxu0 %v2815
  %v3227 = vpop.f32.mrb[0].mxu0
  %v3228 = vadd.f32 %v3067, %v3227
  %v3229 = vpop.f32.mrb[0].mxu0
  %v3230 = vpop.f32.mrb[0].mxu0
  %v3231 = vadd.f32 %v3070, %v3230
  %v3232 = vpop.f32.mrb[0].mxu0
  %3233 = vmatprep.mubr.bf16.mxu0 %v2821
  %3234 = vmatmul.mubr.bf16.gmra.mrb[0].mxu0 %v2820
  %v3235 = vpop.f32.mrb[0].mxu0
  %v3236 = vadd.f32 %v3075, %v3235
  %v3237 = vpop.f32.mrb[0].mxu0
  %v3238 = vpop.f32.mrb[0].mxu0
  %v3239 = vadd.f32 %v3078, %v3238
  %v3240 = vpop.f32.mrb[0].mxu0
  %3241 = vmatprep.mubr.bf16.mxu0 %v2826
  %3242 = vmatmul.mubr.bf16.gmra.mrb[0].mxu0 %v2825
  %v3243 = vpop.f32.mrb[0].mxu0
  %v3244 = vadd.f32 %v3083, %v3243
  %v3245 = vpop.f32.mrb[0].mxu0
  %v3246 = vpop.f32.mrb[0].mxu0
  %v3247 = vadd.f32 %v3086, %v3246
  %v3248 = vpop.f32.mrb[0].mxu0
  %3249 = vmatprep.mubr.bf16.mxu0 %v2831
  %3250 = vmatmul.mubr.bf16.gmra.mrb[0].mxu0 %v2830
  %v3251 = vpop.f32.mrb[0].mxu0
  %v3252 = vadd.f32 %v3091, %v3251
  %v3253 = vpop.f32.mrb[0].mxu0
  %v3254 = vpop.f32.mrb[0].mxu0
  %v3255 = vadd.f32 %v3094, %v3254
  %v3256 = vpop.f32.mrb[0].mxu0
  %3257 = vmatprep.mubr.bf16.mxu0 %v2836
  %3258 = vmatmul.mubr.bf16.gmra.mrb[0].mxu0 %v2835
  %v3259 = vpop.f32.mrb[0].mxu0
  %v3260 = vadd.f32 %v3099, %v3259
  %v3261 = vpop.f32.mrb[0].mxu0
  %v3262 = vpop.f32.mrb[0].mxu0
  %v3263 = vadd.f32 %v3102, %v3262
  %v3264 = vpop.f32.mrb[0].mxu0
  %3265 = vmatprep.mubr.bf16.mxu0 %v2841
  %3266 = vmatmul.mubr.bf16.gmra.mrb[0].mxu0 %v2840
  %v3267 = vpop.f32.mrb[0].mxu0
  %v3268 = vadd.f32 %v3107, %v3267
  %v3269 = vpop.f32.mrb[0].mxu0
  %v3270 = vpop.f32.mrb[0].mxu0
  %v3271 = vadd.f32 %v3110, %v3270
  %v3272 = vpop.f32.mrb[0].mxu0
  %3273 = vmatprep.mubr.bf16.mxu0 %v2846
  %3274 = vmatmul.mubr.bf16.gmra.mrb[0].mxu0 %v2845
  %v3275 = vpop.f32.mrb[0].mxu0
  %v3276 = vadd.f32 %v3115, %v3275
  %v3277 = vpop.f32.mrb[0].mxu0
  %v3278 = vpop.f32.mrb[0].mxu0
  %v3279 = vadd.f32 %v3118, %v3278
  %v3280 = vpop.f32.mrb[0].mxu0
  %3281 = vdwg.mxu0
  %3282 = vmatprep.subr.bf16.mxu0 0
  %3283 = vmatpush1.bf16.msra.mxu0 %v783
  %3284 = vmatprep.subr.bf16.mxu0 0
  %3285 = vmatpush1.bf16.msra.mxu0 %v784
  %3286 = vmatprep.subr.bf16.mxu0 0
  %3287 = vmatpush1.bf16.msra.mxu0 %v785
  %3288 = vmatprep.subr.bf16.mxu0 0
  %3289 = vmatpush1.bf16.msra.mxu0 %v786
  %3290 = vmatprep.subr.bf16.mxu0 0
  %3291 = vmatpush1.bf16.msra.mxu0 0
  %3292 = vmatprep.subr.bf16.mxu0 0
  %3293 = vmatpush1.bf16.msra.mxu0 0
  %3294 = vmatprep.subr.bf16.mxu0 0
  %3295 = vmatpush1.bf16.msra.mxu0 0
  %3296 = vmatprep.subr.bf16.mxu0 0
  %3297 = vmatpush1.bf16.msra.mxu0 0
  %3298 = vmatprep.subr.bf16.mxu0 0
  %3299 = vmatpush1.bf16.msra.mxu0 0
  %3300 = vmatprep.subr.bf16.mxu0 0
  %3301 = vmatpush1.bf16.msra.mxu0 0
  %3302 = vmatprep.subr.bf16.mxu0 0
  %3303 = vmatpush1.bf16.msra.mxu0 0
  %3304 = vmatprep.subr.bf16.mxu0 0
  %3305 = vmatpush1.bf16.msra.mxu0 0
  %3306 = vmatprep.subr.bf16.mxu0 0
  %3307 = vmatpush1.bf16.msra.mxu0 0
  %3308 = vmatprep.subr.bf16.mxu0 0
  %3309 = vmatpush1.bf16.msra.mxu0 0
  %3310 = vmatprep.subr.bf16.mxu0 0
  %3311 = vmatpush1.bf16.msra.mxu0 0
  %3312 = vmatprep.subr.bf16.mxu0 0
  %3313 = vmatpush1.bf16.msra.mxu0 0
  %3314 = vmatprep.mubr.bf16.mxu0 0
  %3315 = vmatmul.mubr.bf16.gmra.mrb[0].mxu0 %v2913
  %v3316 = vpop.f32.mrb[0].mxu0
  %v3317 = vadd.f32 %v3156, %v3316
  %v3318 = vpop.f32.mrb[0].mxu0
  %v3319 = vpop.f32.mrb[0].mxu0
  %v3320 = vadd.f32 %v3159, %v3319
  %v3321 = vpop.f32.mrb[0].mxu0
  %3322 = vmatprep.mubr.bf16.mxu0 0
  %3323 = vmatmul.mubr.bf16.gmra.mrb[0].mxu0 %v2916
  %v3324 = vpop.f32.mrb[0].mxu0
  %v3325 = vadd.f32 %v3164, %v3324
  %v3326 = vpop.f32.mrb[0].mxu0
  %v3327 = vpop.f32.mrb[0].mxu0
  %v3328 = vadd.f32 %v3167, %v3327
  %v3329 = vpop.f32.mrb[0].mxu0
  %3330 = vmatprep.mubr.bf16.mxu0 0
  %3331 = vmatmul.mubr.bf16.gmra.mrb[0].mxu0 %v2919
  %v3332 = vpop.f32.mrb[0].mxu0
  %v3333 = vadd.f32 %v3172, %v3332
  %v3334 = vpop.f32.mrb[0].mxu0
  %v3335 = vpop.f32.mrb[0].mxu0
  %v3336 = vadd.f32 %v3175, %v3335
  %v3337 = vpop.f32.mrb[0].mxu0
  %3338 = vmatprep.mubr.bf16.mxu0 0
  %3339 = vmatmul.mubr.bf16.gmra.mrb[0].mxu0 %v2922
  %v3340 = vpop.f32.mrb[0].mxu0
  %v3341 = vadd.f32 %v3180, %v3340
  %v3342 = vpop.f32.mrb[0].mxu0
  %v3343 = vpop.f32.mrb[0].mxu0
  %v3344 = vadd.f32 %v3183, %v3343
  %v3345 = vpop.f32.mrb[0].mxu0
  %3346 = vmatprep.mubr.bf16.mxu0 0
  %3347 = vmatmul.mubr.bf16.gmra.mrb[0].mxu0 %v2925
  %v3348 = vpop.f32.mrb[0].mxu0
  %v3349 = vadd.f32 %v3188, %v3348
  %v3350 = vpop.f32.mrb[0].mxu0
  %v3351 = vpop.f32.mrb[0].mxu0
  %v3352 = vadd.f32 %v3191, %v3351
  %v3353 = vpop.f32.mrb[0].mxu0
  %3354 = vmatprep.mubr.bf16.mxu0 0
  %3355 = vmatmul.mubr.bf16.gmra.mrb[0].mxu0 %v2928
  %v3356 = vpop.f32.mrb[0].mxu0
  %v3357 = vadd.f32 %v3196, %v3356
  %v3358 = vpop.f32.mrb[0].mxu0
  %v3359 = vpop.f32.mrb[0].mxu0
  %v3360 = vadd.f32 %v3199, %v3359
  %v3361 = vpop.f32.mrb[0].mxu0
  %3362 = vmatprep.mubr.bf16.mxu0 0
  %3363 = vmatmul.mubr.bf16.gmra.mrb[0].mxu0 %v2931
  %v3364 = vpop.f32.mrb[0].mxu0
  %v3365 = vadd.f32 %v3204, %v3364
  %v3366 = vpop.f32.mrb[0].mxu0
  %v3367 = vpop.f32.mrb[0].mxu0
  %v3368 = vadd.f32 %v3207, %v3367
  %v3369 = vpop.f32.mrb[0].mxu0
  %3370 = vmatprep.mubr.bf16.mxu0 0
  %3371 = vmatmul.mubr.bf16.gmra.mrb[0].mxu0 %v2934
  %v3372 = vpop.f32.mrb[0].mxu0
  %v3373 = vadd.f32 %v3212, %v3372
  %v3374 = vpop.f32.mrb[0].mxu0
  %v3375 = vpop.f32.mrb[0].mxu0
  %v3376 = vadd.f32 %v3215, %v3375
  %v3377 = vpop.f32.mrb[0].mxu0
  %3378 = vmatprep.mubr.bf16.mxu0 0
  %3379 = vmatmul.mubr.bf16.gmra.mrb[0].mxu0 %v2937
  %v3380 = vpop.f32.mrb[0].mxu0
  %v3381 = vadd.f32 %v3220, %v3380
  %v3382 = vpop.f32.mrb[0].mxu0
  %v3383 = vpop.f32.mrb[0].mxu0
  %v3384 = vadd.f32 %v3223, %v3383
  %v3385 = vpop.f32.mrb[0].mxu0
  %3386 = vmatprep.mubr.bf16.mxu0 0
  %3387 = vmatmul.mubr.bf16.gmra.mrb[0].mxu0 %v2940
  %v3388 = vpop.f32.mrb[0].mxu0
  %v3389 = vadd.f32 %v3228, %v3388
  %v3390 = vpop.f32.mrb[0].mxu0
  %v3391 = vpop.f32.mrb[0].mxu0
  %v3392 = vadd.f32 %v3231, %v3391
  %v3393 = vpop.f32.mrb[0].mxu0
  %3394 = vmatprep.mubr.bf16.mxu0 0
  %3395 = vmatmul.mubr.bf16.gmra.mrb[0].mxu0 %v2943
  %v3396 = vpop.f32.mrb[0].mxu0
  %v3397 = vadd.f32 %v3236, %v3396
  %v3398 = vpop.f32.mrb[0].mxu0
  %v3399 = vpop.f32.mrb[0].mxu0
  %v3400 = vadd.f32 %v3239, %v3399
  %v3401 = vpop.f32.mrb[0].mxu0
  %3402 = vmatprep.mubr.bf16.mxu0 0
  %3403 = vmatmul.mubr.bf16.gmra.mrb[0].mxu0 %v2946
  %v3404 = vpop.f32.mrb[0].mxu0
  %v3405 = vadd.f32 %v3244, %v3404
  %v3406 = vpop.f32.mrb[0].mxu0
  %v3407 = vpop.f32.mrb[0].mxu0
  %v3408 = vadd.f32 %v3247, %v3407
  %v3409 = vpop.f32.mrb[0].mxu0
  %3410 = vmatprep.mubr.bf16.mxu0 0
  %3411 = vmatmul.mubr.bf16.gmra.mrb[0].mxu0 %v2949
  %v3412 = vpop.f32.mrb[0].mxu0
  %v3413 = vadd.f32 %v3252, %v3412
  %v3414 = vpop.f32.mrb[0].mxu0
  %v3415 = vpop.f32.mrb[0].mxu0
  %v3416 = vadd.f32 %v3255, %v3415
  %v3417 = vpop.f32.mrb[0].mxu0
  %3418 = vmatprep.mubr.bf16.mxu0 0
  %3419 = vmatmul.mubr.bf16.gmra.mrb[0].mxu0 %v2952
  %v3420 = vpop.f32.mrb[0].mxu0
  %v3421 = vadd.f32 %v3260, %v3420
  %v3422 = vpop.f32.mrb[0].mxu0
  %v3423 = vpop.f32.mrb[0].mxu0
  %v3424 = vadd.f32 %v3263, %v3423
  %v3425 = vpop.f32.mrb[0].mxu0
  %3426 = vmatprep.mubr.bf16.mxu0 0
  %3427 = vmatmul.mubr.bf16.gmra.mrb[0].mxu0 %v2955
  %v3428 = vpop.f32.mrb[0].mxu0
  %v3429 = vadd.f32 %v3268, %v3428
  %v3430 = vpop.f32.mrb[0].mxu0
  %v3431 = vpop.f32.mrb[0].mxu0
  %v3432 = vadd.f32 %v3271, %v3431
  %v3433 = vpop.f32.mrb[0].mxu0
  %3434 = vmatprep.mubr.bf16.mxu0 0
  %3435 = vmatmul.mubr.bf16.gmra.mrb[0].mxu0 %v2958
  %v3436 = vpop.f32.mrb[0].mxu0
  %v3437 = vadd.f32 %v3276, %v3436
  %v3438 = vpop.f32.mrb[0].mxu0
  %v3439 = vpop.f32.mrb[0].mxu0
  %v3440 = vadd.f32 %v3279, %v3439
  %v3441 = vpop.f32.mrb[0].mxu0
  %3442 = vdwg.mxu0
  %v3443 = vmax.f32 %v2383, %v3317
  %v3444 = vmax.f32 %v2384, %v3320
  %v3445 = vmax.f32 %v2385, %v3325
  %v3446 = vmax.f32 %v2386, %v3328
  %v3447 = vmax.f32 %v2387, %v3333
  %v3448 = vmax.f32 %v2388, %v3336
  %v3449 = vmax.f32 %v2389, %v3341
  %v3450 = vmax.f32 %v2390, %v3344
  %v3451 = vmax.f32 %v2391, %v3349
  %v3452 = vmax.f32 %v2392, %v3352
  %v3453 = vmax.f32 %v2393, %v3357
  %v3454 = vmax.f32 %v2394, %v3360
  %v3455 = vmax.f32 %v2395, %v3365
  %v3456 = vmax.f32 %v2396, %v3368
  %v3457 = vmax.f32 %v2397, %v3373
  %v3458 = vmax.f32 %v2398, %v3376
  %v3459 = vmax.f32 %v2399, %v3381
  %v3460 = vmax.f32 %v2400, %v3384
  %v3461 = vmax.f32 %v2401, %v3389
  %v3462 = vmax.f32 %v2402, %v3392
  %v3463 = vmax.f32 %v2403, %v3397
  %v3464 = vmax.f32 %v2404, %v3400
  %v3465 = vmax.f32 %v2405, %v3405
  %v3466 = vmax.f32 %v2406, %v3408
  %v3467 = vmax.f32 %v2407, %v3413
  %v3468 = vmax.f32 %v2408, %v3416
  %v3469 = vmax.f32 %v2409, %v3421
  %v3470 = vmax.f32 %v2410, %v3424
  %v3471 = vmax.f32 %v2411, %v3429
  %v3472 = vmax.f32 %v2412, %v3432
  %v3473 = vmax.f32 %v2413, %v3437
  %v3474 = vmax.f32 %v2414, %v3440
  %s3475 = scalar_lea.vmem %s0, 1920
  %v3476 = vld [vmem:[%s3475] sm:$0xff]
  %v3477 = vld [vmem:[%s3475 + $0x8] sm:$0xff]
  %v3478 = vld [vmem:[%s3475 + $0x10] sm:$0xf]
  %v3479 = vld [vmem:[%s3475 + $0x14] sm:$0xff]
  %v3480 = vld [vmem:[%s3475 + $0x1c] sm:$0xff]
  %v3481 = vld [vmem:[%s3475 + $0x24] sm:$0xf]
  %v3482 = vld [vmem:[%s3475 + $0x28] sm:$0xff]
  %v3483 = vld [vmem:[%s3475 + $0x30] sm:$0xff]
  %v3484 = vld [vmem:[%s3475 + $0x38] sm:$0xf]
  %v3485 = vld [vmem:[%s3475 + $0x3c] sm:$0xff]
  %v3486 = vld [vmem:[%s3475 + $0x44] sm:$0xff]
  %v3487 = vld [vmem:[%s3475 + $0x4c] sm:$0xf]
  %v3488 = vld [vmem:[%s3475 + $0x50] sm:$0xff]
  %v3489 = vld [vmem:[%s3475 + $0x58] sm:$0xff]
  %v3490 = vld [vmem:[%s3475 + $0x60] sm:$0xf]
  %v3491 = vld [vmem:[%s3475 + $0x64] sm:$0xff]
  %v3492 = vld [vmem:[%s3475 + $0x6c] sm:$0xff]
  %v3493 = vld [vmem:[%s3475 + $0x74] sm:$0xf]
  %v3494 = vld [vmem:[%s3475 + $0x78] sm:$0xff]
  %v3495 = vld [vmem:[%s3475 + $0x80] sm:$0xff]
  %v3496 = vld [vmem:[%s3475 + $0x88] sm:$0xf]
  %v3497 = vld [vmem:[%s3475 + $0x8c] sm:$0xff]
  %v3498 = vld [vmem:[%s3475 + $0x94] sm:$0xff]
  %v3499 = vld [vmem:[%s3475 + $0x9c] sm:$0xf]
  %v3500 = vld [vmem:[%s3475 + $0xa0] sm:$0xff]
  %v3501 = vld [vmem:[%s3475 + $0xa8] sm:$0xff]
  %v3502 = vld [vmem:[%s3475 + $0xb0] sm:$0xf]
  %v3503 = vld [vmem:[%s3475 + $0xb4] sm:$0xff]
  %v3504 = vld [vmem:[%s3475 + $0xbc] sm:$0xff]
  %v3505 = vld [vmem:[%s3475 + $0xc4] sm:$0xf]
  %v3506 = vld [vmem:[%s3475 + $0xc8] sm:$0xff]
  %v3507 = vld [vmem:[%s3475 + $0xd0] sm:$0xff]
  %v3508 = vld [vmem:[%s3475 + $0xd8] sm:$0xf]
  %v3509 = vld [vmem:[%s3475 + $0xdc] sm:$0xff]
  %v3510 = vld [vmem:[%s3475 + $0xe4] sm:$0xff]
  %v3511 = vld [vmem:[%s3475 + $0xec] sm:$0xf]
  %v3512 = vld [vmem:[%s3475 + $0xf0] sm:$0xff]
  %v3513 = vld [vmem:[%s3475 + $0xf8] sm:$0xff]
  %v3514 = vld [vmem:[%s3475 + $0x100] sm:$0xf]
  %v3515 = vld [vmem:[%s3475 + $0x104] sm:$0xff]
  %v3516 = vld [vmem:[%s3475 + $0x10c] sm:$0xff]
  %v3517 = vld [vmem:[%s3475 + $0x114] sm:$0xf]
  %v3518 = vld [vmem:[%s3475 + $0x118] sm:$0xff]
  %v3519 = vld [vmem:[%s3475 + $0x120] sm:$0xff]
  %v3520 = vld [vmem:[%s3475 + $0x128] sm:$0xf]
  %v3521 = vld [vmem:[%s3475 + $0x12c] sm:$0xff]
  %v3522 = vld [vmem:[%s3475 + $0x134] sm:$0xff]
  %v3523 = vld [vmem:[%s3475 + $0x13c] sm:$0xf]
  %v3524 = vld [vmem:[%s3475 + $0x140] sm:$0xff]
  %v3525 = vld [vmem:[%s3475 + $0x148] sm:$0xff]
  %v3526 = vld [vmem:[%s3475 + $0x150] sm:$0xf]
  %v3527 = vld [vmem:[%s3475 + $0x154] sm:$0xff]
  %v3528 = vld [vmem:[%s3475 + $0x15c] sm:$0xff]
  %v3529 = vld [vmem:[%s3475 + $0x164] sm:$0xf]
  %v3530 = vld [vmem:[%s3475 + $0x168] sm:$0xff]
  %v3531 = vld [vmem:[%s3475 + $0x170] sm:$0xff]
  %v3532 = vld [vmem:[%s3475 + $0x178] sm:$0xf]
  %v3533 = vld [vmem:[%s3475 + $0x17c] sm:$0xff]
  %v3534 = vld [vmem:[%s3475 + $0x184] sm:$0xff]
  %v3535 = vld [vmem:[%s3475 + $0x18c] sm:$0xf]
  %v3536 = vld [vmem:[%s3475 + $0x190] sm:$0xff]
  %v3537 = vld [vmem:[%s3475 + $0x198] sm:$0xff]
  %v3538 = vld [vmem:[%s3475 + $0x1a0] sm:$0xf]
  %v3539 = vld [vmem:[%s3475 + $0x1a4] sm:$0xff]
  %v3540 = vld [vmem:[%s3475 + $0x1ac] sm:$0xff]
  %v3541 = vld [vmem:[%s3475 + $0x1b4] sm:$0xf]
  %v3542 = vld [vmem:[%s3475 + $0x1b8] sm:$0xff]
  %v3543 = vld [vmem:[%s3475 + $0x1c0] sm:$0xff]
  %v3544 = vld [vmem:[%s3475 + $0x1c8] sm:$0xf]
  %v3545 = vld [vmem:[%s3475 + $0x1cc] sm:$0xff]
  %v3546 = vld [vmem:[%s3475 + $0x1d4] sm:$0xff]
  %v3547 = vld [vmem:[%s3475 + $0x1dc] sm:$0xf]
  %v3548 = vld [vmem:[%s3475 + $0x1e0] sm:$0xff]
  %v3549 = vld [vmem:[%s3475 + $0x1e8] sm:$0xff]
  %v3550 = vld [vmem:[%s3475 + $0x1f0] sm:$0xf]
  %v3551 = vld [vmem:[%s3475 + $0x1f4] sm:$0xff]
  %v3552 = vld [vmem:[%s3475 + $0x1fc] sm:$0xff]
  %v3553 = vld [vmem:[%s3475 + $0x204] sm:$0xf]
  %v3554 = vld [vmem:[%s3475 + $0x208] sm:$0xff]
  %v3555 = vld [vmem:[%s3475 + $0x210] sm:$0xff]
  %v3556 = vld [vmem:[%s3475 + $0x218] sm:$0xf]
  %v3557 = vld [vmem:[%s3475 + $0x21c] sm:$0xff]
  %v3558 = vld [vmem:[%s3475 + $0x224] sm:$0xff]
  %v3559 = vld [vmem:[%s3475 + $0x22c] sm:$0xf]
  %v3560 = vld [vmem:[%s3475 + $0x230] sm:$0xff]
  %v3561 = vld [vmem:[%s3475 + $0x238] sm:$0xff]
  %v3562 = vld [vmem:[%s3475 + $0x240] sm:$0xf]
  %v3563 = vld [vmem:[%s3475 + $0x244] sm:$0xff]
  %v3564 = vld [vmem:[%s3475 + $0x24c] sm:$0xff]
  %v3565 = vld [vmem:[%s3475 + $0x254] sm:$0xf]
  %v3566 = vld [vmem:[%s3475 + $0x258] sm:$0xff]
  %v3567 = vld [vmem:[%s3475 + $0x260] sm:$0xff]
  %v3568 = vld [vmem:[%s3475 + $0x268] sm:$0xf]
  %v3569 = vld [vmem:[%s3475 + $0x26c] sm:$0xff]
  %v3570 = vld [vmem:[%s3475 + $0x274] sm:$0xff]
  %v3571 = vld [vmem:[%s3475 + $0x27c] sm:$0xf]
  %v3668 = vunpack.c.l.b16 %v3476
  %v3669 = vunpack.c.h.b16 %v3476
  %v3670 = vunpack.c.l.b16 %v3477
  %v3671 = vunpack.c.h.b16 %v3477
  %v3672 = vunpack.c.l.b16 %v3478
  %v3673 = vunpack.c.l.b16 %v3479
  %v3674 = vunpack.c.h.b16 %v3479
  %v3675 = vunpack.c.l.b16 %v3480
  %v3676 = vunpack.c.h.b16 %v3480
  %v3677 = vunpack.c.l.b16 %v3481
  %v3678 = vunpack.c.l.b16 %v3482
  %v3679 = vunpack.c.h.b16 %v3482
  %v3680 = vunpack.c.l.b16 %v3483
  %v3681 = vunpack.c.h.b16 %v3483
  %v3682 = vunpack.c.l.b16 %v3484
  %v3683 = vunpack.c.l.b16 %v3485
  %v3684 = vunpack.c.h.b16 %v3485
  %v3685 = vunpack.c.l.b16 %v3486
  %v3686 = vunpack.c.h.b16 %v3486
  %v3687 = vunpack.c.l.b16 %v3487
  %v3688 = vunpack.c.l.b16 %v3488
  %v3689 = vunpack.c.h.b16 %v3488
  %v3690 = vunpack.c.l.b16 %v3489
  %v3691 = vunpack.c.h.b16 %v3489
  %v3692 = vunpack.c.l.b16 %v3490
  %v3693 = vunpack.c.l.b16 %v3491
  %v3694 = vunpack.c.h.b16 %v3491
  %v3695 = vunpack.c.l.b16 %v3492
  %v3696 = vunpack.c.h.b16 %v3492
  %v3697 = vunpack.c.l.b16 %v3493
  %v3698 = vunpack.c.l.b16 %v3494
  %v3699 = vunpack.c.h.b16 %v3494
  %v3700 = vunpack.c.l.b16 %v3495
  %v3701 = vunpack.c.h.b16 %v3495
  %v3702 = vunpack.c.l.b16 %v3496
  %v3703 = vunpack.c.l.b16 %v3497
  %v3704 = vunpack.c.h.b16 %v3497
  %v3705 = vunpack.c.l.b16 %v3498
  %v3706 = vunpack.c.h.b16 %v3498
  %v3707 = vunpack.c.l.b16 %v3499
  %v3708 = vunpack.c.l.b16 %v3500
  %v3709 = vunpack.c.h.b16 %v3500
  %v3710 = vunpack.c.l.b16 %v3501
  %v3711 = vunpack.c.h.b16 %v3501
  %v3712 = vunpack.c.l.b16 %v3502
  %v3713 = vunpack.c.l.b16 %v3503
  %v3714 = vunpack.c.h.b16 %v3503
  %v3715 = vunpack.c.l.b16 %v3504
  %v3716 = vunpack.c.h.b16 %v3504
  %v3717 = vunpack.c.l.b16 %v3505
  %v3718 = vunpack.c.l.b16 %v3506
  %v3719 = vunpack.c.h.b16 %v3506
  %v3720 = vunpack.c.l.b16 %v3507
  %v3721 = vunpack.c.h.b16 %v3507
  %v3722 = vunpack.c.l.b16 %v3508
  %v3723 = vunpack.c.l.b16 %v3509
  %v3724 = vunpack.c.h.b16 %v3509
  %v3725 = vunpack.c.l.b16 %v3510
  %v3726 = vunpack.c.h.b16 %v3510
  %v3727 = vunpack.c.l.b16 %v3511
  %v3728 = vunpack.c.l.b16 %v3512
  %v3729 = vunpack.c.h.b16 %v3512
  %v3730 = vunpack.c.l.b16 %v3513
  %v3731 = vunpack.c.h.b16 %v3513
  %v3732 = vunpack.c.l.b16 %v3514
  %v3733 = vunpack.c.l.b16 %v3515
  %v3734 = vunpack.c.h.b16 %v3515
  %v3735 = vunpack.c.l.b16 %v3516
  %v3736 = vunpack.c.h.b16 %v3516
  %v3737 = vunpack.c.l.b16 %v3517
  %v3738 = vunpack.c.l.b16 %v3518
  %v3739 = vunpack.c.h.b16 %v3518
  %v3740 = vunpack.c.l.b16 %v3519
  %v3741 = vunpack.c.h.b16 %v3519
  %v3742 = vunpack.c.l.b16 %v3520
  %v3743 = vunpack.c.l.b16 %v3521
  %v3744 = vunpack.c.h.b16 %v3521
  %v3745 = vunpack.c.l.b16 %v3522
  %v3746 = vunpack.c.h.b16 %v3522
  %v3747 = vunpack.c.l.b16 %v3523
  %v3748 = vunpack.c.l.b16 %v3524
  %v3749 = vunpack.c.h.b16 %v3524
  %v3750 = vunpack.c.l.b16 %v3525
  %v3751 = vunpack.c.h.b16 %v3525
  %v3752 = vunpack.c.l.b16 %v3526
  %v3753 = vunpack.c.l.b16 %v3527
  %v3754 = vunpack.c.h.b16 %v3527
  %v3755 = vunpack.c.l.b16 %v3528
  %v3756 = vunpack.c.h.b16 %v3528
  %v3757 = vunpack.c.l.b16 %v3529
  %v3758 = vunpack.c.l.b16 %v3530
  %v3759 = vunpack.c.h.b16 %v3530
  %v3760 = vunpack.c.l.b16 %v3531
  %v3761 = vunpack.c.h.b16 %v3531
  %v3762 = vunpack.c.l.b16 %v3532
  %v3763 = vunpack.c.l.b16 %v3533
  %v3764 = vunpack.c.h.b16 %v3533
  %v3765 = vunpack.c.l.b16 %v3534
  %v3766 = vunpack.c.h.b16 %v3534
  %v3767 = vunpack.c.l.b16 %v3535
  %v3768 = vunpack.c.l.b16 %v3536
  %v3769 = vunpack.c.h.b16 %v3536
  %v3770 = vunpack.c.l.b16 %v3537
  %v3771 = vunpack.c.h.b16 %v3537
  %v3772 = vunpack.c.l.b16 %v3538
  %v3773 = vunpack.c.l.b16 %v3539
  %v3774 = vunpack.c.h.b16 %v3539
  %v3775 = vunpack.c.l.b16 %v3540
  %v3776 = vunpack.c.h.b16 %v3540
  %v3777 = vunpack.c.l.b16 %v3541
  %v3778 = vunpack.c.l.b16 %v3542
  %v3779 = vunpack.c.h.b16 %v3542
  %v3780 = vunpack.c.l.b16 %v3543
  %v3781 = vunpack.c.h.b16 %v3543
  %v3782 = vunpack.c.l.b16 %v3544
  %v3783 = vunpack.c.l.b16 %v3545
  %v3784 = vunpack.c.h.b16 %v3545
  %v3785 = vunpack.c.l.b16 %v3546
  %v3786 = vunpack.c.h.b16 %v3546
  %v3787 = vunpack.c.l.b16 %v3547
  %v3788 = vunpack.c.l.b16 %v3548
  %v3789 = vunpack.c.h.b16 %v3548
  %v3790 = vunpack.c.l.b16 %v3549
  %v3791 = vunpack.c.h.b16 %v3549
  %v3792 = vunpack.c.l.b16 %v3550
  %v3793 = vunpack.c.l.b16 %v3551
  %v3794 = vunpack.c.h.b16 %v3551
  %v3795 = vunpack.c.l.b16 %v3552
  %v3796 = vunpack.c.h.b16 %v3552
  %v3797 = vunpack.c.l.b16 %v3553
  %v3798 = vunpack.c.l.b16 %v3554
  %v3799 = vunpack.c.h.b16 %v3554
  %v3800 = vunpack.c.l.b16 %v3555
  %v3801 = vunpack.c.h.b16 %v3555
  %v3802 = vunpack.c.l.b16 %v3556
  %v3803 = vunpack.c.l.b16 %v3557
  %v3804 = vunpack.c.h.b16 %v3557
  %v3805 = vunpack.c.l.b16 %v3558
  %v3806 = vunpack.c.h.b16 %v3558
  %v3807 = vunpack.c.l.b16 %v3559
  %v3808 = vunpack.c.l.b16 %v3560
  %v3809 = vunpack.c.h.b16 %v3560
  %v3810 = vunpack.c.l.b16 %v3561
  %v3811 = vunpack.c.h.b16 %v3561
  %v3812 = vunpack.c.l.b16 %v3562
  %v3813 = vunpack.c.l.b16 %v3563
  %v3814 = vunpack.c.h.b16 %v3563
  %v3815 = vunpack.c.l.b16 %v3564
  %v3816 = vunpack.c.h.b16 %v3564
  %v3817 = vunpack.c.l.b16 %v3565
  %v3818 = vunpack.c.l.b16 %v3566
  %v3819 = vunpack.c.h.b16 %v3566
  %v3820 = vunpack.c.l.b16 %v3567
  %v3821 = vunpack.c.h.b16 %v3567
  %v3822 = vunpack.c.l.b16 %v3568
  %v3823 = vunpack.c.l.b16 %v3569
  %v3824 = vunpack.c.h.b16 %v3569
  %v3825 = vunpack.c.l.b16 %v3570
  %v3826 = vunpack.c.h.b16 %v3570
  %v3827 = vunpack.c.l.b16 %v3571
  %v3828 = vpack.c.b16 %v3673, %v3668
  %v3829 = vpack.c.b16 %v3674, %v3669
  %v3830 = vpack.c.b16 %v3675, %v3670
  %v3831 = vpack.c.b16 %v3676, %v3671
  %v3832 = vpack.c.b16 %v3677, %v3672
  %v3833 = vpack.c.b16 %v3683, %v3678
  %v3834 = vpack.c.b16 %v3684, %v3679
  %v3835 = vpack.c.b16 %v3685, %v3680
  %v3836 = vpack.c.b16 %v3686, %v3681
  %v3837 = vpack.c.b16 %v3687, %v3682
  %v3838 = vpack.c.b16 %v3693, %v3688
  %v3839 = vpack.c.b16 %v3694, %v3689
  %v3840 = vpack.c.b16 %v3695, %v3690
  %v3841 = vpack.c.b16 %v3696, %v3691
  %v3842 = vpack.c.b16 %v3697, %v3692
  %v3843 = vpack.c.b16 %v3703, %v3698
  %v3844 = vpack.c.b16 %v3704, %v3699
  %v3845 = vpack.c.b16 %v3705, %v3700
  %v3846 = vpack.c.b16 %v3706, %v3701
  %v3847 = vpack.c.b16 %v3707, %v3702
  %v3848 = vpack.c.b16 %v3713, %v3708
  %v3849 = vpack.c.b16 %v3714, %v3709
  %v3850 = vpack.c.b16 %v3715, %v3710
  %v3851 = vpack.c.b16 %v3716, %v3711
  %v3852 = vpack.c.b16 %v3717, %v3712
  %v3853 = vpack.c.b16 %v3723, %v3718
  %v3854 = vpack.c.b16 %v3724, %v3719
  %v3855 = vpack.c.b16 %v3725, %v3720
  %v3856 = vpack.c.b16 %v3726, %v3721
  %v3857 = vpack.c.b16 %v3727, %v3722
  %v3858 = vpack.c.b16 %v3733, %v3728
  %v3859 = vpack.c.b16 %v3734, %v3729
  %v3860 = vpack.c.b16 %v3735, %v3730
  %v3861 = vpack.c.b16 %v3736, %v3731
  %v3862 = vpack.c.b16 %v3737, %v3732
  %v3863 = vpack.c.b16 %v3743, %v3738
  %v3864 = vpack.c.b16 %v3744, %v3739
  %v3865 = vpack.c.b16 %v3745, %v3740
  %v3866 = vpack.c.b16 %v3746, %v3741
  %v3867 = vpack.c.b16 %v3747, %v3742
  %v3868 = vpack.c.b16 %v3753, %v3748
  %v3869 = vpack.c.b16 %v3754, %v3749
  %v3870 = vpack.c.b16 %v3755, %v3750
  %v3871 = vpack.c.b16 %v3756, %v3751
  %v3872 = vpack.c.b16 %v3757, %v3752
  %v3873 = vpack.c.b16 %v3763, %v3758
  %v3874 = vpack.c.b16 %v3764, %v3759
  %v3875 = vpack.c.b16 %v3765, %v3760
  %v3876 = vpack.c.b16 %v3766, %v3761
  %v3877 = vpack.c.b16 %v3767, %v3762
  %v3878 = vpack.c.b16 %v3773, %v3768
  %v3879 = vpack.c.b16 %v3774, %v3769
  %v3880 = vpack.c.b16 %v3775, %v3770
  %v3881 = vpack.c.b16 %v3776, %v3771
  %v3882 = vpack.c.b16 %v3777, %v3772
  %v3883 = vpack.c.b16 %v3783, %v3778
  %v3884 = vpack.c.b16 %v3784, %v3779
  %v3885 = vpack.c.b16 %v3785, %v3780
  %v3886 = vpack.c.b16 %v3786, %v3781
  %v3887 = vpack.c.b16 %v3787, %v3782
  %v3888 = vpack.c.b16 %v3793, %v3788
  %v3889 = vpack.c.b16 %v3794, %v3789
  %v3890 = vpack.c.b16 %v3795, %v3790
  %v3891 = vpack.c.b16 %v3796, %v3791
  %v3892 = vpack.c.b16 %v3797, %v3792
  %v3893 = vpack.c.b16 %v3803, %v3798
  %v3894 = vpack.c.b16 %v3804, %v3799
  %v3895 = vpack.c.b16 %v3805, %v3800
  %v3896 = vpack.c.b16 %v3806, %v3801
  %v3897 = vpack.c.b16 %v3807, %v3802
  %v3898 = vpack.c.b16 %v3813, %v3808
  %v3899 = vpack.c.b16 %v3814, %v3809
  %v3900 = vpack.c.b16 %v3815, %v3810
  %v3901 = vpack.c.b16 %v3816, %v3811
  %v3902 = vpack.c.b16 %v3817, %v3812
  %v3903 = vpack.c.b16 %v3823, %v3818
  %v3904 = vpack.c.b16 %v3824, %v3819
  %v3905 = vpack.c.b16 %v3825, %v3820
  %v3906 = vpack.c.b16 %v3826, %v3821
  %v3907 = vpack.c.b16 %v3827, %v3822
  %v3973 = vsel %vm823, %v3832, 0
  %v3976 = vsel %vm823, %v3837, 0
  %v3979 = vsel %vm823, %v3842, 0
  %v3982 = vsel %vm823, %v3847, 0
  %v3985 = vsel %vm823, %v3852, 0
  %v3988 = vsel %vm823, %v3857, 0
  %v3991 = vsel %vm823, %v3862, 0
  %v3994 = vsel %vm823, %v3867, 0
  %v3997 = vsel %vm823, %v3872, 0
  %v4000 = vsel %vm823, %v3877, 0
  %v4003 = vsel %vm823, %v3882, 0
  %v4006 = vsel %vm823, %v3887, 0
  %v4009 = vsel %vm823, %v3892, 0
  %v4012 = vsel %vm823, %v3897, 0
  %v4015 = vsel %vm823, %v3902, 0
  %v4018 = vsel %vm823, %v3907, 0
  %4020 = vmatprep.subr.bf16.mxu0 0
  %4021 = vmatpush1.bf16.msra.mxu0 %v751
  %4022 = vmatprep.subr.bf16.mxu0 0
  %4023 = vmatpush1.bf16.msra.mxu0 %v752
  %4024 = vmatprep.subr.bf16.mxu0 0
  %4025 = vmatpush1.bf16.msra.mxu0 %v753
  %4026 = vmatprep.subr.bf16.mxu0 0
  %4027 = vmatpush1.bf16.msra.mxu0 %v754
  %4028 = vmatprep.subr.bf16.mxu0 0
  %4029 = vmatpush1.bf16.msra.mxu0 %v755
  %4030 = vmatprep.subr.bf16.mxu0 0
  %4031 = vmatpush1.bf16.msra.mxu0 %v756
  %4032 = vmatprep.subr.bf16.mxu0 0
  %4033 = vmatpush1.bf16.msra.mxu0 %v757
  %4034 = vmatprep.subr.bf16.mxu0 0
  %4035 = vmatpush1.bf16.msra.mxu0 %v758
  %4036 = vmatprep.subr.bf16.mxu0 0
  %4037 = vmatpush1.bf16.msra.mxu0 %v759
  %4038 = vmatprep.subr.bf16.mxu0 0
  %4039 = vmatpush1.bf16.msra.mxu0 %v760
  %4040 = vmatprep.subr.bf16.mxu0 0
  %4041 = vmatpush1.bf16.msra.mxu0 %v761
  %4042 = vmatprep.subr.bf16.mxu0 0
  %4043 = vmatpush1.bf16.msra.mxu0 %v762
  %4044 = vmatprep.subr.bf16.mxu0 0
  %4045 = vmatpush1.bf16.msra.mxu0 %v763
  %4046 = vmatprep.subr.bf16.mxu0 0
  %4047 = vmatpush1.bf16.msra.mxu0 %v764
  %4048 = vmatprep.subr.bf16.mxu0 0
  %4049 = vmatpush1.bf16.msra.mxu0 %v765
  %4050 = vmatprep.subr.bf16.mxu0 0
  %4051 = vmatpush1.bf16.msra.mxu0 %v766
  %4052 = vmatprep.mubr.bf16.mxu0 %v3829
  %4053 = vmatmul.mubr.bf16.gmra.mrb[0].mxu0 %v3828
  %v4054 = vpop.f32.mrb[0].mxu0
  %v4055 = vadd.f32 0.0, %v4054
  %v4056 = vpop.f32.mrb[0].mxu0
  %v4057 = vpop.f32.mrb[0].mxu0
  %v4058 = vadd.f32 0.0, %v4057
  %v4059 = vpop.f32.mrb[0].mxu0
  %4060 = vmatprep.mubr.bf16.mxu0 %v3834
  %4061 = vmatmul.mubr.bf16.gmra.mrb[0].mxu0 %v3833
  %v4062 = vpop.f32.mrb[0].mxu0
  %v4063 = vadd.f32 0.0, %v4062
  %v4064 = vpop.f32.mrb[0].mxu0
  %v4065 = vpop.f32.mrb[0].mxu0
  %v4066 = vadd.f32 0.0, %v4065
  %v4067 = vpop.f32.mrb[0].mxu0
  %4068 = vmatprep.mubr.bf16.mxu0 %v3839
  %4069 = vmatmul.mubr.bf16.gmra.mrb[0].mxu0 %v3838
  %v4070 = vpop.f32.mrb[0].mxu0
  %v4071 = vadd.f32 0.0, %v4070
  %v4072 = vpop.f32.mrb[0].mxu0
  %v4073 = vpop.f32.mrb[0].mxu0
  %v4074 = vadd.f32 0.0, %v4073
  %v4075 = vpop.f32.mrb[0].mxu0
  %4076 = vmatprep.mubr.bf16.mxu0 %v3844
  %4077 = vmatmul.mubr.bf16.gmra.mrb[0].mxu0 %v3843
  %v4078 = vpop.f32.mrb[0].mxu0
  %v4079 = vadd.f32 0.0, %v4078
  %v4080 = vpop.f32.mrb[0].mxu0
  %v4081 = vpop.f32.mrb[0].mxu0
  %v4082 = vadd.f32 0.0, %v4081
  %v4083 = vpop.f32.mrb[0].mxu0
  %4084 = vmatprep.mubr.bf16.mxu0 %v3849
  %4085 = vmatmul.mubr.bf16.gmra.mrb[0].mxu0 %v3848
  %v4086 = vpop.f32.mrb[0].mxu0
  %v4087 = vadd.f32 0.0, %v4086
  %v4088 = vpop.f32.mrb[0].mxu0
  %v4089 = vpop.f32.mrb[0].mxu0
  %v4090 = vadd.f32 0.0, %v4089
  %v4091 = vpop.f32.mrb[0].mxu0
  %4092 = vmatprep.mubr.bf16.mxu0 %v3854
  %4093 = vmatmul.mubr.bf16.gmra.mrb[0].mxu0 %v3853
  %v4094 = vpop.f32.mrb[0].mxu0
  %v4095 = vadd.f32 0.0, %v4094
  %v4096 = vpop.f32.mrb[0].mxu0
  %v4097 = vpop.f32.mrb[0].mxu0
  %v4098 = vadd.f32 0.0, %v4097
  %v4099 = vpop.f32.mrb[0].mxu0
  %4100 = vmatprep.mubr.bf16.mxu0 %v3859
  %4101 = vmatmul.mubr.bf16.gmra.mrb[0].mxu0 %v3858
  %v4102 = vpop.f32.mrb[0].mxu0
  %v4103 = vadd.f32 0.0, %v4102
  %v4104 = vpop.f32.mrb[0].mxu0
  %v4105 = vpop.f32.mrb[0].mxu0
  %v4106 = vadd.f32 0.0, %v4105
  %v4107 = vpop.f32.mrb[0].mxu0
  %4108 = vmatprep.mubr.bf16.mxu0 %v3864
  %4109 = vmatmul.mubr.bf16.gmra.mrb[0].mxu0 %v3863
  %v4110 = vpop.f32.mrb[0].mxu0
  %v4111 = vadd.f32 0.0, %v4110
  %v4112 = vpop.f32.mrb[0].mxu0
  %v4113 = vpop.f32.mrb[0].mxu0
  %v4114 = vadd.f32 0.0, %v4113
  %v4115 = vpop.f32.mrb[0].mxu0
  %4116 = vmatprep.mubr.bf16.mxu0 %v3869
  %4117 = vmatmul.mubr.bf16.gmra.mrb[0].mxu0 %v3868
  %v4118 = vpop.f32.mrb[0].mxu0
  %v4119 = vadd.f32 0.0, %v4118
  %v4120 = vpop.f32.mrb[0].mxu0
  %v4121 = vpop.f32.mrb[0].mxu0
  %v4122 = vadd.f32 0.0, %v4121
  %v4123 = vpop.f32.mrb[0].mxu0
  %4124 = vmatprep.mubr.bf16.mxu0 %v3874
  %4125 = vmatmul.mubr.bf16.gmra.mrb[0].mxu0 %v3873
  %v4126 = vpop.f32.mrb[0].mxu0
  %v4127 = vadd.f32 0.0, %v4126
  %v4128 = vpop.f32.mrb[0].mxu0
  %v4129 = vpop.f32.mrb[0].mxu0
  %v4130 = vadd.f32 0.0, %v4129
  %v4131 = vpop.f32.mrb[0].mxu0
  %4132 = vmatprep.mubr.bf16.mxu0 %v3879
  %4133 = vmatmul.mubr.bf16.gmra.mrb[0].mxu0 %v3878
  %v4134 = vpop.f32.mrb[0].mxu0
  %v4135 = vadd.f32 0.0, %v4134
  %v4136 = vpop.f32.mrb[0].mxu0
  %v4137 = vpop.f32.mrb[0].mxu0
  %v4138 = vadd.f32 0.0, %v4137
  %v4139 = vpop.f32.mrb[0].mxu0
  %4140 = vmatprep.mubr.bf16.mxu0 %v3884
  %4141 = vmatmul.mubr.bf16.gmra.mrb[0].mxu0 %v3883
  %v4142 = vpop.f32.mrb[0].mxu0
  %v4143 = vadd.f32 0.0, %v4142
  %v4144 = vpop.f32.mrb[0].mxu0
  %v4145 = vpop.f32.mrb[0].mxu0
  %v4146 = vadd.f32 0.0, %v4145
  %v4147 = vpop.f32.mrb[0].mxu0
  %4148 = vmatprep.mubr.bf16.mxu0 %v3889
  %4149 = vmatmul.mubr.bf16.gmra.mrb[0].mxu0 %v3888
  %v4150 = vpop.f32.mrb[0].mxu0
  %v4151 = vadd.f32 0.0, %v4150
  %v4152 = vpop.f32.mrb[0].mxu0
  %v4153 = vpop.f32.mrb[0].mxu0
  %v4154 = vadd.f32 0.0, %v4153
  %v4155 = vpop.f32.mrb[0].mxu0
  %4156 = vmatprep.mubr.bf16.mxu0 %v3894
  %4157 = vmatmul.mubr.bf16.gmra.mrb[0].mxu0 %v3893
  %v4158 = vpop.f32.mrb[0].mxu0
  %v4159 = vadd.f32 0.0, %v4158
  %v4160 = vpop.f32.mrb[0].mxu0
  %v4161 = vpop.f32.mrb[0].mxu0
  %v4162 = vadd.f32 0.0, %v4161
  %v4163 = vpop.f32.mrb[0].mxu0
  %4164 = vmatprep.mubr.bf16.mxu0 %v3899
  %4165 = vmatmul.mubr.bf16.gmra.mrb[0].mxu0 %v3898
  %v4166 = vpop.f32.mrb[0].mxu0
  %v4167 = vadd.f32 0.0, %v4166
  %v4168 = vpop.f32.mrb[0].mxu0
  %v4169 = vpop.f32.mrb[0].mxu0
  %v4170 = vadd.f32 0.0, %v4169
  %v4171 = vpop.f32.mrb[0].mxu0
  %4172 = vmatprep.mubr.bf16.mxu0 %v3904
  %4173 = vmatmul.mubr.bf16.gmra.mrb[0].mxu0 %v3903
  %v4174 = vpop.f32.mrb[0].mxu0
  %v4175 = vadd.f32 0.0, %v4174
  %v4176 = vpop.f32.mrb[0].mxu0
  %v4177 = vpop.f32.mrb[0].mxu0
  %v4178 = vadd.f32 0.0, %v4177
  %v4179 = vpop.f32.mrb[0].mxu0
  %4180 = vdwg.mxu0
  %4181 = vmatprep.subr.bf16.mxu0 0
  %4182 = vmatpush1.bf16.msra.mxu0 %v767
  %4183 = vmatprep.subr.bf16.mxu0 0
  %4184 = vmatpush1.bf16.msra.mxu0 %v768
  %4185 = vmatprep.subr.bf16.mxu0 0
  %4186 = vmatpush1.bf16.msra.mxu0 %v769
  %4187 = vmatprep.subr.bf16.mxu0 0
  %4188 = vmatpush1.bf16.msra.mxu0 %v770
  %4189 = vmatprep.subr.bf16.mxu0 0
  %4190 = vmatpush1.bf16.msra.mxu0 %v771
  %4191 = vmatprep.subr.bf16.mxu0 0
  %4192 = vmatpush1.bf16.msra.mxu0 %v772
  %4193 = vmatprep.subr.bf16.mxu0 0
  %4194 = vmatpush1.bf16.msra.mxu0 %v773
  %4195 = vmatprep.subr.bf16.mxu0 0
  %4196 = vmatpush1.bf16.msra.mxu0 %v774
  %4197 = vmatprep.subr.bf16.mxu0 0
  %4198 = vmatpush1.bf16.msra.mxu0 %v775
  %4199 = vmatprep.subr.bf16.mxu0 0
  %4200 = vmatpush1.bf16.msra.mxu0 %v776
  %4201 = vmatprep.subr.bf16.mxu0 0
  %4202 = vmatpush1.bf16.msra.mxu0 %v777
  %4203 = vmatprep.subr.bf16.mxu0 0
  %4204 = vmatpush1.bf16.msra.mxu0 %v778
  %4205 = vmatprep.subr.bf16.mxu0 0
  %4206 = vmatpush1.bf16.msra.mxu0 %v779
  %4207 = vmatprep.subr.bf16.mxu0 0
  %4208 = vmatpush1.bf16.msra.mxu0 %v780
  %4209 = vmatprep.subr.bf16.mxu0 0
  %4210 = vmatpush1.bf16.msra.mxu0 %v781
  %4211 = vmatprep.subr.bf16.mxu0 0
  %4212 = vmatpush1.bf16.msra.mxu0 %v782
  %4213 = vmatprep.mubr.bf16.mxu0 %v3831
  %4214 = vmatmul.mubr.bf16.gmra.mrb[0].mxu0 %v3830
  %v4215 = vpop.f32.mrb[0].mxu0
  %v4216 = vadd.f32 %v4055, %v4215
  %v4217 = vpop.f32.mrb[0].mxu0
  %v4218 = vpop.f32.mrb[0].mxu0
  %v4219 = vadd.f32 %v4058, %v4218
  %v4220 = vpop.f32.mrb[0].mxu0
  %4221 = vmatprep.mubr.bf16.mxu0 %v3836
  %4222 = vmatmul.mubr.bf16.gmra.mrb[0].mxu0 %v3835
  %v4223 = vpop.f32.mrb[0].mxu0
  %v4224 = vadd.f32 %v4063, %v4223
  %v4225 = vpop.f32.mrb[0].mxu0
  %v4226 = vpop.f32.mrb[0].mxu0
  %v4227 = vadd.f32 %v4066, %v4226
  %v4228 = vpop.f32.mrb[0].mxu0
  %4229 = vmatprep.mubr.bf16.mxu0 %v3841
  %4230 = vmatmul.mubr.bf16.gmra.mrb[0].mxu0 %v3840
  %v4231 = vpop.f32.mrb[0].mxu0
  %v4232 = vadd.f32 %v4071, %v4231
  %v4233 = vpop.f32.mrb[0].mxu0
  %v4234 = vpop.f32.mrb[0].mxu0
  %v4235 = vadd.f32 %v4074, %v4234
  %v4236 = vpop.f32.mrb[0].mxu0
  %4237 = vmatprep.mubr.bf16.mxu0 %v3846
  %4238 = vmatmul.mubr.bf16.gmra.mrb[0].mxu0 %v3845
  %v4239 = vpop.f32.mrb[0].mxu0
  %v4240 = vadd.f32 %v4079, %v4239
  %v4241 = vpop.f32.mrb[0].mxu0
  %v4242 = vpop.f32.mrb[0].mxu0
  %v4243 = vadd.f32 %v4082, %v4242
  %v4244 = vpop.f32.mrb[0].mxu0
  %4245 = vmatprep.mubr.bf16.mxu0 %v3851
  %4246 = vmatmul.mubr.bf16.gmra.mrb[0].mxu0 %v3850
  %v4247 = vpop.f32.mrb[0].mxu0
  %v4248 = vadd.f32 %v4087, %v4247
  %v4249 = vpop.f32.mrb[0].mxu0
  %v4250 = vpop.f32.mrb[0].mxu0
  %v4251 = vadd.f32 %v4090, %v4250
  %v4252 = vpop.f32.mrb[0].mxu0
  %4253 = vmatprep.mubr.bf16.mxu0 %v3856
  %4254 = vmatmul.mubr.bf16.gmra.mrb[0].mxu0 %v3855
  %v4255 = vpop.f32.mrb[0].mxu0
  %v4256 = vadd.f32 %v4095, %v4255
  %v4257 = vpop.f32.mrb[0].mxu0
  %v4258 = vpop.f32.mrb[0].mxu0
  %v4259 = vadd.f32 %v4098, %v4258
  %v4260 = vpop.f32.mrb[0].mxu0
  %4261 = vmatprep.mubr.bf16.mxu0 %v3861
  %4262 = vmatmul.mubr.bf16.gmra.mrb[0].mxu0 %v3860
  %v4263 = vpop.f32.mrb[0].mxu0
  %v4264 = vadd.f32 %v4103, %v4263
  %v4265 = vpop.f32.mrb[0].mxu0
  %v4266 = vpop.f32.mrb[0].mxu0
  %v4267 = vadd.f32 %v4106, %v4266
  %v4268 = vpop.f32.mrb[0].mxu0
  %4269 = vmatprep.mubr.bf16.mxu0 %v3866
  %4270 = vmatmul.mubr.bf16.gmra.mrb[0].mxu0 %v3865
  %v4271 = vpop.f32.mrb[0].mxu0
  %v4272 = vadd.f32 %v4111, %v4271
  %v4273 = vpop.f32.mrb[0].mxu0
  %v4274 = vpop.f32.mrb[0].mxu0
  %v4275 = vadd.f32 %v4114, %v4274
  %v4276 = vpop.f32.mrb[0].mxu0
  %4277 = vmatprep.mubr.bf16.mxu0 %v3871
  %4278 = vmatmul.mubr.bf16.gmra.mrb[0].mxu0 %v3870
  %v4279 = vpop.f32.mrb[0].mxu0
  %v4280 = vadd.f32 %v4119, %v4279
  %v4281 = vpop.f32.mrb[0].mxu0
  %v4282 = vpop.f32.mrb[0].mxu0
  %v4283 = vadd.f32 %v4122, %v4282
  %v4284 = vpop.f32.mrb[0].mxu0
  %4285 = vmatprep.mubr.bf16.mxu0 %v3876
  %4286 = vmatmul.mubr.bf16.gmra.mrb[0].mxu0 %v3875
  %v4287 = vpop.f32.mrb[0].mxu0
  %v4288 = vadd.f32 %v4127, %v4287
  %v4289 = vpop.f32.mrb[0].mxu0
  %v4290 = vpop.f32.mrb[0].mxu0
  %v4291 = vadd.f32 %v4130, %v4290
  %v4292 = vpop.f32.mrb[0].mxu0
  %4293 = vmatprep.mubr.bf16.mxu0 %v3881
  %4294 = vmatmul.mubr.bf16.gmra.mrb[0].mxu0 %v3880
  %v4295 = vpop.f32.mrb[0].mxu0
  %v4296 = vadd.f32 %v4135, %v4295
  %v4297 = vpop.f32.mrb[0].mxu0
  %v4298 = vpop.f32.mrb[0].mxu0
  %v4299 = vadd.f32 %v4138, %v4298
  %v4300 = vpop.f32.mrb[0].mxu0
  %4301 = vmatprep.mubr.bf16.mxu0 %v3886
  %4302 = vmatmul.mubr.bf16.gmra.mrb[0].mxu0 %v3885
  %v4303 = vpop.f32.mrb[0].mxu0
  %v4304 = vadd.f32 %v4143, %v4303
  %v4305 = vpop.f32.mrb[0].mxu0
  %v4306 = vpop.f32.mrb[0].mxu0
  %v4307 = vadd.f32 %v4146, %v4306
  %v4308 = vpop.f32.mrb[0].mxu0
  %4309 = vmatprep.mubr.bf16.mxu0 %v3891
  %4310 = vmatmul.mubr.bf16.gmra.mrb[0].mxu0 %v3890
  %v4311 = vpop.f32.mrb[0].mxu0
  %v4312 = vadd.f32 %v4151, %v4311
  %v4313 = vpop.f32.mrb[0].mxu0
  %v4314 = vpop.f32.mrb[0].mxu0
  %v4315 = vadd.f32 %v4154, %v4314
  %v4316 = vpop.f32.mrb[0].mxu0
  %4317 = vmatprep.mubr.bf16.mxu0 %v3896
  %4318 = vmatmul.mubr.bf16.gmra.mrb[0].mxu0 %v3895
  %v4319 = vpop.f32.mrb[0].mxu0
  %v4320 = vadd.f32 %v4159, %v4319
  %v4321 = vpop.f32.mrb[0].mxu0
  %v4322 = vpop.f32.mrb[0].mxu0
  %v4323 = vadd.f32 %v4162, %v4322
  %v4324 = vpop.f32.mrb[0].mxu0
  %4325 = vmatprep.mubr.bf16.mxu0 %v3901
  %4326 = vmatmul.mubr.bf16.gmra.mrb[0].mxu0 %v3900
  %v4327 = vpop.f32.mrb[0].mxu0
  %v4328 = vadd.f32 %v4167, %v4327
  %v4329 = vpop.f32.mrb[0].mxu0
  %v4330 = vpop.f32.mrb[0].mxu0
  %v4331 = vadd.f32 %v4170, %v4330
  %v4332 = vpop.f32.mrb[0].mxu0
  %4333 = vmatprep.mubr.bf16.mxu0 %v3906
  %4334 = vmatmul.mubr.bf16.gmra.mrb[0].mxu0 %v3905
  %v4335 = vpop.f32.mrb[0].mxu0
  %v4336 = vadd.f32 %v4175, %v4335
  %v4337 = vpop.f32.mrb[0].mxu0
  %v4338 = vpop.f32.mrb[0].mxu0
  %v4339 = vadd.f32 %v4178, %v4338
  %v4340 = vpop.f32.mrb[0].mxu0
  %4341 = vdwg.mxu0
  %4342 = vmatprep.subr.bf16.mxu0 0
  %4343 = vmatpush1.bf16.msra.mxu0 %v783
  %4344 = vmatprep.subr.bf16.mxu0 0
  %4345 = vmatpush1.bf16.msra.mxu0 %v784
  %4346 = vmatprep.subr.bf16.mxu0 0
  %4347 = vmatpush1.bf16.msra.mxu0 %v785
  %4348 = vmatprep.subr.bf16.mxu0 0
  %4349 = vmatpush1.bf16.msra.mxu0 %v786
  %4350 = vmatprep.subr.bf16.mxu0 0
  %4351 = vmatpush1.bf16.msra.mxu0 0
  %4352 = vmatprep.subr.bf16.mxu0 0
  %4353 = vmatpush1.bf16.msra.mxu0 0
  %4354 = vmatprep.subr.bf16.mxu0 0
  %4355 = vmatpush1.bf16.msra.mxu0 0
  %4356 = vmatprep.subr.bf16.mxu0 0
  %4357 = vmatpush1.bf16.msra.mxu0 0
  %4358 = vmatprep.subr.bf16.mxu0 0
  %4359 = vmatpush1.bf16.msra.mxu0 0
  %4360 = vmatprep.subr.bf16.mxu0 0
  %4361 = vmatpush1.bf16.msra.mxu0 0
  %4362 = vmatprep.subr.bf16.mxu0 0
  %4363 = vmatpush1.bf16.msra.mxu0 0
  %4364 = vmatprep.subr.bf16.mxu0 0
  %4365 = vmatpush1.bf16.msra.mxu0 0
  %4366 = vmatprep.subr.bf16.mxu0 0
  %4367 = vmatpush1.bf16.msra.mxu0 0
  %4368 = vmatprep.subr.bf16.mxu0 0
  %4369 = vmatpush1.bf16.msra.mxu0 0
  %4370 = vmatprep.subr.bf16.mxu0 0
  %4371 = vmatpush1.bf16.msra.mxu0 0
  %4372 = vmatprep.subr.bf16.mxu0 0
  %4373 = vmatpush1.bf16.msra.mxu0 0
  %4374 = vmatprep.mubr.bf16.mxu0 0
  %4375 = vmatmul.mubr.bf16.gmra.mrb[0].mxu0 %v3973
  %v4376 = vpop.f32.mrb[0].mxu0
  %v4377 = vadd.f32 %v4216, %v4376
  %v4378 = vpop.f32.mrb[0].mxu0
  %v4379 = vpop.f32.mrb[0].mxu0
  %v4380 = vadd.f32 %v4219, %v4379
  %v4381 = vpop.f32.mrb[0].mxu0
  %4382 = vmatprep.mubr.bf16.mxu0 0
  %4383 = vmatmul.mubr.bf16.gmra.mrb[0].mxu0 %v3976
  %v4384 = vpop.f32.mrb[0].mxu0
  %v4385 = vadd.f32 %v4224, %v4384
  %v4386 = vpop.f32.mrb[0].mxu0
  %v4387 = vpop.f32.mrb[0].mxu0
  %v4388 = vadd.f32 %v4227, %v4387
  %v4389 = vpop.f32.mrb[0].mxu0
  %4390 = vmatprep.mubr.bf16.mxu0 0
  %4391 = vmatmul.mubr.bf16.gmra.mrb[0].mxu0 %v3979
  %v4392 = vpop.f32.mrb[0].mxu0
  %v4393 = vadd.f32 %v4232, %v4392
  %v4394 = vpop.f32.mrb[0].mxu0
  %v4395 = vpop.f32.mrb[0].mxu0
  %v4396 = vadd.f32 %v4235, %v4395
  %v4397 = vpop.f32.mrb[0].mxu0
  %4398 = vmatprep.mubr.bf16.mxu0 0
  %4399 = vmatmul.mubr.bf16.gmra.mrb[0].mxu0 %v3982
  %v4400 = vpop.f32.mrb[0].mxu0
  %v4401 = vadd.f32 %v4240, %v4400
  %v4402 = vpop.f32.mrb[0].mxu0
  %v4403 = vpop.f32.mrb[0].mxu0
  %v4404 = vadd.f32 %v4243, %v4403
  %v4405 = vpop.f32.mrb[0].mxu0
  %4406 = vmatprep.mubr.bf16.mxu0 0
  %4407 = vmatmul.mubr.bf16.gmra.mrb[0].mxu0 %v3985
  %v4408 = vpop.f32.mrb[0].mxu0
  %v4409 = vadd.f32 %v4248, %v4408
  %v4410 = vpop.f32.mrb[0].mxu0
  %v4411 = vpop.f32.mrb[0].mxu0
  %v4412 = vadd.f32 %v4251, %v4411
  %v4413 = vpop.f32.mrb[0].mxu0
  %4414 = vmatprep.mubr.bf16.mxu0 0
  %4415 = vmatmul.mubr.bf16.gmra.mrb[0].mxu0 %v3988
  %v4416 = vpop.f32.mrb[0].mxu0
  %v4417 = vadd.f32 %v4256, %v4416
  %v4418 = vpop.f32.mrb[0].mxu0
  %v4419 = vpop.f32.mrb[0].mxu0
  %v4420 = vadd.f32 %v4259, %v4419
  %v4421 = vpop.f32.mrb[0].mxu0
  %4422 = vmatprep.mubr.bf16.mxu0 0
  %4423 = vmatmul.mubr.bf16.gmra.mrb[0].mxu0 %v3991
  %v4424 = vpop.f32.mrb[0].mxu0
  %v4425 = vadd.f32 %v4264, %v4424
  %v4426 = vpop.f32.mrb[0].mxu0
  %v4427 = vpop.f32.mrb[0].mxu0
  %v4428 = vadd.f32 %v4267, %v4427
  %v4429 = vpop.f32.mrb[0].mxu0
  %4430 = vmatprep.mubr.bf16.mxu0 0
  %4431 = vmatmul.mubr.bf16.gmra.mrb[0].mxu0 %v3994
  %v4432 = vpop.f32.mrb[0].mxu0
  %v4433 = vadd.f32 %v4272, %v4432
  %v4434 = vpop.f32.mrb[0].mxu0
  %v4435 = vpop.f32.mrb[0].mxu0
  %v4436 = vadd.f32 %v4275, %v4435
  %v4437 = vpop.f32.mrb[0].mxu0
  %4438 = vmatprep.mubr.bf16.mxu0 0
  %4439 = vmatmul.mubr.bf16.gmra.mrb[0].mxu0 %v3997
  %v4440 = vpop.f32.mrb[0].mxu0
  %v4441 = vadd.f32 %v4280, %v4440
  %v4442 = vpop.f32.mrb[0].mxu0
  %v4443 = vpop.f32.mrb[0].mxu0
  %v4444 = vadd.f32 %v4283, %v4443
  %v4445 = vpop.f32.mrb[0].mxu0
  %4446 = vmatprep.mubr.bf16.mxu0 0
  %4447 = vmatmul.mubr.bf16.gmra.mrb[0].mxu0 %v4000
  %v4448 = vpop.f32.mrb[0].mxu0
  %v4449 = vadd.f32 %v4288, %v4448
  %v4450 = vpop.f32.mrb[0].mxu0
  %v4451 = vpop.f32.mrb[0].mxu0
  %v4452 = vadd.f32 %v4291, %v4451
  %v4453 = vpop.f32.mrb[0].mxu0
  %4454 = vmatprep.mubr.bf16.mxu0 0
  %4455 = vmatmul.mubr.bf16.gmra.mrb[0].mxu0 %v4003
  %v4456 = vpop.f32.mrb[0].mxu0
  %v4457 = vadd.f32 %v4296, %v4456
  %v4458 = vpop.f32.mrb[0].mxu0
  %v4459 = vpop.f32.mrb[0].mxu0
  %v4460 = vadd.f32 %v4299, %v4459
  %v4461 = vpop.f32.mrb[0].mxu0
  %4462 = vmatprep.mubr.bf16.mxu0 0
  %4463 = vmatmul.mubr.bf16.gmra.mrb[0].mxu0 %v4006
  %v4464 = vpop.f32.mrb[0].mxu0
  %v4465 = vadd.f32 %v4304, %v4464
  %v4466 = vpop.f32.mrb[0].mxu0
  %v4467 = vpop.f32.mrb[0].mxu0
  %v4468 = vadd.f32 %v4307, %v4467
  %v4469 = vpop.f32.mrb[0].mxu0
  %4470 = vmatprep.mubr.bf16.mxu0 0
  %4471 = vmatmul.mubr.bf16.gmra.mrb[0].mxu0 %v4009
  %v4472 = vpop.f32.mrb[0].mxu0
  %v4473 = vadd.f32 %v4312, %v4472
  %v4474 = vpop.f32.mrb[0].mxu0
  %v4475 = vpop.f32.mrb[0].mxu0
  %v4476 = vadd.f32 %v4315, %v4475
  %v4477 = vpop.f32.mrb[0].mxu0
  %4478 = vmatprep.mubr.bf16.mxu0 0
  %4479 = vmatmul.mubr.bf16.gmra.mrb[0].mxu0 %v4012
  %v4480 = vpop.f32.mrb[0].mxu0
  %v4481 = vadd.f32 %v4320, %v4480
  %v4482 = vpop.f32.mrb[0].mxu0
  %v4483 = vpop.f32.mrb[0].mxu0
  %v4484 = vadd.f32 %v4323, %v4483
  %v4485 = vpop.f32.mrb[0].mxu0
  %4486 = vmatprep.mubr.bf16.mxu0 0
  %4487 = vmatmul.mubr.bf16.gmra.mrb[0].mxu0 %v4015
  %v4488 = vpop.f32.mrb[0].mxu0
  %v4489 = vadd.f32 %v4328, %v4488
  %v4490 = vpop.f32.mrb[0].mxu0
  %v4491 = vpop.f32.mrb[0].mxu0
  %v4492 = vadd.f32 %v4331, %v4491
  %v4493 = vpop.f32.mrb[0].mxu0
  %4494 = vmatprep.mubr.bf16.mxu0 0
  %4495 = vmatmul.mubr.bf16.gmra.mrb[0].mxu0 %v4018
  %v4496 = vpop.f32.mrb[0].mxu0
  %v4497 = vadd.f32 %v4336, %v4496
  %v4498 = vpop.f32.mrb[0].mxu0
  %v4499 = vpop.f32.mrb[0].mxu0
  %v4500 = vadd.f32 %v4339, %v4499
  %v4501 = vpop.f32.mrb[0].mxu0
  %4502 = vdwg.mxu0
  %v4503 = vmax.f32 %v3443, %v4377
  %v4504 = vmax.f32 %v3444, %v4380
  %v4505 = vmax.f32 %v3445, %v4385
  %v4506 = vmax.f32 %v3446, %v4388
  %v4507 = vmax.f32 %v3447, %v4393
  %v4508 = vmax.f32 %v3448, %v4396
  %v4509 = vmax.f32 %v3449, %v4401
  %v4510 = vmax.f32 %v3450, %v4404
  %v4511 = vmax.f32 %v3451, %v4409
  %v4512 = vmax.f32 %v3452, %v4412
  %v4513 = vmax.f32 %v3453, %v4417
  %v4514 = vmax.f32 %v3454, %v4420
  %v4515 = vmax.f32 %v3455, %v4425
  %v4516 = vmax.f32 %v3456, %v4428
  %v4517 = vmax.f32 %v3457, %v4433
  %v4518 = vmax.f32 %v3458, %v4436
  %v4519 = vmax.f32 %v3459, %v4441
  %v4520 = vmax.f32 %v3460, %v4444
  %v4521 = vmax.f32 %v3461, %v4449
  %v4522 = vmax.f32 %v3462, %v4452
  %v4523 = vmax.f32 %v3463, %v4457
  %v4524 = vmax.f32 %v3464, %v4460
  %v4525 = vmax.f32 %v3465, %v4465
  %v4526 = vmax.f32 %v3466, %v4468
  %v4527 = vmax.f32 %v3467, %v4473
  %v4528 = vmax.f32 %v3468, %v4476
  %v4529 = vmax.f32 %v3469, %v4481
  %v4530 = vmax.f32 %v3470, %v4484
  %v4531 = vmax.f32 %v3471, %v4489
  %v4532 = vmax.f32 %v3472, %v4492
  %v4533 = vmax.f32 %v3473, %v4497
  %v4534 = vmax.f32 %v3474, %v4500
  %v4535 = vld [vmem:[%s2] sm:$0x1]
  %v4537 = vlaneseq
  %v4538 = vshrl.u32 %v4537, 7
  %v4539 = vsub.s32 0, %v4538
  %v4540 = vrot.slane %v4535, %v4539
  %v4542 = vadd.f32 %v4503, %v4540
  %v4543 = vadd.f32 %v4504, %v4540
  %v4544 = vadd.f32 %v4505, %v4540
  %v4545 = vadd.f32 %v4506, %v4540
  %v4546 = vadd.f32 %v4507, %v4540
  %v4547 = vadd.f32 %v4508, %v4540
  %v4548 = vadd.f32 %v4509, %v4540
  %v4549 = vadd.f32 %v4510, %v4540
  %v4550 = vadd.f32 %v4511, %v4540
  %v4551 = vadd.f32 %v4512, %v4540
  %v4552 = vadd.f32 %v4513, %v4540
  %v4553 = vadd.f32 %v4514, %v4540
  %v4554 = vadd.f32 %v4515, %v4540
  %v4555 = vadd.f32 %v4516, %v4540
  %v4556 = vadd.f32 %v4517, %v4540
  %v4557 = vadd.f32 %v4518, %v4540
  %v4558 = vadd.f32 %v4519, %v4540
  %v4559 = vadd.f32 %v4520, %v4540
  %v4560 = vadd.f32 %v4521, %v4540
  %v4561 = vadd.f32 %v4522, %v4540
  %v4562 = vadd.f32 %v4523, %v4540
  %v4563 = vadd.f32 %v4524, %v4540
  %v4564 = vadd.f32 %v4525, %v4540
  %v4565 = vadd.f32 %v4526, %v4540
  %v4566 = vadd.f32 %v4527, %v4540
  %v4567 = vadd.f32 %v4528, %v4540
  %v4568 = vadd.f32 %v4529, %v4540
  %v4569 = vadd.f32 %v4530, %v4540
  %v4570 = vadd.f32 %v4531, %v4540
  %v4571 = vadd.f32 %v4532, %v4540
  %v4572 = vadd.f32 %v4533, %v4540
  %v4573 = vadd.f32 %v4534, %v4540
  %v4574 = vmax.f32 %v4542, 0.0
  %v4575 = vmax.f32 %v4543, 0.0
  %v4576 = vmax.f32 %v4544, 0.0
  %v4577 = vmax.f32 %v4545, 0.0
  %v4578 = vmax.f32 %v4546, 0.0
  %v4579 = vmax.f32 %v4547, 0.0
  %v4580 = vmax.f32 %v4548, 0.0
  %v4581 = vmax.f32 %v4549, 0.0
  %v4582 = vmax.f32 %v4550, 0.0
  %v4583 = vmax.f32 %v4551, 0.0
  %v4584 = vmax.f32 %v4552, 0.0
  %v4585 = vmax.f32 %v4553, 0.0
  %v4586 = vmax.f32 %v4554, 0.0
  %v4587 = vmax.f32 %v4555, 0.0
  %v4588 = vmax.f32 %v4556, 0.0
  %v4589 = vmax.f32 %v4557, 0.0
  %v4590 = vmax.f32 %v4558, 0.0
  %v4591 = vmax.f32 %v4559, 0.0
  %v4592 = vmax.f32 %v4560, 0.0
  %v4593 = vmax.f32 %v4561, 0.0
  %v4594 = vmax.f32 %v4562, 0.0
  %v4595 = vmax.f32 %v4563, 0.0
  %v4596 = vmax.f32 %v4564, 0.0
  %v4597 = vmax.f32 %v4565, 0.0
  %v4598 = vmax.f32 %v4566, 0.0
  %v4599 = vmax.f32 %v4567, 0.0
  %v4600 = vmax.f32 %v4568, 0.0
  %v4601 = vmax.f32 %v4569, 0.0
  %v4602 = vmax.f32 %v4570, 0.0
  %v4603 = vmax.f32 %v4571, 0.0
  %v4604 = vmax.f32 %v4572, 0.0
  %v4605 = vmax.f32 %v4573, 0.0
  %v4606 = vpack.c.bf16 %v4575, %v4574
  %v4607 = vpack.c.bf16 %v4577, %v4576
  %v4608 = vpack.c.bf16 %v4579, %v4578
  %v4609 = vpack.c.bf16 %v4581, %v4580
  %v4610 = vpack.c.bf16 %v4583, %v4582
  %v4611 = vpack.c.bf16 %v4585, %v4584
  %v4612 = vpack.c.bf16 %v4587, %v4586
  %v4613 = vpack.c.bf16 %v4589, %v4588
  %v4614 = vpack.c.bf16 %v4591, %v4590
  %v4615 = vpack.c.bf16 %v4593, %v4592
  %v4616 = vpack.c.bf16 %v4595, %v4594
  %v4617 = vpack.c.bf16 %v4597, %v4596
  %v4618 = vpack.c.bf16 %v4599, %v4598
  %v4619 = vpack.c.bf16 %v4601, %v4600
  %v4620 = vpack.c.bf16 %v4603, %v4602
  %v4621 = vpack.c.bf16 %v4605, %v4604
  %v4622 = vld [vmem:[%s3] sm:$0xff]
  %v4623 = vld [vmem:[%s3 + $0x8] sm:$0xff]
  %v4624 = vld [vmem:[%s3 + $0x10] sm:$0xff]
  %v4625 = vld [vmem:[%s3 + $0x18] sm:$0xff]
  %v4626 = vld [vmem:[%s3 + $0x20] sm:$0xff]
  %v4627 = vld [vmem:[%s3 + $0x28] sm:$0xff]
  %v4628 = vld [vmem:[%s3 + $0x30] sm:$0xff]
  %v4629 = vld [vmem:[%s3 + $0x38] sm:$0xff]
  %v4630 = vld [vmem:[%s3 + $0x40] sm:$0xff]
  %v4631 = vld [vmem:[%s3 + $0x48] sm:$0xff]
  %v4632 = vld [vmem:[%s3 + $0x50] sm:$0xff]
  %v4633 = vld [vmem:[%s3 + $0x58] sm:$0xff]
  %v4634 = vld [vmem:[%s3 + $0x60] sm:$0xff]
  %v4635 = vld [vmem:[%s3 + $0x68] sm:$0xff]
  %v4636 = vld [vmem:[%s3 + $0x70] sm:$0xff]
  %v4637 = vld [vmem:[%s3 + $0x78] sm:$0xff]
  %v4638 = vld [vmem:[%s4] sm:$0x3]
  %v4640 = vlaneseq
  %v4641 = vshrl.u32 %v4640, 7
  %v4642 = vsub.s32 0, %v4641
  %v4643 = vrot.slane %v4638, %v4642
  %v4644 = vlaneseq
  %v4645 = vshrl.u32 %v4644, 7
  %v4646 = vsub.s32 1, %v4645
  %v4647 = vrot.slane %v4638, %v4646
  %v4666 = vunpack.c.l.b16 %v4622
  %v4667 = vunpack.c.h.b16 %v4622
  %v4668 = vunpack.c.l.b16 %v4623
  %v4669 = vunpack.c.h.b16 %v4623
  %v4670 = vunpack.c.l.b16 %v4624
  %v4671 = vunpack.c.h.b16 %v4624
  %v4672 = vunpack.c.l.b16 %v4625
  %v4673 = vunpack.c.h.b16 %v4625
  %v4674 = vunpack.c.l.b16 %v4626
  %v4675 = vunpack.c.h.b16 %v4626
  %v4676 = vunpack.c.l.b16 %v4627
  %v4677 = vunpack.c.h.b16 %v4627
  %v4678 = vunpack.c.l.b16 %v4628
  %v4679 = vunpack.c.h.b16 %v4628
  %v4680 = vunpack.c.l.b16 %v4629
  %v4681 = vunpack.c.h.b16 %v4629
  %v4682 = vunpack.c.l.b16 %v4630
  %v4683 = vunpack.c.h.b16 %v4630
  %v4684 = vunpack.c.l.b16 %v4631
  %v4685 = vunpack.c.h.b16 %v4631
  %v4686 = vunpack.c.l.b16 %v4632
  %v4687 = vunpack.c.h.b16 %v4632
  %v4688 = vunpack.c.l.b16 %v4633
  %v4689 = vunpack.c.h.b16 %v4633
  %v4690 = vunpack.c.l.b16 %v4634
  %v4691 = vunpack.c.h.b16 %v4634
  %v4692 = vunpack.c.l.b16 %v4635
  %v4693 = vunpack.c.h.b16 %v4635
  %v4694 = vunpack.c.l.b16 %v4636
  %v4695 = vunpack.c.h.b16 %v4636
  %v4696 = vunpack.c.l.b16 %v4637
  %v4697 = vunpack.c.h.b16 %v4637
  %v4698 = vpack.c.b16 %v4668, %v4666
  %v4699 = vpack.c.b16 %v4669, %v4667
  %v4700 = vpack.c.b16 %v4672, %v4670
  %v4701 = vpack.c.b16 %v4673, %v4671
  %v4702 = vpack.c.b16 %v4676, %v4674
  %v4703 = vpack.c.b16 %v4677, %v4675
  %v4704 = vpack.c.b16 %v4680, %v4678
  %v4705 = vpack.c.b16 %v4681, %v4679
  %v4706 = vpack.c.b16 %v4684, %v4682
  %v4707 = vpack.c.b16 %v4685, %v4683
  %v4708 = vpack.c.b16 %v4688, %v4686
  %v4709 = vpack.c.b16 %v4689, %v4687
  %v4710 = vpack.c.b16 %v4692, %v4690
  %v4711 = vpack.c.b16 %v4693, %v4691
  %v4712 = vpack.c.b16 %v4696, %v4694
  %v4713 = vpack.c.b16 %v4697, %v4695
  %4730 = vmatprep.subr.bf16.mxu0 %v4699
  %4731 = vmatpush1.bf16.msra.mxu0 %v4698
  %4732 = vmatprep.subr.bf16.mxu0 %v4701
  %4733 = vmatpush1.bf16.msra.mxu0 %v4700
  %4734 = vmatprep.subr.bf16.mxu0 %v4703
  %4735 = vmatpush1.bf16.msra.mxu0 %v4702
  %4736 = vmatprep.subr.bf16.mxu0 %v4705
  %4737 = vmatpush1.bf16.msra.mxu0 %v4704
  %4738 = vmatprep.subr.bf16.mxu0 %v4707
  %4739 = vmatpush1.bf16.msra.mxu0 %v4706
  %4740 = vmatprep.subr.bf16.mxu0 %v4709
  %4741 = vmatpush1.bf16.msra.mxu0 %v4708
  %4742 = vmatprep.subr.bf16.mxu0 %v4711
  %4743 = vmatpush1.bf16.msra.mxu0 %v4710
  %4744 = vmatprep.subr.bf16.mxu0 %v4713
  %4745 = vmatpush1.bf16.msra.mxu0 %v4712
  %4746 = vmatprep.subr.bf16.mxu0 0
  %4747 = vmatpush1.bf16.msra.mxu0 0
  %4748 = vmatprep.subr.bf16.mxu0 0
  %4749 = vmatpush1.bf16.msra.mxu0 0
  %4750 = vmatprep.subr.bf16.mxu0 0
  %4751 = vmatpush1.bf16.msra.mxu0 0
  %4752 = vmatprep.subr.bf16.mxu0 0
  %4753 = vmatpush1.bf16.msra.mxu0 0
  %4754 = vmatprep.subr.bf16.mxu0 0
  %4755 = vmatpush1.bf16.msra.mxu0 0
  %4756 = vmatprep.subr.bf16.mxu0 0
  %4757 = vmatpush1.bf16.msra.mxu0 0
  %4758 = vmatprep.subr.bf16.mxu0 0
  %4759 = vmatpush1.bf16.msra.mxu0 0
  %4760 = vmatprep.subr.bf16.mxu0 0
  %4761 = vmatpush1.bf16.msra.mxu0 0
  %4762 = vmatprep.mubr.bf16.mxu0 0
  %4763 = vmatmul.mubr.bf16.gmra.mrb[0].mxu0 %v4606
  %v4764 = vpop.f32.mrb[0].mxu0
  %v4765 = vadd.f32 %v4643, %v4764
  %v4766 = vpop.f32.mrb[0].mxu0
  %v4767 = vadd.f32 %v4647, %v4766
  %v4768 = vpop.f32.mrb[0].mxu0
  %v4769 = vadd.f32 %v4643, %v4768
  %v4770 = vpop.f32.mrb[0].mxu0
  %v4771 = vadd.f32 %v4647, %v4770
  %4772 = vmatprep.mubr.bf16.mxu0 0
  %4773 = vmatmul.mubr.bf16.gmra.mrb[0].mxu0 %v4607
  %v4774 = vpop.f32.mrb[0].mxu0
  %v4775 = vadd.f32 %v4643, %v4774
  %v4776 = vpop.f32.mrb[0].mxu0
  %v4777 = vadd.f32 %v4647, %v4776
  %v4778 = vpop.f32.mrb[0].mxu0
  %v4779 = vadd.f32 %v4643, %v4778
  %v4780 = vpop.f32.mrb[0].mxu0
  %v4781 = vadd.f32 %v4647, %v4780
  %4782 = vmatprep.mubr.bf16.mxu0 0
  %4783 = vmatmul.mubr.bf16.gmra.mrb[0].mxu0 %v4608
  %v4784 = vpop.f32.mrb[0].mxu0
  %v4785 = vadd.f32 %v4643, %v4784
  %v4786 = vpop.f32.mrb[0].mxu0
  %v4787 = vadd.f32 %v4647, %v4786
  %v4788 = vpop.f32.mrb[0].mxu0
  %v4789 = vadd.f32 %v4643, %v4788
  %v4790 = vpop.f32.mrb[0].mxu0
  %v4791 = vadd.f32 %v4647, %v4790
  %4792 = vmatprep.mubr.bf16.mxu0 0
  %4793 = vmatmul.mubr.bf16.gmra.mrb[0].mxu0 %v4609
  %v4794 = vpop.f32.mrb[0].mxu0
  %v4795 = vadd.f32 %v4643, %v4794
  %v4796 = vpop.f32.mrb[0].mxu0
  %v4797 = vadd.f32 %v4647, %v4796
  %v4798 = vpop.f32.mrb[0].mxu0
  %v4799 = vadd.f32 %v4643, %v4798
  %v4800 = vpop.f32.mrb[0].mxu0
  %v4801 = vadd.f32 %v4647, %v4800
  %4802 = vmatprep.mubr.bf16.mxu0 0
  %4803 = vmatmul.mubr.bf16.gmra.mrb[0].mxu0 %v4610
  %v4804 = vpop.f32.mrb[0].mxu0
  %v4805 = vadd.f32 %v4643, %v4804
  %v4806 = vpop.f32.mrb[0].mxu0
  %v4807 = vadd.f32 %v4647, %v4806
  %v4808 = vpop.f32.mrb[0].mxu0
  %v4809 = vadd.f32 %v4643, %v4808
  %v4810 = vpop.f32.mrb[0].mxu0
  %v4811 = vadd.f32 %v4647, %v4810
  %4812 = vmatprep.mubr.bf16.mxu0 0
  %4813 = vmatmul.mubr.bf16.gmra.mrb[0].mxu0 %v4611
  %v4814 = vpop.f32.mrb[0].mxu0
  %v4815 = vadd.f32 %v4643, %v4814
  %v4816 = vpop.f32.mrb[0].mxu0
  %v4817 = vadd.f32 %v4647, %v4816
  %v4818 = vpop.f32.mrb[0].mxu0
  %v4819 = vadd.f32 %v4643, %v4818
  %v4820 = vpop.f32.mrb[0].mxu0
  %v4821 = vadd.f32 %v4647, %v4820
  %4822 = vmatprep.mubr.bf16.mxu0 0
  %4823 = vmatmul.mubr.bf16.gmra.mrb[0].mxu0 %v4612
  %v4824 = vpop.f32.mrb[0].mxu0
  %v4825 = vadd.f32 %v4643, %v4824
  %v4826 = vpop.f32.mrb[0].mxu0
  %v4827 = vadd.f32 %v4647, %v4826
  %v4828 = vpop.f32.mrb[0].mxu0
  %v4829 = vadd.f32 %v4643, %v4828
  %v4830 = vpop.f32.mrb[0].mxu0
  %v4831 = vadd.f32 %v4647, %v4830
  %4832 = vmatprep.mubr.bf16.mxu0 0
  %4833 = vmatmul.mubr.bf16.gmra.mrb[0].mxu0 %v4613
  %v4834 = vpop.f32.mrb[0].mxu0
  %v4835 = vadd.f32 %v4643, %v4834
  %v4836 = vpop.f32.mrb[0].mxu0
  %v4837 = vadd.f32 %v4647, %v4836
  %v4838 = vpop.f32.mrb[0].mxu0
  %v4839 = vadd.f32 %v4643, %v4838
  %v4840 = vpop.f32.mrb[0].mxu0
  %v4841 = vadd.f32 %v4647, %v4840
  %4842 = vmatprep.mubr.bf16.mxu0 0
  %4843 = vmatmul.mubr.bf16.gmra.mrb[0].mxu0 %v4614
  %v4844 = vpop.f32.mrb[0].mxu0
  %v4845 = vadd.f32 %v4643, %v4844
  %v4846 = vpop.f32.mrb[0].mxu0
  %v4847 = vadd.f32 %v4647, %v4846
  %v4848 = vpop.f32.mrb[0].mxu0
  %v4849 = vadd.f32 %v4643, %v4848
  %v4850 = vpop.f32.mrb[0].mxu0
  %v4851 = vadd.f32 %v4647, %v4850
  %4852 = vmatprep.mubr.bf16.mxu0 0
  %4853 = vmatmul.mubr.bf16.gmra.mrb[0].mxu0 %v4615
  %v4854 = vpop.f32.mrb[0].mxu0
  %v4855 = vadd.f32 %v4643, %v4854
  %v4856 = vpop.f32.mrb[0].mxu0
  %v4857 = vadd.f32 %v4647, %v4856
  %v4858 = vpop.f32.mrb[0].mxu0
  %v4859 = vadd.f32 %v4643, %v4858
  %v4860 = vpop.f32.mrb[0].mxu0
  %v4861 = vadd.f32 %v4647, %v4860
  %4862 = vmatprep.mubr.bf16.mxu0 0
  %4863 = vmatmul.mubr.bf16.gmra.mrb[0].mxu0 %v4616
  %v4864 = vpop.f32.mrb[0].mxu0
  %v4865 = vadd.f32 %v4643, %v4864
  %v4866 = vpop.f32.mrb[0].mxu0
  %v4867 = vadd.f32 %v4647, %v4866
  %v4868 = vpop.f32.mrb[0].mxu0
  %v4869 = vadd.f32 %v4643, %v4868
  %v4870 = vpop.f32.mrb[0].mxu0
  %v4871 = vadd.f32 %v4647, %v4870
  %4872 = vmatprep.mubr.bf16.mxu0 0
  %4873 = vmatmul.mubr.bf16.gmra.mrb[0].mxu0 %v4617
  %v4874 = vpop.f32.mrb[0].mxu0
  %v4875 = vadd.f32 %v4643, %v4874
  %v4876 = vpop.f32.mrb[0].mxu0
  %v4877 = vadd.f32 %v4647, %v4876
  %v4878 = vpop.f32.mrb[0].mxu0
  %v4879 = vadd.f32 %v4643, %v4878
  %v4880 = vpop.f32.mrb[0].mxu0
  %v4881 = vadd.f32 %v4647, %v4880
  %4882 = vmatprep.mubr.bf16.mxu0 0
  %4883 = vmatmul.mubr.bf16.gmra.mrb[0].mxu0 %v4618
  %v4884 = vpop.f32.mrb[0].mxu0
  %v4885 = vadd.f32 %v4643, %v4884
  %v4886 = vpop.f32.mrb[0].mxu0
  %v4887 = vadd.f32 %v4647, %v4886
  %v4888 = vpop.f32.mrb[0].mxu0
  %v4889 = vadd.f32 %v4643, %v4888
  %v4890 = vpop.f32.mrb[0].mxu0
  %v4891 = vadd.f32 %v4647, %v4890
  %4892 = vmatprep.mubr.bf16.mxu0 0
  %4893 = vmatmul.mubr.bf16.gmra.mrb[0].mxu0 %v4619
  %v4894 = vpop.f32.mrb[0].mxu0
  %v4895 = vadd.f32 %v4643, %v4894
  %v4896 = vpop.f32.mrb[0].mxu0
  %v4897 = vadd.f32 %v4647, %v4896
  %v4898 = vpop.f32.mrb[0].mxu0
  %v4899 = vadd.f32 %v4643, %v4898
  %v4900 = vpop.f32.mrb[0].mxu0
  %v4901 = vadd.f32 %v4647, %v4900
  %4902 = vmatprep.mubr.bf16.mxu0 0
  %4903 = vmatmul.mubr.bf16.gmra.mrb[0].mxu0 %v4620
  %v4904 = vpop.f32.mrb[0].mxu0
  %v4905 = vadd.f32 %v4643, %v4904
  %v4906 = vpop.f32.mrb[0].mxu0
  %v4907 = vadd.f32 %v4647, %v4906
  %v4908 = vpop.f32.mrb[0].mxu0
  %v4909 = vadd.f32 %v4643, %v4908
  %v4910 = vpop.f32.mrb[0].mxu0
  %v4911 = vadd.f32 %v4647, %v4910
  %4912 = vmatprep.mubr.bf16.mxu0 0
  %4913 = vmatmul.mubr.bf16.gmra.mrb[0].mxu0 %v4621
  %v4914 = vpop.f32.mrb[0].mxu0
  %v4915 = vadd.f32 %v4643, %v4914
  %v4916 = vpop.f32.mrb[0].mxu0
  %v4917 = vadd.f32 %v4647, %v4916
  %v4918 = vpop.f32.mrb[0].mxu0
  %v4919 = vadd.f32 %v4643, %v4918
  %v4920 = vpop.f32.mrb[0].mxu0
  %v4921 = vadd.f32 %v4647, %v4920
  %4922 = vdwg.mxu0
  %v4923 = vmax.f32 %v4765, 0.0
  %v4924 = vmax.f32 %v4767, 0.0
  %v4925 = vmax.f32 %v4769, 0.0
  %v4926 = vmax.f32 %v4771, 0.0
  %v4927 = vmax.f32 %v4775, 0.0
  %v4928 = vmax.f32 %v4777, 0.0
  %v4929 = vmax.f32 %v4779, 0.0
  %v4930 = vmax.f32 %v4781, 0.0
  %v4931 = vmax.f32 %v4785, 0.0
  %v4932 = vmax.f32 %v4787, 0.0
  %v4933 = vmax.f32 %v4789, 0.0
  %v4934 = vmax.f32 %v4791, 0.0
  %v4935 = vmax.f32 %v4795, 0.0
  %v4936 = vmax.f32 %v4797, 0.0
  %v4937 = vmax.f32 %v4799, 0.0
  %v4938 = vmax.f32 %v4801, 0.0
  %v4939 = vmax.f32 %v4805, 0.0
  %v4940 = vmax.f32 %v4807, 0.0
  %v4941 = vmax.f32 %v4809, 0.0
  %v4942 = vmax.f32 %v4811, 0.0
  %v4943 = vmax.f32 %v4815, 0.0
  %v4944 = vmax.f32 %v4817, 0.0
  %v4945 = vmax.f32 %v4819, 0.0
  %v4946 = vmax.f32 %v4821, 0.0
  %v4947 = vmax.f32 %v4825, 0.0
  %v4948 = vmax.f32 %v4827, 0.0
  %v4949 = vmax.f32 %v4829, 0.0
  %v4950 = vmax.f32 %v4831, 0.0
  %v4951 = vmax.f32 %v4835, 0.0
  %v4952 = vmax.f32 %v4837, 0.0
  %v4953 = vmax.f32 %v4839, 0.0
  %v4954 = vmax.f32 %v4841, 0.0
  %v4955 = vmax.f32 %v4845, 0.0
  %v4956 = vmax.f32 %v4847, 0.0
  %v4957 = vmax.f32 %v4849, 0.0
  %v4958 = vmax.f32 %v4851, 0.0
  %v4959 = vmax.f32 %v4855, 0.0
  %v4960 = vmax.f32 %v4857, 0.0
  %v4961 = vmax.f32 %v4859, 0.0
  %v4962 = vmax.f32 %v4861, 0.0
  %v4963 = vmax.f32 %v4865, 0.0
  %v4964 = vmax.f32 %v4867, 0.0
  %v4965 = vmax.f32 %v4869, 0.0
  %v4966 = vmax.f32 %v4871, 0.0
  %v4967 = vmax.f32 %v4875, 0.0
  %v4968 = vmax.f32 %v4877, 0.0
  %v4969 = vmax.f32 %v4879, 0.0
  %v4970 = vmax.f32 %v4881, 0.0
  %v4971 = vmax.f32 %v4885, 0.0
  %v4972 = vmax.f32 %v4887, 0.0
  %v4973 = vmax.f32 %v4889, 0.0
  %v4974 = vmax.f32 %v4891, 0.0
  %v4975 = vmax.f32 %v4895, 0.0
  %v4976 = vmax.f32 %v4897, 0.0
  %v4977 = vmax.f32 %v4899, 0.0
  %v4978 = vmax.f32 %v4901, 0.0
  %v4979 = vmax.f32 %v4905, 0.0
  %v4980 = vmax.f32 %v4907, 0.0
  %v4981 = vmax.f32 %v4909, 0.0
  %v4982 = vmax.f32 %v4911, 0.0
  %v4983 = vmax.f32 %v4915, 0.0
  %v4984 = vmax.f32 %v4917, 0.0
  %v4985 = vmax.f32 %v4919, 0.0
  %v4986 = vmax.f32 %v4921, 0.0
  %v4987 = vpack.c.bf16 %v4925, %v4923
  %v4988 = vpack.c.bf16 %v4926, %v4924
  %v4989 = vpack.c.bf16 %v4929, %v4927
  %v4990 = vpack.c.bf16 %v4930, %v4928
  %v4991 = vpack.c.bf16 %v4933, %v4931
  %v4992 = vpack.c.bf16 %v4934, %v4932
  %v4993 = vpack.c.bf16 %v4937, %v4935
  %v4994 = vpack.c.bf16 %v4938, %v4936
  %v4995 = vpack.c.bf16 %v4941, %v4939
  %v4996 = vpack.c.bf16 %v4942, %v4940
  %v4997 = vpack.c.bf16 %v4945, %v4943
  %v4998 = vpack.c.bf16 %v4946, %v4944
  %v4999 = vpack.c.bf16 %v4949, %v4947
  %v5000 = vpack.c.bf16 %v4950, %v4948
  %v5001 = vpack.c.bf16 %v4953, %v4951
  %v5002 = vpack.c.bf16 %v4954, %v4952
  %v5003 = vpack.c.bf16 %v4957, %v4955
  %v5004 = vpack.c.bf16 %v4958, %v4956
  %v5005 = vpack.c.bf16 %v4961, %v4959
  %v5006 = vpack.c.bf16 %v4962, %v4960
  %v5007 = vpack.c.bf16 %v4965, %v4963
  %v5008 = vpack.c.bf16 %v4966, %v4964
  %v5009 = vpack.c.bf16 %v4969, %v4967
  %v5010 = vpack.c.bf16 %v4970, %v4968
  %v5011 = vpack.c.bf16 %v4973, %v4971
  %v5012 = vpack.c.bf16 %v4974, %v4972
  %v5013 = vpack.c.bf16 %v4977, %v4975
  %v5014 = vpack.c.bf16 %v4978, %v4976
  %v5015 = vpack.c.bf16 %v4981, %v4979
  %v5016 = vpack.c.bf16 %v4982, %v4980
  %v5017 = vpack.c.bf16 %v4985, %v4983
  %v5018 = vpack.c.bf16 %v4986, %v4984
  %v5019 = vld [vmem:[%s5] sm:$0xff]
  %v5020 = vld [vmem:[%s5 + $0x8] sm:$0xff]
  %v5021 = vld [vmem:[%s5 + $0x10] sm:$0xff]
  %v5022 = vld [vmem:[%s5 + $0x18] sm:$0xff]
  %v5023 = vld [vmem:[%s5 + $0x20] sm:$0xff]
  %v5024 = vld [vmem:[%s5 + $0x28] sm:$0xff]
  %v5025 = vld [vmem:[%s5 + $0x30] sm:$0xff]
  %v5026 = vld [vmem:[%s5 + $0x38] sm:$0xff]
  %v5027 = vld [vmem:[%s5 + $0x40] sm:$0xff]
  %v5028 = vld [vmem:[%s5 + $0x48] sm:$0xff]
  %v5029 = vld [vmem:[%s5 + $0x50] sm:$0xff]
  %v5030 = vld [vmem:[%s5 + $0x58] sm:$0xff]
  %v5031 = vld [vmem:[%s5 + $0x60] sm:$0xff]
  %v5032 = vld [vmem:[%s5 + $0x68] sm:$0xff]
  %v5033 = vld [vmem:[%s5 + $0x70] sm:$0xff]
  %v5034 = vld [vmem:[%s5 + $0x78] sm:$0xff]
  %v5035 = vld [vmem:[%s5 + $0x80] sm:$0xff]
  %v5036 = vld [vmem:[%s5 + $0x88] sm:$0xff]
  %v5037 = vld [vmem:[%s5 + $0x90] sm:$0xff]
  %v5038 = vld [vmem:[%s5 + $0x98] sm:$0xff]
  %v5039 = vld [vmem:[%s5 + $0xa0] sm:$0xff]
  %v5040 = vld [vmem:[%s5 + $0xa8] sm:$0xff]
  %v5041 = vld [vmem:[%s5 + $0xb0] sm:$0xff]
  %v5042 = vld [vmem:[%s5 + $0xb8] sm:$0xff]
  %v5043 = vld [vmem:[%s5 + $0xc0] sm:$0xff]
  %v5044 = vld [vmem:[%s5 + $0xc8] sm:$0xff]
  %v5045 = vld [vmem:[%s5 + $0xd0] sm:$0xff]
  %v5046 = vld [vmem:[%s5 + $0xd8] sm:$0xff]
  %v5047 = vld [vmem:[%s5 + $0xe0] sm:$0xff]
  %v5048 = vld [vmem:[%s5 + $0xe8] sm:$0xff]
  %v5049 = vld [vmem:[%s5 + $0xf0] sm:$0xff]
  %v5050 = vld [vmem:[%s5 + $0xf8] sm:$0xff]
  %v5051 = vld [vmem:[%s5 + $0x100] sm:$0xff]
  %v5052 = vld [vmem:[%s5 + $0x108] sm:$0xff]
  %v5053 = vld [vmem:[%s5 + $0x110] sm:$0xff]
  %v5054 = vld [vmem:[%s5 + $0x118] sm:$0xff]
  %v5055 = vld [vmem:[%s5 + $0x120] sm:$0xff]
  %v5056 = vld [vmem:[%s5 + $0x128] sm:$0xff]
  %v5057 = vld [vmem:[%s5 + $0x130] sm:$0xff]
  %v5058 = vld [vmem:[%s5 + $0x138] sm:$0xff]
  %v5059 = vld [vmem:[%s5 + $0x140] sm:$0xff]
  %v5060 = vld [vmem:[%s5 + $0x148] sm:$0xff]
  %v5061 = vld [vmem:[%s5 + $0x150] sm:$0xff]
  %v5062 = vld [vmem:[%s5 + $0x158] sm:$0xff]
  %v5063 = vld [vmem:[%s5 + $0x160] sm:$0xff]
  %v5064 = vld [vmem:[%s5 + $0x168] sm:$0xff]
  %v5065 = vld [vmem:[%s5 + $0x170] sm:$0xff]
  %v5066 = vld [vmem:[%s5 + $0x178] sm:$0xff]
  %v5067 = vld [vmem:[%s5 + $0x180] sm:$0xff]
  %v5068 = vld [vmem:[%s5 + $0x188] sm:$0xff]
  %v5069 = vld [vmem:[%s5 + $0x190] sm:$0xff]
  %v5070 = vld [vmem:[%s5 + $0x198] sm:$0xff]
  %v5071 = vld [vmem:[%s5 + $0x1a0] sm:$0xff]
  %v5072 = vld [vmem:[%s5 + $0x1a8] sm:$0xff]
  %v5073 = vld [vmem:[%s5 + $0x1b0] sm:$0xff]
  %v5074 = vld [vmem:[%s5 + $0x1b8] sm:$0xff]
  %v5075 = vld [vmem:[%s5 + $0x1c0] sm:$0xff]
  %v5076 = vld [vmem:[%s5 + $0x1c8] sm:$0xff]
  %v5077 = vld [vmem:[%s5 + $0x1d0] sm:$0xff]
  %v5078 = vld [vmem:[%s5 + $0x1d8] sm:$0xff]
  %v5079 = vld [vmem:[%s5 + $0x1e0] sm:$0xff]
  %v5080 = vld [vmem:[%s5 + $0x1e8] sm:$0xff]
  %v5081 = vld [vmem:[%s5 + $0x1f0] sm:$0xff]
  %v5082 = vld [vmem:[%s5 + $0x1f8] sm:$0xff]
  %v5083 = vld [vmem:[%s6] sm:$0xf]
  %v5085 = vlaneseq
  %v5086 = vshrl.u32 %v5085, 7
  %v5087 = vsub.s32 0, %v5086
  %v5088 = vrot.slane %v5083, %v5087
  %v5089 = vlaneseq
  %v5090 = vshrl.u32 %v5089, 7
  %v5091 = vsub.s32 1, %v5090
  %v5092 = vrot.slane %v5083, %v5091
  %v5093 = vlaneseq
  %v5094 = vshrl.u32 %v5093, 7
  %v5095 = vsub.s32 2, %v5094
  %v5096 = vrot.slane %v5083, %v5095
  %v5097 = vlaneseq
  %v5098 = vshrl.u32 %v5097, 7
  %v5099 = vsub.s32 3, %v5098
  %v5100 = vrot.slane %v5083, %v5099
  %v5169 = vunpack.c.l.b16 %v5019
  %v5170 = vunpack.c.h.b16 %v5019
  %v5171 = vunpack.c.l.b16 %v5020
  %v5172 = vunpack.c.h.b16 %v5020
  %v5173 = vunpack.c.l.b16 %v5021
  %v5174 = vunpack.c.h.b16 %v5021
  %v5175 = vunpack.c.l.b16 %v5022
  %v5176 = vunpack.c.h.b16 %v5022
  %v5177 = vunpack.c.l.b16 %v5023
  %v5178 = vunpack.c.h.b16 %v5023
  %v5179 = vunpack.c.l.b16 %v5024
  %v5180 = vunpack.c.h.b16 %v5024
  %v5181 = vunpack.c.l.b16 %v5025
  %v5182 = vunpack.c.h.b16 %v5025
  %v5183 = vunpack.c.l.b16 %v5026
  %v5184 = vunpack.c.h.b16 %v5026
  %v5185 = vunpack.c.l.b16 %v5027
  %v5186 = vunpack.c.h.b16 %v5027
  %v5187 = vunpack.c.l.b16 %v5028
  %v5188 = vunpack.c.h.b16 %v5028
  %v5189 = vunpack.c.l.b16 %v5029
  %v5190 = vunpack.c.h.b16 %v5029
  %v5191 = vunpack.c.l.b16 %v5030
  %v5192 = vunpack.c.h.b16 %v5030
  %v5193 = vunpack.c.l.b16 %v5031
  %v5194 = vunpack.c.h.b16 %v5031
  %v5195 = vunpack.c.l.b16 %v5032
  %v5196 = vunpack.c.h.b16 %v5032
  %v5197 = vunpack.c.l.b16 %v5033
  %v5198 = vunpack.c.h.b16 %v5033
  %v5199 = vunpack.c.l.b16 %v5034
  %v5200 = vunpack.c.h.b16 %v5034
  %v5201 = vunpack.c.l.b16 %v5035
  %v5202 = vunpack.c.h.b16 %v5035
  %v5203 = vunpack.c.l.b16 %v5036
  %v5204 = vunpack.c.h.b16 %v5036
  %v5205 = vunpack.c.l.b16 %v5037
  %v5206 = vunpack.c.h.b16 %v5037
  %v5207 = vunpack.c.l.b16 %v5038
  %v5208 = vunpack.c.h.b16 %v5038
  %v5209 = vunpack.c.l.b16 %v5039
  %v5210 = vunpack.c.h.b16 %v5039
  %v5211 = vunpack.c.l.b16 %v5040
  %v5212 = vunpack.c.h.b16 %v5040
  %v5213 = vunpack.c.l.b16 %v5041
  %v5214 = vunpack.c.h.b16 %v5041
  %v5215 = vunpack.c.l.b16 %v5042
  %v5216 = vunpack.c.h.b16 %v5042
  %v5217 = vunpack.c.l.b16 %v5043
  %v5218 = vunpack.c.h.b16 %v5043
  %v5219 = vunpack.c.l.b16 %v5044
  %v5220 = vunpack.c.h.b16 %v5044
  %v5221 = vunpack.c.l.b16 %v5045
  %v5222 = vunpack.c.h.b16 %v5045
  %v5223 = vunpack.c.l.b16 %v5046
  %v5224 = vunpack.c.h.b16 %v5046
  %v5225 = vunpack.c.l.b16 %v5047
  %v5226 = vunpack.c.h.b16 %v5047
  %v5227 = vunpack.c.l.b16 %v5048
  %v5228 = vunpack.c.h.b16 %v5048
  %v5229 = vunpack.c.l.b16 %v5049
  %v5230 = vunpack.c.h.b16 %v5049
  %v5231 = vunpack.c.l.b16 %v5050
  %v5232 = vunpack.c.h.b16 %v5050
  %v5233 = vunpack.c.l.b16 %v5051
  %v5234 = vunpack.c.h.b16 %v5051
  %v5235 = vunpack.c.l.b16 %v5052
  %v5236 = vunpack.c.h.b16 %v5052
  %v5237 = vunpack.c.l.b16 %v5053
  %v5238 = vunpack.c.h.b16 %v5053
  %v5239 = vunpack.c.l.b16 %v5054
  %v5240 = vunpack.c.h.b16 %v5054
  %v5241 = vunpack.c.l.b16 %v5055
  %v5242 = vunpack.c.h.b16 %v5055
  %v5243 = vunpack.c.l.b16 %v5056
  %v5244 = vunpack.c.h.b16 %v5056
  %v5245 = vunpack.c.l.b16 %v5057
  %v5246 = vunpack.c.h.b16 %v5057
  %v5247 = vunpack.c.l.b16 %v5058
  %v5248 = vunpack.c.h.b16 %v5058
  %v5249 = vunpack.c.l.b16 %v5059
  %v5250 = vunpack.c.h.b16 %v5059
  %v5251 = vunpack.c.l.b16 %v5060
  %v5252 = vunpack.c.h.b16 %v5060
  %v5253 = vunpack.c.l.b16 %v5061
  %v5254 = vunpack.c.h.b16 %v5061
  %v5255 = vunpack.c.l.b16 %v5062
  %v5256 = vunpack.c.h.b16 %v5062
  %v5257 = vunpack.c.l.b16 %v5063
  %v5258 = vunpack.c.h.b16 %v5063
  %v5259 = vunpack.c.l.b16 %v5064
  %v5260 = vunpack.c.h.b16 %v5064
  %v5261 = vunpack.c.l.b16 %v5065
  %v5262 = vunpack.c.h.b16 %v5065
  %v5263 = vunpack.c.l.b16 %v5066
  %v5264 = vunpack.c.h.b16 %v5066
  %v5265 = vunpack.c.l.b16 %v5067
  %v5266 = vunpack.c.h.b16 %v5067
  %v5267 = vunpack.c.l.b16 %v5068
  %v5268 = vunpack.c.h.b16 %v5068
  %v5269 = vunpack.c.l.b16 %v5069
  %v5270 = vunpack.c.h.b16 %v5069
  %v5271 = vunpack.c.l.b16 %v5070
  %v5272 = vunpack.c.h.b16 %v5070
  %v5273 = vunpack.c.l.b16 %v5071
  %v5274 = vunpack.c.h.b16 %v5071
  %v5275 = vunpack.c.l.b16 %v5072
  %v5276 = vunpack.c.h.b16 %v5072
  %v5277 = vunpack.c.l.b16 %v5073
  %v5278 = vunpack.c.h.b16 %v5073
  %v5279 = vunpack.c.l.b16 %v5074
  %v5280 = vunpack.c.h.b16 %v5074
  %v5281 = vunpack.c.l.b16 %v5075
  %v5282 = vunpack.c.h.b16 %v5075
  %v5283 = vunpack.c.l.b16 %v5076
  %v5284 = vunpack.c.h.b16 %v5076
  %v5285 = vunpack.c.l.b16 %v5077
  %v5286 = vunpack.c.h.b16 %v5077
  %v5287 = vunpack.c.l.b16 %v5078
  %v5288 = vunpack.c.h.b16 %v5078
  %v5289 = vunpack.c.l.b16 %v5079
  %v5290 = vunpack.c.h.b16 %v5079
  %v5291 = vunpack.c.l.b16 %v5080
  %v5292 = vunpack.c.h.b16 %v5080
  %v5293 = vunpack.c.l.b16 %v5081
  %v5294 = vunpack.c.h.b16 %v5081
  %v5295 = vunpack.c.l.b16 %v5082
  %v5296 = vunpack.c.h.b16 %v5082
  %v5297 = vpack.c.b16 %v5173, %v5169
  %v5298 = vpack.c.b16 %v5174, %v5170
  %v5299 = vpack.c.b16 %v5175, %v5171
  %v5300 = vpack.c.b16 %v5176, %v5172
  %v5301 = vpack.c.b16 %v5181, %v5177
  %v5302 = vpack.c.b16 %v5182, %v5178
  %v5303 = vpack.c.b16 %v5183, %v5179
  %v5304 = vpack.c.b16 %v5184, %v5180
  %v5305 = vpack.c.b16 %v5189, %v5185
  %v5306 = vpack.c.b16 %v5190, %v5186
  %v5307 = vpack.c.b16 %v5191, %v5187
  %v5308 = vpack.c.b16 %v5192, %v5188
  %v5309 = vpack.c.b16 %v5197, %v5193
  %v5310 = vpack.c.b16 %v5198, %v5194
  %v5311 = vpack.c.b16 %v5199, %v5195
  %v5312 = vpack.c.b16 %v5200, %v5196
  %v5313 = vpack.c.b16 %v5205, %v5201
  %v5314 = vpack.c.b16 %v5206, %v5202
  %v5315 = vpack.c.b16 %v5207, %v5203
  %v5316 = vpack.c.b16 %v5208, %v5204
  %v5317 = vpack.c.b16 %v5213, %v5209
  %v5318 = vpack.c.b16 %v5214, %v5210
  %v5319 = vpack.c.b16 %v5215, %v5211
  %v5320 = vpack.c.b16 %v5216, %v5212
  %v5321 = vpack.c.b16 %v5221, %v5217
  %v5322 = vpack.c.b16 %v5222, %v5218
  %v5323 = vpack.c.b16 %v5223, %v5219
  %v5324 = vpack.c.b16 %v5224, %v5220
  %v5325 = vpack.c.b16 %v5229, %v5225
  %v5326 = vpack.c.b16 %v5230, %v5226
  %v5327 = vpack.c.b16 %v5231, %v5227
  %v5328 = vpack.c.b16 %v5232, %v5228
  %v5329 = vpack.c.b16 %v5237, %v5233
  %v5330 = vpack.c.b16 %v5238, %v5234
  %v5331 = vpack.c.b16 %v5239, %v5235
  %v5332 = vpack.c.b16 %v5240, %v5236
  %v5333 = vpack.c.b16 %v5245, %v5241
  %v5334 = vpack.c.b16 %v5246, %v5242
  %v5335 = vpack.c.b16 %v5247, %v5243
  %v5336 = vpack.c.b16 %v5248, %v5244
  %v5337 = vpack.c.b16 %v5253, %v5249
  %v5338 = vpack.c.b16 %v5254, %v5250
  %v5339 = vpack.c.b16 %v5255, %v5251
  %v5340 = vpack.c.b16 %v5256, %v5252
  %v5341 = vpack.c.b16 %v5261, %v5257
  %v5342 = vpack.c.b16 %v5262, %v5258
  %v5343 = vpack.c.b16 %v5263, %v5259
  %v5344 = vpack.c.b16 %v5264, %v5260
  %v5345 = vpack.c.b16 %v5269, %v5265
  %v5346 = vpack.c.b16 %v5270, %v5266
  %v5347 = vpack.c.b16 %v5271, %v5267
  %v5348 = vpack.c.b16 %v5272, %v5268
  %v5349 = vpack.c.b16 %v5277, %v5273
  %v5350 = vpack.c.b16 %v5278, %v5274
  %v5351 = vpack.c.b16 %v5279, %v5275
  %v5352 = vpack.c.b16 %v5280, %v5276
  %v5353 = vpack.c.b16 %v5285, %v5281
  %v5354 = vpack.c.b16 %v5286, %v5282
  %v5355 = vpack.c.b16 %v5287, %v5283
  %v5356 = vpack.c.b16 %v5288, %v5284
  %v5357 = vpack.c.b16 %v5293, %v5289
  %v5358 = vpack.c.b16 %v5294, %v5290
  %v5359 = vpack.c.b16 %v5295, %v5291
  %v5360 = vpack.c.b16 %v5296, %v5292
  %5425 = vmatprep.subr.bf16.mxu0 %v5298
  %5426 = vmatpush1.bf16.msra.mxu0 %v5297
  %5427 = vmatprep.subr.bf16.mxu0 %v5302
  %5428 = vmatpush1.bf16.msra.mxu0 %v5301
  %5429 = vmatprep.subr.bf16.mxu0 %v5306
  %5430 = vmatpush1.bf16.msra.mxu0 %v5305
  %5431 = vmatprep.subr.bf16.mxu0 %v5310
  %5432 = vmatpush1.bf16.msra.mxu0 %v5309
  %5433 = vmatprep.subr.bf16.mxu0 %v5314
  %5434 = vmatpush1.bf16.msra.mxu0 %v5313
  %5435 = vmatprep.subr.bf16.mxu0 %v5318
  %5436 = vmatpush1.bf16.msra.mxu0 %v5317
  %5437 = vmatprep.subr.bf16.mxu0 %v5322
  %5438 = vmatpush1.bf16.msra.mxu0 %v5321
  %5439 = vmatprep.subr.bf16.mxu0 %v5326
  %5440 = vmatpush1.bf16.msra.mxu0 %v5325
  %5441 = vmatprep.subr.bf16.mxu0 %v5330
  %5442 = vmatpush1.bf16.msra.mxu0 %v5329
  %5443 = vmatprep.subr.bf16.mxu0 %v5334
  %5444 = vmatpush1.bf16.msra.mxu0 %v5333
  %5445 = vmatprep.subr.bf16.mxu0 %v5338
  %5446 = vmatpush1.bf16.msra.mxu0 %v5337
  %5447 = vmatprep.subr.bf16.mxu0 %v5342
  %5448 = vmatpush1.bf16.msra.mxu0 %v5341
  %5449 = vmatprep.subr.bf16.mxu0 %v5346
  %5450 = vmatpush1.bf16.msra.mxu0 %v5345
  %5451 = vmatprep.subr.bf16.mxu0 %v5350
  %5452 = vmatpush1.bf16.msra.mxu0 %v5349
  %5453 = vmatprep.subr.bf16.mxu0 %v5354
  %5454 = vmatpush1.bf16.msra.mxu0 %v5353
  %5455 = vmatprep.subr.bf16.mxu0 %v5358
  %5456 = vmatpush1.bf16.msra.mxu0 %v5357
  %5457 = vmatprep.mubr.bf16.mxu0 %v4988
  %5458 = vmatmul.mubr.bf16.gmra.mrb[0].mxu0 %v4987
  %v5459 = vpop.f32.mrb[0].mxu0
  %v5460 = vadd.f32 %v5088, %v5459
  %v5461 = vpop.f32.mrb[0].mxu0
  %v5462 = vadd.f32 %v5092, %v5461
  %v5463 = vpop.f32.mrb[0].mxu0
  %v5464 = vadd.f32 %v5088, %v5463
  %v5465 = vpop.f32.mrb[0].mxu0
  %v5466 = vadd.f32 %v5092, %v5465
  %5467 = vmatprep.mubr.bf16.mxu0 %v4990
  %5468 = vmatmul.mubr.bf16.gmra.mrb[0].mxu0 %v4989
  %v5469 = vpop.f32.mrb[0].mxu0
  %v5470 = vadd.f32 %v5088, %v5469
  %v5471 = vpop.f32.mrb[0].mxu0
  %v5472 = vadd.f32 %v5092, %v5471
  %v5473 = vpop.f32.mrb[0].mxu0
  %v5474 = vadd.f32 %v5088, %v5473
  %v5475 = vpop.f32.mrb[0].mxu0
  %v5476 = vadd.f32 %v5092, %v5475
  %5477 = vmatprep.mubr.bf16.mxu0 %v4992
  %5478 = vmatmul.mubr.bf16.gmra.mrb[0].mxu0 %v4991
  %v5479 = vpop.f32.mrb[0].mxu0
  %v5480 = vadd.f32 %v5088, %v5479
  %v5481 = vpop.f32.mrb[0].mxu0
  %v5482 = vadd.f32 %v5092, %v5481
  %v5483 = vpop.f32.mrb[0].mxu0
  %v5484 = vadd.f32 %v5088, %v5483
  %v5485 = vpop.f32.mrb[0].mxu0
  %v5486 = vadd.f32 %v5092, %v5485
  %5487 = vmatprep.mubr.bf16.mxu0 %v4994
  %5488 = vmatmul.mubr.bf16.gmra.mrb[0].mxu0 %v4993
  %v5489 = vpop.f32.mrb[0].mxu0
  %v5490 = vadd.f32 %v5088, %v5489
  %v5491 = vpop.f32.mrb[0].mxu0
  %v5492 = vadd.f32 %v5092, %v5491
  %v5493 = vpop.f32.mrb[0].mxu0
  %v5494 = vadd.f32 %v5088, %v5493
  %v5495 = vpop.f32.mrb[0].mxu0
  %v5496 = vadd.f32 %v5092, %v5495
  %5497 = vmatprep.mubr.bf16.mxu0 %v4996
  %5498 = vmatmul.mubr.bf16.gmra.mrb[0].mxu0 %v4995
  %v5499 = vpop.f32.mrb[0].mxu0
  %v5500 = vadd.f32 %v5088, %v5499
  %v5501 = vpop.f32.mrb[0].mxu0
  %v5502 = vadd.f32 %v5092, %v5501
  %v5503 = vpop.f32.mrb[0].mxu0
  %v5504 = vadd.f32 %v5088, %v5503
  %v5505 = vpop.f32.mrb[0].mxu0
  %v5506 = vadd.f32 %v5092, %v5505
  %5507 = vmatprep.mubr.bf16.mxu0 %v4998
  %5508 = vmatmul.mubr.bf16.gmra.mrb[0].mxu0 %v4997
  %v5509 = vpop.f32.mrb[0].mxu0
  %v5510 = vadd.f32 %v5088, %v5509
  %v5511 = vpop.f32.mrb[0].mxu0
  %v5512 = vadd.f32 %v5092, %v5511
  %v5513 = vpop.f32.mrb[0].mxu0
  %v5514 = vadd.f32 %v5088, %v5513
  %v5515 = vpop.f32.mrb[0].mxu0
  %v5516 = vadd.f32 %v5092, %v5515
  %5517 = vmatprep.mubr.bf16.mxu0 %v5000
  %5518 = vmatmul.mubr.bf16.gmra.mrb[0].mxu0 %v4999
  %v5519 = vpop.f32.mrb[0].mxu0
  %v5520 = vadd.f32 %v5088, %v5519
  %v5521 = vpop.f32.mrb[0].mxu0
  %v5522 = vadd.f32 %v5092, %v5521
  %v5523 = vpop.f32.mrb[0].mxu0
  %v5524 = vadd.f32 %v5088, %v5523
  %v5525 = vpop.f32.mrb[0].mxu0
  %v5526 = vadd.f32 %v5092, %v5525
  %5527 = vmatprep.mubr.bf16.mxu0 %v5002
  %5528 = vmatmul.mubr.bf16.gmra.mrb[0].mxu0 %v5001
  %v5529 = vpop.f32.mrb[0].mxu0
  %v5530 = vadd.f32 %v5088, %v5529
  %v5531 = vpop.f32.mrb[0].mxu0
  %v5532 = vadd.f32 %v5092, %v5531
  %v5533 = vpop.f32.mrb[0].mxu0
  %v5534 = vadd.f32 %v5088, %v5533
  %v5535 = vpop.f32.mrb[0].mxu0
  %v5536 = vadd.f32 %v5092, %v5535
  %5537 = vmatprep.mubr.bf16.mxu0 %v5004
  %5538 = vmatmul.mubr.bf16.gmra.mrb[0].mxu0 %v5003
  %v5539 = vpop.f32.mrb[0].mxu0
  %v5540 = vadd.f32 %v5088, %v5539
  %v5541 = vpop.f32.mrb[0].mxu0
  %v5542 = vadd.f32 %v5092, %v5541
  %v5543 = vpop.f32.mrb[0].mxu0
  %v5544 = vadd.f32 %v5088, %v5543
  %v5545 = vpop.f32.mrb[0].mxu0
  %v5546 = vadd.f32 %v5092, %v5545
  %5547 = vmatprep.mubr.bf16.mxu0 %v5006
  %5548 = vmatmul.mubr.bf16.gmra.mrb[0].mxu0 %v5005
  %v5549 = vpop.f32.mrb[0].mxu0
  %v5550 = vadd.f32 %v5088, %v5549
  %v5551 = vpop.f32.mrb[0].mxu0
  %v5552 = vadd.f32 %v5092, %v5551
  %v5553 = vpop.f32.mrb[0].mxu0
  %v5554 = vadd.f32 %v5088, %v5553
  %v5555 = vpop.f32.mrb[0].mxu0
  %v5556 = vadd.f32 %v5092, %v5555
  %5557 = vmatprep.mubr.bf16.mxu0 %v5008
  %5558 = vmatmul.mubr.bf16.gmra.mrb[0].mxu0 %v5007
  %v5559 = vpop.f32.mrb[0].mxu0
  %v5560 = vadd.f32 %v5088, %v5559
  %v5561 = vpop.f32.mrb[0].mxu0
  %v5562 = vadd.f32 %v5092, %v5561
  %v5563 = vpop.f32.mrb[0].mxu0
  %v5564 = vadd.f32 %v5088, %v5563
  %v5565 = vpop.f32.mrb[0].mxu0
  %v5566 = vadd.f32 %v5092, %v5565
  %5567 = vmatprep.mubr.bf16.mxu0 %v5010
  %5568 = vmatmul.mubr.bf16.gmra.mrb[0].mxu0 %v5009
  %v5569 = vpop.f32.mrb[0].mxu0
  %v5570 = vadd.f32 %v5088, %v5569
  %v5571 = vpop.f32.mrb[0].mxu0
  %v5572 = vadd.f32 %v5092, %v5571
  %v5573 = vpop.f32.mrb[0].mxu0
  %v5574 = vadd.f32 %v5088, %v5573
  %v5575 = vpop.f32.mrb[0].mxu0
  %v5576 = vadd.f32 %v5092, %v5575
  %5577 = vmatprep.mubr.bf16.mxu0 %v5012
  %5578 = vmatmul.mubr.bf16.gmra.mrb[0].mxu0 %v5011
  %v5579 = vpop.f32.mrb[0].mxu0
  %v5580 = vadd.f32 %v5088, %v5579
  %v5581 = vpop.f32.mrb[0].mxu0
  %v5582 = vadd.f32 %v5092, %v5581
  %v5583 = vpop.f32.mrb[0].mxu0
  %v5584 = vadd.f32 %v5088, %v5583
  %v5585 = vpop.f32.mrb[0].mxu0
  %v5586 = vadd.f32 %v5092, %v5585
  %5587 = vmatprep.mubr.bf16.mxu0 %v5014
  %5588 = vmatmul.mubr.bf16.gmra.mrb[0].mxu0 %v5013
  %v5589 = vpop.f32.mrb[0].mxu0
  %v5590 = vadd.f32 %v5088, %v5589
  %v5591 = vpop.f32.mrb[0].mxu0
  %v5592 = vadd.f32 %v5092, %v5591
  %v5593 = vpop.f32.mrb[0].mxu0
  %v5594 = vadd.f32 %v5088, %v5593
  %v5595 = vpop.f32.mrb[0].mxu0
  %v5596 = vadd.f32 %v5092, %v5595
  %5597 = vmatprep.mubr.bf16.mxu0 %v5016
  %5598 = vmatmul.mubr.bf16.gmra.mrb[0].mxu0 %v5015
  %v5599 = vpop.f32.mrb[0].mxu0
  %v5600 = vadd.f32 %v5088, %v5599
  %v5601 = vpop.f32.mrb[0].mxu0
  %v5602 = vadd.f32 %v5092, %v5601
  %v5603 = vpop.f32.mrb[0].mxu0
  %v5604 = vadd.f32 %v5088, %v5603
  %v5605 = vpop.f32.mrb[0].mxu0
  %v5606 = vadd.f32 %v5092, %v5605
  %5607 = vmatprep.mubr.bf16.mxu0 %v5018
  %5608 = vmatmul.mubr.bf16.gmra.mrb[0].mxu0 %v5017
  %v5609 = vpop.f32.mrb[0].mxu0
  %v5610 = vadd.f32 %v5088, %v5609
  %v5611 = vpop.f32.mrb[0].mxu0
  %v5612 = vadd.f32 %v5092, %v5611
  %v5613 = vpop.f32.mrb[0].mxu0
  %v5614 = vadd.f32 %v5088, %v5613
  %v5615 = vpop.f32.mrb[0].mxu0
  %v5616 = vadd.f32 %v5092, %v5615
  %5617 = vdwg.mxu0
  %5618 = vmatprep.subr.bf16.mxu0 %v5300
  %5619 = vmatpush1.bf16.msra.mxu0 %v5299
  %5620 = vmatprep.subr.bf16.mxu0 %v5304
  %5621 = vmatpush1.bf16.msra.mxu0 %v5303
  %5622 = vmatprep.subr.bf16.mxu0 %v5308
  %5623 = vmatpush1.bf16.msra.mxu0 %v5307
  %5624 = vmatprep.subr.bf16.mxu0 %v5312
  %5625 = vmatpush1.bf16.msra.mxu0 %v5311
  %5626 = vmatprep.subr.bf16.mxu0 %v5316
  %5627 = vmatpush1.bf16.msra.mxu0 %v5315
  %5628 = vmatprep.subr.bf16.mxu0 %v5320
  %5629 = vmatpush1.bf16.msra.mxu0 %v5319
  %5630 = vmatprep.subr.bf16.mxu0 %v5324
  %5631 = vmatpush1.bf16.msra.mxu0 %v5323
  %5632 = vmatprep.subr.bf16.mxu0 %v5328
  %5633 = vmatpush1.bf16.msra.mxu0 %v5327
  %5634 = vmatprep.subr.bf16.mxu0 %v5332
  %5635 = vmatpush1.bf16.msra.mxu0 %v5331
  %5636 = vmatprep.subr.bf16.mxu0 %v5336
  %5637 = vmatpush1.bf16.msra.mxu0 %v5335
  %5638 = vmatprep.subr.bf16.mxu0 %v5340
  %5639 = vmatpush1.bf16.msra.mxu0 %v5339
  %5640 = vmatprep.subr.bf16.mxu0 %v5344
  %5641 = vmatpush1.bf16.msra.mxu0 %v5343
  %5642 = vmatprep.subr.bf16.mxu0 %v5348
  %5643 = vmatpush1.bf16.msra.mxu0 %v5347
  %5644 = vmatprep.subr.bf16.mxu0 %v5352
  %5645 = vmatpush1.bf16.msra.mxu0 %v5351
  %5646 = vmatprep.subr.bf16.mxu0 %v5356
  %5647 = vmatpush1.bf16.msra.mxu0 %v5355
  %5648 = vmatprep.subr.bf16.mxu0 %v5360
  %5649 = vmatpush1.bf16.msra.mxu0 %v5359
  %5650 = vmatprep.mubr.bf16.mxu0 %v4988
  %5651 = vmatmul.mubr.bf16.gmra.mrb[0].mxu0 %v4987
  %v5652 = vpop.f32.mrb[0].mxu0
  %v5653 = vadd.f32 %v5096, %v5652
  %v5654 = vpop.f32.mrb[0].mxu0
  %v5655 = vadd.f32 %v5100, %v5654
  %v5656 = vpop.f32.mrb[0].mxu0
  %v5657 = vadd.f32 %v5096, %v5656
  %v5658 = vpop.f32.mrb[0].mxu0
  %v5659 = vadd.f32 %v5100, %v5658
  %5660 = vmatprep.mubr.bf16.mxu0 %v4990
  %5661 = vmatmul.mubr.bf16.gmra.mrb[0].mxu0 %v4989
  %v5662 = vpop.f32.mrb[0].mxu0
  %v5663 = vadd.f32 %v5096, %v5662
  %v5664 = vpop.f32.mrb[0].mxu0
  %v5665 = vadd.f32 %v5100, %v5664
  %v5666 = vpop.f32.mrb[0].mxu0
  %v5667 = vadd.f32 %v5096, %v5666
  %v5668 = vpop.f32.mrb[0].mxu0
  %v5669 = vadd.f32 %v5100, %v5668
  %5670 = vmatprep.mubr.bf16.mxu0 %v4992
  %5671 = vmatmul.mubr.bf16.gmra.mrb[0].mxu0 %v4991
  %v5672 = vpop.f32.mrb[0].mxu0
  %v5673 = vadd.f32 %v5096, %v5672
  %v5674 = vpop.f32.mrb[0].mxu0
  %v5675 = vadd.f32 %v5100, %v5674
  %v5676 = vpop.f32.mrb[0].mxu0
  %v5677 = vadd.f32 %v5096, %v5676
  %v5678 = vpop.f32.mrb[0].mxu0
  %v5679 = vadd.f32 %v5100, %v5678
  %5680 = vmatprep.mubr.bf16.mxu0 %v4994
  %5681 = vmatmul.mubr.bf16.gmra.mrb[0].mxu0 %v4993
  %v5682 = vpop.f32.mrb[0].mxu0
  %v5683 = vadd.f32 %v5096, %v5682
  %v5684 = vpop.f32.mrb[0].mxu0
  %v5685 = vadd.f32 %v5100, %v5684
  %v5686 = vpop.f32.mrb[0].mxu0
  %v5687 = vadd.f32 %v5096, %v5686
  %v5688 = vpop.f32.mrb[0].mxu0
  %v5689 = vadd.f32 %v5100, %v5688
  %5690 = vmatprep.mubr.bf16.mxu0 %v4996
  %5691 = vmatmul.mubr.bf16.gmra.mrb[0].mxu0 %v4995
  %v5692 = vpop.f32.mrb[0].mxu0
  %v5693 = vadd.f32 %v5096, %v5692
  %v5694 = vpop.f32.mrb[0].mxu0
  %v5695 = vadd.f32 %v5100, %v5694
  %v5696 = vpop.f32.mrb[0].mxu0
  %v5697 = vadd.f32 %v5096, %v5696
  %v5698 = vpop.f32.mrb[0].mxu0
  %v5699 = vadd.f32 %v5100, %v5698
  %5700 = vmatprep.mubr.bf16.mxu0 %v4998
  %5701 = vmatmul.mubr.bf16.gmra.mrb[0].mxu0 %v4997
  %v5702 = vpop.f32.mrb[0].mxu0
  %v5703 = vadd.f32 %v5096, %v5702
  %v5704 = vpop.f32.mrb[0].mxu0
  %v5705 = vadd.f32 %v5100, %v5704
  %v5706 = vpop.f32.mrb[0].mxu0
  %v5707 = vadd.f32 %v5096, %v5706
  %v5708 = vpop.f32.mrb[0].mxu0
  %v5709 = vadd.f32 %v5100, %v5708
  %5710 = vmatprep.mubr.bf16.mxu0 %v5000
  %5711 = vmatmul.mubr.bf16.gmra.mrb[0].mxu0 %v4999
  %v5712 = vpop.f32.mrb[0].mxu0
  %v5713 = vadd.f32 %v5096, %v5712
  %v5714 = vpop.f32.mrb[0].mxu0
  %v5715 = vadd.f32 %v5100, %v5714
  %v5716 = vpop.f32.mrb[0].mxu0
  %v5717 = vadd.f32 %v5096, %v5716
  %v5718 = vpop.f32.mrb[0].mxu0
  %v5719 = vadd.f32 %v5100, %v5718
  %5720 = vmatprep.mubr.bf16.mxu0 %v5002
  %5721 = vmatmul.mubr.bf16.gmra.mrb[0].mxu0 %v5001
  %v5722 = vpop.f32.mrb[0].mxu0
  %v5723 = vadd.f32 %v5096, %v5722
  %v5724 = vpop.f32.mrb[0].mxu0
  %v5725 = vadd.f32 %v5100, %v5724
  %v5726 = vpop.f32.mrb[0].mxu0
  %v5727 = vadd.f32 %v5096, %v5726
  %v5728 = vpop.f32.mrb[0].mxu0
  %v5729 = vadd.f32 %v5100, %v5728
  %5730 = vmatprep.mubr.bf16.mxu0 %v5004
  %5731 = vmatmul.mubr.bf16.gmra.mrb[0].mxu0 %v5003
  %v5732 = vpop.f32.mrb[0].mxu0
  %v5733 = vadd.f32 %v5096, %v5732
  %v5734 = vpop.f32.mrb[0].mxu0
  %v5735 = vadd.f32 %v5100, %v5734
  %v5736 = vpop.f32.mrb[0].mxu0
  %v5737 = vadd.f32 %v5096, %v5736
  %v5738 = vpop.f32.mrb[0].mxu0
  %v5739 = vadd.f32 %v5100, %v5738
  %5740 = vmatprep.mubr.bf16.mxu0 %v5006
  %5741 = vmatmul.mubr.bf16.gmra.mrb[0].mxu0 %v5005
  %v5742 = vpop.f32.mrb[0].mxu0
  %v5743 = vadd.f32 %v5096, %v5742
  %v5744 = vpop.f32.mrb[0].mxu0
  %v5745 = vadd.f32 %v5100, %v5744
  %v5746 = vpop.f32.mrb[0].mxu0
  %v5747 = vadd.f32 %v5096, %v5746
  %v5748 = vpop.f32.mrb[0].mxu0
  %v5749 = vadd.f32 %v5100, %v5748
  %5750 = vmatprep.mubr.bf16.mxu0 %v5008
  %5751 = vmatmul.mubr.bf16.gmra.mrb[0].mxu0 %v5007
  %v5752 = vpop.f32.mrb[0].mxu0
  %v5753 = vadd.f32 %v5096, %v5752
  %v5754 = vpop.f32.mrb[0].mxu0
  %v5755 = vadd.f32 %v5100, %v5754
  %v5756 = vpop.f32.mrb[0].mxu0
  %v5757 = vadd.f32 %v5096, %v5756
  %v5758 = vpop.f32.mrb[0].mxu0
  %v5759 = vadd.f32 %v5100, %v5758
  %5760 = vmatprep.mubr.bf16.mxu0 %v5010
  %5761 = vmatmul.mubr.bf16.gmra.mrb[0].mxu0 %v5009
  %v5762 = vpop.f32.mrb[0].mxu0
  %v5763 = vadd.f32 %v5096, %v5762
  %v5764 = vpop.f32.mrb[0].mxu0
  %v5765 = vadd.f32 %v5100, %v5764
  %v5766 = vpop.f32.mrb[0].mxu0
  %v5767 = vadd.f32 %v5096, %v5766
  %v5768 = vpop.f32.mrb[0].mxu0
  %v5769 = vadd.f32 %v5100, %v5768
  %5770 = vmatprep.mubr.bf16.mxu0 %v5012
  %5771 = vmatmul.mubr.bf16.gmra.mrb[0].mxu0 %v5011
  %v5772 = vpop.f32.mrb[0].mxu0
  %v5773 = vadd.f32 %v5096, %v5772
  %v5774 = vpop.f32.mrb[0].mxu0
  %v5775 = vadd.f32 %v5100, %v5774
  %v5776 = vpop.f32.mrb[0].mxu0
  %v5777 = vadd.f32 %v5096, %v5776
  %v5778 = vpop.f32.mrb[0].mxu0
  %v5779 = vadd.f32 %v5100, %v5778
  %5780 = vmatprep.mubr.bf16.mxu0 %v5014
  %5781 = vmatmul.mubr.bf16.gmra.mrb[0].mxu0 %v5013
  %v5782 = vpop.f32.mrb[0].mxu0
  %v5783 = vadd.f32 %v5096, %v5782
  %v5784 = vpop.f32.mrb[0].mxu0
  %v5785 = vadd.f32 %v5100, %v5784
  %v5786 = vpop.f32.mrb[0].mxu0
  %v5787 = vadd.f32 %v5096, %v5786
  %v5788 = vpop.f32.mrb[0].mxu0
  %v5789 = vadd.f32 %v5100, %v5788
  %5790 = vmatprep.mubr.bf16.mxu0 %v5016
  %5791 = vmatmul.mubr.bf16.gmra.mrb[0].mxu0 %v5015
  %v5792 = vpop.f32.mrb[0].mxu0
  %v5793 = vadd.f32 %v5096, %v5792
  %v5794 = vpop.f32.mrb[0].mxu0
  %v5795 = vadd.f32 %v5100, %v5794
  %v5796 = vpop.f32.mrb[0].mxu0
  %v5797 = vadd.f32 %v5096, %v5796
  %v5798 = vpop.f32.mrb[0].mxu0
  %v5799 = vadd.f32 %v5100, %v5798
  %5800 = vmatprep.mubr.bf16.mxu0 %v5018
  %5801 = vmatmul.mubr.bf16.gmra.mrb[0].mxu0 %v5017
  %v5802 = vpop.f32.mrb[0].mxu0
  %v5803 = vadd.f32 %v5096, %v5802
  %v5804 = vpop.f32.mrb[0].mxu0
  %v5805 = vadd.f32 %v5100, %v5804
  %v5806 = vpop.f32.mrb[0].mxu0
  %v5807 = vadd.f32 %v5096, %v5806
  %v5808 = vpop.f32.mrb[0].mxu0
  %v5809 = vadd.f32 %v5100, %v5808
  %5810 = vdwg.mxu0
  %v5811 = vmax.f32 %v5460, 0.0
  %v5812 = vmax.f32 %v5462, 0.0
  %v5813 = vmax.f32 %v5653, 0.0
  %v5814 = vmax.f32 %v5655, 0.0
  %v5815 = vmax.f32 %v5464, 0.0
  %v5816 = vmax.f32 %v5466, 0.0
  %v5817 = vmax.f32 %v5657, 0.0
  %v5818 = vmax.f32 %v5659, 0.0
  %v5819 = vmax.f32 %v5470, 0.0
  %v5820 = vmax.f32 %v5472, 0.0
  %v5821 = vmax.f32 %v5663, 0.0
  %v5822 = vmax.f32 %v5665, 0.0
  %v5823 = vmax.f32 %v5474, 0.0
  %v5824 = vmax.f32 %v5476, 0.0
  %v5825 = vmax.f32 %v5667, 0.0
  %v5826 = vmax.f32 %v5669, 0.0
  %v5827 = vmax.f32 %v5480, 0.0
  %v5828 = vmax.f32 %v5482, 0.0
  %v5829 = vmax.f32 %v5673, 0.0
  %v5830 = vmax.f32 %v5675, 0.0
  %v5831 = vmax.f32 %v5484, 0.0
  %v5832 = vmax.f32 %v5486, 0.0
  %v5833 = vmax.f32 %v5677, 0.0
  %v5834 = vmax.f32 %v5679, 0.0
  %v5835 = vmax.f32 %v5490, 0.0
  %v5836 = vmax.f32 %v5492, 0.0
  %v5837 = vmax.f32 %v5683, 0.0
  %v5838 = vmax.f32 %v5685, 0.0
  %v5839 = vmax.f32 %v5494, 0.0
  %v5840 = vmax.f32 %v5496, 0.0
  %v5841 = vmax.f32 %v5687, 0.0
  %v5842 = vmax.f32 %v5689, 0.0
  %v5843 = vmax.f32 %v5500, 0.0
  %v5844 = vmax.f32 %v5502, 0.0
  %v5845 = vmax.f32 %v5693, 0.0
  %v5846 = vmax.f32 %v5695, 0.0
  %v5847 = vmax.f32 %v5504, 0.0
  %v5848 = vmax.f32 %v5506, 0.0
  %v5849 = vmax.f32 %v5697, 0.0
  %v5850 = vmax.f32 %v5699, 0.0
  %v5851 = vmax.f32 %v5510, 0.0
  %v5852 = vmax.f32 %v5512, 0.0
  %v5853 = vmax.f32 %v5703, 0.0
  %v5854 = vmax.f32 %v5705, 0.0
  %v5855 = vmax.f32 %v5514, 0.0
  %v5856 = vmax.f32 %v5516, 0.0
  %v5857 = vmax.f32 %v5707, 0.0
  %v5858 = vmax.f32 %v5709, 0.0
  %v5859 = vmax.f32 %v5520, 0.0
  %v5860 = vmax.f32 %v5522, 0.0
  %v5861 = vmax.f32 %v5713, 0.0
  %v5862 = vmax.f32 %v5715, 0.0
  %v5863 = vmax.f32 %v5524, 0.0
  %v5864 = vmax.f32 %v5526, 0.0
  %v5865 = vmax.f32 %v5717, 0.0
  %v5866 = vmax.f32 %v5719, 0.0
  %v5867 = vmax.f32 %v5530, 0.0
  %v5868 = vmax.f32 %v5532, 0.0
  %v5869 = vmax.f32 %v5723, 0.0
  %v5870 = vmax.f32 %v5725, 0.0
  %v5871 = vmax.f32 %v5534, 0.0
  %v5872 = vmax.f32 %v5536, 0.0
  %v5873 = vmax.f32 %v5727, 0.0
  %v5874 = vmax.f32 %v5729, 0.0
  %v5875 = vmax.f32 %v5540, 0.0
  %v5876 = vmax.f32 %v5542, 0.0
  %v5877 = vmax.f32 %v5733, 0.0
  %v5878 = vmax.f32 %v5735, 0.0
  %v5879 = vmax.f32 %v5544, 0.0
  %v5880 = vmax.f32 %v5546, 0.0
  %v5881 = vmax.f32 %v5737, 0.0
  %v5882 = vmax.f32 %v5739, 0.0
  %v5883 = vmax.f32 %v5550, 0.0
  %v5884 = vmax.f32 %v5552, 0.0
  %v5885 = vmax.f32 %v5743, 0.0
  %v5886 = vmax.f32 %v5745, 0.0
  %v5887 = vmax.f32 %v5554, 0.0
  %v5888 = vmax.f32 %v5556, 0.0
  %v5889 = vmax.f32 %v5747, 0.0
  %v5890 = vmax.f32 %v5749, 0.0
  %v5891 = vmax.f32 %v5560, 0.0
  %v5892 = vmax.f32 %v5562, 0.0
  %v5893 = vmax.f32 %v5753, 0.0
  %v5894 = vmax.f32 %v5755, 0.0
  %v5895 = vmax.f32 %v5564, 0.0
  %v5896 = vmax.f32 %v5566, 0.0
  %v5897 = vmax.f32 %v5757, 0.0
  %v5898 = vmax.f32 %v5759, 0.0
  %v5899 = vmax.f32 %v5570, 0.0
  %v5900 = vmax.f32 %v5572, 0.0
  %v5901 = vmax.f32 %v5763, 0.0
  %v5902 = vmax.f32 %v5765, 0.0
  %v5903 = vmax.f32 %v5574, 0.0
  %v5904 = vmax.f32 %v5576, 0.0
  %v5905 = vmax.f32 %v5767, 0.0
  %v5906 = vmax.f32 %v5769, 0.0
  %v5907 = vmax.f32 %v5580, 0.0
  %v5908 = vmax.f32 %v5582, 0.0
  %v5909 = vmax.f32 %v5773, 0.0
  %v5910 = vmax.f32 %v5775, 0.0
  %v5911 = vmax.f32 %v5584, 0.0
  %v5912 = vmax.f32 %v5586, 0.0
  %v5913 = vmax.f32 %v5777, 0.0
  %v5914 = vmax.f32 %v5779, 0.0
  %v5915 = vmax.f32 %v5590, 0.0
  %v5916 = vmax.f32 %v5592, 0.0
  %v5917 = vmax.f32 %v5783, 0.0
  %v5918 = vmax.f32 %v5785, 0.0
  %v5919 = vmax.f32 %v5594, 0.0
  %v5920 = vmax.f32 %v5596, 0.0
  %v5921 = vmax.f32 %v5787, 0.0
  %v5922 = vmax.f32 %v5789, 0.0
  %v5923 = vmax.f32 %v5600, 0.0
  %v5924 = vmax.f32 %v5602, 0.0
  %v5925 = vmax.f32 %v5793, 0.0
  %v5926 = vmax.f32 %v5795, 0.0
  %v5927 = vmax.f32 %v5604, 0.0
  %v5928 = vmax.f32 %v5606, 0.0
  %v5929 = vmax.f32 %v5797, 0.0
  %v5930 = vmax.f32 %v5799, 0.0
  %v5931 = vmax.f32 %v5610, 0.0
  %v5932 = vmax.f32 %v5612, 0.0
  %v5933 = vmax.f32 %v5803, 0.0
  %v5934 = vmax.f32 %v5805, 0.0
  %v5935 = vmax.f32 %v5614, 0.0
  %v5936 = vmax.f32 %v5616, 0.0
  %v5937 = vmax.f32 %v5807, 0.0
  %v5938 = vmax.f32 %v5809, 0.0
  %v5939 = vpack.c.bf16 %v5815, %v5811
  %v5940 = vpack.c.bf16 %v5816, %v5812
  %v5941 = vpack.c.bf16 %v5817, %v5813
  %v5942 = vpack.c.bf16 %v5818, %v5814
  %v5943 = vpack.c.bf16 %v5823, %v5819
  %v5944 = vpack.c.bf16 %v5824, %v5820
  %v5945 = vpack.c.bf16 %v5825, %v5821
  %v5946 = vpack.c.bf16 %v5826, %v5822
  %v5947 = vpack.c.bf16 %v5831, %v5827
  %v5948 = vpack.c.bf16 %v5832, %v5828
  %v5949 = vpack.c.bf16 %v5833, %v5829
  %v5950 = vpack.c.bf16 %v5834, %v5830
  %v5951 = vpack.c.bf16 %v5839, %v5835
  %v5952 = vpack.c.bf16 %v5840, %v5836
  %v5953 = vpack.c.bf16 %v5841, %v5837
  %v5954 = vpack.c.bf16 %v5842, %v5838
  %v5955 = vpack.c.bf16 %v5847, %v5843
  %v5956 = vpack.c.bf16 %v5848, %v5844
  %v5957 = vpack.c.bf16 %v5849, %v5845
  %v5958 = vpack.c.bf16 %v5850, %v5846
  %v5959 = vpack.c.bf16 %v5855, %v5851
  %v5960 = vpack.c.bf16 %v5856, %v5852
  %v5961 = vpack.c.bf16 %v5857, %v5853
  %v5962 = vpack.c.bf16 %v5858, %v5854
  %v5963 = vpack.c.bf16 %v5863, %v5859
  %v5964 = vpack.c.bf16 %v5864, %v5860
  %v5965 = vpack.c.bf16 %v5865, %v5861
  %v5966 = vpack.c.bf16 %v5866, %v5862
  %v5967 = vpack.c.bf16 %v5871, %v5867
  %v5968 = vpack.c.bf16 %v5872, %v5868
  %v5969 = vpack.c.bf16 %v5873, %v5869
  %v5970 = vpack.c.bf16 %v5874, %v5870
  %v5971 = vpack.c.bf16 %v5879, %v5875
  %v5972 = vpack.c.bf16 %v5880, %v5876
  %v5973 = vpack.c.bf16 %v5881, %v5877
  %v5974 = vpack.c.bf16 %v5882, %v5878
  %v5975 = vpack.c.bf16 %v5887, %v5883
  %v5976 = vpack.c.bf16 %v5888, %v5884
  %v5977 = vpack.c.bf16 %v5889, %v5885
  %v5978 = vpack.c.bf16 %v5890, %v5886
  %v5979 = vpack.c.bf16 %v5895, %v5891
  %v5980 = vpack.c.bf16 %v5896, %v5892
  %v5981 = vpack.c.bf16 %v5897, %v5893
  %v5982 = vpack.c.bf16 %v5898, %v5894
  %v5983 = vpack.c.bf16 %v5903, %v5899
  %v5984 = vpack.c.bf16 %v5904, %v5900
  %v5985 = vpack.c.bf16 %v5905, %v5901
  %v5986 = vpack.c.bf16 %v5906, %v5902
  %v5987 = vpack.c.bf16 %v5911, %v5907
  %v5988 = vpack.c.bf16 %v5912, %v5908
  %v5989 = vpack.c.bf16 %v5913, %v5909
  %v5990 = vpack.c.bf16 %v5914, %v5910
  %v5991 = vpack.c.bf16 %v5919, %v5915
  %v5992 = vpack.c.bf16 %v5920, %v5916
  %v5993 = vpack.c.bf16 %v5921, %v5917
  %v5994 = vpack.c.bf16 %v5922, %v5918
  %v5995 = vpack.c.bf16 %v5927, %v5923
  %v5996 = vpack.c.bf16 %v5928, %v5924
  %v5997 = vpack.c.bf16 %v5929, %v5925
  %v5998 = vpack.c.bf16 %v5930, %v5926
  %v5999 = vpack.c.bf16 %v5935, %v5931
  %v6000 = vpack.c.bf16 %v5936, %v5932
  %v6001 = vpack.c.bf16 %v5937, %v5933
  %v6002 = vpack.c.bf16 %v5938, %v5934
  %v6003 = vld [vmem:[%s7] sm:$0xff]
  %v6004 = vld [vmem:[%s7 + $0x8] sm:$0xff]
  %v6005 = vld [vmem:[%s7 + $0x10] sm:$0xff]
  %v6006 = vld [vmem:[%s7 + $0x18] sm:$0xff]
  %v6007 = vld [vmem:[%s7 + $0x20] sm:$0xff]
  %v6008 = vld [vmem:[%s7 + $0x28] sm:$0xff]
  %v6009 = vld [vmem:[%s7 + $0x30] sm:$0xff]
  %v6010 = vld [vmem:[%s7 + $0x38] sm:$0xff]
  %v6011 = vld [vmem:[%s7 + $0x40] sm:$0xff]
  %v6012 = vld [vmem:[%s7 + $0x48] sm:$0xff]
  %v6013 = vld [vmem:[%s7 + $0x50] sm:$0xff]
  %v6014 = vld [vmem:[%s7 + $0x58] sm:$0xff]
  %v6015 = vld [vmem:[%s7 + $0x60] sm:$0xff]
  %v6016 = vld [vmem:[%s7 + $0x68] sm:$0xff]
  %v6017 = vld [vmem:[%s7 + $0x70] sm:$0xff]
  %v6018 = vld [vmem:[%s7 + $0x78] sm:$0xff]
  %v6019 = vld [vmem:[%s7 + $0x80] sm:$0xff]
  %v6020 = vld [vmem:[%s7 + $0x88] sm:$0xff]
  %v6021 = vld [vmem:[%s7 + $0x90] sm:$0xff]
  %v6022 = vld [vmem:[%s7 + $0x98] sm:$0xff]
  %v6023 = vld [vmem:[%s7 + $0xa0] sm:$0xff]
  %v6024 = vld [vmem:[%s7 + $0xa8] sm:$0xff]
  %v6025 = vld [vmem:[%s7 + $0xb0] sm:$0xff]
  %v6026 = vld [vmem:[%s7 + $0xb8] sm:$0xff]
  %v6027 = vld [vmem:[%s7 + $0xc0] sm:$0xff]
  %v6028 = vld [vmem:[%s7 + $0xc8] sm:$0xff]
  %v6029 = vld [vmem:[%s7 + $0xd0] sm:$0xff]
  %v6030 = vld [vmem:[%s7 + $0xd8] sm:$0xff]
  %v6031 = vld [vmem:[%s7 + $0xe0] sm:$0xff]
  %v6032 = vld [vmem:[%s7 + $0xe8] sm:$0xff]
  %v6033 = vld [vmem:[%s7 + $0xf0] sm:$0xff]
  %v6034 = vld [vmem:[%s7 + $0xf8] sm:$0xff]
  %v6035 = vld [vmem:[%s7 + $0x100] sm:$0xff]
  %v6036 = vld [vmem:[%s7 + $0x108] sm:$0xff]
  %v6037 = vld [vmem:[%s7 + $0x110] sm:$0xff]
  %v6038 = vld [vmem:[%s7 + $0x118] sm:$0xff]
  %v6039 = vld [vmem:[%s7 + $0x120] sm:$0xff]
  %v6040 = vld [vmem:[%s7 + $0x128] sm:$0xff]
  %v6041 = vld [vmem:[%s7 + $0x130] sm:$0xff]
  %v6042 = vld [vmem:[%s7 + $0x138] sm:$0xff]
  %v6043 = vld [vmem:[%s7 + $0x140] sm:$0xff]
  %v6044 = vld [vmem:[%s7 + $0x148] sm:$0xff]
  %v6045 = vld [vmem:[%s7 + $0x150] sm:$0xff]
  %v6046 = vld [vmem:[%s7 + $0x158] sm:$0xff]
  %v6047 = vld [vmem:[%s7 + $0x160] sm:$0xff]
  %v6048 = vld [vmem:[%s7 + $0x168] sm:$0xff]
  %v6049 = vld [vmem:[%s7 + $0x170] sm:$0xff]
  %v6050 = vld [vmem:[%s7 + $0x178] sm:$0xff]
  %v6051 = vld [vmem:[%s7 + $0x180] sm:$0xff]
  %v6052 = vld [vmem:[%s7 + $0x188] sm:$0xff]
  %v6053 = vld [vmem:[%s7 + $0x190] sm:$0xff]
  %v6054 = vld [vmem:[%s7 + $0x198] sm:$0xff]
  %v6055 = vld [vmem:[%s7 + $0x1a0] sm:$0xff]
  %v6056 = vld [vmem:[%s7 + $0x1a8] sm:$0xff]
  %v6057 = vld [vmem:[%s7 + $0x1b0] sm:$0xff]
  %v6058 = vld [vmem:[%s7 + $0x1b8] sm:$0xff]
  %v6059 = vld [vmem:[%s7 + $0x1c0] sm:$0xff]
  %v6060 = vld [vmem:[%s7 + $0x1c8] sm:$0xff]
  %v6061 = vld [vmem:[%s7 + $0x1d0] sm:$0xff]
  %v6062 = vld [vmem:[%s7 + $0x1d8] sm:$0xff]
  %v6063 = vld [vmem:[%s7 + $0x1e0] sm:$0xff]
  %v6064 = vld [vmem:[%s7 + $0x1e8] sm:$0xff]
  %v6065 = vld [vmem:[%s7 + $0x1f0] sm:$0xff]
  %v6066 = vld [vmem:[%s7 + $0x1f8] sm:$0xff]
  %v6067 = vld [vmem:[%s7 + $0x200] sm:$0xff]
  %v6068 = vld [vmem:[%s7 + $0x208] sm:$0xff]
  %v6069 = vld [vmem:[%s7 + $0x210] sm:$0xff]
  %v6070 = vld [vmem:[%s7 + $0x218] sm:$0xff]
  %v6071 = vld [vmem:[%s7 + $0x220] sm:$0xff]
  %v6072 = vld [vmem:[%s7 + $0x228] sm:$0xff]
  %v6073 = vld [vmem:[%s7 + $0x230] sm:$0xff]
  %v6074 = vld [vmem:[%s7 + $0x238] sm:$0xff]
  %v6075 = vld [vmem:[%s7 + $0x240] sm:$0xff]
  %v6076 = vld [vmem:[%s7 + $0x248] sm:$0xff]
  %v6077 = vld [vmem:[%s7 + $0x250] sm:$0xff]
  %v6078 = vld [vmem:[%s7 + $0x258] sm:$0xff]
  %v6079 = vld [vmem:[%s7 + $0x260] sm:$0xff]
  %v6080 = vld [vmem:[%s7 + $0x268] sm:$0xff]
  %v6081 = vld [vmem:[%s7 + $0x270] sm:$0xff]
  %v6082 = vld [vmem:[%s7 + $0x278] sm:$0xff]
  %v6083 = vld [vmem:[%s7 + $0x280] sm:$0xff]
  %v6084 = vld [vmem:[%s7 + $0x288] sm:$0xff]
  %v6085 = vld [vmem:[%s7 + $0x290] sm:$0xff]
  %v6086 = vld [vmem:[%s7 + $0x298] sm:$0xff]
  %v6087 = vld [vmem:[%s7 + $0x2a0] sm:$0xff]
  %v6088 = vld [vmem:[%s7 + $0x2a8] sm:$0xff]
  %v6089 = vld [vmem:[%s7 + $0x2b0] sm:$0xff]
  %v6090 = vld [vmem:[%s7 + $0x2b8] sm:$0xff]
  %v6091 = vld [vmem:[%s7 + $0x2c0] sm:$0xff]
  %v6092 = vld [vmem:[%s7 + $0x2c8] sm:$0xff]
  %v6093 = vld [vmem:[%s7 + $0x2d0] sm:$0xff]
  %v6094 = vld [vmem:[%s7 + $0x2d8] sm:$0xff]
  %v6095 = vld [vmem:[%s7 + $0x2e0] sm:$0xff]
  %v6096 = vld [vmem:[%s7 + $0x2e8] sm:$0xff]
  %v6097 = vld [vmem:[%s7 + $0x2f0] sm:$0xff]
  %v6098 = vld [vmem:[%s7 + $0x2f8] sm:$0xff]
  %v6099 = vld [vmem:[%s7 + $0x300] sm:$0xff]
  %v6100 = vld [vmem:[%s7 + $0x308] sm:$0xff]
  %v6101 = vld [vmem:[%s7 + $0x310] sm:$0xff]
  %v6102 = vld [vmem:[%s7 + $0x318] sm:$0xff]
  %v6103 = vld [vmem:[%s7 + $0x320] sm:$0xff]
  %v6104 = vld [vmem:[%s7 + $0x328] sm:$0xff]
  %v6105 = vld [vmem:[%s7 + $0x330] sm:$0xff]
  %v6106 = vld [vmem:[%s7 + $0x338] sm:$0xff]
  %v6107 = vld [vmem:[%s7 + $0x340] sm:$0xff]
  %v6108 = vld [vmem:[%s7 + $0x348] sm:$0xff]
  %v6109 = vld [vmem:[%s7 + $0x350] sm:$0xff]
  %v6110 = vld [vmem:[%s7 + $0x358] sm:$0xff]
  %v6111 = vld [vmem:[%s7 + $0x360] sm:$0xff]
  %v6112 = vld [vmem:[%s7 + $0x368] sm:$0xff]
  %v6113 = vld [vmem:[%s7 + $0x370] sm:$0xff]
  %v6114 = vld [vmem:[%s7 + $0x378] sm:$0xff]
  %v6115 = vld [vmem:[%s7 + $0x380] sm:$0xff]
  %v6116 = vld [vmem:[%s7 + $0x388] sm:$0xff]
  %v6117 = vld [vmem:[%s7 + $0x390] sm:$0xff]
  %v6118 = vld [vmem:[%s7 + $0x398] sm:$0xff]
  %v6119 = vld [vmem:[%s7 + $0x3a0] sm:$0xff]
  %v6120 = vld [vmem:[%s7 + $0x3a8] sm:$0xff]
  %v6121 = vld [vmem:[%s7 + $0x3b0] sm:$0xff]
  %v6122 = vld [vmem:[%s7 + $0x3b8] sm:$0xff]
  %v6123 = vld [vmem:[%s7 + $0x3c0] sm:$0xff]
  %v6124 = vld [vmem:[%s7 + $0x3c8] sm:$0xff]
  %v6125 = vld [vmem:[%s7 + $0x3d0] sm:$0xff]
  %v6126 = vld [vmem:[%s7 + $0x3d8] sm:$0xff]
  %v6127 = vld [vmem:[%s7 + $0x3e0] sm:$0xff]
  %v6128 = vld [vmem:[%s7 + $0x3e8] sm:$0xff]
  %v6129 = vld [vmem:[%s7 + $0x3f0] sm:$0xff]
  %v6130 = vld [vmem:[%s7 + $0x3f8] sm:$0xff]
  %v6131 = vld [vmem:[%s7 + $0x400] sm:$0xff]
  %v6132 = vld [vmem:[%s7 + $0x408] sm:$0xff]
  %v6133 = vld [vmem:[%s7 + $0x410] sm:$0xff]
  %v6134 = vld [vmem:[%s7 + $0x418] sm:$0xff]
  %v6135 = vld [vmem:[%s7 + $0x420] sm:$0xff]
  %v6136 = vld [vmem:[%s7 + $0x428] sm:$0xff]
  %v6137 = vld [vmem:[%s7 + $0x430] sm:$0xff]
  %v6138 = vld [vmem:[%s7 + $0x438] sm:$0xff]
  %v6139 = vld [vmem:[%s7 + $0x440] sm:$0xff]
  %v6140 = vld [vmem:[%s7 + $0x448] sm:$0xff]
  %v6141 = vld [vmem:[%s7 + $0x450] sm:$0xff]
  %v6142 = vld [vmem:[%s7 + $0x458] sm:$0xff]
  %v6143 = vld [vmem:[%s7 + $0x460] sm:$0xff]
  %v6144 = vld [vmem:[%s7 + $0x468] sm:$0xff]
  %v6145 = vld [vmem:[%s7 + $0x470] sm:$0xff]
  %v6146 = vld [vmem:[%s7 + $0x478] sm:$0xff]
  %v6147 = vld [vmem:[%s7 + $0x480] sm:$0xff]
  %v6148 = vld [vmem:[%s7 + $0x488] sm:$0xff]
  %v6149 = vld [vmem:[%s7 + $0x490] sm:$0xff]
  %v6150 = vld [vmem:[%s7 + $0x498] sm:$0xff]
  %v6151 = vld [vmem:[%s7 + $0x4a0] sm:$0xff]
  %v6152 = vld [vmem:[%s7 + $0x4a8] sm:$0xff]
  %v6153 = vld [vmem:[%s7 + $0x4b0] sm:$0xff]
  %v6154 = vld [vmem:[%s7 + $0x4b8] sm:$0xff]
  %v6155 = vld [vmem:[%s7 + $0x4c0] sm:$0xff]
  %v6156 = vld [vmem:[%s7 + $0x4c8] sm:$0xff]
  %v6157 = vld [vmem:[%s7 + $0x4d0] sm:$0xff]
  %v6158 = vld [vmem:[%s7 + $0x4d8] sm:$0xff]
  %v6159 = vld [vmem:[%s7 + $0x4e0] sm:$0xff]
  %v6160 = vld [vmem:[%s7 + $0x4e8] sm:$0xff]
  %v6161 = vld [vmem:[%s7 + $0x4f0] sm:$0xff]
  %v6162 = vld [vmem:[%s7 + $0x4f8] sm:$0xff]
  %v6163 = vld [vmem:[%s7 + $0x500] sm:$0xff]
  %v6164 = vld [vmem:[%s7 + $0x508] sm:$0xff]
  %v6165 = vld [vmem:[%s7 + $0x510] sm:$0xff]
  %v6166 = vld [vmem:[%s7 + $0x518] sm:$0xff]
  %v6167 = vld [vmem:[%s7 + $0x520] sm:$0xff]
  %v6168 = vld [vmem:[%s7 + $0x528] sm:$0xff]
  %v6169 = vld [vmem:[%s7 + $0x530] sm:$0xff]
  %v6170 = vld [vmem:[%s7 + $0x538] sm:$0xff]
  %v6171 = vld [vmem:[%s7 + $0x540] sm:$0xff]
  %v6172 = vld [vmem:[%s7 + $0x548] sm:$0xff]
  %v6173 = vld [vmem:[%s7 + $0x550] sm:$0xff]
  %v6174 = vld [vmem:[%s7 + $0x558] sm:$0xff]
  %v6175 = vld [vmem:[%s7 + $0x560] sm:$0xff]
  %v6176 = vld [vmem:[%s7 + $0x568] sm:$0xff]
  %v6177 = vld [vmem:[%s7 + $0x570] sm:$0xff]
  %v6178 = vld [vmem:[%s7 + $0x578] sm:$0xff]
  %v6179 = vld [vmem:[%s7 + $0x580] sm:$0xff]
  %v6180 = vld [vmem:[%s7 + $0x588] sm:$0xff]
  %v6181 = vld [vmem:[%s7 + $0x590] sm:$0xff]
  %v6182 = vld [vmem:[%s7 + $0x598] sm:$0xff]
  %v6183 = vld [vmem:[%s7 + $0x5a0] sm:$0xff]
  %v6184 = vld [vmem:[%s7 + $0x5a8] sm:$0xff]
  %v6185 = vld [vmem:[%s7 + $0x5b0] sm:$0xff]
  %v6186 = vld [vmem:[%s7 + $0x5b8] sm:$0xff]
  %v6187 = vld [vmem:[%s7 + $0x5c0] sm:$0xff]
  %v6188 = vld [vmem:[%s7 + $0x5c8] sm:$0xff]
  %v6189 = vld [vmem:[%s7 + $0x5d0] sm:$0xff]
  %v6190 = vld [vmem:[%s7 + $0x5d8] sm:$0xff]
  %v6191 = vld [vmem:[%s7 + $0x5e0] sm:$0xff]
  %v6192 = vld [vmem:[%s7 + $0x5e8] sm:$0xff]
  %v6193 = vld [vmem:[%s7 + $0x5f0] sm:$0xff]
  %v6194 = vld [vmem:[%s7 + $0x5f8] sm:$0xff]
  %v6195 = vld [vmem:[%s7 + $0x600] sm:$0xff]
  %v6196 = vld [vmem:[%s7 + $0x608] sm:$0xff]
  %v6197 = vld [vmem:[%s7 + $0x610] sm:$0xff]
  %v6198 = vld [vmem:[%s7 + $0x618] sm:$0xff]
  %v6199 = vld [vmem:[%s7 + $0x620] sm:$0xff]
  %v6200 = vld [vmem:[%s7 + $0x628] sm:$0xff]
  %v6201 = vld [vmem:[%s7 + $0x630] sm:$0xff]
  %v6202 = vld [vmem:[%s7 + $0x638] sm:$0xff]
  %v6203 = vld [vmem:[%s7 + $0x640] sm:$0xff]
  %v6204 = vld [vmem:[%s7 + $0x648] sm:$0xff]
  %v6205 = vld [vmem:[%s7 + $0x650] sm:$0xff]
  %v6206 = vld [vmem:[%s7 + $0x658] sm:$0xff]
  %v6207 = vld [vmem:[%s7 + $0x660] sm:$0xff]
  %v6208 = vld [vmem:[%s7 + $0x668] sm:$0xff]
  %v6209 = vld [vmem:[%s7 + $0x670] sm:$0xff]
  %v6210 = vld [vmem:[%s7 + $0x678] sm:$0xff]
  %v6211 = vld [vmem:[%s7 + $0x680] sm:$0xff]
  %v6212 = vld [vmem:[%s7 + $0x688] sm:$0xff]
  %v6213 = vld [vmem:[%s7 + $0x690] sm:$0xff]
  %v6214 = vld [vmem:[%s7 + $0x698] sm:$0xff]
  %v6215 = vld [vmem:[%s7 + $0x6a0] sm:$0xff]
  %v6216 = vld [vmem:[%s7 + $0x6a8] sm:$0xff]
  %v6217 = vld [vmem:[%s7 + $0x6b0] sm:$0xff]
  %v6218 = vld [vmem:[%s7 + $0x6b8] sm:$0xff]
  %v6219 = vld [vmem:[%s7 + $0x6c0] sm:$0xff]
  %v6220 = vld [vmem:[%s7 + $0x6c8] sm:$0xff]
  %v6221 = vld [vmem:[%s7 + $0x6d0] sm:$0xff]
  %v6222 = vld [vmem:[%s7 + $0x6d8] sm:$0xff]
  %v6223 = vld [vmem:[%s7 + $0x6e0] sm:$0xff]
  %v6224 = vld [vmem:[%s7 + $0x6e8] sm:$0xff]
  %v6225 = vld [vmem:[%s7 + $0x6f0] sm:$0xff]
  %v6226 = vld [vmem:[%s7 + $0x6f8] sm:$0xff]
  %v6227 = vld [vmem:[%s7 + $0x700] sm:$0xff]
  %v6228 = vld [vmem:[%s7 + $0x708] sm:$0xff]
  %v6229 = vld [vmem:[%s7 + $0x710] sm:$0xff]
  %v6230 = vld [vmem:[%s7 + $0x718] sm:$0xff]
  %v6231 = vld [vmem:[%s7 + $0x720] sm:$0xff]
  %v6232 = vld [vmem:[%s7 + $0x728] sm:$0xff]
  %v6233 = vld [vmem:[%s7 + $0x730] sm:$0xff]
  %v6234 = vld [vmem:[%s7 + $0x738] sm:$0xff]
  %v6235 = vld [vmem:[%s7 + $0x740] sm:$0xff]
  %v6236 = vld [vmem:[%s7 + $0x748] sm:$0xff]
  %v6237 = vld [vmem:[%s7 + $0x750] sm:$0xff]
  %v6238 = vld [vmem:[%s7 + $0x758] sm:$0xff]
  %v6239 = vld [vmem:[%s7 + $0x760] sm:$0xff]
  %v6240 = vld [vmem:[%s7 + $0x768] sm:$0xff]
  %v6241 = vld [vmem:[%s7 + $0x770] sm:$0xff]
  %v6242 = vld [vmem:[%s7 + $0x778] sm:$0xff]
  %v6243 = vld [vmem:[%s7 + $0x780] sm:$0xff]
  %v6244 = vld [vmem:[%s7 + $0x788] sm:$0xff]
  %v6245 = vld [vmem:[%s7 + $0x790] sm:$0xff]
  %v6246 = vld [vmem:[%s7 + $0x798] sm:$0xff]
  %v6247 = vld [vmem:[%s7 + $0x7a0] sm:$0xff]
  %v6248 = vld [vmem:[%s7 + $0x7a8] sm:$0xff]
  %v6249 = vld [vmem:[%s7 + $0x7b0] sm:$0xff]
  %v6250 = vld [vmem:[%s7 + $0x7b8] sm:$0xff]
  %v6251 = vld [vmem:[%s7 + $0x7c0] sm:$0xff]
  %v6252 = vld [vmem:[%s7 + $0x7c8] sm:$0xff]
  %v6253 = vld [vmem:[%s7 + $0x7d0] sm:$0xff]
  %v6254 = vld [vmem:[%s7 + $0x7d8] sm:$0xff]
  %v6255 = vld [vmem:[%s7 + $0x7e0] sm:$0xff]
  %v6256 = vld [vmem:[%s7 + $0x7e8] sm:$0xff]
  %v6257 = vld [vmem:[%s7 + $0x7f0] sm:$0xff]
  %v6258 = vld [vmem:[%s7 + $0x7f8] sm:$0xff]
  %v6259 = vld [vmem:[%s8] sm:$0xff]
  %v6261 = vlaneseq
  %v6262 = vshrl.u32 %v6261, 7
  %v6263 = vsub.s32 0, %v6262
  %v6264 = vrot.slane %v6259, %v6263
  %v6265 = vlaneseq
  %v6266 = vshrl.u32 %v6265, 7
  %v6267 = vsub.s32 1, %v6266
  %v6268 = vrot.slane %v6259, %v6267
  %v6269 = vlaneseq
  %v6270 = vshrl.u32 %v6269, 7
  %v6271 = vsub.s32 2, %v6270
  %v6272 = vrot.slane %v6259, %v6271
  %v6273 = vlaneseq
  %v6274 = vshrl.u32 %v6273, 7
  %v6275 = vsub.s32 3, %v6274
  %v6276 = vrot.slane %v6259, %v6275
  %v6277 = vlaneseq
  %v6278 = vshrl.u32 %v6277, 7
  %v6279 = vsub.s32 4, %v6278
  %v6280 = vrot.slane %v6259, %v6279
  %v6281 = vlaneseq
  %v6282 = vshrl.u32 %v6281, 7
  %v6283 = vsub.s32 5, %v6282
  %v6284 = vrot.slane %v6259, %v6283
  %v6285 = vlaneseq
  %v6286 = vshrl.u32 %v6285, 7
  %v6287 = vsub.s32 6, %v6286
  %v6288 = vrot.slane %v6259, %v6287
  %v6289 = vlaneseq
  %v6290 = vshrl.u32 %v6289, 7
  %v6291 = vsub.s32 7, %v6290
  %v6292 = vrot.slane %v6259, %v6291
  %v6557 = vunpack.c.l.b16 %v6003
  %v6558 = vunpack.c.h.b16 %v6003
  %v6559 = vunpack.c.l.b16 %v6004
  %v6560 = vunpack.c.h.b16 %v6004
  %v6561 = vunpack.c.l.b16 %v6005
  %v6562 = vunpack.c.h.b16 %v6005
  %v6563 = vunpack.c.l.b16 %v6006
  %v6564 = vunpack.c.h.b16 %v6006
  %v6565 = vunpack.c.l.b16 %v6007
  %v6566 = vunpack.c.h.b16 %v6007
  %v6567 = vunpack.c.l.b16 %v6008
  %v6568 = vunpack.c.h.b16 %v6008
  %v6569 = vunpack.c.l.b16 %v6009
  %v6570 = vunpack.c.h.b16 %v6009
  %v6571 = vunpack.c.l.b16 %v6010
  %v6572 = vunpack.c.h.b16 %v6010
  %v6573 = vunpack.c.l.b16 %v6011
  %v6574 = vunpack.c.h.b16 %v6011
  %v6575 = vunpack.c.l.b16 %v6012
  %v6576 = vunpack.c.h.b16 %v6012
  %v6577 = vunpack.c.l.b16 %v6013
  %v6578 = vunpack.c.h.b16 %v6013
  %v6579 = vunpack.c.l.b16 %v6014
  %v6580 = vunpack.c.h.b16 %v6014
  %v6581 = vunpack.c.l.b16 %v6015
  %v6582 = vunpack.c.h.b16 %v6015
  %v6583 = vunpack.c.l.b16 %v6016
  %v6584 = vunpack.c.h.b16 %v6016
  %v6585 = vunpack.c.l.b16 %v6017
  %v6586 = vunpack.c.h.b16 %v6017
  %v6587 = vunpack.c.l.b16 %v6018
  %v6588 = vunpack.c.h.b16 %v6018
  %v6589 = vunpack.c.l.b16 %v6019
  %v6590 = vunpack.c.h.b16 %v6019
  %v6591 = vunpack.c.l.b16 %v6020
  %v6592 = vunpack.c.h.b16 %v6020
  %v6593 = vunpack.c.l.b16 %v6021
  %v6594 = vunpack.c.h.b16 %v6021
  %v6595 = vunpack.c.l.b16 %v6022
  %v6596 = vunpack.c.h.b16 %v6022
  %v6597 = vunpack.c.l.b16 %v6023
  %v6598 = vunpack.c.h.b16 %v6023
  %v6599 = vunpack.c.l.b16 %v6024
  %v6600 = vunpack.c.h.b16 %v6024
  %v6601 = vunpack.c.l.b16 %v6025
  %v6602 = vunpack.c.h.b16 %v6025
  %v6603 = vunpack.c.l.b16 %v6026
  %v6604 = vunpack.c.h.b16 %v6026
  %v6605 = vunpack.c.l.b16 %v6027
  %v6606 = vunpack.c.h.b16 %v6027
  %v6607 = vunpack.c.l.b16 %v6028
  %v6608 = vunpack.c.h.b16 %v6028
  %v6609 = vunpack.c.l.b16 %v6029
  %v6610 = vunpack.c.h.b16 %v6029
  %v6611 = vunpack.c.l.b16 %v6030
  %v6612 = vunpack.c.h.b16 %v6030
  %v6613 = vunpack.c.l.b16 %v6031
  %v6614 = vunpack.c.h.b16 %v6031
  %v6615 = vunpack.c.l.b16 %v6032
  %v6616 = vunpack.c.h.b16 %v6032
  %v6617 = vunpack.c.l.b16 %v6033
  %v6618 = vunpack.c.h.b16 %v6033
  %v6619 = vunpack.c.l.b16 %v6034
  %v6620 = vunpack.c.h.b16 %v6034
  %v6621 = vunpack.c.l.b16 %v6035
  %v6622 = vunpack.c.h.b16 %v6035
  %v6623 = vunpack.c.l.b16 %v6036
  %v6624 = vunpack.c.h.b16 %v6036
  %v6625 = vunpack.c.l.b16 %v6037
  %v6626 = vunpack.c.h.b16 %v6037
  %v6627 = vunpack.c.l.b16 %v6038
  %v6628 = vunpack.c.h.b16 %v6038
  %v6629 = vunpack.c.l.b16 %v6039
  %v6630 = vunpack.c.h.b16 %v6039
  %v6631 = vunpack.c.l.b16 %v6040
  %v6632 = vunpack.c.h.b16 %v6040
  %v6633 = vunpack.c.l.b16 %v6041
  %v6634 = vunpack.c.h.b16 %v6041
  %v6635 = vunpack.c.l.b16 %v6042
  %v6636 = vunpack.c.h.b16 %v6042
  %v6637 = vunpack.c.l.b16 %v6043
  %v6638 = vunpack.c.h.b16 %v6043
  %v6639 = vunpack.c.l.b16 %v6044
  %v6640 = vunpack.c.h.b16 %v6044
  %v6641 = vunpack.c.l.b16 %v6045
  %v6642 = vunpack.c.h.b16 %v6045
  %v6643 = vunpack.c.l.b16 %v6046
  %v6644 = vunpack.c.h.b16 %v6046
  %v6645 = vunpack.c.l.b16 %v6047
  %v6646 = vunpack.c.h.b16 %v6047
  %v6647 = vunpack.c.l.b16 %v6048
  %v6648 = vunpack.c.h.b16 %v6048
  %v6649 = vunpack.c.l.b16 %v6049
  %v6650 = vunpack.c.h.b16 %v6049
  %v6651 = vunpack.c.l.b16 %v6050
  %v6652 = vunpack.c.h.b16 %v6050
  %v6653 = vunpack.c.l.b16 %v6051
  %v6654 = vunpack.c.h.b16 %v6051
  %v6655 = vunpack.c.l.b16 %v6052
  %v6656 = vunpack.c.h.b16 %v6052
  %v6657 = vunpack.c.l.b16 %v6053
  %v6658 = vunpack.c.h.b16 %v6053
  %v6659 = vunpack.c.l.b16 %v6054
  %v6660 = vunpack.c.h.b16 %v6054
  %v6661 = vunpack.c.l.b16 %v6055
  %v6662 = vunpack.c.h.b16 %v6055
  %v6663 = vunpack.c.l.b16 %v6056
  %v6664 = vunpack.c.h.b16 %v6056
  %v6665 = vunpack.c.l.b16 %v6057
  %v6666 = vunpack.c.h.b16 %v6057
  %v6667 = vunpack.c.l.b16 %v6058
  %v6668 = vunpack.c.h.b16 %v6058
  %v6669 = vunpack.c.l.b16 %v6059
  %v6670 = vunpack.c.h.b16 %v6059
  %v6671 = vunpack.c.l.b16 %v6060
  %v6672 = vunpack.c.h.b16 %v6060
  %v6673 = vunpack.c.l.b16 %v6061
  %v6674 = vunpack.c.h.b16 %v6061
  %v6675 = vunpack.c.l.b16 %v6062
  %v6676 = vunpack.c.h.b16 %v6062
  %v6677 = vunpack.c.l.b16 %v6063
  %v6678 = vunpack.c.h.b16 %v6063
  %v6679 = vunpack.c.l.b16 %v6064
  %v6680 = vunpack.c.h.b16 %v6064
  %v6681 = vunpack.c.l.b16 %v6065
  %v6682 = vunpack.c.h.b16 %v6065
  %v6683 = vunpack.c.l.b16 %v6066
  %v6684 = vunpack.c.h.b16 %v6066
  %v6685 = vunpack.c.l.b16 %v6067
  %v6686 = vunpack.c.h.b16 %v6067
  %v6687 = vunpack.c.l.b16 %v6068
  %v6688 = vunpack.c.h.b16 %v6068
  %v6689 = vunpack.c.l.b16 %v6069
  %v6690 = vunpack.c.h.b16 %v6069
  %v6691 = vunpack.c.l.b16 %v6070
  %v6692 = vunpack.c.h.b16 %v6070
  %v6693 = vunpack.c.l.b16 %v6071
  %v6694 = vunpack.c.h.b16 %v6071
  %v6695 = vunpack.c.l.b16 %v6072
  %v6696 = vunpack.c.h.b16 %v6072
  %v6697 = vunpack.c.l.b16 %v6073
  %v6698 = vunpack.c.h.b16 %v6073
  %v6699 = vunpack.c.l.b16 %v6074
  %v6700 = vunpack.c.h.b16 %v6074
  %v6701 = vunpack.c.l.b16 %v6075
  %v6702 = vunpack.c.h.b16 %v6075
  %v6703 = vunpack.c.l.b16 %v6076
  %v6704 = vunpack.c.h.b16 %v6076
  %v6705 = vunpack.c.l.b16 %v6077
  %v6706 = vunpack.c.h.b16 %v6077
  %v6707 = vunpack.c.l.b16 %v6078
  %v6708 = vunpack.c.h.b16 %v6078
  %v6709 = vunpack.c.l.b16 %v6079
  %v6710 = vunpack.c.h.b16 %v6079
  %v6711 = vunpack.c.l.b16 %v6080
  %v6712 = vunpack.c.h.b16 %v6080
  %v6713 = vunpack.c.l.b16 %v6081
  %v6714 = vunpack.c.h.b16 %v6081
  %v6715 = vunpack.c.l.b16 %v6082
  %v6716 = vunpack.c.h.b16 %v6082
  %v6717 = vunpack.c.l.b16 %v6083
  %v6718 = vunpack.c.h.b16 %v6083
  %v6719 = vunpack.c.l.b16 %v6084
  %v6720 = vunpack.c.h.b16 %v6084
  %v6721 = vunpack.c.l.b16 %v6085
  %v6722 = vunpack.c.h.b16 %v6085
  %v6723 = vunpack.c.l.b16 %v6086
  %v6724 = vunpack.c.h.b16 %v6086
  %v6725 = vunpack.c.l.b16 %v6087
  %v6726 = vunpack.c.h.b16 %v6087
  %v6727 = vunpack.c.l.b16 %v6088
  %v6728 = vunpack.c.h.b16 %v6088
  %v6729 = vunpack.c.l.b16 %v6089
  %v6730 = vunpack.c.h.b16 %v6089
  %v6731 = vunpack.c.l.b16 %v6090
  %v6732 = vunpack.c.h.b16 %v6090
  %v6733 = vunpack.c.l.b16 %v6091
  %v6734 = vunpack.c.h.b16 %v6091
  %v6735 = vunpack.c.l.b16 %v6092
  %v6736 = vunpack.c.h.b16 %v6092
  %v6737 = vunpack.c.l.b16 %v6093
  %v6738 = vunpack.c.h.b16 %v6093
  %v6739 = vunpack.c.l.b16 %v6094
  %v6740 = vunpack.c.h.b16 %v6094
  %v6741 = vunpack.c.l.b16 %v6095
  %v6742 = vunpack.c.h.b16 %v6095
  %v6743 = vunpack.c.l.b16 %v6096
  %v6744 = vunpack.c.h.b16 %v6096
  %v6745 = vunpack.c.l.b16 %v6097
  %v6746 = vunpack.c.h.b16 %v6097
  %v6747 = vunpack.c.l.b16 %v6098
  %v6748 = vunpack.c.h.b16 %v6098
  %v6749 = vunpack.c.l.b16 %v6099
  %v6750 = vunpack.c.h.b16 %v6099
  %v6751 = vunpack.c.l.b16 %v6100
  %v6752 = vunpack.c.h.b16 %v6100
  %v6753 = vunpack.c.l.b16 %v6101
  %v6754 = vunpack.c.h.b16 %v6101
  %v6755 = vunpack.c.l.b16 %v6102
  %v6756 = vunpack.c.h.b16 %v6102
  %v6757 = vunpack.c.l.b16 %v6103
  %v6758 = vunpack.c.h.b16 %v6103
  %v6759 = vunpack.c.l.b16 %v6104
  %v6760 = vunpack.c.h.b16 %v6104
  %v6761 = vunpack.c.l.b16 %v6105
  %v6762 = vunpack.c.h.b16 %v6105
  %v6763 = vunpack.c.l.b16 %v6106
  %v6764 = vunpack.c.h.b16 %v6106
  %v6765 = vunpack.c.l.b16 %v6107
  %v6766 = vunpack.c.h.b16 %v6107
  %v6767 = vunpack.c.l.b16 %v6108
  %v6768 = vunpack.c.h.b16 %v6108
  %v6769 = vunpack.c.l.b16 %v6109
  %v6770 = vunpack.c.h.b16 %v6109
  %v6771 = vunpack.c.l.b16 %v6110
  %v6772 = vunpack.c.h.b16 %v6110
  %v6773 = vunpack.c.l.b16 %v6111
  %v6774 = vunpack.c.h.b16 %v6111
  %v6775 = vunpack.c.l.b16 %v6112
  %v6776 = vunpack.c.h.b16 %v6112
  %v6777 = vunpack.c.l.b16 %v6113
  %v6778 = vunpack.c.h.b16 %v6113
  %v6779 = vunpack.c.l.b16 %v6114
  %v6780 = vunpack.c.h.b16 %v6114
  %v6781 = vunpack.c.l.b16 %v6115
  %v6782 = vunpack.c.h.b16 %v6115
  %v6783 = vunpack.c.l.b16 %v6116
  %v6784 = vunpack.c.h.b16 %v6116
  %v6785 = vunpack.c.l.b16 %v6117
  %v6786 = vunpack.c.h.b16 %v6117
  %v6787 = vunpack.c.l.b16 %v6118
  %v6788 = vunpack.c.h.b16 %v6118
  %v6789 = vunpack.c.l.b16 %v6119
  %v6790 = vunpack.c.h.b16 %v6119
  %v6791 = vunpack.c.l.b16 %v6120
  %v6792 = vunpack.c.h.b16 %v6120
  %v6793 = vunpack.c.l.b16 %v6121
  %v6794 = vunpack.c.h.b16 %v6121
  %v6795 = vunpack.c.l.b16 %v6122
  %v6796 = vunpack.c.h.b16 %v6122
  %v6797 = vunpack.c.l.b16 %v6123
  %v6798 = vunpack.c.h.b16 %v6123
  %v6799 = vunpack.c.l.b16 %v6124
  %v6800 = vunpack.c.h.b16 %v6124
  %v6801 = vunpack.c.l.b16 %v6125
  %v6802 = vunpack.c.h.b16 %v6125
  %v6803 = vunpack.c.l.b16 %v6126
  %v6804 = vunpack.c.h.b16 %v6126
  %v6805 = vunpack.c.l.b16 %v6127
  %v6806 = vunpack.c.h.b16 %v6127
  %v6807 = vunpack.c.l.b16 %v6128
  %v6808 = vunpack.c.h.b16 %v6128
  %v6809 = vunpack.c.l.b16 %v6129
  %v6810 = vunpack.c.h.b16 %v6129
  %v6811 = vunpack.c.l.b16 %v6130
  %v6812 = vunpack.c.h.b16 %v6130
  %v6813 = vunpack.c.l.b16 %v6131
  %v6814 = vunpack.c.h.b16 %v6131
  %v6815 = vunpack.c.l.b16 %v6132
  %v6816 = vunpack.c.h.b16 %v6132
  %v6817 = vunpack.c.l.b16 %v6133
  %v6818 = vunpack.c.h.b16 %v6133
  %v6819 = vunpack.c.l.b16 %v6134
  %v6820 = vunpack.c.h.b16 %v6134
  %v6821 = vunpack.c.l.b16 %v6135
  %v6822 = vunpack.c.h.b16 %v6135
  %v6823 = vunpack.c.l.b16 %v6136
  %v6824 = vunpack.c.h.b16 %v6136
  %v6825 = vunpack.c.l.b16 %v6137
  %v6826 = vunpack.c.h.b16 %v6137
  %v6827 = vunpack.c.l.b16 %v6138
  %v6828 = vunpack.c.h.b16 %v6138
  %v6829 = vunpack.c.l.b16 %v6139
  %v6830 = vunpack.c.h.b16 %v6139
  %v6831 = vunpack.c.l.b16 %v6140
  %v6832 = vunpack.c.h.b16 %v6140
  %v6833 = vunpack.c.l.b16 %v6141
  %v6834 = vunpack.c.h.b16 %v6141
  %v6835 = vunpack.c.l.b16 %v6142
  %v6836 = vunpack.c.h.b16 %v6142
  %v6837 = vunpack.c.l.b16 %v6143
  %v6838 = vunpack.c.h.b16 %v6143
  %v6839 = vunpack.c.l.b16 %v6144
  %v6840 = vunpack.c.h.b16 %v6144
  %v6841 = vunpack.c.l.b16 %v6145
  %v6842 = vunpack.c.h.b16 %v6145
  %v6843 = vunpack.c.l.b16 %v6146
  %v6844 = vunpack.c.h.b16 %v6146
  %v6845 = vunpack.c.l.b16 %v6147
  %v6846 = vunpack.c.h.b16 %v6147
  %v6847 = vunpack.c.l.b16 %v6148
  %v6848 = vunpack.c.h.b16 %v6148
  %v6849 = vunpack.c.l.b16 %v6149
  %v6850 = vunpack.c.h.b16 %v6149
  %v6851 = vunpack.c.l.b16 %v6150
  %v6852 = vunpack.c.h.b16 %v6150
  %v6853 = vunpack.c.l.b16 %v6151
  %v6854 = vunpack.c.h.b16 %v6151
  %v6855 = vunpack.c.l.b16 %v6152
  %v6856 = vunpack.c.h.b16 %v6152
  %v6857 = vunpack.c.l.b16 %v6153
  %v6858 = vunpack.c.h.b16 %v6153
  %v6859 = vunpack.c.l.b16 %v6154
  %v6860 = vunpack.c.h.b16 %v6154
  %v6861 = vunpack.c.l.b16 %v6155
  %v6862 = vunpack.c.h.b16 %v6155
  %v6863 = vunpack.c.l.b16 %v6156
  %v6864 = vunpack.c.h.b16 %v6156
  %v6865 = vunpack.c.l.b16 %v6157
  %v6866 = vunpack.c.h.b16 %v6157
  %v6867 = vunpack.c.l.b16 %v6158
  %v6868 = vunpack.c.h.b16 %v6158
  %v6869 = vunpack.c.l.b16 %v6159
  %v6870 = vunpack.c.h.b16 %v6159
  %v6871 = vunpack.c.l.b16 %v6160
  %v6872 = vunpack.c.h.b16 %v6160
  %v6873 = vunpack.c.l.b16 %v6161
  %v6874 = vunpack.c.h.b16 %v6161
  %v6875 = vunpack.c.l.b16 %v6162
  %v6876 = vunpack.c.h.b16 %v6162
  %v6877 = vunpack.c.l.b16 %v6163
  %v6878 = vunpack.c.h.b16 %v6163
  %v6879 = vunpack.c.l.b16 %v6164
  %v6880 = vunpack.c.h.b16 %v6164
  %v6881 = vunpack.c.l.b16 %v6165
  %v6882 = vunpack.c.h.b16 %v6165
  %v6883 = vunpack.c.l.b16 %v6166
  %v6884 = vunpack.c.h.b16 %v6166
  %v6885 = vunpack.c.l.b16 %v6167
  %v6886 = vunpack.c.h.b16 %v6167
  %v6887 = vunpack.c.l.b16 %v6168
  %v6888 = vunpack.c.h.b16 %v6168
  %v6889 = vunpack.c.l.b16 %v6169
  %v6890 = vunpack.c.h.b16 %v6169
  %v6891 = vunpack.c.l.b16 %v6170
  %v6892 = vunpack.c.h.b16 %v6170
  %v6893 = vunpack.c.l.b16 %v6171
  %v6894 = vunpack.c.h.b16 %v6171
  %v6895 = vunpack.c.l.b16 %v6172
  %v6896 = vunpack.c.h.b16 %v6172
  %v6897 = vunpack.c.l.b16 %v6173
  %v6898 = vunpack.c.h.b16 %v6173
  %v6899 = vunpack.c.l.b16 %v6174
  %v6900 = vunpack.c.h.b16 %v6174
  %v6901 = vunpack.c.l.b16 %v6175
  %v6902 = vunpack.c.h.b16 %v6175
  %v6903 = vunpack.c.l.b16 %v6176
  %v6904 = vunpack.c.h.b16 %v6176
  %v6905 = vunpack.c.l.b16 %v6177
  %v6906 = vunpack.c.h.b16 %v6177
  %v6907 = vunpack.c.l.b16 %v6178
  %v6908 = vunpack.c.h.b16 %v6178
  %v6909 = vunpack.c.l.b16 %v6179
  %v6910 = vunpack.c.h.b16 %v6179
  %v6911 = vunpack.c.l.b16 %v6180
  %v6912 = vunpack.c.h.b16 %v6180
  %v6913 = vunpack.c.l.b16 %v6181
  %v6914 = vunpack.c.h.b16 %v6181
  %v6915 = vunpack.c.l.b16 %v6182
  %v6916 = vunpack.c.h.b16 %v6182
  %v6917 = vunpack.c.l.b16 %v6183
  %v6918 = vunpack.c.h.b16 %v6183
  %v6919 = vunpack.c.l.b16 %v6184
  %v6920 = vunpack.c.h.b16 %v6184
  %v6921 = vunpack.c.l.b16 %v6185
  %v6922 = vunpack.c.h.b16 %v6185
  %v6923 = vunpack.c.l.b16 %v6186
  %v6924 = vunpack.c.h.b16 %v6186
  %v6925 = vunpack.c.l.b16 %v6187
  %v6926 = vunpack.c.h.b16 %v6187
  %v6927 = vunpack.c.l.b16 %v6188
  %v6928 = vunpack.c.h.b16 %v6188
  %v6929 = vunpack.c.l.b16 %v6189
  %v6930 = vunpack.c.h.b16 %v6189
  %v6931 = vunpack.c.l.b16 %v6190
  %v6932 = vunpack.c.h.b16 %v6190
  %v6933 = vunpack.c.l.b16 %v6191
  %v6934 = vunpack.c.h.b16 %v6191
  %v6935 = vunpack.c.l.b16 %v6192
  %v6936 = vunpack.c.h.b16 %v6192
  %v6937 = vunpack.c.l.b16 %v6193
  %v6938 = vunpack.c.h.b16 %v6193
  %v6939 = vunpack.c.l.b16 %v6194
  %v6940 = vunpack.c.h.b16 %v6194
  %v6941 = vunpack.c.l.b16 %v6195
  %v6942 = vunpack.c.h.b16 %v6195
  %v6943 = vunpack.c.l.b16 %v6196
  %v6944 = vunpack.c.h.b16 %v6196
  %v6945 = vunpack.c.l.b16 %v6197
  %v6946 = vunpack.c.h.b16 %v6197
  %v6947 = vunpack.c.l.b16 %v6198
  %v6948 = vunpack.c.h.b16 %v6198
  %v6949 = vunpack.c.l.b16 %v6199
  %v6950 = vunpack.c.h.b16 %v6199
  %v6951 = vunpack.c.l.b16 %v6200
  %v6952 = vunpack.c.h.b16 %v6200
  %v6953 = vunpack.c.l.b16 %v6201
  %v6954 = vunpack.c.h.b16 %v6201
  %v6955 = vunpack.c.l.b16 %v6202
  %v6956 = vunpack.c.h.b16 %v6202
  %v6957 = vunpack.c.l.b16 %v6203
  %v6958 = vunpack.c.h.b16 %v6203
  %v6959 = vunpack.c.l.b16 %v6204
  %v6960 = vunpack.c.h.b16 %v6204
  %v6961 = vunpack.c.l.b16 %v6205
  %v6962 = vunpack.c.h.b16 %v6205
  %v6963 = vunpack.c.l.b16 %v6206
  %v6964 = vunpack.c.h.b16 %v6206
  %v6965 = vunpack.c.l.b16 %v6207
  %v6966 = vunpack.c.h.b16 %v6207
  %v6967 = vunpack.c.l.b16 %v6208
  %v6968 = vunpack.c.h.b16 %v6208
  %v6969 = vunpack.c.l.b16 %v6209
  %v6970 = vunpack.c.h.b16 %v6209
  %v6971 = vunpack.c.l.b16 %v6210
  %v6972 = vunpack.c.h.b16 %v6210
  %v6973 = vunpack.c.l.b16 %v6211
  %v6974 = vunpack.c.h.b16 %v6211
  %v6975 = vunpack.c.l.b16 %v6212
  %v6976 = vunpack.c.h.b16 %v6212
  %v6977 = vunpack.c.l.b16 %v6213
  %v6978 = vunpack.c.h.b16 %v6213
  %v6979 = vunpack.c.l.b16 %v6214
  %v6980 = vunpack.c.h.b16 %v6214
  %v6981 = vunpack.c.l.b16 %v6215
  %v6982 = vunpack.c.h.b16 %v6215
  %v6983 = vunpack.c.l.b16 %v6216
  %v6984 = vunpack.c.h.b16 %v6216
  %v6985 = vunpack.c.l.b16 %v6217
  %v6986 = vunpack.c.h.b16 %v6217
  %v6987 = vunpack.c.l.b16 %v6218
  %v6988 = vunpack.c.h.b16 %v6218
  %v6989 = vunpack.c.l.b16 %v6219
  %v6990 = vunpack.c.h.b16 %v6219
  %v6991 = vunpack.c.l.b16 %v6220
  %v6992 = vunpack.c.h.b16 %v6220
  %v6993 = vunpack.c.l.b16 %v6221
  %v6994 = vunpack.c.h.b16 %v6221
  %v6995 = vunpack.c.l.b16 %v6222
  %v6996 = vunpack.c.h.b16 %v6222
  %v6997 = vunpack.c.l.b16 %v6223
  %v6998 = vunpack.c.h.b16 %v6223
  %v6999 = vunpack.c.l.b16 %v6224
  %v7000 = vunpack.c.h.b16 %v6224
  %v7001 = vunpack.c.l.b16 %v6225
  %v7002 = vunpack.c.h.b16 %v6225
  %v7003 = vunpack.c.l.b16 %v6226
  %v7004 = vunpack.c.h.b16 %v6226
  %v7005 = vunpack.c.l.b16 %v6227
  %v7006 = vunpack.c.h.b16 %v6227
  %v7007 = vunpack.c.l.b16 %v6228
  %v7008 = vunpack.c.h.b16 %v6228
  %v7009 = vunpack.c.l.b16 %v6229
  %v7010 = vunpack.c.h.b16 %v6229
  %v7011 = vunpack.c.l.b16 %v6230
  %v7012 = vunpack.c.h.b16 %v6230
  %v7013 = vunpack.c.l.b16 %v6231
  %v7014 = vunpack.c.h.b16 %v6231
  %v7015 = vunpack.c.l.b16 %v6232
  %v7016 = vunpack.c.h.b16 %v6232
  %v7017 = vunpack.c.l.b16 %v6233
  %v7018 = vunpack.c.h.b16 %v6233
  %v7019 = vunpack.c.l.b16 %v6234
  %v7020 = vunpack.c.h.b16 %v6234
  %v7021 = vunpack.c.l.b16 %v6235
  %v7022 = vunpack.c.h.b16 %v6235
  %v7023 = vunpack.c.l.b16 %v6236
  %v7024 = vunpack.c.h.b16 %v6236
  %v7025 = vunpack.c.l.b16 %v6237
  %v7026 = vunpack.c.h.b16 %v6237
  %v7027 = vunpack.c.l.b16 %v6238
  %v7028 = vunpack.c.h.b16 %v6238
  %v7029 = vunpack.c.l.b16 %v6239
  %v7030 = vunpack.c.h.b16 %v6239
  %v7031 = vunpack.c.l.b16 %v6240
  %v7032 = vunpack.c.h.b16 %v6240
  %v7033 = vunpack.c.l.b16 %v6241
  %v7034 = vunpack.c.h.b16 %v6241
  %v7035 = vunpack.c.l.b16 %v6242
  %v7036 = vunpack.c.h.b16 %v6242
  %v7037 = vunpack.c.l.b16 %v6243
  %v7038 = vunpack.c.h.b16 %v6243
  %v7039 = vunpack.c.l.b16 %v6244
  %v7040 = vunpack.c.h.b16 %v6244
  %v7041 = vunpack.c.l.b16 %v6245
  %v7042 = vunpack.c.h.b16 %v6245
  %v7043 = vunpack.c.l.b16 %v6246
  %v7044 = vunpack.c.h.b16 %v6246
  %v7045 = vunpack.c.l.b16 %v6247
  %v7046 = vunpack.c.h.b16 %v6247
  %v7047 = vunpack.c.l.b16 %v6248
  %v7048 = vunpack.c.h.b16 %v6248
  %v7049 = vunpack.c.l.b16 %v6249
  %v7050 = vunpack.c.h.b16 %v6249
  %v7051 = vunpack.c.l.b16 %v6250
  %v7052 = vunpack.c.h.b16 %v6250
  %v7053 = vunpack.c.l.b16 %v6251
  %v7054 = vunpack.c.h.b16 %v6251
  %v7055 = vunpack.c.l.b16 %v6252
  %v7056 = vunpack.c.h.b16 %v6252
  %v7057 = vunpack.c.l.b16 %v6253
  %v7058 = vunpack.c.h.b16 %v6253
  %v7059 = vunpack.c.l.b16 %v6254
  %v7060 = vunpack.c.h.b16 %v6254
  %v7061 = vunpack.c.l.b16 %v6255
  %v7062 = vunpack.c.h.b16 %v6255
  %v7063 = vunpack.c.l.b16 %v6256
  %v7064 = vunpack.c.h.b16 %v6256
  %v7065 = vunpack.c.l.b16 %v6257
  %v7066 = vunpack.c.h.b16 %v6257
  %v7067 = vunpack.c.l.b16 %v6258
  %v7068 = vunpack.c.h.b16 %v6258
  %v7069 = vpack.c.b16 %v6565, %v6557
  %v7070 = vpack.c.b16 %v6566, %v6558
  %v7071 = vpack.c.b16 %v6567, %v6559
  %v7072 = vpack.c.b16 %v6568, %v6560
  %v7073 = vpack.c.b16 %v6569, %v6561
  %v7074 = vpack.c.b16 %v6570, %v6562
  %v7075 = vpack.c.b16 %v6571, %v6563
  %v7076 = vpack.c.b16 %v6572, %v6564
  %v7077 = vpack.c.b16 %v6581, %v6573
  %v7078 = vpack.c.b16 %v6582, %v6574
  %v7079 = vpack.c.b16 %v6583, %v6575
  %v7080 = vpack.c.b16 %v6584, %v6576
  %v7081 = vpack.c.b16 %v6585, %v6577
  %v7082 = vpack.c.b16 %v6586, %v6578
  %v7083 = vpack.c.b16 %v6587, %v6579
  %v7084 = vpack.c.b16 %v6588, %v6580
  %v7085 = vpack.c.b16 %v6597, %v6589
  %v7086 = vpack.c.b16 %v6598, %v6590
  %v7087 = vpack.c.b16 %v6599, %v6591
  %v7088 = vpack.c.b16 %v6600, %v6592
  %v7089 = vpack.c.b16 %v6601, %v6593
  %v7090 = vpack.c.b16 %v6602, %v6594
  %v7091 = vpack.c.b16 %v6603, %v6595
  %v7092 = vpack.c.b16 %v6604, %v6596
  %v7093 = vpack.c.b16 %v6613, %v6605
  %v7094 = vpack.c.b16 %v6614, %v6606
  %v7095 = vpack.c.b16 %v6615, %v6607
  %v7096 = vpack.c.b16 %v6616, %v6608
  %v7097 = vpack.c.b16 %v6617, %v6609
  %v7098 = vpack.c.b16 %v6618, %v6610
  %v7099 = vpack.c.b16 %v6619, %v6611
  %v7100 = vpack.c.b16 %v6620, %v6612
  %v7101 = vpack.c.b16 %v6629, %v6621
  %v7102 = vpack.c.b16 %v6630, %v6622
  %v7103 = vpack.c.b16 %v6631, %v6623
  %v7104 = vpack.c.b16 %v6632, %v6624
  %v7105 = vpack.c.b16 %v6633, %v6625
  %v7106 = vpack.c.b16 %v6634, %v6626
  %v7107 = vpack.c.b16 %v6635, %v6627
  %v7108 = vpack.c.b16 %v6636, %v6628
  %v7109 = vpack.c.b16 %v6645, %v6637
  %v7110 = vpack.c.b16 %v6646, %v6638
  %v7111 = vpack.c.b16 %v6647, %v6639
  %v7112 = vpack.c.b16 %v6648, %v6640
  %v7113 = vpack.c.b16 %v6649, %v6641
  %v7114 = vpack.c.b16 %v6650, %v6642
  %v7115 = vpack.c.b16 %v6651, %v6643
  %v7116 = vpack.c.b16 %v6652, %v6644
  %v7117 = vpack.c.b16 %v6661, %v6653
  %v7118 = vpack.c.b16 %v6662, %v6654
  %v7119 = vpack.c.b16 %v6663, %v6655
  %v7120 = vpack.c.b16 %v6664, %v6656
  %v7121 = vpack.c.b16 %v6665, %v6657
  %v7122 = vpack.c.b16 %v6666, %v6658
  %v7123 = vpack.c.b16 %v6667, %v6659
  %v7124 = vpack.c.b16 %v6668, %v6660
  %v7125 = vpack.c.b16 %v6677, %v6669
  %v7126 = vpack.c.b16 %v6678, %v6670
  %v7127 = vpack.c.b16 %v6679, %v6671
  %v7128 = vpack.c.b16 %v6680, %v6672
  %v7129 = vpack.c.b16 %v6681, %v6673
  %v7130 = vpack.c.b16 %v6682, %v6674
  %v7131 = vpack.c.b16 %v6683, %v6675
  %v7132 = vpack.c.b16 %v6684, %v6676
  %v7133 = vpack.c.b16 %v6693, %v6685
  %v7134 = vpack.c.b16 %v6694, %v6686
  %v7135 = vpack.c.b16 %v6695, %v6687
  %v7136 = vpack.c.b16 %v6696, %v6688
  %v7137 = vpack.c.b16 %v6697, %v6689
  %v7138 = vpack.c.b16 %v6698, %v6690
  %v7139 = vpack.c.b16 %v6699, %v6691
  %v7140 = vpack.c.b16 %v6700, %v6692
  %v7141 = vpack.c.b16 %v6709, %v6701
  %v7142 = vpack.c.b16 %v6710, %v6702
  %v7143 = vpack.c.b16 %v6711, %v6703
  %v7144 = vpack.c.b16 %v6712, %v6704
  %v7145 = vpack.c.b16 %v6713, %v6705
  %v7146 = vpack.c.b16 %v6714, %v6706
  %v7147 = vpack.c.b16 %v6715, %v6707
  %v7148 = vpack.c.b16 %v6716, %v6708
  %v7149 = vpack.c.b16 %v6725, %v6717
  %v7150 = vpack.c.b16 %v6726, %v6718
  %v7151 = vpack.c.b16 %v6727, %v6719
  %v7152 = vpack.c.b16 %v6728, %v6720
  %v7153 = vpack.c.b16 %v6729, %v6721
  %v7154 = vpack.c.b16 %v6730, %v6722
  %v7155 = vpack.c.b16 %v6731, %v6723
  %v7156 = vpack.c.b16 %v6732, %v6724
  %v7157 = vpack.c.b16 %v6741, %v6733
  %v7158 = vpack.c.b16 %v6742, %v6734
  %v7159 = vpack.c.b16 %v6743, %v6735
  %v7160 = vpack.c.b16 %v6744, %v6736
  %v7161 = vpack.c.b16 %v6745, %v6737
  %v7162 = vpack.c.b16 %v6746, %v6738
  %v7163 = vpack.c.b16 %v6747, %v6739
  %v7164 = vpack.c.b16 %v6748, %v6740
  %v7165 = vpack.c.b16 %v6757, %v6749
  %v7166 = vpack.c.b16 %v6758, %v6750
  %v7167 = vpack.c.b16 %v6759, %v6751
  %v7168 = vpack.c.b16 %v6760, %v6752
  %v7169 = vpack.c.b16 %v6761, %v6753
  %v7170 = vpack.c.b16 %v6762, %v6754
  %v7171 = vpack.c.b16 %v6763, %v6755
  %v7172 = vpack.c.b16 %v6764, %v6756
  %v7173 = vpack.c.b16 %v6773, %v6765
  %v7174 = vpack.c.b16 %v6774, %v6766
  %v7175 = vpack.c.b16 %v6775, %v6767
  %v7176 = vpack.c.b16 %v6776, %v6768
  %v7177 = vpack.c.b16 %v6777, %v6769
  %v7178 = vpack.c.b16 %v6778, %v6770
  %v7179 = vpack.c.b16 %v6779, %v6771
  %v7180 = vpack.c.b16 %v6780, %v6772
  %v7181 = vpack.c.b16 %v6789, %v6781
  %v7182 = vpack.c.b16 %v6790, %v6782
  %v7183 = vpack.c.b16 %v6791, %v6783
  %v7184 = vpack.c.b16 %v6792, %v6784
  %v7185 = vpack.c.b16 %v6793, %v6785
  %v7186 = vpack.c.b16 %v6794, %v6786
  %v7187 = vpack.c.b16 %v6795, %v6787
  %v7188 = vpack.c.b16 %v6796, %v6788
  %v7189 = vpack.c.b16 %v6805, %v6797
  %v7190 = vpack.c.b16 %v6806, %v6798
  %v7191 = vpack.c.b16 %v6807, %v6799
  %v7192 = vpack.c.b16 %v6808, %v6800
  %v7193 = vpack.c.b16 %v6809, %v6801
  %v7194 = vpack.c.b16 %v6810, %v6802
  %v7195 = vpack.c.b16 %v6811, %v6803
  %v7196 = vpack.c.b16 %v6812, %v6804
  %v7197 = vpack.c.b16 %v6821, %v6813
  %v7198 = vpack.c.b16 %v6822, %v6814
  %v7199 = vpack.c.b16 %v6823, %v6815
  %v7200 = vpack.c.b16 %v6824, %v6816
  %v7201 = vpack.c.b16 %v6825, %v6817
  %v7202 = vpack.c.b16 %v6826, %v6818
  %v7203 = vpack.c.b16 %v6827, %v6819
  %v7204 = vpack.c.b16 %v6828, %v6820
  %v7205 = vpack.c.b16 %v6837, %v6829
  %v7206 = vpack.c.b16 %v6838, %v6830
  %v7207 = vpack.c.b16 %v6839, %v6831
  %v7208 = vpack.c.b16 %v6840, %v6832
  %v7209 = vpack.c.b16 %v6841, %v6833
  %v7210 = vpack.c.b16 %v6842, %v6834
  %v7211 = vpack.c.b16 %v6843, %v6835
  %v7212 = vpack.c.b16 %v6844, %v6836
  %v7213 = vpack.c.b16 %v6853, %v6845
  %v7214 = vpack.c.b16 %v6854, %v6846
  %v7215 = vpack.c.b16 %v6855, %v6847
  %v7216 = vpack.c.b16 %v6856, %v6848
  %v7217 = vpack.c.b16 %v6857, %v6849
  %v7218 = vpack.c.b16 %v6858, %v6850
  %v7219 = vpack.c.b16 %v6859, %v6851
  %v7220 = vpack.c.b16 %v6860, %v6852
  %v7221 = vpack.c.b16 %v6869, %v6861
  %v7222 = vpack.c.b16 %v6870, %v6862
  %v7223 = vpack.c.b16 %v6871, %v6863
  %v7224 = vpack.c.b16 %v6872, %v6864
  %v7225 = vpack.c.b16 %v6873, %v6865
  %v7226 = vpack.c.b16 %v6874, %v6866
  %v7227 = vpack.c.b16 %v6875, %v6867
  %v7228 = vpack.c.b16 %v6876, %v6868
  %v7229 = vpack.c.b16 %v6885, %v6877
  %v7230 = vpack.c.b16 %v6886, %v6878
  %v7231 = vpack.c.b16 %v6887, %v6879
  %v7232 = vpack.c.b16 %v6888, %v6880
  %v7233 = vpack.c.b16 %v6889, %v6881
  %v7234 = vpack.c.b16 %v6890, %v6882
  %v7235 = vpack.c.b16 %v6891, %v6883
  %v7236 = vpack.c.b16 %v6892, %v6884
  %v7237 = vpack.c.b16 %v6901, %v6893
  %v7238 = vpack.c.b16 %v6902, %v6894
  %v7239 = vpack.c.b16 %v6903, %v6895
  %v7240 = vpack.c.b16 %v6904, %v6896
  %v7241 = vpack.c.b16 %v6905, %v6897
  %v7242 = vpack.c.b16 %v6906, %v6898
  %v7243 = vpack.c.b16 %v6907, %v6899
  %v7244 = vpack.c.b16 %v6908, %v6900
  %v7245 = vpack.c.b16 %v6917, %v6909
  %v7246 = vpack.c.b16 %v6918, %v6910
  %v7247 = vpack.c.b16 %v6919, %v6911
  %v7248 = vpack.c.b16 %v6920, %v6912
  %v7249 = vpack.c.b16 %v6921, %v6913
  %v7250 = vpack.c.b16 %v6922, %v6914
  %v7251 = vpack.c.b16 %v6923, %v6915
  %v7252 = vpack.c.b16 %v6924, %v6916
  %v7253 = vpack.c.b16 %v6933, %v6925
  %v7254 = vpack.c.b16 %v6934, %v6926
  %v7255 = vpack.c.b16 %v6935, %v6927
  %v7256 = vpack.c.b16 %v6936, %v6928
  %v7257 = vpack.c.b16 %v6937, %v6929
  %v7258 = vpack.c.b16 %v6938, %v6930
  %v7259 = vpack.c.b16 %v6939, %v6931
  %v7260 = vpack.c.b16 %v6940, %v6932
  %v7261 = vpack.c.b16 %v6949, %v6941
  %v7262 = vpack.c.b16 %v6950, %v6942
  %v7263 = vpack.c.b16 %v6951, %v6943
  %v7264 = vpack.c.b16 %v6952, %v6944
  %v7265 = vpack.c.b16 %v6953, %v6945
  %v7266 = vpack.c.b16 %v6954, %v6946
  %v7267 = vpack.c.b16 %v6955, %v6947
  %v7268 = vpack.c.b16 %v6956, %v6948
  %v7269 = vpack.c.b16 %v6965, %v6957
  %v7270 = vpack.c.b16 %v6966, %v6958
  %v7271 = vpack.c.b16 %v6967, %v6959
  %v7272 = vpack.c.b16 %v6968, %v6960
  %v7273 = vpack.c.b16 %v6969, %v6961
  %v7274 = vpack.c.b16 %v6970, %v6962
  %v7275 = vpack.c.b16 %v6971, %v6963
  %v7276 = vpack.c.b16 %v6972, %v6964
  %v7277 = vpack.c.b16 %v6981, %v6973
  %v7278 = vpack.c.b16 %v6982, %v6974
  %v7279 = vpack.c.b16 %v6983, %v6975
  %v7280 = vpack.c.b16 %v6984, %v6976
  %v7281 = vpack.c.b16 %v6985, %v6977
  %v7282 = vpack.c.b16 %v6986, %v6978
  %v7283 = vpack.c.b16 %v6987, %v6979
  %v7284 = vpack.c.b16 %v6988, %v6980
  %v7285 = vpack.c.b16 %v6997, %v6989
  %v7286 = vpack.c.b16 %v6998, %v6990
  %v7287 = vpack.c.b16 %v6999, %v6991
  %v7288 = vpack.c.b16 %v7000, %v6992
  %v7289 = vpack.c.b16 %v7001, %v6993
  %v7290 = vpack.c.b16 %v7002, %v6994
  %v7291 = vpack.c.b16 %v7003, %v6995
  %v7292 = vpack.c.b16 %v7004, %v6996
  %v7293 = vpack.c.b16 %v7013, %v7005
  %v7294 = vpack.c.b16 %v7014, %v7006
  %v7295 = vpack.c.b16 %v7015, %v7007
  %v7296 = vpack.c.b16 %v7016, %v7008
  %v7297 = vpack.c.b16 %v7017, %v7009
  %v7298 = vpack.c.b16 %v7018, %v7010
  %v7299 = vpack.c.b16 %v7019, %v7011
  %v7300 = vpack.c.b16 %v7020, %v7012
  %v7301 = vpack.c.b16 %v7029, %v7021
  %v7302 = vpack.c.b16 %v7030, %v7022
  %v7303 = vpack.c.b16 %v7031, %v7023
  %v7304 = vpack.c.b16 %v7032, %v7024
  %v7305 = vpack.c.b16 %v7033, %v7025
  %v7306 = vpack.c.b16 %v7034, %v7026
  %v7307 = vpack.c.b16 %v7035, %v7027
  %v7308 = vpack.c.b16 %v7036, %v7028
  %v7309 = vpack.c.b16 %v7045, %v7037
  %v7310 = vpack.c.b16 %v7046, %v7038
  %v7311 = vpack.c.b16 %v7047, %v7039
  %v7312 = vpack.c.b16 %v7048, %v7040
  %v7313 = vpack.c.b16 %v7049, %v7041
  %v7314 = vpack.c.b16 %v7050, %v7042
  %v7315 = vpack.c.b16 %v7051, %v7043
  %v7316 = vpack.c.b16 %v7052, %v7044
  %v7317 = vpack.c.b16 %v7061, %v7053
  %v7318 = vpack.c.b16 %v7062, %v7054
  %v7319 = vpack.c.b16 %v7063, %v7055
  %v7320 = vpack.c.b16 %v7064, %v7056
  %v7321 = vpack.c.b16 %v7065, %v7057
  %v7322 = vpack.c.b16 %v7066, %v7058
  %v7323 = vpack.c.b16 %v7067, %v7059
  %v7324 = vpack.c.b16 %v7068, %v7060
  %7581 = vmatprep.subr.bf16.mxu0 %v7070
  %7582 = vmatpush1.bf16.msra.mxu0 %v7069
  %7583 = vmatprep.subr.bf16.mxu0 %v7078
  %7584 = vmatpush1.bf16.msra.mxu0 %v7077
  %7585 = vmatprep.subr.bf16.mxu0 %v7086
  %7586 = vmatpush1.bf16.msra.mxu0 %v7085
  %7587 = vmatprep.subr.bf16.mxu0 %v7094
  %7588 = vmatpush1.bf16.msra.mxu0 %v7093
  %7589 = vmatprep.subr.bf16.mxu0 %v7102
  %7590 = vmatpush1.bf16.msra.mxu0 %v7101
  %7591 = vmatprep.subr.bf16.mxu0 %v7110
  %7592 = vmatpush1.bf16.msra.mxu0 %v7109
  %7593 = vmatprep.subr.bf16.mxu0 %v7118
  %7594 = vmatpush1.bf16.msra.mxu0 %v7117
  %7595 = vmatprep.subr.bf16.mxu0 %v7126
  %7596 = vmatpush1.bf16.msra.mxu0 %v7125
  %7597 = vmatprep.subr.bf16.mxu0 %v7134
  %7598 = vmatpush1.bf16.msra.mxu0 %v7133
  %7599 = vmatprep.subr.bf16.mxu0 %v7142
  %7600 = vmatpush1.bf16.msra.mxu0 %v7141
  %7601 = vmatprep.subr.bf16.mxu0 %v7150
  %7602 = vmatpush1.bf16.msra.mxu0 %v7149
  %7603 = vmatprep.subr.bf16.mxu0 %v7158
  %7604 = vmatpush1.bf16.msra.mxu0 %v7157
  %7605 = vmatprep.subr.bf16.mxu0 %v7166
  %7606 = vmatpush1.bf16.msra.mxu0 %v7165
  %7607 = vmatprep.subr.bf16.mxu0 %v7174
  %7608 = vmatpush1.bf16.msra.mxu0 %v7173
  %7609 = vmatprep.subr.bf16.mxu0 %v7182
  %7610 = vmatpush1.bf16.msra.mxu0 %v7181
  %7611 = vmatprep.subr.bf16.mxu0 %v7190
  %7612 = vmatpush1.bf16.msra.mxu0 %v7189
  %7613 = vmatprep.mubr.bf16.mxu0 %v5940
  %7614 = vmatmul.mubr.bf16.gmra.mrb[0].mxu0 %v5939
  %v7615 = vpop.f32.mrb[0].mxu0
  %v7616 = vadd.f32 %v6264, %v7615
  %v7617 = vpop.f32.mrb[0].mxu0
  %v7618 = vadd.f32 %v6268, %v7617
  %v7619 = vpop.f32.mrb[0].mxu0
  %v7620 = vadd.f32 %v6264, %v7619
  %v7621 = vpop.f32.mrb[0].mxu0
  %v7622 = vadd.f32 %v6268, %v7621
  %7623 = vmatprep.mubr.bf16.mxu0 %v5944
  %7624 = vmatmul.mubr.bf16.gmra.mrb[0].mxu0 %v5943
  %v7625 = vpop.f32.mrb[0].mxu0
  %v7626 = vadd.f32 %v6264, %v7625
  %v7627 = vpop.f32.mrb[0].mxu0
  %v7628 = vadd.f32 %v6268, %v7627
  %v7629 = vpop.f32.mrb[0].mxu0
  %v7630 = vadd.f32 %v6264, %v7629
  %v7631 = vpop.f32.mrb[0].mxu0
  %v7632 = vadd.f32 %v6268, %v7631
  %7633 = vmatprep.mubr.bf16.mxu0 %v5948
  %7634 = vmatmul.mubr.bf16.gmra.mrb[0].mxu0 %v5947
  %v7635 = vpop.f32.mrb[0].mxu0
  %v7636 = vadd.f32 %v6264, %v7635
  %v7637 = vpop.f32.mrb[0].mxu0
  %v7638 = vadd.f32 %v6268, %v7637
  %v7639 = vpop.f32.mrb[0].mxu0
  %v7640 = vadd.f32 %v6264, %v7639
  %v7641 = vpop.f32.mrb[0].mxu0
  %v7642 = vadd.f32 %v6268, %v7641
  %7643 = vmatprep.mubr.bf16.mxu0 %v5952
  %7644 = vmatmul.mubr.bf16.gmra.mrb[0].mxu0 %v5951
  %v7645 = vpop.f32.mrb[0].mxu0
  %v7646 = vadd.f32 %v6264, %v7645
  %v7647 = vpop.f32.mrb[0].mxu0
  %v7648 = vadd.f32 %v6268, %v7647
  %v7649 = vpop.f32.mrb[0].mxu0
  %v7650 = vadd.f32 %v6264, %v7649
  %v7651 = vpop.f32.mrb[0].mxu0
  %v7652 = vadd.f32 %v6268, %v7651
  %7653 = vmatprep.mubr.bf16.mxu0 %v5956
  %7654 = vmatmul.mubr.bf16.gmra.mrb[0].mxu0 %v5955
  %v7655 = vpop.f32.mrb[0].mxu0
  %v7656 = vadd.f32 %v6264, %v7655
  %v7657 = vpop.f32.mrb[0].mxu0
  %v7658 = vadd.f32 %v6268, %v7657
  %v7659 = vpop.f32.mrb[0].mxu0
  %v7660 = vadd.f32 %v6264, %v7659
  %v7661 = vpop.f32.mrb[0].mxu0
  %v7662 = vadd.f32 %v6268, %v7661
  %7663 = vmatprep.mubr.bf16.mxu0 %v5960
  %7664 = vmatmul.mubr.bf16.gmra.mrb[0].mxu0 %v5959
  %v7665 = vpop.f32.mrb[0].mxu0
  %v7666 = vadd.f32 %v6264, %v7665
  %v7667 = vpop.f32.mrb[0].mxu0
  %v7668 = vadd.f32 %v6268, %v7667
  %v7669 = vpop.f32.mrb[0].mxu0
  %v7670 = vadd.f32 %v6264, %v7669
  %v7671 = vpop.f32.mrb[0].mxu0
  %v7672 = vadd.f32 %v6268, %v7671
  %7673 = vmatprep.mubr.bf16.mxu0 %v5964
  %7674 = vmatmul.mubr.bf16.gmra.mrb[0].mxu0 %v5963
  %v7675 = vpop.f32.mrb[0].mxu0
  %v7676 = vadd.f32 %v6264, %v7675
  %v7677 = vpop.f32.mrb[0].mxu0
  %v7678 = vadd.f32 %v6268, %v7677
  %v7679 = vpop.f32.mrb[0].mxu0
  %v7680 = vadd.f32 %v6264, %v7679
  %v7681 = vpop.f32.mrb[0].mxu0
  %v7682 = vadd.f32 %v6268, %v7681
  %7683 = vmatprep.mubr.bf16.mxu0 %v5968
  %7684 = vmatmul.mubr.bf16.gmra.mrb[0].mxu0 %v5967
  %v7685 = vpop.f32.mrb[0].mxu0
  %v7686 = vadd.f32 %v6264, %v7685
  %v7687 = vpop.f32.mrb[0].mxu0
  %v7688 = vadd.f32 %v6268, %v7687
  %v7689 = vpop.f32.mrb[0].mxu0
  %v7690 = vadd.f32 %v6264, %v7689
  %v7691 = vpop.f32.mrb[0].mxu0
  %v7692 = vadd.f32 %v6268, %v7691
  %7693 = vmatprep.mubr.bf16.mxu0 %v5972
  %7694 = vmatmul.mubr.bf16.gmra.mrb[0].mxu0 %v5971
  %v7695 = vpop.f32.mrb[0].mxu0
  %v7696 = vadd.f32 %v6264, %v7695
  %v7697 = vpop.f32.mrb[0].mxu0
  %v7698 = vadd.f32 %v6268, %v7697
  %v7699 = vpop.f32.mrb[0].mxu0
  %v7700 = vadd.f32 %v6264, %v7699
  %v7701 = vpop.f32.mrb[0].mxu0
  %v7702 = vadd.f32 %v6268, %v7701
  %7703 = vmatprep.mubr.bf16.mxu0 %v5976
  %7704 = vmatmul.mubr.bf16.gmra.mrb[0].mxu0 %v5975
  %v7705 = vpop.f32.mrb[0].mxu0
  %v7706 = vadd.f32 %v6264, %v7705
  %v7707 = vpop.f32.mrb[0].mxu0
  %v7708 = vadd.f32 %v6268, %v7707
  %v7709 = vpop.f32.mrb[0].mxu0
  %v7710 = vadd.f32 %v6264, %v7709
  %v7711 = vpop.f32.mrb[0].mxu0
  %v7712 = vadd.f32 %v6268, %v7711
  %7713 = vmatprep.mubr.bf16.mxu0 %v5980
  %7714 = vmatmul.mubr.bf16.gmra.mrb[0].mxu0 %v5979
  %v7715 = vpop.f32.mrb[0].mxu0
  %v7716 = vadd.f32 %v6264, %v7715
  %v7717 = vpop.f32.mrb[0].mxu0
  %v7718 = vadd.f32 %v6268, %v7717
  %v7719 = vpop.f32.mrb[0].mxu0
  %v7720 = vadd.f32 %v6264, %v7719
  %v7721 = vpop.f32.mrb[0].mxu0
  %v7722 = vadd.f32 %v6268, %v7721
  %7723 = vmatprep.mubr.bf16.mxu0 %v5984
  %7724 = vmatmul.mubr.bf16.gmra.mrb[0].mxu0 %v5983
  %v7725 = vpop.f32.mrb[0].mxu0
  %v7726 = vadd.f32 %v6264, %v7725
  %v7727 = vpop.f32.mrb[0].mxu0
  %v7728 = vadd.f32 %v6268, %v7727
  %v7729 = vpop.f32.mrb[0].mxu0
  %v7730 = vadd.f32 %v6264, %v7729
  %v7731 = vpop.f32.mrb[0].mxu0
  %v7732 = vadd.f32 %v6268, %v7731
  %7733 = vmatprep.mubr.bf16.mxu0 %v5988
  %7734 = vmatmul.mubr.bf16.gmra.mrb[0].mxu0 %v5987
  %v7735 = vpop.f32.mrb[0].mxu0
  %v7736 = vadd.f32 %v6264, %v7735
  %v7737 = vpop.f32.mrb[0].mxu0
  %v7738 = vadd.f32 %v6268, %v7737
  %v7739 = vpop.f32.mrb[0].mxu0
  %v7740 = vadd.f32 %v6264, %v7739
  %v7741 = vpop.f32.mrb[0].mxu0
  %v7742 = vadd.f32 %v6268, %v7741
  %7743 = vmatprep.mubr.bf16.mxu0 %v5992
  %7744 = vmatmul.mubr.bf16.gmra.mrb[0].mxu0 %v5991
  %v7745 = vpop.f32.mrb[0].mxu0
  %v7746 = vadd.f32 %v6264, %v7745
  %v7747 = vpop.f32.mrb[0].mxu0
  %v7748 = vadd.f32 %v6268, %v7747
  %v7749 = vpop.f32.mrb[0].mxu0
  %v7750 = vadd.f32 %v6264, %v7749
  %v7751 = vpop.f32.mrb[0].mxu0
  %v7752 = vadd.f32 %v6268, %v7751
  %7753 = vmatprep.mubr.bf16.mxu0 %v5996
  %7754 = vmatmul.mubr.bf16.gmra.mrb[0].mxu0 %v5995
  %v7755 = vpop.f32.mrb[0].mxu0
  %v7756 = vadd.f32 %v6264, %v7755
  %v7757 = vpop.f32.mrb[0].mxu0
  %v7758 = vadd.f32 %v6268, %v7757
  %v7759 = vpop.f32.mrb[0].mxu0
  %v7760 = vadd.f32 %v6264, %v7759
  %v7761 = vpop.f32.mrb[0].mxu0
  %v7762 = vadd.f32 %v6268, %v7761
  %7763 = vmatprep.mubr.bf16.mxu0 %v6000
  %7764 = vmatmul.mubr.bf16.gmra.mrb[0].mxu0 %v5999
  %v7765 = vpop.f32.mrb[0].mxu0
  %v7766 = vadd.f32 %v6264, %v7765
  %v7767 = vpop.f32.mrb[0].mxu0
  %v7768 = vadd.f32 %v6268, %v7767
  %v7769 = vpop.f32.mrb[0].mxu0
  %v7770 = vadd.f32 %v6264, %v7769
  %v7771 = vpop.f32.mrb[0].mxu0
  %v7772 = vadd.f32 %v6268, %v7771
  %7773 = vdwg.mxu0
  %7774 = vmatprep.subr.bf16.mxu0 %v7198
  %7775 = vmatpush1.bf16.msra.mxu0 %v7197
  %7776 = vmatprep.subr.bf16.mxu0 %v7206
  %7777 = vmatpush1.bf16.msra.mxu0 %v7205
  %7778 = vmatprep.subr.bf16.mxu0 %v7214
  %7779 = vmatpush1.bf16.msra.mxu0 %v7213
  %7780 = vmatprep.subr.bf16.mxu0 %v7222
  %7781 = vmatpush1.bf16.msra.mxu0 %v7221
  %7782 = vmatprep.subr.bf16.mxu0 %v7230
  %7783 = vmatpush1.bf16.msra.mxu0 %v7229
  %7784 = vmatprep.subr.bf16.mxu0 %v7238
  %7785 = vmatpush1.bf16.msra.mxu0 %v7237
  %7786 = vmatprep.subr.bf16.mxu0 %v7246
  %7787 = vmatpush1.bf16.msra.mxu0 %v7245
  %7788 = vmatprep.subr.bf16.mxu0 %v7254
  %7789 = vmatpush1.bf16.msra.mxu0 %v7253
  %7790 = vmatprep.subr.bf16.mxu0 %v7262
  %7791 = vmatpush1.bf16.msra.mxu0 %v7261
  %7792 = vmatprep.subr.bf16.mxu0 %v7270
  %7793 = vmatpush1.bf16.msra.mxu0 %v7269
  %7794 = vmatprep.subr.bf16.mxu0 %v7278
  %7795 = vmatpush1.bf16.msra.mxu0 %v7277
  %7796 = vmatprep.subr.bf16.mxu0 %v7286
  %7797 = vmatpush1.bf16.msra.mxu0 %v7285
  %7798 = vmatprep.subr.bf16.mxu0 %v7294
  %7799 = vmatpush1.bf16.msra.mxu0 %v7293
  %7800 = vmatprep.subr.bf16.mxu0 %v7302
  %7801 = vmatpush1.bf16.msra.mxu0 %v7301
  %7802 = vmatprep.subr.bf16.mxu0 %v7310
  %7803 = vmatpush1.bf16.msra.mxu0 %v7309
  %7804 = vmatprep.subr.bf16.mxu0 %v7318
  %7805 = vmatpush1.bf16.msra.mxu0 %v7317
  %7806 = vmatprep.mubr.bf16.mxu0 %v5942
  %7807 = vmatmul.mubr.bf16.gmra.mrb[0].mxu0 %v5941
  %v7808 = vpop.f32.mrb[0].mxu0
  %v7809 = vadd.f32 %v7616, %v7808
  %v7810 = vpop.f32.mrb[0].mxu0
  %v7811 = vadd.f32 %v7618, %v7810
  %v7812 = vpop.f32.mrb[0].mxu0
  %v7813 = vadd.f32 %v7620, %v7812
  %v7814 = vpop.f32.mrb[0].mxu0
  %v7815 = vadd.f32 %v7622, %v7814
  %7816 = vmatprep.mubr.bf16.mxu0 %v5946
  %7817 = vmatmul.mubr.bf16.gmra.mrb[0].mxu0 %v5945
  %v7818 = vpop.f32.mrb[0].mxu0
  %v7819 = vadd.f32 %v7626, %v7818
  %v7820 = vpop.f32.mrb[0].mxu0
  %v7821 = vadd.f32 %v7628, %v7820
  %v7822 = vpop.f32.mrb[0].mxu0
  %v7823 = vadd.f32 %v7630, %v7822
  %v7824 = vpop.f32.mrb[0].mxu0
  %v7825 = vadd.f32 %v7632, %v7824
  %7826 = vmatprep.mubr.bf16.mxu0 %v5950
  %7827 = vmatmul.mubr.bf16.gmra.mrb[0].mxu0 %v5949
  %v7828 = vpop.f32.mrb[0].mxu0
  %v7829 = vadd.f32 %v7636, %v7828
  %v7830 = vpop.f32.mrb[0].mxu0
  %v7831 = vadd.f32 %v7638, %v7830
  %v7832 = vpop.f32.mrb[0].mxu0
  %v7833 = vadd.f32 %v7640, %v7832
  %v7834 = vpop.f32.mrb[0].mxu0
  %v7835 = vadd.f32 %v7642, %v7834
  %7836 = vmatprep.mubr.bf16.mxu0 %v5954
  %7837 = vmatmul.mubr.bf16.gmra.mrb[0].mxu0 %v5953
  %v7838 = vpop.f32.mrb[0].mxu0
  %v7839 = vadd.f32 %v7646, %v7838
  %v7840 = vpop.f32.mrb[0].mxu0
  %v7841 = vadd.f32 %v7648, %v7840
  %v7842 = vpop.f32.mrb[0].mxu0
  %v7843 = vadd.f32 %v7650, %v7842
  %v7844 = vpop.f32.mrb[0].mxu0
  %v7845 = vadd.f32 %v7652, %v7844
  %7846 = vmatprep.mubr.bf16.mxu0 %v5958
  %7847 = vmatmul.mubr.bf16.gmra.mrb[0].mxu0 %v5957
  %v7848 = vpop.f32.mrb[0].mxu0
  %v7849 = vadd.f32 %v7656, %v7848
  %v7850 = vpop.f32.mrb[0].mxu0
  %v7851 = vadd.f32 %v7658, %v7850
  %v7852 = vpop.f32.mrb[0].mxu0
  %v7853 = vadd.f32 %v7660, %v7852
  %v7854 = vpop.f32.mrb[0].mxu0
  %v7855 = vadd.f32 %v7662, %v7854
  %7856 = vmatprep.mubr.bf16.mxu0 %v5962
  %7857 = vmatmul.mubr.bf16.gmra.mrb[0].mxu0 %v5961
  %v7858 = vpop.f32.mrb[0].mxu0
  %v7859 = vadd.f32 %v7666, %v7858
  %v7860 = vpop.f32.mrb[0].mxu0
  %v7861 = vadd.f32 %v7668, %v7860
  %v7862 = vpop.f32.mrb[0].mxu0
  %v7863 = vadd.f32 %v7670, %v7862
  %v7864 = vpop.f32.mrb[0].mxu0
  %v7865 = vadd.f32 %v7672, %v7864
  %7866 = vmatprep.mubr.bf16.mxu0 %v5966
  %7867 = vmatmul.mubr.bf16.gmra.mrb[0].mxu0 %v5965
  %v7868 = vpop.f32.mrb[0].mxu0
  %v7869 = vadd.f32 %v7676, %v7868
  %v7870 = vpop.f32.mrb[0].mxu0
  %v7871 = vadd.f32 %v7678, %v7870
  %v7872 = vpop.f32.mrb[0].mxu0
  %v7873 = vadd.f32 %v7680, %v7872
  %v7874 = vpop.f32.mrb[0].mxu0
  %v7875 = vadd.f32 %v7682, %v7874
  %7876 = vmatprep.mubr.bf16.mxu0 %v5970
  %7877 = vmatmul.mubr.bf16.gmra.mrb[0].mxu0 %v5969
  %v7878 = vpop.f32.mrb[0].mxu0
  %v7879 = vadd.f32 %v7686, %v7878
  %v7880 = vpop.f32.mrb[0].mxu0
  %v7881 = vadd.f32 %v7688, %v7880
  %v7882 = vpop.f32.mrb[0].mxu0
  %v7883 = vadd.f32 %v7690, %v7882
  %v7884 = vpop.f32.mrb[0].mxu0
  %v7885 = vadd.f32 %v7692, %v7884
  %7886 = vmatprep.mubr.bf16.mxu0 %v5974
  %7887 = vmatmul.mubr.bf16.gmra.mrb[0].mxu0 %v5973
  %v7888 = vpop.f32.mrb[0].mxu0
  %v7889 = vadd.f32 %v7696, %v7888
  %v7890 = vpop.f32.mrb[0].mxu0
  %v7891 = vadd.f32 %v7698, %v7890
  %v7892 = vpop.f32.mrb[0].mxu0
  %v7893 = vadd.f32 %v7700, %v7892
  %v7894 = vpop.f32.mrb[0].mxu0
  %v7895 = vadd.f32 %v7702, %v7894
  %7896 = vmatprep.mubr.bf16.mxu0 %v5978
  %7897 = vmatmul.mubr.bf16.gmra.mrb[0].mxu0 %v5977
  %v7898 = vpop.f32.mrb[0].mxu0
  %v7899 = vadd.f32 %v7706, %v7898
  %v7900 = vpop.f32.mrb[0].mxu0
  %v7901 = vadd.f32 %v7708, %v7900
  %v7902 = vpop.f32.mrb[0].mxu0
  %v7903 = vadd.f32 %v7710, %v7902
  %v7904 = vpop.f32.mrb[0].mxu0
  %v7905 = vadd.f32 %v7712, %v7904
  %7906 = vmatprep.mubr.bf16.mxu0 %v5982
  %7907 = vmatmul.mubr.bf16.gmra.mrb[0].mxu0 %v5981
  %v7908 = vpop.f32.mrb[0].mxu0
  %v7909 = vadd.f32 %v7716, %v7908
  %v7910 = vpop.f32.mrb[0].mxu0
  %v7911 = vadd.f32 %v7718, %v7910
  %v7912 = vpop.f32.mrb[0].mxu0
  %v7913 = vadd.f32 %v7720, %v7912
  %v7914 = vpop.f32.mrb[0].mxu0
  %v7915 = vadd.f32 %v7722, %v7914
  %7916 = vmatprep.mubr.bf16.mxu0 %v5986
  %7917 = vmatmul.mubr.bf16.gmra.mrb[0].mxu0 %v5985
  %v7918 = vpop.f32.mrb[0].mxu0
  %v7919 = vadd.f32 %v7726, %v7918
  %v7920 = vpop.f32.mrb[0].mxu0
  %v7921 = vadd.f32 %v7728, %v7920
  %v7922 = vpop.f32.mrb[0].mxu0
  %v7923 = vadd.f32 %v7730, %v7922
  %v7924 = vpop.f32.mrb[0].mxu0
  %v7925 = vadd.f32 %v7732, %v7924
  %7926 = vmatprep.mubr.bf16.mxu0 %v5990
  %7927 = vmatmul.mubr.bf16.gmra.mrb[0].mxu0 %v5989
  %v7928 = vpop.f32.mrb[0].mxu0
  %v7929 = vadd.f32 %v7736, %v7928
  %v7930 = vpop.f32.mrb[0].mxu0
  %v7931 = vadd.f32 %v7738, %v7930
  %v7932 = vpop.f32.mrb[0].mxu0
  %v7933 = vadd.f32 %v7740, %v7932
  %v7934 = vpop.f32.mrb[0].mxu0
  %v7935 = vadd.f32 %v7742, %v7934
  %7936 = vmatprep.mubr.bf16.mxu0 %v5994
  %7937 = vmatmul.mubr.bf16.gmra.mrb[0].mxu0 %v5993
  %v7938 = vpop.f32.mrb[0].mxu0
  %v7939 = vadd.f32 %v7746, %v7938
  %v7940 = vpop.f32.mrb[0].mxu0
  %v7941 = vadd.f32 %v7748, %v7940
  %v7942 = vpop.f32.mrb[0].mxu0
  %v7943 = vadd.f32 %v7750, %v7942
  %v7944 = vpop.f32.mrb[0].mxu0
  %v7945 = vadd.f32 %v7752, %v7944
  %7946 = vmatprep.mubr.bf16.mxu0 %v5998
  %7947 = vmatmul.mubr.bf16.gmra.mrb[0].mxu0 %v5997
  %v7948 = vpop.f32.mrb[0].mxu0
  %v7949 = vadd.f32 %v7756, %v7948
  %v7950 = vpop.f32.mrb[0].mxu0
  %v7951 = vadd.f32 %v7758, %v7950
  %v7952 = vpop.f32.mrb[0].mxu0
  %v7953 = vadd.f32 %v7760, %v7952
  %v7954 = vpop.f32.mrb[0].mxu0
  %v7955 = vadd.f32 %v7762, %v7954
  %7956 = vmatprep.mubr.bf16.mxu0 %v6002
  %7957 = vmatmul.mubr.bf16.gmra.mrb[0].mxu0 %v6001
  %v7958 = vpop.f32.mrb[0].mxu0
  %v7959 = vadd.f32 %v7766, %v7958
  %v7960 = vpop.f32.mrb[0].mxu0
  %v7961 = vadd.f32 %v7768, %v7960
  %v7962 = vpop.f32.mrb[0].mxu0
  %v7963 = vadd.f32 %v7770, %v7962
  %v7964 = vpop.f32.mrb[0].mxu0
  %v7965 = vadd.f32 %v7772, %v7964
  %7966 = vdwg.mxu0
  %7967 = vmatprep.subr.bf16.mxu0 %v7072
  %7968 = vmatpush1.bf16.msra.mxu0 %v7071
  %7969 = vmatprep.subr.bf16.mxu0 %v7080
  %7970 = vmatpush1.bf16.msra.mxu0 %v7079
  %7971 = vmatprep.subr.bf16.mxu0 %v7088
  %7972 = vmatpush1.bf16.msra.mxu0 %v7087
  %7973 = vmatprep.subr.bf16.mxu0 %v7096
  %7974 = vmatpush1.bf16.msra.mxu0 %v7095
  %7975 = vmatprep.subr.bf16.mxu0 %v7104
  %7976 = vmatpush1.bf16.msra.mxu0 %v7103
  %7977 = vmatprep.subr.bf16.mxu0 %v7112
  %7978 = vmatpush1.bf16.msra.mxu0 %v7111
  %7979 = vmatprep.subr.bf16.mxu0 %v7120
  %7980 = vmatpush1.bf16.msra.mxu0 %v7119
  %7981 = vmatprep.subr.bf16.mxu0 %v7128
  %7982 = vmatpush1.bf16.msra.mxu0 %v7127
  %7983 = vmatprep.subr.bf16.mxu0 %v7136
  %7984 = vmatpush1.bf16.msra.mxu0 %v7135
  %7985 = vmatprep.subr.bf16.mxu0 %v7144
  %7986 = vmatpush1.bf16.msra.mxu0 %v7143
  %7987 = vmatprep.subr.bf16.mxu0 %v7152
  %7988 = vmatpush1.bf16.msra.mxu0 %v7151
  %7989 = vmatprep.subr.bf16.mxu0 %v7160
  %7990 = vmatpush1.bf16.msra.mxu0 %v7159
  %7991 = vmatprep.subr.bf16.mxu0 %v7168
  %7992 = vmatpush1.bf16.msra.mxu0 %v7167
  %7993 = vmatprep.subr.bf16.mxu0 %v7176
  %7994 = vmatpush1.bf16.msra.mxu0 %v7175
  %7995 = vmatprep.subr.bf16.mxu0 %v7184
  %7996 = vmatpush1.bf16.msra.mxu0 %v7183
  %7997 = vmatprep.subr.bf16.mxu0 %v7192
  %7998 = vmatpush1.bf16.msra.mxu0 %v7191
  %7999 = vmatprep.mubr.bf16.mxu0 %v5940
  %8000 = vmatmul.mubr.bf16.gmra.mrb[0].mxu0 %v5939
  %v8001 = vpop.f32.mrb[0].mxu0
  %v8002 = vadd.f32 %v6272, %v8001
  %v8003 = vpop.f32.mrb[0].mxu0
  %v8004 = vadd.f32 %v6276, %v8003
  %v8005 = vpop.f32.mrb[0].mxu0
  %v8006 = vadd.f32 %v6272, %v8005
  %v8007 = vpop.f32.mrb[0].mxu0
  %v8008 = vadd.f32 %v6276, %v8007
  %8009 = vmatprep.mubr.bf16.mxu0 %v5944
  %8010 = vmatmul.mubr.bf16.gmra.mrb[0].mxu0 %v5943
  %v8011 = vpop.f32.mrb[0].mxu0
  %v8012 = vadd.f32 %v6272, %v8011
  %v8013 = vpop.f32.mrb[0].mxu0
  %v8014 = vadd.f32 %v6276, %v8013
  %v8015 = vpop.f32.mrb[0].mxu0
  %v8016 = vadd.f32 %v6272, %v8015
  %v8017 = vpop.f32.mrb[0].mxu0
  %v8018 = vadd.f32 %v6276, %v8017
  %8019 = vmatprep.mubr.bf16.mxu0 %v5948
  %8020 = vmatmul.mubr.bf16.gmra.mrb[0].mxu0 %v5947
  %v8021 = vpop.f32.mrb[0].mxu0
  %v8022 = vadd.f32 %v6272, %v8021
  %v8023 = vpop.f32.mrb[0].mxu0
  %v8024 = vadd.f32 %v6276, %v8023
  %v8025 = vpop.f32.mrb[0].mxu0
  %v8026 = vadd.f32 %v6272, %v8025
  %v8027 = vpop.f32.mrb[0].mxu0
  %v8028 = vadd.f32 %v6276, %v8027
  %8029 = vmatprep.mubr.bf16.mxu0 %v5952
  %8030 = vmatmul.mubr.bf16.gmra.mrb[0].mxu0 %v5951
  %v8031 = vpop.f32.mrb[0].mxu0
  %v8032 = vadd.f32 %v6272, %v8031
  %v8033 = vpop.f32.mrb[0].mxu0
  %v8034 = vadd.f32 %v6276, %v8033
  %v8035 = vpop.f32.mrb[0].mxu0
  %v8036 = vadd.f32 %v6272, %v8035
  %v8037 = vpop.f32.mrb[0].mxu0
  %v8038 = vadd.f32 %v6276, %v8037
  %8039 = vmatprep.mubr.bf16.mxu0 %v5956
  %8040 = vmatmul.mubr.bf16.gmra.mrb[0].mxu0 %v5955
  %v8041 = vpop.f32.mrb[0].mxu0
  %v8042 = vadd.f32 %v6272, %v8041
  %v8043 = vpop.f32.mrb[0].mxu0
  %v8044 = vadd.f32 %v6276, %v8043
  %v8045 = vpop.f32.mrb[0].mxu0
  %v8046 = vadd.f32 %v6272, %v8045
  %v8047 = vpop.f32.mrb[0].mxu0
  %v8048 = vadd.f32 %v6276, %v8047
  %8049 = vmatprep.mubr.bf16.mxu0 %v5960
  %8050 = vmatmul.mubr.bf16.gmra.mrb[0].mxu0 %v5959
  %v8051 = vpop.f32.mrb[0].mxu0
  %v8052 = vadd.f32 %v6272, %v8051
  %v8053 = vpop.f32.mrb[0].mxu0
  %v8054 = vadd.f32 %v6276, %v8053
  %v8055 = vpop.f32.mrb[0].mxu0
  %v8056 = vadd.f32 %v6272, %v8055
  %v8057 = vpop.f32.mrb[0].mxu0
  %v8058 = vadd.f32 %v6276, %v8057
  %8059 = vmatprep.mubr.bf16.mxu0 %v5964
  %8060 = vmatmul.mubr.bf16.gmra.mrb[0].mxu0 %v5963
  %v8061 = vpop.f32.mrb[0].mxu0
  %v8062 = vadd.f32 %v6272, %v8061
  %v8063 = vpop.f32.mrb[0].mxu0
  %v8064 = vadd.f32 %v6276, %v8063
  %v8065 = vpop.f32.mrb[0].mxu0
  %v8066 = vadd.f32 %v6272, %v8065
  %v8067 = vpop.f32.mrb[0].mxu0
  %v8068 = vadd.f32 %v6276, %v8067
  %8069 = vmatprep.mubr.bf16.mxu0 %v5968
  %8070 = vmatmul.mubr.bf16.gmra.mrb[0].mxu0 %v5967
  %v8071 = vpop.f32.mrb[0].mxu0
  %v8072 = vadd.f32 %v6272, %v8071
  %v8073 = vpop.f32.mrb[0].mxu0
  %v8074 = vadd.f32 %v6276, %v8073
  %v8075 = vpop.f32.mrb[0].mxu0
  %v8076 = vadd.f32 %v6272, %v8075
  %v8077 = vpop.f32.mrb[0].mxu0
  %v8078 = vadd.f32 %v6276, %v8077
  %8079 = vmatprep.mubr.bf16.mxu0 %v5972
  %8080 = vmatmul.mubr.bf16.gmra.mrb[0].mxu0 %v5971
  %v8081 = vpop.f32.mrb[0].mxu0
  %v8082 = vadd.f32 %v6272, %v8081
  %v8083 = vpop.f32.mrb[0].mxu0
  %v8084 = vadd.f32 %v6276, %v8083
  %v8085 = vpop.f32.mrb[0].mxu0
  %v8086 = vadd.f32 %v6272, %v8085
  %v8087 = vpop.f32.mrb[0].mxu0
  %v8088 = vadd.f32 %v6276, %v8087
  %8089 = vmatprep.mubr.bf16.mxu0 %v5976
  %8090 = vmatmul.mubr.bf16.gmra.mrb[0].mxu0 %v5975
  %v8091 = vpop.f32.mrb[0].mxu0
  %v8092 = vadd.f32 %v6272, %v8091
  %v8093 = vpop.f32.mrb[0].mxu0
  %v8094 = vadd.f32 %v6276, %v8093
  %v8095 = vpop.f32.mrb[0].mxu0
  %v8096 = vadd.f32 %v6272, %v8095
  %v8097 = vpop.f32.mrb[0].mxu0
  %v8098 = vadd.f32 %v6276, %v8097
  %8099 = vmatprep.mubr.bf16.mxu0 %v5980
  %8100 = vmatmul.mubr.bf16.gmra.mrb[0].mxu0 %v5979
  %v8101 = vpop.f32.mrb[0].mxu0
  %v8102 = vadd.f32 %v6272, %v8101
  %v8103 = vpop.f32.mrb[0].mxu0
  %v8104 = vadd.f32 %v6276, %v8103
  %v8105 = vpop.f32.mrb[0].mxu0
  %v8106 = vadd.f32 %v6272, %v8105
  %v8107 = vpop.f32.mrb[0].mxu0
  %v8108 = vadd.f32 %v6276, %v8107
  %8109 = vmatprep.mubr.bf16.mxu0 %v5984
  %8110 = vmatmul.mubr.bf16.gmra.mrb[0].mxu0 %v5983
  %v8111 = vpop.f32.mrb[0].mxu0
  %v8112 = vadd.f32 %v6272, %v8111
  %v8113 = vpop.f32.mrb[0].mxu0
  %v8114 = vadd.f32 %v6276, %v8113
  %v8115 = vpop.f32.mrb[0].mxu0
  %v8116 = vadd.f32 %v6272, %v8115
  %v8117 = vpop.f32.mrb[0].mxu0
  %v8118 = vadd.f32 %v6276, %v8117
  %8119 = vmatprep.mubr.bf16.mxu0 %v5988
  %8120 = vmatmul.mubr.bf16.gmra.mrb[0].mxu0 %v5987
  %v8121 = vpop.f32.mrb[0].mxu0
  %v8122 = vadd.f32 %v6272, %v8121
  %v8123 = vpop.f32.mrb[0].mxu0
  %v8124 = vadd.f32 %v6276, %v8123
  %v8125 = vpop.f32.mrb[0].mxu0
  %v8126 = vadd.f32 %v6272, %v8125
  %v8127 = vpop.f32.mrb[0].mxu0
  %v8128 = vadd.f32 %v6276, %v8127
  %8129 = vmatprep.mubr.bf16.mxu0 %v5992
  %8130 = vmatmul.mubr.bf16.gmra.mrb[0].mxu0 %v5991
  %v8131 = vpop.f32.mrb[0].mxu0
  %v8132 = vadd.f32 %v6272, %v8131
  %v8133 = vpop.f32.mrb[0].mxu0
  %v8134 = vadd.f32 %v6276, %v8133
  %v8135 = vpop.f32.mrb[0].mxu0
  %v8136 = vadd.f32 %v6272, %v8135
  %v8137 = vpop.f32.mrb[0].mxu0
  %v8138 = vadd.f32 %v6276, %v8137
  %8139 = vmatprep.mubr.bf16.mxu0 %v5996
  %8140 = vmatmul.mubr.bf16.gmra.mrb[0].mxu0 %v5995
  %v8141 = vpop.f32.mrb[0].mxu0
  %v8142 = vadd.f32 %v6272, %v8141
  %v8143 = vpop.f32.mrb[0].mxu0
  %v8144 = vadd.f32 %v6276, %v8143
  %v8145 = vpop.f32.mrb[0].mxu0
  %v8146 = vadd.f32 %v6272, %v8145
  %v8147 = vpop.f32.mrb[0].mxu0
  %v8148 = vadd.f32 %v6276, %v8147
  %8149 = vmatprep.mubr.bf16.mxu0 %v6000
  %8150 = vmatmul.mubr.bf16.gmra.mrb[0].mxu0 %v5999
  %v8151 = vpop.f32.mrb[0].mxu0
  %v8152 = vadd.f32 %v6272, %v8151
  %v8153 = vpop.f32.mrb[0].mxu0
  %v8154 = vadd.f32 %v6276, %v8153
  %v8155 = vpop.f32.mrb[0].mxu0
  %v8156 = vadd.f32 %v6272, %v8155
  %v8157 = vpop.f32.mrb[0].mxu0
  %v8158 = vadd.f32 %v6276, %v8157
  %8159 = vdwg.mxu0
  %8160 = vmatprep.subr.bf16.mxu0 %v7200
  %8161 = vmatpush1.bf16.msra.mxu0 %v7199
  %8162 = vmatprep.subr.bf16.mxu0 %v7208
  %8163 = vmatpush1.bf16.msra.mxu0 %v7207
  %8164 = vmatprep.subr.bf16.mxu0 %v7216
  %8165 = vmatpush1.bf16.msra.mxu0 %v7215
  %8166 = vmatprep.subr.bf16.mxu0 %v7224
  %8167 = vmatpush1.bf16.msra.mxu0 %v7223
  %8168 = vmatprep.subr.bf16.mxu0 %v7232
  %8169 = vmatpush1.bf16.msra.mxu0 %v7231
  %8170 = vmatprep.subr.bf16.mxu0 %v7240
  %8171 = vmatpush1.bf16.msra.mxu0 %v7239
  %8172 = vmatprep.subr.bf16.mxu0 %v7248
  %8173 = vmatpush1.bf16.msra.mxu0 %v7247
  %8174 = vmatprep.subr.bf16.mxu0 %v7256
  %8175 = vmatpush1.bf16.msra.mxu0 %v7255
  %8176 = vmatprep.subr.bf16.mxu0 %v7264
  %8177 = vmatpush1.bf16.msra.mxu0 %v7263
  %8178 = vmatprep.subr.bf16.mxu0 %v7272
  %8179 = vmatpush1.bf16.msra.mxu0 %v7271
  %8180 = vmatprep.subr.bf16.mxu0 %v7280
  %8181 = vmatpush1.bf16.msra.mxu0 %v7279
  %8182 = vmatprep.subr.bf16.mxu0 %v7288
  %8183 = vmatpush1.bf16.msra.mxu0 %v7287
  %8184 = vmatprep.subr.bf16.mxu0 %v7296
  %8185 = vmatpush1.bf16.msra.mxu0 %v7295
  %8186 = vmatprep.subr.bf16.mxu0 %v7304
  %8187 = vmatpush1.bf16.msra.mxu0 %v7303
  %8188 = vmatprep.subr.bf16.mxu0 %v7312
  %8189 = vmatpush1.bf16.msra.mxu0 %v7311
  %8190 = vmatprep.subr.bf16.mxu0 %v7320
  %8191 = vmatpush1.bf16.msra.mxu0 %v7319
  %8192 = vmatprep.mubr.bf16.mxu0 %v5942
  %8193 = vmatmul.mubr.bf16.gmra.mrb[0].mxu0 %v5941
  %v8194 = vpop.f32.mrb[0].mxu0
  %v8195 = vadd.f32 %v8002, %v8194
  %v8196 = vpop.f32.mrb[0].mxu0
  %v8197 = vadd.f32 %v8004, %v8196
  %v8198 = vpop.f32.mrb[0].mxu0
  %v8199 = vadd.f32 %v8006, %v8198
  %v8200 = vpop.f32.mrb[0].mxu0
  %v8201 = vadd.f32 %v8008, %v8200
  %8202 = vmatprep.mubr.bf16.mxu0 %v5946
  %8203 = vmatmul.mubr.bf16.gmra.mrb[0].mxu0 %v5945
  %v8204 = vpop.f32.mrb[0].mxu0
  %v8205 = vadd.f32 %v8012, %v8204
  %v8206 = vpop.f32.mrb[0].mxu0
  %v8207 = vadd.f32 %v8014, %v8206
  %v8208 = vpop.f32.mrb[0].mxu0
  %v8209 = vadd.f32 %v8016, %v8208
  %v8210 = vpop.f32.mrb[0].mxu0
  %v8211 = vadd.f32 %v8018, %v8210
  %8212 = vmatprep.mubr.bf16.mxu0 %v5950
  %8213 = vmatmul.mubr.bf16.gmra.mrb[0].mxu0 %v5949
  %v8214 = vpop.f32.mrb[0].mxu0
  %v8215 = vadd.f32 %v8022, %v8214
  %v8216 = vpop.f32.mrb[0].mxu0
  %v8217 = vadd.f32 %v8024, %v8216
  %v8218 = vpop.f32.mrb[0].mxu0
  %v8219 = vadd.f32 %v8026, %v8218
  %v8220 = vpop.f32.mrb[0].mxu0
  %v8221 = vadd.f32 %v8028, %v8220
  %8222 = vmatprep.mubr.bf16.mxu0 %v5954
  %8223 = vmatmul.mubr.bf16.gmra.mrb[0].mxu0 %v5953
  %v8224 = vpop.f32.mrb[0].mxu0
  %v8225 = vadd.f32 %v8032, %v8224
  %v8226 = vpop.f32.mrb[0].mxu0
  %v8227 = vadd.f32 %v8034, %v8226
  %v8228 = vpop.f32.mrb[0].mxu0
  %v8229 = vadd.f32 %v8036, %v8228
  %v8230 = vpop.f32.mrb[0].mxu0
  %v8231 = vadd.f32 %v8038, %v8230
  %8232 = vmatprep.mubr.bf16.mxu0 %v5958
  %8233 = vmatmul.mubr.bf16.gmra.mrb[0].mxu0 %v5957
  %v8234 = vpop.f32.mrb[0].mxu0
  %v8235 = vadd.f32 %v8042, %v8234
  %v8236 = vpop.f32.mrb[0].mxu0
  %v8237 = vadd.f32 %v8044, %v8236
  %v8238 = vpop.f32.mrb[0].mxu0
  %v8239 = vadd.f32 %v8046, %v8238
  %v8240 = vpop.f32.mrb[0].mxu0
  %v8241 = vadd.f32 %v8048, %v8240
  %8242 = vmatprep.mubr.bf16.mxu0 %v5962
  %8243 = vmatmul.mubr.bf16.gmra.mrb[0].mxu0 %v5961
  %v8244 = vpop.f32.mrb[0].mxu0
  %v8245 = vadd.f32 %v8052, %v8244
  %v8246 = vpop.f32.mrb[0].mxu0
  %v8247 = vadd.f32 %v8054, %v8246
  %v8248 = vpop.f32.mrb[0].mxu0
  %v8249 = vadd.f32 %v8056, %v8248
  %v8250 = vpop.f32.mrb[0].mxu0
  %v8251 = vadd.f32 %v8058, %v8250
  %8252 = vmatprep.mubr.bf16.mxu0 %v5966
  %8253 = vmatmul.mubr.bf16.gmra.mrb[0].mxu0 %v5965
  %v8254 = vpop.f32.mrb[0].mxu0
  %v8255 = vadd.f32 %v8062, %v8254
  %v8256 = vpop.f32.mrb[0].mxu0
  %v8257 = vadd.f32 %v8064, %v8256
  %v8258 = vpop.f32.mrb[0].mxu0
  %v8259 = vadd.f32 %v8066, %v8258
  %v8260 = vpop.f32.mrb[0].mxu0
  %v8261 = vadd.f32 %v8068, %v8260
  %8262 = vmatprep.mubr.bf16.mxu0 %v5970
  %8263 = vmatmul.mubr.bf16.gmra.mrb[0].mxu0 %v5969
  %v8264 = vpop.f32.mrb[0].mxu0
  %v8265 = vadd.f32 %v8072, %v8264
  %v8266 = vpop.f32.mrb[0].mxu0
  %v8267 = vadd.f32 %v8074, %v8266
  %v8268 = vpop.f32.mrb[0].mxu0
  %v8269 = vadd.f32 %v8076, %v8268
  %v8270 = vpop.f32.mrb[0].mxu0
  %v8271 = vadd.f32 %v8078, %v8270
  %8272 = vmatprep.mubr.bf16.mxu0 %v5974
  %8273 = vmatmul.mubr.bf16.gmra.mrb[0].mxu0 %v5973
  %v8274 = vpop.f32.mrb[0].mxu0
  %v8275 = vadd.f32 %v8082, %v8274
  %v8276 = vpop.f32.mrb[0].mxu0
  %v8277 = vadd.f32 %v8084, %v8276
  %v8278 = vpop.f32.mrb[0].mxu0
  %v8279 = vadd.f32 %v8086, %v8278
  %v8280 = vpop.f32.mrb[0].mxu0
  %v8281 = vadd.f32 %v8088, %v8280
  %8282 = vmatprep.mubr.bf16.mxu0 %v5978
  %8283 = vmatmul.mubr.bf16.gmra.mrb[0].mxu0 %v5977
  %v8284 = vpop.f32.mrb[0].mxu0
  %v8285 = vadd.f32 %v8092, %v8284
  %v8286 = vpop.f32.mrb[0].mxu0
  %v8287 = vadd.f32 %v8094, %v8286
  %v8288 = vpop.f32.mrb[0].mxu0
  %v8289 = vadd.f32 %v8096, %v8288
  %v8290 = vpop.f32.mrb[0].mxu0
  %v8291 = vadd.f32 %v8098, %v8290
  %8292 = vmatprep.mubr.bf16.mxu0 %v5982
  %8293 = vmatmul.mubr.bf16.gmra.mrb[0].mxu0 %v5981
  %v8294 = vpop.f32.mrb[0].mxu0
  %v8295 = vadd.f32 %v8102, %v8294
  %v8296 = vpop.f32.mrb[0].mxu0
  %v8297 = vadd.f32 %v8104, %v8296
  %v8298 = vpop.f32.mrb[0].mxu0
  %v8299 = vadd.f32 %v8106, %v8298
  %v8300 = vpop.f32.mrb[0].mxu0
  %v8301 = vadd.f32 %v8108, %v8300
  %8302 = vmatprep.mubr.bf16.mxu0 %v5986
  %8303 = vmatmul.mubr.bf16.gmra.mrb[0].mxu0 %v5985
  %v8304 = vpop.f32.mrb[0].mxu0
  %v8305 = vadd.f32 %v8112, %v8304
  %v8306 = vpop.f32.mrb[0].mxu0
  %v8307 = vadd.f32 %v8114, %v8306
  %v8308 = vpop.f32.mrb[0].mxu0
  %v8309 = vadd.f32 %v8116, %v8308
  %v8310 = vpop.f32.mrb[0].mxu0
  %v8311 = vadd.f32 %v8118, %v8310
  %8312 = vmatprep.mubr.bf16.mxu0 %v5990
  %8313 = vmatmul.mubr.bf16.gmra.mrb[0].mxu0 %v5989
  %v8314 = vpop.f32.mrb[0].mxu0
  %v8315 = vadd.f32 %v8122, %v8314
  %v8316 = vpop.f32.mrb[0].mxu0
  %v8317 = vadd.f32 %v8124, %v8316
  %v8318 = vpop.f32.mrb[0].mxu0
  %v8319 = vadd.f32 %v8126, %v8318
  %v8320 = vpop.f32.mrb[0].mxu0
  %v8321 = vadd.f32 %v8128, %v8320
  %8322 = vmatprep.mubr.bf16.mxu0 %v5994
  %8323 = vmatmul.mubr.bf16.gmra.mrb[0].mxu0 %v5993
  %v8324 = vpop.f32.mrb[0].mxu0
  %v8325 = vadd.f32 %v8132, %v8324
  %v8326 = vpop.f32.mrb[0].mxu0
  %v8327 = vadd.f32 %v8134, %v8326
  %v8328 = vpop.f32.mrb[0].mxu0
  %v8329 = vadd.f32 %v8136, %v8328
  %v8330 = vpop.f32.mrb[0].mxu0
  %v8331 = vadd.f32 %v8138, %v8330
  %8332 = vmatprep.mubr.bf16.mxu0 %v5998
  %8333 = vmatmul.mubr.bf16.gmra.mrb[0].mxu0 %v5997
  %v8334 = vpop.f32.mrb[0].mxu0
  %v8335 = vadd.f32 %v8142, %v8334
  %v8336 = vpop.f32.mrb[0].mxu0
  %v8337 = vadd.f32 %v8144, %v8336
  %v8338 = vpop.f32.mrb[0].mxu0
  %v8339 = vadd.f32 %v8146, %v8338
  %v8340 = vpop.f32.mrb[0].mxu0
  %v8341 = vadd.f32 %v8148, %v8340
  %8342 = vmatprep.mubr.bf16.mxu0 %v6002
  %8343 = vmatmul.mubr.bf16.gmra.mrb[0].mxu0 %v6001
  %v8344 = vpop.f32.mrb[0].mxu0
  %v8345 = vadd.f32 %v8152, %v8344
  %v8346 = vpop.f32.mrb[0].mxu0
  %v8347 = vadd.f32 %v8154, %v8346
  %v8348 = vpop.f32.mrb[0].mxu0
  %v8349 = vadd.f32 %v8156, %v8348
  %v8350 = vpop.f32.mrb[0].mxu0
  %v8351 = vadd.f32 %v8158, %v8350
  %8352 = vdwg.mxu0
  %8353 = vmatprep.subr.bf16.mxu0 %v7074
  %8354 = vmatpush1.bf16.msra.mxu0 %v7073
  %8355 = vmatprep.subr.bf16.mxu0 %v7082
  %8356 = vmatpush1.bf16.msra.mxu0 %v7081
  %8357 = vmatprep.subr.bf16.mxu0 %v7090
  %8358 = vmatpush1.bf16.msra.mxu0 %v7089
  %8359 = vmatprep.subr.bf16.mxu0 %v7098
  %8360 = vmatpush1.bf16.msra.mxu0 %v7097
  %8361 = vmatprep.subr.bf16.mxu0 %v7106
  %8362 = vmatpush1.bf16.msra.mxu0 %v7105
  %8363 = vmatprep.subr.bf16.mxu0 %v7114
  %8364 = vmatpush1.bf16.msra.mxu0 %v7113
  %8365 = vmatprep.subr.bf16.mxu0 %v7122
  %8366 = vmatpush1.bf16.msra.mxu0 %v7121
  %8367 = vmatprep.subr.bf16.mxu0 %v7130
  %8368 = vmatpush1.bf16.msra.mxu0 %v7129
  %8369 = vmatprep.subr.bf16.mxu0 %v7138
  %8370 = vmatpush1.bf16.msra.mxu0 %v7137
  %8371 = vmatprep.subr.bf16.mxu0 %v7146
  %8372 = vmatpush1.bf16.msra.mxu0 %v7145
  %8373 = vmatprep.subr.bf16.mxu0 %v7154
  %8374 = vmatpush1.bf16.msra.mxu0 %v7153
  %8375 = vmatprep.subr.bf16.mxu0 %v7162
  %8376 = vmatpush1.bf16.msra.mxu0 %v7161
  %8377 = vmatprep.subr.bf16.mxu0 %v7170
  %8378 = vmatpush1.bf16.msra.mxu0 %v7169
  %8379 = vmatprep.subr.bf16.mxu0 %v7178
  %8380 = vmatpush1.bf16.msra.mxu0 %v7177
  %8381 = vmatprep.subr.bf16.mxu0 %v7186
  %8382 = vmatpush1.bf16.msra.mxu0 %v7185
  %8383 = vmatprep.subr.bf16.mxu0 %v7194
  %8384 = vmatpush1.bf16.msra.mxu0 %v7193
  %8385 = vmatprep.mubr.bf16.mxu0 %v5940
  %8386 = vmatmul.mubr.bf16.gmra.mrb[0].mxu0 %v5939
  %v8387 = vpop.f32.mrb[0].mxu0
  %v8388 = vadd.f32 %v6280, %v8387
  %v8389 = vpop.f32.mrb[0].mxu0
  %v8390 = vadd.f32 %v6284, %v8389
  %v8391 = vpop.f32.mrb[0].mxu0
  %v8392 = vadd.f32 %v6280, %v8391
  %v8393 = vpop.f32.mrb[0].mxu0
  %v8394 = vadd.f32 %v6284, %v8393
  %8395 = vmatprep.mubr.bf16.mxu0 %v5944
  %8396 = vmatmul.mubr.bf16.gmra.mrb[0].mxu0 %v5943
  %v8397 = vpop.f32.mrb[0].mxu0
  %v8398 = vadd.f32 %v6280, %v8397
  %v8399 = vpop.f32.mrb[0].mxu0
  %v8400 = vadd.f32 %v6284, %v8399
  %v8401 = vpop.f32.mrb[0].mxu0
  %v8402 = vadd.f32 %v6280, %v8401
  %v8403 = vpop.f32.mrb[0].mxu0
  %v8404 = vadd.f32 %v6284, %v8403
  %8405 = vmatprep.mubr.bf16.mxu0 %v5948
  %8406 = vmatmul.mubr.bf16.gmra.mrb[0].mxu0 %v5947
  %v8407 = vpop.f32.mrb[0].mxu0
  %v8408 = vadd.f32 %v6280, %v8407
  %v8409 = vpop.f32.mrb[0].mxu0
  %v8410 = vadd.f32 %v6284, %v8409
  %v8411 = vpop.f32.mrb[0].mxu0
  %v8412 = vadd.f32 %v6280, %v8411
  %v8413 = vpop.f32.mrb[0].mxu0
  %v8414 = vadd.f32 %v6284, %v8413
  %8415 = vmatprep.mubr.bf16.mxu0 %v5952
  %8416 = vmatmul.mubr.bf16.gmra.mrb[0].mxu0 %v5951
  %v8417 = vpop.f32.mrb[0].mxu0
  %v8418 = vadd.f32 %v6280, %v8417
  %v8419 = vpop.f32.mrb[0].mxu0
  %v8420 = vadd.f32 %v6284, %v8419
  %v8421 = vpop.f32.mrb[0].mxu0
  %v8422 = vadd.f32 %v6280, %v8421
  %v8423 = vpop.f32.mrb[0].mxu0
  %v8424 = vadd.f32 %v6284, %v8423
  %8425 = vmatprep.mubr.bf16.mxu0 %v5956
  %8426 = vmatmul.mubr.bf16.gmra.mrb[0].mxu0 %v5955
  %v8427 = vpop.f32.mrb[0].mxu0
  %v8428 = vadd.f32 %v6280, %v8427
  %v8429 = vpop.f32.mrb[0].mxu0
  %v8430 = vadd.f32 %v6284, %v8429
  %v8431 = vpop.f32.mrb[0].mxu0
  %v8432 = vadd.f32 %v6280, %v8431
  %v8433 = vpop.f32.mrb[0].mxu0
  %v8434 = vadd.f32 %v6284, %v8433
  %8435 = vmatprep.mubr.bf16.mxu0 %v5960
  %8436 = vmatmul.mubr.bf16.gmra.mrb[0].mxu0 %v5959
  %v8437 = vpop.f32.mrb[0].mxu0
  %v8438 = vadd.f32 %v6280, %v8437
  %v8439 = vpop.f32.mrb[0].mxu0
  %v8440 = vadd.f32 %v6284, %v8439
  %v8441 = vpop.f32.mrb[0].mxu0
  %v8442 = vadd.f32 %v6280, %v8441
  %v8443 = vpop.f32.mrb[0].mxu0
  %v8444 = vadd.f32 %v6284, %v8443
  %8445 = vmatprep.mubr.bf16.mxu0 %v5964
  %8446 = vmatmul.mubr.bf16.gmra.mrb[0].mxu0 %v5963
  %v8447 = vpop.f32.mrb[0].mxu0
  %v8448 = vadd.f32 %v6280, %v8447
  %v8449 = vpop.f32.mrb[0].mxu0
  %v8450 = vadd.f32 %v6284, %v8449
  %v8451 = vpop.f32.mrb[0].mxu0
  %v8452 = vadd.f32 %v6280, %v8451
  %v8453 = vpop.f32.mrb[0].mxu0
  %v8454 = vadd.f32 %v6284, %v8453
  %8455 = vmatprep.mubr.bf16.mxu0 %v5968
  %8456 = vmatmul.mubr.bf16.gmra.mrb[0].mxu0 %v5967
  %v8457 = vpop.f32.mrb[0].mxu0
  %v8458 = vadd.f32 %v6280, %v8457
  %v8459 = vpop.f32.mrb[0].mxu0
  %v8460 = vadd.f32 %v6284, %v8459
  %v8461 = vpop.f32.mrb[0].mxu0
  %v8462 = vadd.f32 %v6280, %v8461
  %v8463 = vpop.f32.mrb[0].mxu0
  %v8464 = vadd.f32 %v6284, %v8463
  %8465 = vmatprep.mubr.bf16.mxu0 %v5972
  %8466 = vmatmul.mubr.bf16.gmra.mrb[0].mxu0 %v5971
  %v8467 = vpop.f32.mrb[0].mxu0
  %v8468 = vadd.f32 %v6280, %v8467
  %v8469 = vpop.f32.mrb[0].mxu0
  %v8470 = vadd.f32 %v6284, %v8469
  %v8471 = vpop.f32.mrb[0].mxu0
  %v8472 = vadd.f32 %v6280, %v8471
  %v8473 = vpop.f32.mrb[0].mxu0
  %v8474 = vadd.f32 %v6284, %v8473
  %8475 = vmatprep.mubr.bf16.mxu0 %v5976
  %8476 = vmatmul.mubr.bf16.gmra.mrb[0].mxu0 %v5975
  %v8477 = vpop.f32.mrb[0].mxu0
  %v8478 = vadd.f32 %v6280, %v8477
  %v8479 = vpop.f32.mrb[0].mxu0
  %v8480 = vadd.f32 %v6284, %v8479
  %v8481 = vpop.f32.mrb[0].mxu0
  %v8482 = vadd.f32 %v6280, %v8481
  %v8483 = vpop.f32.mrb[0].mxu0
  %v8484 = vadd.f32 %v6284, %v8483
  %8485 = vmatprep.mubr.bf16.mxu0 %v5980
  %8486 = vmatmul.mubr.bf16.gmra.mrb[0].mxu0 %v5979
  %v8487 = vpop.f32.mrb[0].mxu0
  %v8488 = vadd.f32 %v6280, %v8487
  %v8489 = vpop.f32.mrb[0].mxu0
  %v8490 = vadd.f32 %v6284, %v8489
  %v8491 = vpop.f32.mrb[0].mxu0
  %v8492 = vadd.f32 %v6280, %v8491
  %v8493 = vpop.f32.mrb[0].mxu0
  %v8494 = vadd.f32 %v6284, %v8493
  %8495 = vmatprep.mubr.bf16.mxu0 %v5984
  %8496 = vmatmul.mubr.bf16.gmra.mrb[0].mxu0 %v5983
  %v8497 = vpop.f32.mrb[0].mxu0
  %v8498 = vadd.f32 %v6280, %v8497
  %v8499 = vpop.f32.mrb[0].mxu0
  %v8500 = vadd.f32 %v6284, %v8499
  %v8501 = vpop.f32.mrb[0].mxu0
  %v8502 = vadd.f32 %v6280, %v8501
  %v8503 = vpop.f32.mrb[0].mxu0
  %v8504 = vadd.f32 %v6284, %v8503
  %8505 = vmatprep.mubr.bf16.mxu0 %v5988
  %8506 = vmatmul.mubr.bf16.gmra.mrb[0].mxu0 %v5987
  %v8507 = vpop.f32.mrb[0].mxu0
  %v8508 = vadd.f32 %v6280, %v8507
  %v8509 = vpop.f32.mrb[0].mxu0
  %v8510 = vadd.f32 %v6284, %v8509
  %v8511 = vpop.f32.mrb[0].mxu0
  %v8512 = vadd.f32 %v6280, %v8511
  %v8513 = vpop.f32.mrb[0].mxu0
  %v8514 = vadd.f32 %v6284, %v8513
  %8515 = vmatprep.mubr.bf16.mxu0 %v5992
  %8516 = vmatmul.mubr.bf16.gmra.mrb[0].mxu0 %v5991
  %v8517 = vpop.f32.mrb[0].mxu0
  %v8518 = vadd.f32 %v6280, %v8517
  %v8519 = vpop.f32.mrb[0].mxu0
  %v8520 = vadd.f32 %v6284, %v8519
  %v8521 = vpop.f32.mrb[0].mxu0
  %v8522 = vadd.f32 %v6280, %v8521
  %v8523 = vpop.f32.mrb[0].mxu0
  %v8524 = vadd.f32 %v6284, %v8523
  %8525 = vmatprep.mubr.bf16.mxu0 %v5996
  %8526 = vmatmul.mubr.bf16.gmra.mrb[0].mxu0 %v5995
  %v8527 = vpop.f32.mrb[0].mxu0
  %v8528 = vadd.f32 %v6280, %v8527
  %v8529 = vpop.f32.mrb[0].mxu0
  %v8530 = vadd.f32 %v6284, %v8529
  %v8531 = vpop.f32.mrb[0].mxu0
  %v8532 = vadd.f32 %v6280, %v8531
  %v8533 = vpop.f32.mrb[0].mxu0
  %v8534 = vadd.f32 %v6284, %v8533
  %8535 = vmatprep.mubr.bf16.mxu0 %v6000
  %8536 = vmatmul.mubr.bf16.gmra.mrb[0].mxu0 %v5999
  %v8537 = vpop.f32.mrb[0].mxu0
  %v8538 = vadd.f32 %v6280, %v8537
  %v8539 = vpop.f32.mrb[0].mxu0
  %v8540 = vadd.f32 %v6284, %v8539
  %v8541 = vpop.f32.mrb[0].mxu0
  %v8542 = vadd.f32 %v6280, %v8541
  %v8543 = vpop.f32.mrb[0].mxu0
  %v8544 = vadd.f32 %v6284, %v8543
  %8545 = vdwg.mxu0
  %8546 = vmatprep.subr.bf16.mxu0 %v7202
  %8547 = vmatpush1.bf16.msra.mxu0 %v7201
  %8548 = vmatprep.subr.bf16.mxu0 %v7210
  %8549 = vmatpush1.bf16.msra.mxu0 %v7209
  %8550 = vmatprep.subr.bf16.mxu0 %v7218
  %8551 = vmatpush1.bf16.msra.mxu0 %v7217
  %8552 = vmatprep.subr.bf16.mxu0 %v7226
  %8553 = vmatpush1.bf16.msra.mxu0 %v7225
  %8554 = vmatprep.subr.bf16.mxu0 %v7234
  %8555 = vmatpush1.bf16.msra.mxu0 %v7233
  %8556 = vmatprep.subr.bf16.mxu0 %v7242
  %8557 = vmatpush1.bf16.msra.mxu0 %v7241
  %8558 = vmatprep.subr.bf16.mxu0 %v7250
  %8559 = vmatpush1.bf16.msra.mxu0 %v7249
  %8560 = vmatprep.subr.bf16.mxu0 %v7258
  %8561 = vmatpush1.bf16.msra.mxu0 %v7257
  %8562 = vmatprep.subr.bf16.mxu0 %v7266
  %8563 = vmatpush1.bf16.msra.mxu0 %v7265
  %8564 = vmatprep.subr.bf16.mxu0 %v7274
  %8565 = vmatpush1.bf16.msra.mxu0 %v7273
  %8566 = vmatprep.subr.bf16.mxu0 %v7282
  %8567 = vmatpush1.bf16.msra.mxu0 %v7281
  %8568 = vmatprep.subr.bf16.mxu0 %v7290
  %8569 = vmatpush1.bf16.msra.mxu0 %v7289
  %8570 = vmatprep.subr.bf16.mxu0 %v7298
  %8571 = vmatpush1.bf16.msra.mxu0 %v7297
  %8572 = vmatprep.subr.bf16.mxu0 %v7306
  %8573 = vmatpush1.bf16.msra.mxu0 %v7305
  %8574 = vmatprep.subr.bf16.mxu0 %v7314
  %8575 = vmatpush1.bf16.msra.mxu0 %v7313
  %8576 = vmatprep.subr.bf16.mxu0 %v7322
  %8577 = vmatpush1.bf16.msra.mxu0 %v7321
  %8578 = vmatprep.mubr.bf16.mxu0 %v5942
  %8579 = vmatmul.mubr.bf16.gmra.mrb[0].mxu0 %v5941
  %v8580 = vpop.f32.mrb[0].mxu0
  %v8581 = vadd.f32 %v8388, %v8580
  %v8582 = vpop.f32.mrb[0].mxu0
  %v8583 = vadd.f32 %v8390, %v8582
  %v8584 = vpop.f32.mrb[0].mxu0
  %v8585 = vadd.f32 %v8392, %v8584
  %v8586 = vpop.f32.mrb[0].mxu0
  %v8587 = vadd.f32 %v8394, %v8586
  %8588 = vmatprep.mubr.bf16.mxu0 %v5946
  %8589 = vmatmul.mubr.bf16.gmra.mrb[0].mxu0 %v5945
  %v8590 = vpop.f32.mrb[0].mxu0
  %v8591 = vadd.f32 %v8398, %v8590
  %v8592 = vpop.f32.mrb[0].mxu0
  %v8593 = vadd.f32 %v8400, %v8592
  %v8594 = vpop.f32.mrb[0].mxu0
  %v8595 = vadd.f32 %v8402, %v8594
  %v8596 = vpop.f32.mrb[0].mxu0
  %v8597 = vadd.f32 %v8404, %v8596
  %8598 = vmatprep.mubr.bf16.mxu0 %v5950
  %8599 = vmatmul.mubr.bf16.gmra.mrb[0].mxu0 %v5949
  %v8600 = vpop.f32.mrb[0].mxu0
  %v8601 = vadd.f32 %v8408, %v8600
  %v8602 = vpop.f32.mrb[0].mxu0
  %v8603 = vadd.f32 %v8410, %v8602
  %v8604 = vpop.f32.mrb[0].mxu0
  %v8605 = vadd.f32 %v8412, %v8604
  %v8606 = vpop.f32.mrb[0].mxu0
  %v8607 = vadd.f32 %v8414, %v8606
  %8608 = vmatprep.mubr.bf16.mxu0 %v5954
  %8609 = vmatmul.mubr.bf16.gmra.mrb[0].mxu0 %v5953
  %v8610 = vpop.f32.mrb[0].mxu0
  %v8611 = vadd.f32 %v8418, %v8610
  %v8612 = vpop.f32.mrb[0].mxu0
  %v8613 = vadd.f32 %v8420, %v8612
  %v8614 = vpop.f32.mrb[0].mxu0
  %v8615 = vadd.f32 %v8422, %v8614
  %v8616 = vpop.f32.mrb[0].mxu0
  %v8617 = vadd.f32 %v8424, %v8616
  %8618 = vmatprep.mubr.bf16.mxu0 %v5958
  %8619 = vmatmul.mubr.bf16.gmra.mrb[0].mxu0 %v5957
  %v8620 = vpop.f32.mrb[0].mxu0
  %v8621 = vadd.f32 %v8428, %v8620
  %v8622 = vpop.f32.mrb[0].mxu0
  %v8623 = vadd.f32 %v8430, %v8622
  %v8624 = vpop.f32.mrb[0].mxu0
  %v8625 = vadd.f32 %v8432, %v8624
  %v8626 = vpop.f32.mrb[0].mxu0
  %v8627 = vadd.f32 %v8434, %v8626
  %8628 = vmatprep.mubr.bf16.mxu0 %v5962
  %8629 = vmatmul.mubr.bf16.gmra.mrb[0].mxu0 %v5961
  %v8630 = vpop.f32.mrb[0].mxu0
  %v8631 = vadd.f32 %v8438, %v8630
  %v8632 = vpop.f32.mrb[0].mxu0
  %v8633 = vadd.f32 %v8440, %v8632
  %v8634 = vpop.f32.mrb[0].mxu0
  %v8635 = vadd.f32 %v8442, %v8634
  %v8636 = vpop.f32.mrb[0].mxu0
  %v8637 = vadd.f32 %v8444, %v8636
  %8638 = vmatprep.mubr.bf16.mxu0 %v5966
  %8639 = vmatmul.mubr.bf16.gmra.mrb[0].mxu0 %v5965
  %v8640 = vpop.f32.mrb[0].mxu0
  %v8641 = vadd.f32 %v8448, %v8640
  %v8642 = vpop.f32.mrb[0].mxu0
  %v8643 = vadd.f32 %v8450, %v8642
  %v8644 = vpop.f32.mrb[0].mxu0
  %v8645 = vadd.f32 %v8452, %v8644
  %v8646 = vpop.f32.mrb[0].mxu0
  %v8647 = vadd.f32 %v8454, %v8646
  %8648 = vmatprep.mubr.bf16.mxu0 %v5970
  %8649 = vmatmul.mubr.bf16.gmra.mrb[0].mxu0 %v5969
  %v8650 = vpop.f32.mrb[0].mxu0
  %v8651 = vadd.f32 %v8458, %v8650
  %v8652 = vpop.f32.mrb[0].mxu0
  %v8653 = vadd.f32 %v8460, %v8652
  %v8654 = vpop.f32.mrb[0].mxu0
  %v8655 = vadd.f32 %v8462, %v8654
  %v8656 = vpop.f32.mrb[0].mxu0
  %v8657 = vadd.f32 %v8464, %v8656
  %8658 = vmatprep.mubr.bf16.mxu0 %v5974
  %8659 = vmatmul.mubr.bf16.gmra.mrb[0].mxu0 %v5973
  %v8660 = vpop.f32.mrb[0].mxu0
  %v8661 = vadd.f32 %v8468, %v8660
  %v8662 = vpop.f32.mrb[0].mxu0
  %v8663 = vadd.f32 %v8470, %v8662
  %v8664 = vpop.f32.mrb[0].mxu0
  %v8665 = vadd.f32 %v8472, %v8664
  %v8666 = vpop.f32.mrb[0].mxu0
  %v8667 = vadd.f32 %v8474, %v8666
  %8668 = vmatprep.mubr.bf16.mxu0 %v5978
  %8669 = vmatmul.mubr.bf16.gmra.mrb[0].mxu0 %v5977
  %v8670 = vpop.f32.mrb[0].mxu0
  %v8671 = vadd.f32 %v8478, %v8670
  %v8672 = vpop.f32.mrb[0].mxu0
  %v8673 = vadd.f32 %v8480, %v8672
  %v8674 = vpop.f32.mrb[0].mxu0
  %v8675 = vadd.f32 %v8482, %v8674
  %v8676 = vpop.f32.mrb[0].mxu0
  %v8677 = vadd.f32 %v8484, %v8676
  %8678 = vmatprep.mubr.bf16.mxu0 %v5982
  %8679 = vmatmul.mubr.bf16.gmra.mrb[0].mxu0 %v5981
  %v8680 = vpop.f32.mrb[0].mxu0
  %v8681 = vadd.f32 %v8488, %v8680
  %v8682 = vpop.f32.mrb[0].mxu0
  %v8683 = vadd.f32 %v8490, %v8682
  %v8684 = vpop.f32.mrb[0].mxu0
  %v8685 = vadd.f32 %v8492, %v8684
  %v8686 = vpop.f32.mrb[0].mxu0
  %v8687 = vadd.f32 %v8494, %v8686
  %8688 = vmatprep.mubr.bf16.mxu0 %v5986
  %8689 = vmatmul.mubr.bf16.gmra.mrb[0].mxu0 %v5985
  %v8690 = vpop.f32.mrb[0].mxu0
  %v8691 = vadd.f32 %v8498, %v8690
  %v8692 = vpop.f32.mrb[0].mxu0
  %v8693 = vadd.f32 %v8500, %v8692
  %v8694 = vpop.f32.mrb[0].mxu0
  %v8695 = vadd.f32 %v8502, %v8694
  %v8696 = vpop.f32.mrb[0].mxu0
  %v8697 = vadd.f32 %v8504, %v8696
  %8698 = vmatprep.mubr.bf16.mxu0 %v5990
  %8699 = vmatmul.mubr.bf16.gmra.mrb[0].mxu0 %v5989
  %v8700 = vpop.f32.mrb[0].mxu0
  %v8701 = vadd.f32 %v8508, %v8700
  %v8702 = vpop.f32.mrb[0].mxu0
  %v8703 = vadd.f32 %v8510, %v8702
  %v8704 = vpop.f32.mrb[0].mxu0
  %v8705 = vadd.f32 %v8512, %v8704
  %v8706 = vpop.f32.mrb[0].mxu0
  %v8707 = vadd.f32 %v8514, %v8706
  %8708 = vmatprep.mubr.bf16.mxu0 %v5994
  %8709 = vmatmul.mubr.bf16.gmra.mrb[0].mxu0 %v5993
  %v8710 = vpop.f32.mrb[0].mxu0
  %v8711 = vadd.f32 %v8518, %v8710
  %v8712 = vpop.f32.mrb[0].mxu0
  %v8713 = vadd.f32 %v8520, %v8712
  %v8714 = vpop.f32.mrb[0].mxu0
  %v8715 = vadd.f32 %v8522, %v8714
  %v8716 = vpop.f32.mrb[0].mxu0
  %v8717 = vadd.f32 %v8524, %v8716
  %8718 = vmatprep.mubr.bf16.mxu0 %v5998
  %8719 = vmatmul.mubr.bf16.gmra.mrb[0].mxu0 %v5997
  %v8720 = vpop.f32.mrb[0].mxu0
  %v8721 = vadd.f32 %v8528, %v8720
  %v8722 = vpop.f32.mrb[0].mxu0
  %v8723 = vadd.f32 %v8530, %v8722
  %v8724 = vpop.f32.mrb[0].mxu0
  %v8725 = vadd.f32 %v8532, %v8724
  %v8726 = vpop.f32.mrb[0].mxu0
  %v8727 = vadd.f32 %v8534, %v8726
  %8728 = vmatprep.mubr.bf16.mxu0 %v6002
  %8729 = vmatmul.mubr.bf16.gmra.mrb[0].mxu0 %v6001
  %v8730 = vpop.f32.mrb[0].mxu0
  %v8731 = vadd.f32 %v8538, %v8730
  %v8732 = vpop.f32.mrb[0].mxu0
  %v8733 = vadd.f32 %v8540, %v8732
  %v8734 = vpop.f32.mrb[0].mxu0
  %v8735 = vadd.f32 %v8542, %v8734
  %v8736 = vpop.f32.mrb[0].mxu0
  %v8737 = vadd.f32 %v8544, %v8736
  %8738 = vdwg.mxu0
  %8739 = vmatprep.subr.bf16.mxu0 %v7076
  %8740 = vmatpush1.bf16.msra.mxu0 %v7075
  %8741 = vmatprep.subr.bf16.mxu0 %v7084
  %8742 = vmatpush1.bf16.msra.mxu0 %v7083
  %8743 = vmatprep.subr.bf16.mxu0 %v7092
  %8744 = vmatpush1.bf16.msra.mxu0 %v7091
  %8745 = vmatprep.subr.bf16.mxu0 %v7100
  %8746 = vmatpush1.bf16.msra.mxu0 %v7099
  %8747 = vmatprep.subr.bf16.mxu0 %v7108
  %8748 = vmatpush1.bf16.msra.mxu0 %v7107
  %8749 = vmatprep.subr.bf16.mxu0 %v7116
  %8750 = vmatpush1.bf16.msra.mxu0 %v7115
  %8751 = vmatprep.subr.bf16.mxu0 %v7124
  %8752 = vmatpush1.bf16.msra.mxu0 %v7123
  %8753 = vmatprep.subr.bf16.mxu0 %v7132
  %8754 = vmatpush1.bf16.msra.mxu0 %v7131
  %8755 = vmatprep.subr.bf16.mxu0 %v7140
  %8756 = vmatpush1.bf16.msra.mxu0 %v7139
  %8757 = vmatprep.subr.bf16.mxu0 %v7148
  %8758 = vmatpush1.bf16.msra.mxu0 %v7147
  %8759 = vmatprep.subr.bf16.mxu0 %v7156
  %8760 = vmatpush1.bf16.msra.mxu0 %v7155
  %8761 = vmatprep.subr.bf16.mxu0 %v7164
  %8762 = vmatpush1.bf16.msra.mxu0 %v7163
  %8763 = vmatprep.subr.bf16.mxu0 %v7172
  %8764 = vmatpush1.bf16.msra.mxu0 %v7171
  %8765 = vmatprep.subr.bf16.mxu0 %v7180
  %8766 = vmatpush1.bf16.msra.mxu0 %v7179
  %8767 = vmatprep.subr.bf16.mxu0 %v7188
  %8768 = vmatpush1.bf16.msra.mxu0 %v7187
  %8769 = vmatprep.subr.bf16.mxu0 %v7196
  %8770 = vmatpush1.bf16.msra.mxu0 %v7195
  %8771 = vmatprep.mubr.bf16.mxu0 %v5940
  %8772 = vmatmul.mubr.bf16.gmra.mrb[0].mxu0 %v5939
  %v8773 = vpop.f32.mrb[0].mxu0
  %v8774 = vadd.f32 %v6288, %v8773
  %v8775 = vpop.f32.mrb[0].mxu0
  %v8776 = vadd.f32 %v6292, %v8775
  %v8777 = vpop.f32.mrb[0].mxu0
  %v8778 = vadd.f32 %v6288, %v8777
  %v8779 = vpop.f32.mrb[0].mxu0
  %v8780 = vadd.f32 %v6292, %v8779
  %8781 = vmatprep.mubr.bf16.mxu0 %v5944
  %8782 = vmatmul.mubr.bf16.gmra.mrb[0].mxu0 %v5943
  %v8783 = vpop.f32.mrb[0].mxu0
  %v8784 = vadd.f32 %v6288, %v8783
  %v8785 = vpop.f32.mrb[0].mxu0
  %v8786 = vadd.f32 %v6292, %v8785
  %v8787 = vpop.f32.mrb[0].mxu0
  %v8788 = vadd.f32 %v6288, %v8787
  %v8789 = vpop.f32.mrb[0].mxu0
  %v8790 = vadd.f32 %v6292, %v8789
  %8791 = vmatprep.mubr.bf16.mxu0 %v5948
  %8792 = vmatmul.mubr.bf16.gmra.mrb[0].mxu0 %v5947
  %v8793 = vpop.f32.mrb[0].mxu0
  %v8794 = vadd.f32 %v6288, %v8793
  %v8795 = vpop.f32.mrb[0].mxu0
  %v8796 = vadd.f32 %v6292, %v8795
  %v8797 = vpop.f32.mrb[0].mxu0
  %v8798 = vadd.f32 %v6288, %v8797
  %v8799 = vpop.f32.mrb[0].mxu0
  %v8800 = vadd.f32 %v6292, %v8799
  %8801 = vmatprep.mubr.bf16.mxu0 %v5952
  %8802 = vmatmul.mubr.bf16.gmra.mrb[0].mxu0 %v5951
  %v8803 = vpop.f32.mrb[0].mxu0
  %v8804 = vadd.f32 %v6288, %v8803
  %v8805 = vpop.f32.mrb[0].mxu0
  %v8806 = vadd.f32 %v6292, %v8805
  %v8807 = vpop.f32.mrb[0].mxu0
  %v8808 = vadd.f32 %v6288, %v8807
  %v8809 = vpop.f32.mrb[0].mxu0
  %v8810 = vadd.f32 %v6292, %v8809
  %8811 = vmatprep.mubr.bf16.mxu0 %v5956
  %8812 = vmatmul.mubr.bf16.gmra.mrb[0].mxu0 %v5955
  %v8813 = vpop.f32.mrb[0].mxu0
  %v8814 = vadd.f32 %v6288, %v8813
  %v8815 = vpop.f32.mrb[0].mxu0
  %v8816 = vadd.f32 %v6292, %v8815
  %v8817 = vpop.f32.mrb[0].mxu0
  %v8818 = vadd.f32 %v6288, %v8817
  %v8819 = vpop.f32.mrb[0].mxu0
  %v8820 = vadd.f32 %v6292, %v8819
  %8821 = vmatprep.mubr.bf16.mxu0 %v5960
  %8822 = vmatmul.mubr.bf16.gmra.mrb[0].mxu0 %v5959
  %v8823 = vpop.f32.mrb[0].mxu0
  %v8824 = vadd.f32 %v6288, %v8823
  %v8825 = vpop.f32.mrb[0].mxu0
  %v8826 = vadd.f32 %v6292, %v8825
  %v8827 = vpop.f32.mrb[0].mxu0
  %v8828 = vadd.f32 %v6288, %v8827
  %v8829 = vpop.f32.mrb[0].mxu0
  %v8830 = vadd.f32 %v6292, %v8829
  %8831 = vmatprep.mubr.bf16.mxu0 %v5964
  %8832 = vmatmul.mubr.bf16.gmra.mrb[0].mxu0 %v5963
  %v8833 = vpop.f32.mrb[0].mxu0
  %v8834 = vadd.f32 %v6288, %v8833
  %v8835 = vpop.f32.mrb[0].mxu0
  %v8836 = vadd.f32 %v6292, %v8835
  %v8837 = vpop.f32.mrb[0].mxu0
  %v8838 = vadd.f32 %v6288, %v8837
  %v8839 = vpop.f32.mrb[0].mxu0
  %v8840 = vadd.f32 %v6292, %v8839
  %8841 = vmatprep.mubr.bf16.mxu0 %v5968
  %8842 = vmatmul.mubr.bf16.gmra.mrb[0].mxu0 %v5967
  %v8843 = vpop.f32.mrb[0].mxu0
  %v8844 = vadd.f32 %v6288, %v8843
  %v8845 = vpop.f32.mrb[0].mxu0
  %v8846 = vadd.f32 %v6292, %v8845
  %v8847 = vpop.f32.mrb[0].mxu0
  %v8848 = vadd.f32 %v6288, %v8847
  %v8849 = vpop.f32.mrb[0].mxu0
  %v8850 = vadd.f32 %v6292, %v8849
  %8851 = vmatprep.mubr.bf16.mxu0 %v5972
  %8852 = vmatmul.mubr.bf16.gmra.mrb[0].mxu0 %v5971
  %v8853 = vpop.f32.mrb[0].mxu0
  %v8854 = vadd.f32 %v6288, %v8853
  %v8855 = vpop.f32.mrb[0].mxu0
  %v8856 = vadd.f32 %v6292, %v8855
  %v8857 = vpop.f32.mrb[0].mxu0
  %v8858 = vadd.f32 %v6288, %v8857
  %v8859 = vpop.f32.mrb[0].mxu0
  %v8860 = vadd.f32 %v6292, %v8859
  %8861 = vmatprep.mubr.bf16.mxu0 %v5976
  %8862 = vmatmul.mubr.bf16.gmra.mrb[0].mxu0 %v5975
  %v8863 = vpop.f32.mrb[0].mxu0
  %v8864 = vadd.f32 %v6288, %v8863
  %v8865 = vpop.f32.mrb[0].mxu0
  %v8866 = vadd.f32 %v6292, %v8865
  %v8867 = vpop.f32.mrb[0].mxu0
  %v8868 = vadd.f32 %v6288, %v8867
  %v8869 = vpop.f32.mrb[0].mxu0
  %v8870 = vadd.f32 %v6292, %v8869
  %8871 = vmatprep.mubr.bf16.mxu0 %v5980
  %8872 = vmatmul.mubr.bf16.gmra.mrb[0].mxu0 %v5979
  %v8873 = vpop.f32.mrb[0].mxu0
  %v8874 = vadd.f32 %v6288, %v8873
  %v8875 = vpop.f32.mrb[0].mxu0
  %v8876 = vadd.f32 %v6292, %v8875
  %v8877 = vpop.f32.mrb[0].mxu0
  %v8878 = vadd.f32 %v6288, %v8877
  %v8879 = vpop.f32.mrb[0].mxu0
  %v8880 = vadd.f32 %v6292, %v8879
  %8881 = vmatprep.mubr.bf16.mxu0 %v5984
  %8882 = vmatmul.mubr.bf16.gmra.mrb[0].mxu0 %v5983
  %v8883 = vpop.f32.mrb[0].mxu0
  %v8884 = vadd.f32 %v6288, %v8883
  %v8885 = vpop.f32.mrb[0].mxu0
  %v8886 = vadd.f32 %v6292, %v8885
  %v8887 = vpop.f32.mrb[0].mxu0
  %v8888 = vadd.f32 %v6288, %v8887
  %v8889 = vpop.f32.mrb[0].mxu0
  %v8890 = vadd.f32 %v6292, %v8889
  %8891 = vmatprep.mubr.bf16.mxu0 %v5988
  %8892 = vmatmul.mubr.bf16.gmra.mrb[0].mxu0 %v5987
  %v8893 = vpop.f32.mrb[0].mxu0
  %v8894 = vadd.f32 %v6288, %v8893
  %v8895 = vpop.f32.mrb[0].mxu0
  %v8896 = vadd.f32 %v6292, %v8895
  %v8897 = vpop.f32.mrb[0].mxu0
  %v8898 = vadd.f32 %v6288, %v8897
  %v8899 = vpop.f32.mrb[0].mxu0
  %v8900 = vadd.f32 %v6292, %v8899
  %8901 = vmatprep.mubr.bf16.mxu0 %v5992
  %8902 = vmatmul.mubr.bf16.gmra.mrb[0].mxu0 %v5991
  %v8903 = vpop.f32.mrb[0].mxu0
  %v8904 = vadd.f32 %v6288, %v8903
  %v8905 = vpop.f32.mrb[0].mxu0
  %v8906 = vadd.f32 %v6292, %v8905
  %v8907 = vpop.f32.mrb[0].mxu0
  %v8908 = vadd.f32 %v6288, %v8907
  %v8909 = vpop.f32.mrb[0].mxu0
  %v8910 = vadd.f32 %v6292, %v8909
  %8911 = vmatprep.mubr.bf16.mxu0 %v5996
  %8912 = vmatmul.mubr.bf16.gmra.mrb[0].mxu0 %v5995
  %v8913 = vpop.f32.mrb[0].mxu0
  %v8914 = vadd.f32 %v6288, %v8913
  %v8915 = vpop.f32.mrb[0].mxu0
  %v8916 = vadd.f32 %v6292, %v8915
  %v8917 = vpop.f32.mrb[0].mxu0
  %v8918 = vadd.f32 %v6288, %v8917
  %v8919 = vpop.f32.mrb[0].mxu0
  %v8920 = vadd.f32 %v6292, %v8919
  %8921 = vmatprep.mubr.bf16.mxu0 %v6000
  %8922 = vmatmul.mubr.bf16.gmra.mrb[0].mxu0 %v5999
  %v8923 = vpop.f32.mrb[0].mxu0
  %v8924 = vadd.f32 %v6288, %v8923
  %v8925 = vpop.f32.mrb[0].mxu0
  %v8926 = vadd.f32 %v6292, %v8925
  %v8927 = vpop.f32.mrb[0].mxu0
  %v8928 = vadd.f32 %v6288, %v8927
  %v8929 = vpop.f32.mrb[0].mxu0
  %v8930 = vadd.f32 %v6292, %v8929
  %8931 = vdwg.mxu0
  %8932 = vmatprep.subr.bf16.mxu0 %v7204
  %8933 = vmatpush1.bf16.msra.mxu0 %v7203
  %8934 = vmatprep.subr.bf16.mxu0 %v7212
  %8935 = vmatpush1.bf16.msra.mxu0 %v7211
  %8936 = vmatprep.subr.bf16.mxu0 %v7220
  %8937 = vmatpush1.bf16.msra.mxu0 %v7219
  %8938 = vmatprep.subr.bf16.mxu0 %v7228
  %8939 = vmatpush1.bf16.msra.mxu0 %v7227
  %8940 = vmatprep.subr.bf16.mxu0 %v7236
  %8941 = vmatpush1.bf16.msra.mxu0 %v7235
  %8942 = vmatprep.subr.bf16.mxu0 %v7244
  %8943 = vmatpush1.bf16.msra.mxu0 %v7243
  %8944 = vmatprep.subr.bf16.mxu0 %v7252
  %8945 = vmatpush1.bf16.msra.mxu0 %v7251
  %8946 = vmatprep.subr.bf16.mxu0 %v7260
  %8947 = vmatpush1.bf16.msra.mxu0 %v7259
  %8948 = vmatprep.subr.bf16.mxu0 %v7268
  %8949 = vmatpush1.bf16.msra.mxu0 %v7267
  %8950 = vmatprep.subr.bf16.mxu0 %v7276
  %8951 = vmatpush1.bf16.msra.mxu0 %v7275
  %8952 = vmatprep.subr.bf16.mxu0 %v7284
  %8953 = vmatpush1.bf16.msra.mxu0 %v7283
  %8954 = vmatprep.subr.bf16.mxu0 %v7292
  %8955 = vmatpush1.bf16.msra.mxu0 %v7291
  %8956 = vmatprep.subr.bf16.mxu0 %v7300
  %8957 = vmatpush1.bf16.msra.mxu0 %v7299
  %8958 = vmatprep.subr.bf16.mxu0 %v7308
  %8959 = vmatpush1.bf16.msra.mxu0 %v7307
  %8960 = vmatprep.subr.bf16.mxu0 %v7316
  %8961 = vmatpush1.bf16.msra.mxu0 %v7315
  %8962 = vmatprep.subr.bf16.mxu0 %v7324
  %8963 = vmatpush1.bf16.msra.mxu0 %v7323
  %8964 = vmatprep.mubr.bf16.mxu0 %v5942
  %8965 = vmatmul.mubr.bf16.gmra.mrb[0].mxu0 %v5941
  %v8966 = vpop.f32.mrb[0].mxu0
  %v8967 = vadd.f32 %v8774, %v8966
  %v8968 = vpop.f32.mrb[0].mxu0
  %v8969 = vadd.f32 %v8776, %v8968
  %v8970 = vpop.f32.mrb[0].mxu0
  %v8971 = vadd.f32 %v8778, %v8970
  %v8972 = vpop.f32.mrb[0].mxu0
  %v8973 = vadd.f32 %v8780, %v8972
  %8974 = vmatprep.mubr.bf16.mxu0 %v5946
  %8975 = vmatmul.mubr.bf16.gmra.mrb[0].mxu0 %v5945
  %v8976 = vpop.f32.mrb[0].mxu0
  %v8977 = vadd.f32 %v8784, %v8976
  %v8978 = vpop.f32.mrb[0].mxu0
  %v8979 = vadd.f32 %v8786, %v8978
  %v8980 = vpop.f32.mrb[0].mxu0
  %v8981 = vadd.f32 %v8788, %v8980
  %v8982 = vpop.f32.mrb[0].mxu0
  %v8983 = vadd.f32 %v8790, %v8982
  %8984 = vmatprep.mubr.bf16.mxu0 %v5950
  %8985 = vmatmul.mubr.bf16.gmra.mrb[0].mxu0 %v5949
  %v8986 = vpop.f32.mrb[0].mxu0
  %v8987 = vadd.f32 %v8794, %v8986
  %v8988 = vpop.f32.mrb[0].mxu0
  %v8989 = vadd.f32 %v8796, %v8988
  %v8990 = vpop.f32.mrb[0].mxu0
  %v8991 = vadd.f32 %v8798, %v8990
  %v8992 = vpop.f32.mrb[0].mxu0
  %v8993 = vadd.f32 %v8800, %v8992
  %8994 = vmatprep.mubr.bf16.mxu0 %v5954
  %8995 = vmatmul.mubr.bf16.gmra.mrb[0].mxu0 %v5953
  %v8996 = vpop.f32.mrb[0].mxu0
  %v8997 = vadd.f32 %v8804, %v8996
  %v8998 = vpop.f32.mrb[0].mxu0
  %v8999 = vadd.f32 %v8806, %v8998
  %v9000 = vpop.f32.mrb[0].mxu0
  %v9001 = vadd.f32 %v8808, %v9000
  %v9002 = vpop.f32.mrb[0].mxu0
  %v9003 = vadd.f32 %v8810, %v9002
  %9004 = vmatprep.mubr.bf16.mxu0 %v5958
  %9005 = vmatmul.mubr.bf16.gmra.mrb[0].mxu0 %v5957
  %v9006 = vpop.f32.mrb[0].mxu0
  %v9007 = vadd.f32 %v8814, %v9006
  %v9008 = vpop.f32.mrb[0].mxu0
  %v9009 = vadd.f32 %v8816, %v9008
  %v9010 = vpop.f32.mrb[0].mxu0
  %v9011 = vadd.f32 %v8818, %v9010
  %v9012 = vpop.f32.mrb[0].mxu0
  %v9013 = vadd.f32 %v8820, %v9012
  %9014 = vmatprep.mubr.bf16.mxu0 %v5962
  %9015 = vmatmul.mubr.bf16.gmra.mrb[0].mxu0 %v5961
  %v9016 = vpop.f32.mrb[0].mxu0
  %v9017 = vadd.f32 %v8824, %v9016
  %v9018 = vpop.f32.mrb[0].mxu0
  %v9019 = vadd.f32 %v8826, %v9018
  %v9020 = vpop.f32.mrb[0].mxu0
  %v9021 = vadd.f32 %v8828, %v9020
  %v9022 = vpop.f32.mrb[0].mxu0
  %v9023 = vadd.f32 %v8830, %v9022
  %9024 = vmatprep.mubr.bf16.mxu0 %v5966
  %9025 = vmatmul.mubr.bf16.gmra.mrb[0].mxu0 %v5965
  %v9026 = vpop.f32.mrb[0].mxu0
  %v9027 = vadd.f32 %v8834, %v9026
  %v9028 = vpop.f32.mrb[0].mxu0
  %v9029 = vadd.f32 %v8836, %v9028
  %v9030 = vpop.f32.mrb[0].mxu0
  %v9031 = vadd.f32 %v8838, %v9030
  %v9032 = vpop.f32.mrb[0].mxu0
  %v9033 = vadd.f32 %v8840, %v9032
  %9034 = vmatprep.mubr.bf16.mxu0 %v5970
  %9035 = vmatmul.mubr.bf16.gmra.mrb[0].mxu0 %v5969
  %v9036 = vpop.f32.mrb[0].mxu0
  %v9037 = vadd.f32 %v8844, %v9036
  %v9038 = vpop.f32.mrb[0].mxu0
  %v9039 = vadd.f32 %v8846, %v9038
  %v9040 = vpop.f32.mrb[0].mxu0
  %v9041 = vadd.f32 %v8848, %v9040
  %v9042 = vpop.f32.mrb[0].mxu0
  %v9043 = vadd.f32 %v8850, %v9042
  %9044 = vmatprep.mubr.bf16.mxu0 %v5974
  %9045 = vmatmul.mubr.bf16.gmra.mrb[0].mxu0 %v5973
  %v9046 = vpop.f32.mrb[0].mxu0
  %v9047 = vadd.f32 %v8854, %v9046
  %v9048 = vpop.f32.mrb[0].mxu0
  %v9049 = vadd.f32 %v8856, %v9048
  %v9050 = vpop.f32.mrb[0].mxu0
  %v9051 = vadd.f32 %v8858, %v9050
  %v9052 = vpop.f32.mrb[0].mxu0
  %v9053 = vadd.f32 %v8860, %v9052
  %9054 = vmatprep.mubr.bf16.mxu0 %v5978
  %9055 = vmatmul.mubr.bf16.gmra.mrb[0].mxu0 %v5977
  %v9056 = vpop.f32.mrb[0].mxu0
  %v9057 = vadd.f32 %v8864, %v9056
  %v9058 = vpop.f32.mrb[0].mxu0
  %v9059 = vadd.f32 %v8866, %v9058
  %v9060 = vpop.f32.mrb[0].mxu0
  %v9061 = vadd.f32 %v8868, %v9060
  %v9062 = vpop.f32.mrb[0].mxu0
  %v9063 = vadd.f32 %v8870, %v9062
  %9064 = vmatprep.mubr.bf16.mxu0 %v5982
  %9065 = vmatmul.mubr.bf16.gmra.mrb[0].mxu0 %v5981
  %v9066 = vpop.f32.mrb[0].mxu0
  %v9067 = vadd.f32 %v8874, %v9066
  %v9068 = vpop.f32.mrb[0].mxu0
  %v9069 = vadd.f32 %v8876, %v9068
  %v9070 = vpop.f32.mrb[0].mxu0
  %v9071 = vadd.f32 %v8878, %v9070
  %v9072 = vpop.f32.mrb[0].mxu0
  %v9073 = vadd.f32 %v8880, %v9072
  %9074 = vmatprep.mubr.bf16.mxu0 %v5986
  %9075 = vmatmul.mubr.bf16.gmra.mrb[0].mxu0 %v5985
  %v9076 = vpop.f32.mrb[0].mxu0
  %v9077 = vadd.f32 %v8884, %v9076
  %v9078 = vpop.f32.mrb[0].mxu0
  %v9079 = vadd.f32 %v8886, %v9078
  %v9080 = vpop.f32.mrb[0].mxu0
  %v9081 = vadd.f32 %v8888, %v9080
  %v9082 = vpop.f32.mrb[0].mxu0
  %v9083 = vadd.f32 %v8890, %v9082
  %9084 = vmatprep.mubr.bf16.mxu0 %v5990
  %9085 = vmatmul.mubr.bf16.gmra.mrb[0].mxu0 %v5989
  %v9086 = vpop.f32.mrb[0].mxu0
  %v9087 = vadd.f32 %v8894, %v9086
  %v9088 = vpop.f32.mrb[0].mxu0
  %v9089 = vadd.f32 %v8896, %v9088
  %v9090 = vpop.f32.mrb[0].mxu0
  %v9091 = vadd.f32 %v8898, %v9090
  %v9092 = vpop.f32.mrb[0].mxu0
  %v9093 = vadd.f32 %v8900, %v9092
  %9094 = vmatprep.mubr.bf16.mxu0 %v5994
  %9095 = vmatmul.mubr.bf16.gmra.mrb[0].mxu0 %v5993
  %v9096 = vpop.f32.mrb[0].mxu0
  %v9097 = vadd.f32 %v8904, %v9096
  %v9098 = vpop.f32.mrb[0].mxu0
  %v9099 = vadd.f32 %v8906, %v9098
  %v9100 = vpop.f32.mrb[0].mxu0
  %v9101 = vadd.f32 %v8908, %v9100
  %v9102 = vpop.f32.mrb[0].mxu0
  %v9103 = vadd.f32 %v8910, %v9102
  %9104 = vmatprep.mubr.bf16.mxu0 %v5998
  %9105 = vmatmul.mubr.bf16.gmra.mrb[0].mxu0 %v5997
  %v9106 = vpop.f32.mrb[0].mxu0
  %v9107 = vadd.f32 %v8914, %v9106
  %v9108 = vpop.f32.mrb[0].mxu0
  %v9109 = vadd.f32 %v8916, %v9108
  %v9110 = vpop.f32.mrb[0].mxu0
  %v9111 = vadd.f32 %v8918, %v9110
  %v9112 = vpop.f32.mrb[0].mxu0
  %v9113 = vadd.f32 %v8920, %v9112
  %9114 = vmatprep.mubr.bf16.mxu0 %v6002
  %9115 = vmatmul.mubr.bf16.gmra.mrb[0].mxu0 %v6001
  %v9116 = vpop.f32.mrb[0].mxu0
  %v9117 = vadd.f32 %v8924, %v9116
  %v9118 = vpop.f32.mrb[0].mxu0
  %v9119 = vadd.f32 %v8926, %v9118
  %v9120 = vpop.f32.mrb[0].mxu0
  %v9121 = vadd.f32 %v8928, %v9120
  %v9122 = vpop.f32.mrb[0].mxu0
  %v9123 = vadd.f32 %v8930, %v9122
  %9124 = vdwg.mxu0
  %v9125 = vmax.f32 %v7809, 0.0
  %v9126 = vmax.f32 %v7811, 0.0
  %v9127 = vmax.f32 %v8195, 0.0
  %v9128 = vmax.f32 %v8197, 0.0
  %v9129 = vmax.f32 %v8581, 0.0
  %v9130 = vmax.f32 %v8583, 0.0
  %v9131 = vmax.f32 %v8967, 0.0
  %v9132 = vmax.f32 %v8969, 0.0
  %v9133 = vmax.f32 %v7813, 0.0
  %v9134 = vmax.f32 %v7815, 0.0
  %v9135 = vmax.f32 %v8199, 0.0
  %v9136 = vmax.f32 %v8201, 0.0
  %v9137 = vmax.f32 %v8585, 0.0
  %v9138 = vmax.f32 %v8587, 0.0
  %v9139 = vmax.f32 %v8971, 0.0
  %v9140 = vmax.f32 %v8973, 0.0
  %v9141 = vmax.f32 %v7819, 0.0
  %v9142 = vmax.f32 %v7821, 0.0
  %v9143 = vmax.f32 %v8205, 0.0
  %v9144 = vmax.f32 %v8207, 0.0
  %v9145 = vmax.f32 %v8591, 0.0
  %v9146 = vmax.f32 %v8593, 0.0
  %v9147 = vmax.f32 %v8977, 0.0
  %v9148 = vmax.f32 %v8979, 0.0
  %v9149 = vmax.f32 %v7823, 0.0
  %v9150 = vmax.f32 %v7825, 0.0
  %v9151 = vmax.f32 %v8209, 0.0
  %v9152 = vmax.f32 %v8211, 0.0
  %v9153 = vmax.f32 %v8595, 0.0
  %v9154 = vmax.f32 %v8597, 0.0
  %v9155 = vmax.f32 %v8981, 0.0
  %v9156 = vmax.f32 %v8983, 0.0
  %v9157 = vmax.f32 %v7829, 0.0
  %v9158 = vmax.f32 %v7831, 0.0
  %v9159 = vmax.f32 %v8215, 0.0
  %v9160 = vmax.f32 %v8217, 0.0
  %v9161 = vmax.f32 %v8601, 0.0
  %v9162 = vmax.f32 %v8603, 0.0
  %v9163 = vmax.f32 %v8987, 0.0
  %v9164 = vmax.f32 %v8989, 0.0
  %v9165 = vmax.f32 %v7833, 0.0
  %v9166 = vmax.f32 %v7835, 0.0
  %v9167 = vmax.f32 %v8219, 0.0
  %v9168 = vmax.f32 %v8221, 0.0
  %v9169 = vmax.f32 %v8605, 0.0
  %v9170 = vmax.f32 %v8607, 0.0
  %v9171 = vmax.f32 %v8991, 0.0
  %v9172 = vmax.f32 %v8993, 0.0
  %v9173 = vmax.f32 %v7839, 0.0
  %v9174 = vmax.f32 %v7841, 0.0
  %v9175 = vmax.f32 %v8225, 0.0
  %v9176 = vmax.f32 %v8227, 0.0
  %v9177 = vmax.f32 %v8611, 0.0
  %v9178 = vmax.f32 %v8613, 0.0
  %v9179 = vmax.f32 %v8997, 0.0
  %v9180 = vmax.f32 %v8999, 0.0
  %v9181 = vmax.f32 %v7843, 0.0
  %v9182 = vmax.f32 %v7845, 0.0
  %v9183 = vmax.f32 %v8229, 0.0
  %v9184 = vmax.f32 %v8231, 0.0
  %v9185 = vmax.f32 %v8615, 0.0
  %v9186 = vmax.f32 %v8617, 0.0
  %v9187 = vmax.f32 %v9001, 0.0
  %v9188 = vmax.f32 %v9003, 0.0
  %v9189 = vmax.f32 %v7849, 0.0
  %v9190 = vmax.f32 %v7851, 0.0
  %v9191 = vmax.f32 %v8235, 0.0
  %v9192 = vmax.f32 %v8237, 0.0
  %v9193 = vmax.f32 %v8621, 0.0
  %v9194 = vmax.f32 %v8623, 0.0
  %v9195 = vmax.f32 %v9007, 0.0
  %v9196 = vmax.f32 %v9009, 0.0
  %v9197 = vmax.f32 %v7853, 0.0
  %v9198 = vmax.f32 %v7855, 0.0
  %v9199 = vmax.f32 %v8239, 0.0
  %v9200 = vmax.f32 %v8241, 0.0
  %v9201 = vmax.f32 %v8625, 0.0
  %v9202 = vmax.f32 %v8627, 0.0
  %v9203 = vmax.f32 %v9011, 0.0
  %v9204 = vmax.f32 %v9013, 0.0
  %v9205 = vmax.f32 %v7859, 0.0
  %v9206 = vmax.f32 %v7861, 0.0
  %v9207 = vmax.f32 %v8245, 0.0
  %v9208 = vmax.f32 %v8247, 0.0
  %v9209 = vmax.f32 %v8631, 0.0
  %v9210 = vmax.f32 %v8633, 0.0
  %v9211 = vmax.f32 %v9017, 0.0
  %v9212 = vmax.f32 %v9019, 0.0
  %v9213 = vmax.f32 %v7863, 0.0
  %v9214 = vmax.f32 %v7865, 0.0
  %v9215 = vmax.f32 %v8249, 0.0
  %v9216 = vmax.f32 %v8251, 0.0
  %v9217 = vmax.f32 %v8635, 0.0
  %v9218 = vmax.f32 %v8637, 0.0
  %v9219 = vmax.f32 %v9021, 0.0
  %v9220 = vmax.f32 %v9023, 0.0
  %v9221 = vmax.f32 %v7869, 0.0
  %v9222 = vmax.f32 %v7871, 0.0
  %v9223 = vmax.f32 %v8255, 0.0
  %v9224 = vmax.f32 %v8257, 0.0
  %v9225 = vmax.f32 %v8641, 0.0
  %v9226 = vmax.f32 %v8643, 0.0
  %v9227 = vmax.f32 %v9027, 0.0
  %v9228 = vmax.f32 %v9029, 0.0
  %v9229 = vmax.f32 %v7873, 0.0
  %v9230 = vmax.f32 %v7875, 0.0
  %v9231 = vmax.f32 %v8259, 0.0
  %v9232 = vmax.f32 %v8261, 0.0
  %v9233 = vmax.f32 %v8645, 0.0
  %v9234 = vmax.f32 %v8647, 0.0
  %v9235 = vmax.f32 %v9031, 0.0
  %v9236 = vmax.f32 %v9033, 0.0
  %v9237 = vmax.f32 %v7879, 0.0
  %v9238 = vmax.f32 %v7881, 0.0
  %v9239 = vmax.f32 %v8265, 0.0
  %v9240 = vmax.f32 %v8267, 0.0
  %v9241 = vmax.f32 %v8651, 0.0
  %v9242 = vmax.f32 %v8653, 0.0
  %v9243 = vmax.f32 %v9037, 0.0
  %v9244 = vmax.f32 %v9039, 0.0
  %v9245 = vmax.f32 %v7883, 0.0
  %v9246 = vmax.f32 %v7885, 0.0
  %v9247 = vmax.f32 %v8269, 0.0
  %v9248 = vmax.f32 %v8271, 0.0
  %v9249 = vmax.f32 %v8655, 0.0
  %v9250 = vmax.f32 %v8657, 0.0
  %v9251 = vmax.f32 %v9041, 0.0
  %v9252 = vmax.f32 %v9043, 0.0
  %v9253 = vmax.f32 %v7889, 0.0
  %v9254 = vmax.f32 %v7891, 0.0
  %v9255 = vmax.f32 %v8275, 0.0
  %v9256 = vmax.f32 %v8277, 0.0
  %v9257 = vmax.f32 %v8661, 0.0
  %v9258 = vmax.f32 %v8663, 0.0
  %v9259 = vmax.f32 %v9047, 0.0
  %v9260 = vmax.f32 %v9049, 0.0
  %v9261 = vmax.f32 %v7893, 0.0
  %v9262 = vmax.f32 %v7895, 0.0
  %v9263 = vmax.f32 %v8279, 0.0
  %v9264 = vmax.f32 %v8281, 0.0
  %v9265 = vmax.f32 %v8665, 0.0
  %v9266 = vmax.f32 %v8667, 0.0
  %v9267 = vmax.f32 %v9051, 0.0
  %v9268 = vmax.f32 %v9053, 0.0
  %v9269 = vmax.f32 %v7899, 0.0
  %v9270 = vmax.f32 %v7901, 0.0
  %v9271 = vmax.f32 %v8285, 0.0
  %v9272 = vmax.f32 %v8287, 0.0
  %v9273 = vmax.f32 %v8671, 0.0
  %v9274 = vmax.f32 %v8673, 0.0
  %v9275 = vmax.f32 %v9057, 0.0
  %v9276 = vmax.f32 %v9059, 0.0
  %v9277 = vmax.f32 %v7903, 0.0
  %v9278 = vmax.f32 %v7905, 0.0
  %v9279 = vmax.f32 %v8289, 0.0
  %v9280 = vmax.f32 %v8291, 0.0
  %v9281 = vmax.f32 %v8675, 0.0
  %v9282 = vmax.f32 %v8677, 0.0
  %v9283 = vmax.f32 %v9061, 0.0
  %v9284 = vmax.f32 %v9063, 0.0
  %v9285 = vmax.f32 %v7909, 0.0
  %v9286 = vmax.f32 %v7911, 0.0
  %v9287 = vmax.f32 %v8295, 0.0
  %v9288 = vmax.f32 %v8297, 0.0
  %v9289 = vmax.f32 %v8681, 0.0
  %v9290 = vmax.f32 %v8683, 0.0
  %v9291 = vmax.f32 %v9067, 0.0
  %v9292 = vmax.f32 %v9069, 0.0
  %v9293 = vmax.f32 %v7913, 0.0
  %v9294 = vmax.f32 %v7915, 0.0
  %v9295 = vmax.f32 %v8299, 0.0
  %v9296 = vmax.f32 %v8301, 0.0
  %v9297 = vmax.f32 %v8685, 0.0
  %v9298 = vmax.f32 %v8687, 0.0
  %v9299 = vmax.f32 %v9071, 0.0
  %v9300 = vmax.f32 %v9073, 0.0
  %v9301 = vmax.f32 %v7919, 0.0
  %v9302 = vmax.f32 %v7921, 0.0
  %v9303 = vmax.f32 %v8305, 0.0
  %v9304 = vmax.f32 %v8307, 0.0
  %v9305 = vmax.f32 %v8691, 0.0
  %v9306 = vmax.f32 %v8693, 0.0
  %v9307 = vmax.f32 %v9077, 0.0
  %v9308 = vmax.f32 %v9079, 0.0
  %v9309 = vmax.f32 %v7923, 0.0
  %v9310 = vmax.f32 %v7925, 0.0
  %v9311 = vmax.f32 %v8309, 0.0
  %v9312 = vmax.f32 %v8311, 0.0
  %v9313 = vmax.f32 %v8695, 0.0
  %v9314 = vmax.f32 %v8697, 0.0
  %v9315 = vmax.f32 %v9081, 0.0
  %v9316 = vmax.f32 %v9083, 0.0
  %v9317 = vmax.f32 %v7929, 0.0
  %v9318 = vmax.f32 %v7931, 0.0
  %v9319 = vmax.f32 %v8315, 0.0
  %v9320 = vmax.f32 %v8317, 0.0
  %v9321 = vmax.f32 %v8701, 0.0
  %v9322 = vmax.f32 %v8703, 0.0
  %v9323 = vmax.f32 %v9087, 0.0
  %v9324 = vmax.f32 %v9089, 0.0
  %v9325 = vmax.f32 %v7933, 0.0
  %v9326 = vmax.f32 %v7935, 0.0
  %v9327 = vmax.f32 %v8319, 0.0
  %v9328 = vmax.f32 %v8321, 0.0
  %v9329 = vmax.f32 %v8705, 0.0
  %v9330 = vmax.f32 %v8707, 0.0
  %v9331 = vmax.f32 %v9091, 0.0
  %v9332 = vmax.f32 %v9093, 0.0
  %v9333 = vmax.f32 %v7939, 0.0
  %v9334 = vmax.f32 %v7941, 0.0
  %v9335 = vmax.f32 %v8325, 0.0
  %v9336 = vmax.f32 %v8327, 0.0
  %v9337 = vmax.f32 %v8711, 0.0
  %v9338 = vmax.f32 %v8713, 0.0
  %v9339 = vmax.f32 %v9097, 0.0
  %v9340 = vmax.f32 %v9099, 0.0
  %v9341 = vmax.f32 %v7943, 0.0
  %v9342 = vmax.f32 %v7945, 0.0
  %v9343 = vmax.f32 %v8329, 0.0
  %v9344 = vmax.f32 %v8331, 0.0
  %v9345 = vmax.f32 %v8715, 0.0
  %v9346 = vmax.f32 %v8717, 0.0
  %v9347 = vmax.f32 %v9101, 0.0
  %v9348 = vmax.f32 %v9103, 0.0
  %v9349 = vmax.f32 %v7949, 0.0
  %v9350 = vmax.f32 %v7951, 0.0
  %v9351 = vmax.f32 %v8335, 0.0
  %v9352 = vmax.f32 %v8337, 0.0
  %v9353 = vmax.f32 %v8721, 0.0
  %v9354 = vmax.f32 %v8723, 0.0
  %v9355 = vmax.f32 %v9107, 0.0
  %v9356 = vmax.f32 %v9109, 0.0
  %v9357 = vmax.f32 %v7953, 0.0
  %v9358 = vmax.f32 %v7955, 0.0
  %v9359 = vmax.f32 %v8339, 0.0
  %v9360 = vmax.f32 %v8341, 0.0
  %v9361 = vmax.f32 %v8725, 0.0
  %v9362 = vmax.f32 %v8727, 0.0
  %v9363 = vmax.f32 %v9111, 0.0
  %v9364 = vmax.f32 %v9113, 0.0
  %v9365 = vmax.f32 %v7959, 0.0
  %v9366 = vmax.f32 %v7961, 0.0
  %v9367 = vmax.f32 %v8345, 0.0
  %v9368 = vmax.f32 %v8347, 0.0
  %v9369 = vmax.f32 %v8731, 0.0
  %v9370 = vmax.f32 %v8733, 0.0
  %v9371 = vmax.f32 %v9117, 0.0
  %v9372 = vmax.f32 %v9119, 0.0
  %v9373 = vmax.f32 %v7963, 0.0
  %v9374 = vmax.f32 %v7965, 0.0
  %v9375 = vmax.f32 %v8349, 0.0
  %v9376 = vmax.f32 %v8351, 0.0
  %v9377 = vmax.f32 %v8735, 0.0
  %v9378 = vmax.f32 %v8737, 0.0
  %v9379 = vmax.f32 %v9121, 0.0
  %v9380 = vmax.f32 %v9123, 0.0
  %v9381 = vpack.c.bf16 %v9133, %v9125
  %v9382 = vpack.c.bf16 %v9134, %v9126
  %v9383 = vpack.c.bf16 %v9135, %v9127
  %v9384 = vpack.c.bf16 %v9136, %v9128
  %v9385 = vpack.c.bf16 %v9137, %v9129
  %v9386 = vpack.c.bf16 %v9138, %v9130
  %v9387 = vpack.c.bf16 %v9139, %v9131
  %v9388 = vpack.c.bf16 %v9140, %v9132
  %v9389 = vpack.c.bf16 %v9149, %v9141
  %v9390 = vpack.c.bf16 %v9150, %v9142
  %v9391 = vpack.c.bf16 %v9151, %v9143
  %v9392 = vpack.c.bf16 %v9152, %v9144
  %v9393 = vpack.c.bf16 %v9153, %v9145
  %v9394 = vpack.c.bf16 %v9154, %v9146
  %v9395 = vpack.c.bf16 %v9155, %v9147
  %v9396 = vpack.c.bf16 %v9156, %v9148
  %v9397 = vpack.c.bf16 %v9165, %v9157
  %v9398 = vpack.c.bf16 %v9166, %v9158
  %v9399 = vpack.c.bf16 %v9167, %v9159
  %v9400 = vpack.c.bf16 %v9168, %v9160
  %v9401 = vpack.c.bf16 %v9169, %v9161
  %v9402 = vpack.c.bf16 %v9170, %v9162
  %v9403 = vpack.c.bf16 %v9171, %v9163
  %v9404 = vpack.c.bf16 %v9172, %v9164
  %v9405 = vpack.c.bf16 %v9181, %v9173
  %v9406 = vpack.c.bf16 %v9182, %v9174
  %v9407 = vpack.c.bf16 %v9183, %v9175
  %v9408 = vpack.c.bf16 %v9184, %v9176
  %v9409 = vpack.c.bf16 %v9185, %v9177
  %v9410 = vpack.c.bf16 %v9186, %v9178
  %v9411 = vpack.c.bf16 %v9187, %v9179
  %v9412 = vpack.c.bf16 %v9188, %v9180
  %v9413 = vpack.c.bf16 %v9197, %v9189
  %v9414 = vpack.c.bf16 %v9198, %v9190
  %v9415 = vpack.c.bf16 %v9199, %v9191
  %v9416 = vpack.c.bf16 %v9200, %v9192
  %v9417 = vpack.c.bf16 %v9201, %v9193
  %v9418 = vpack.c.bf16 %v9202, %v9194
  %v9419 = vpack.c.bf16 %v9203, %v9195
  %v9420 = vpack.c.bf16 %v9204, %v9196
  %v9421 = vpack.c.bf16 %v9213, %v9205
  %v9422 = vpack.c.bf16 %v9214, %v9206
  %v9423 = vpack.c.bf16 %v9215, %v9207
  %v9424 = vpack.c.bf16 %v9216, %v9208
  %v9425 = vpack.c.bf16 %v9217, %v9209
  %v9426 = vpack.c.bf16 %v9218, %v9210
  %v9427 = vpack.c.bf16 %v9219, %v9211
  %v9428 = vpack.c.bf16 %v9220, %v9212
  %v9429 = vpack.c.bf16 %v9229, %v9221
  %v9430 = vpack.c.bf16 %v9230, %v9222
  %v9431 = vpack.c.bf16 %v9231, %v9223
  %v9432 = vpack.c.bf16 %v9232, %v9224
  %v9433 = vpack.c.bf16 %v9233, %v9225
  %v9434 = vpack.c.bf16 %v9234, %v9226
  %v9435 = vpack.c.bf16 %v9235, %v9227
  %v9436 = vpack.c.bf16 %v9236, %v9228
  %v9437 = vpack.c.bf16 %v9245, %v9237
  %v9438 = vpack.c.bf16 %v9246, %v9238
  %v9439 = vpack.c.bf16 %v9247, %v9239
  %v9440 = vpack.c.bf16 %v9248, %v9240
  %v9441 = vpack.c.bf16 %v9249, %v9241
  %v9442 = vpack.c.bf16 %v9250, %v9242
  %v9443 = vpack.c.bf16 %v9251, %v9243
  %v9444 = vpack.c.bf16 %v9252, %v9244
  %v9445 = vpack.c.bf16 %v9261, %v9253
  %v9446 = vpack.c.bf16 %v9262, %v9254
  %v9447 = vpack.c.bf16 %v9263, %v9255
  %v9448 = vpack.c.bf16 %v9264, %v9256
  %v9449 = vpack.c.bf16 %v9265, %v9257
  %v9450 = vpack.c.bf16 %v9266, %v9258
  %v9451 = vpack.c.bf16 %v9267, %v9259
  %v9452 = vpack.c.bf16 %v9268, %v9260
  %v9453 = vpack.c.bf16 %v9277, %v9269
  %v9454 = vpack.c.bf16 %v9278, %v9270
  %v9455 = vpack.c.bf16 %v9279, %v9271
  %v9456 = vpack.c.bf16 %v9280, %v9272
  %v9457 = vpack.c.bf16 %v9281, %v9273
  %v9458 = vpack.c.bf16 %v9282, %v9274
  %v9459 = vpack.c.bf16 %v9283, %v9275
  %v9460 = vpack.c.bf16 %v9284, %v9276
  %v9461 = vpack.c.bf16 %v9293, %v9285
  %v9462 = vpack.c.bf16 %v9294, %v9286
  %v9463 = vpack.c.bf16 %v9295, %v9287
  %v9464 = vpack.c.bf16 %v9296, %v9288
  %v9465 = vpack.c.bf16 %v9297, %v9289
  %v9466 = vpack.c.bf16 %v9298, %v9290
  %v9467 = vpack.c.bf16 %v9299, %v9291
  %v9468 = vpack.c.bf16 %v9300, %v9292
  %v9469 = vpack.c.bf16 %v9309, %v9301
  %v9470 = vpack.c.bf16 %v9310, %v9302
  %v9471 = vpack.c.bf16 %v9311, %v9303
  %v9472 = vpack.c.bf16 %v9312, %v9304
  %v9473 = vpack.c.bf16 %v9313, %v9305
  %v9474 = vpack.c.bf16 %v9314, %v9306
  %v9475 = vpack.c.bf16 %v9315, %v9307
  %v9476 = vpack.c.bf16 %v9316, %v9308
  %v9477 = vpack.c.bf16 %v9325, %v9317
  %v9478 = vpack.c.bf16 %v9326, %v9318
  %v9479 = vpack.c.bf16 %v9327, %v9319
  %v9480 = vpack.c.bf16 %v9328, %v9320
  %v9481 = vpack.c.bf16 %v9329, %v9321
  %v9482 = vpack.c.bf16 %v9330, %v9322
  %v9483 = vpack.c.bf16 %v9331, %v9323
  %v9484 = vpack.c.bf16 %v9332, %v9324
  %v9485 = vpack.c.bf16 %v9341, %v9333
  %v9486 = vpack.c.bf16 %v9342, %v9334
  %v9487 = vpack.c.bf16 %v9343, %v9335
  %v9488 = vpack.c.bf16 %v9344, %v9336
  %v9489 = vpack.c.bf16 %v9345, %v9337
  %v9490 = vpack.c.bf16 %v9346, %v9338
  %v9491 = vpack.c.bf16 %v9347, %v9339
  %v9492 = vpack.c.bf16 %v9348, %v9340
  %v9493 = vpack.c.bf16 %v9357, %v9349
  %v9494 = vpack.c.bf16 %v9358, %v9350
  %v9495 = vpack.c.bf16 %v9359, %v9351
  %v9496 = vpack.c.bf16 %v9360, %v9352
  %v9497 = vpack.c.bf16 %v9361, %v9353
  %v9498 = vpack.c.bf16 %v9362, %v9354
  %v9499 = vpack.c.bf16 %v9363, %v9355
  %v9500 = vpack.c.bf16 %v9364, %v9356
  %v9501 = vpack.c.bf16 %v9373, %v9365
  %v9502 = vpack.c.bf16 %v9374, %v9366
  %v9503 = vpack.c.bf16 %v9375, %v9367
  %v9504 = vpack.c.bf16 %v9376, %v9368
  %v9505 = vpack.c.bf16 %v9377, %v9369
  %v9506 = vpack.c.bf16 %v9378, %v9370
  %v9507 = vpack.c.bf16 %v9379, %v9371
  %v9508 = vpack.c.bf16 %v9380, %v9372
  %v9509 = vld [vmem:[%s9] sm:$0xff]
  %v9510 = vld [vmem:[%s9 + $0x8] sm:$0xff]
  %v9511 = vld [vmem:[%s9 + $0x10] sm:$0xff]
  %v9512 = vld [vmem:[%s9 + $0x18] sm:$0xff]
  %v9513 = vld [vmem:[%s9 + $0x20] sm:$0xff]
  %v9514 = vld [vmem:[%s9 + $0x28] sm:$0xff]
  %v9515 = vld [vmem:[%s9 + $0x30] sm:$0xff]
  %v9516 = vld [vmem:[%s9 + $0x38] sm:$0xff]
  %v9517 = vld [vmem:[%s9 + $0x40] sm:$0xff]
  %v9518 = vld [vmem:[%s9 + $0x48] sm:$0xff]
  %v9519 = vld [vmem:[%s9 + $0x50] sm:$0xff]
  %v9520 = vld [vmem:[%s9 + $0x58] sm:$0xff]
  %v9521 = vld [vmem:[%s9 + $0x60] sm:$0xff]
  %v9522 = vld [vmem:[%s9 + $0x68] sm:$0xff]
  %v9523 = vld [vmem:[%s9 + $0x70] sm:$0xff]
  %v9524 = vld [vmem:[%s9 + $0x78] sm:$0xff]
  %v9525 = vld [vmem:[%s9 + $0x80] sm:$0xff]
  %v9526 = vld [vmem:[%s9 + $0x88] sm:$0xff]
  %v9527 = vld [vmem:[%s9 + $0x90] sm:$0xff]
  %v9528 = vld [vmem:[%s9 + $0x98] sm:$0xff]
  %v9529 = vld [vmem:[%s9 + $0xa0] sm:$0xff]
  %v9530 = vld [vmem:[%s9 + $0xa8] sm:$0xff]
  %v9531 = vld [vmem:[%s9 + $0xb0] sm:$0xff]
  %v9532 = vld [vmem:[%s9 + $0xb8] sm:$0xff]
  %v9533 = vld [vmem:[%s9 + $0xc0] sm:$0xff]
  %v9534 = vld [vmem:[%s9 + $0xc8] sm:$0xff]
  %v9535 = vld [vmem:[%s9 + $0xd0] sm:$0xff]
  %v9536 = vld [vmem:[%s9 + $0xd8] sm:$0xff]
  %v9537 = vld [vmem:[%s9 + $0xe0] sm:$0xff]
  %v9538 = vld [vmem:[%s9 + $0xe8] sm:$0xff]
  %v9539 = vld [vmem:[%s9 + $0xf0] sm:$0xff]
  %v9540 = vld [vmem:[%s9 + $0xf8] sm:$0xff]
  %v9541 = vld [vmem:[%s9 + $0x100] sm:$0xff]
  %v9542 = vld [vmem:[%s9 + $0x108] sm:$0xff]
  %v9543 = vld [vmem:[%s9 + $0x110] sm:$0xff]
  %v9544 = vld [vmem:[%s9 + $0x118] sm:$0xff]
  %v9545 = vld [vmem:[%s9 + $0x120] sm:$0xff]
  %v9546 = vld [vmem:[%s9 + $0x128] sm:$0xff]
  %v9547 = vld [vmem:[%s9 + $0x130] sm:$0xff]
  %v9548 = vld [vmem:[%s9 + $0x138] sm:$0xff]
  %v9549 = vld [vmem:[%s9 + $0x140] sm:$0xff]
  %v9550 = vld [vmem:[%s9 + $0x148] sm:$0xff]
  %v9551 = vld [vmem:[%s9 + $0x150] sm:$0xff]
  %v9552 = vld [vmem:[%s9 + $0x158] sm:$0xff]
  %v9553 = vld [vmem:[%s9 + $0x160] sm:$0xff]
  %v9554 = vld [vmem:[%s9 + $0x168] sm:$0xff]
  %v9555 = vld [vmem:[%s9 + $0x170] sm:$0xff]
  %v9556 = vld [vmem:[%s9 + $0x178] sm:$0xff]
  %v9557 = vld [vmem:[%s9 + $0x180] sm:$0xff]
  %v9558 = vld [vmem:[%s9 + $0x188] sm:$0xff]
  %v9559 = vld [vmem:[%s9 + $0x190] sm:$0xff]
  %v9560 = vld [vmem:[%s9 + $0x198] sm:$0xff]
  %v9561 = vld [vmem:[%s9 + $0x1a0] sm:$0xff]
  %v9562 = vld [vmem:[%s9 + $0x1a8] sm:$0xff]
  %v9563 = vld [vmem:[%s9 + $0x1b0] sm:$0xff]
  %v9564 = vld [vmem:[%s9 + $0x1b8] sm:$0xff]
  %v9565 = vld [vmem:[%s9 + $0x1c0] sm:$0xff]
  %v9566 = vld [vmem:[%s9 + $0x1c8] sm:$0xff]
  %v9567 = vld [vmem:[%s9 + $0x1d0] sm:$0xff]
  %v9568 = vld [vmem:[%s9 + $0x1d8] sm:$0xff]
  %v9569 = vld [vmem:[%s9 + $0x1e0] sm:$0xff]
  %v9570 = vld [vmem:[%s9 + $0x1e8] sm:$0xff]
  %v9571 = vld [vmem:[%s9 + $0x1f0] sm:$0xff]
  %v9572 = vld [vmem:[%s9 + $0x1f8] sm:$0xff]
  %v9573 = vld [vmem:[%s9 + $0x200] sm:$0xff]
  %v9574 = vld [vmem:[%s9 + $0x208] sm:$0xff]
  %v9575 = vld [vmem:[%s9 + $0x210] sm:$0xff]
  %v9576 = vld [vmem:[%s9 + $0x218] sm:$0xff]
  %v9577 = vld [vmem:[%s9 + $0x220] sm:$0xff]
  %v9578 = vld [vmem:[%s9 + $0x228] sm:$0xff]
  %v9579 = vld [vmem:[%s9 + $0x230] sm:$0xff]
  %v9580 = vld [vmem:[%s9 + $0x238] sm:$0xff]
  %v9581 = vld [vmem:[%s9 + $0x240] sm:$0xff]
  %v9582 = vld [vmem:[%s9 + $0x248] sm:$0xff]
  %v9583 = vld [vmem:[%s9 + $0x250] sm:$0xff]
  %v9584 = vld [vmem:[%s9 + $0x258] sm:$0xff]
  %v9585 = vld [vmem:[%s9 + $0x260] sm:$0xff]
  %v9586 = vld [vmem:[%s9 + $0x268] sm:$0xff]
  %v9587 = vld [vmem:[%s9 + $0x270] sm:$0xff]
  %v9588 = vld [vmem:[%s9 + $0x278] sm:$0xff]
  %v9589 = vld [vmem:[%s9 + $0x280] sm:$0xff]
  %v9590 = vld [vmem:[%s9 + $0x288] sm:$0xff]
  %v9591 = vld [vmem:[%s9 + $0x290] sm:$0xff]
  %v9592 = vld [vmem:[%s9 + $0x298] sm:$0xff]
  %v9593 = vld [vmem:[%s9 + $0x2a0] sm:$0xff]
  %v9594 = vld [vmem:[%s9 + $0x2a8] sm:$0xff]
  %v9595 = vld [vmem:[%s9 + $0x2b0] sm:$0xff]
  %v9596 = vld [vmem:[%s9 + $0x2b8] sm:$0xff]
  %v9597 = vld [vmem:[%s9 + $0x2c0] sm:$0xff]
  %v9598 = vld [vmem:[%s9 + $0x2c8] sm:$0xff]
  %v9599 = vld [vmem:[%s9 + $0x2d0] sm:$0xff]
  %v9600 = vld [vmem:[%s9 + $0x2d8] sm:$0xff]
  %v9601 = vld [vmem:[%s9 + $0x2e0] sm:$0xff]
  %v9602 = vld [vmem:[%s9 + $0x2e8] sm:$0xff]
  %v9603 = vld [vmem:[%s9 + $0x2f0] sm:$0xff]
  %v9604 = vld [vmem:[%s9 + $0x2f8] sm:$0xff]
  %v9605 = vld [vmem:[%s9 + $0x300] sm:$0xff]
  %v9606 = vld [vmem:[%s9 + $0x308] sm:$0xff]
  %v9607 = vld [vmem:[%s9 + $0x310] sm:$0xff]
  %v9608 = vld [vmem:[%s9 + $0x318] sm:$0xff]
  %v9609 = vld [vmem:[%s9 + $0x320] sm:$0xff]
  %v9610 = vld [vmem:[%s9 + $0x328] sm:$0xff]
  %v9611 = vld [vmem:[%s9 + $0x330] sm:$0xff]
  %v9612 = vld [vmem:[%s9 + $0x338] sm:$0xff]
  %v9613 = vld [vmem:[%s9 + $0x340] sm:$0xff]
  %v9614 = vld [vmem:[%s9 + $0x348] sm:$0xff]
  %v9615 = vld [vmem:[%s9 + $0x350] sm:$0xff]
  %v9616 = vld [vmem:[%s9 + $0x358] sm:$0xff]
  %v9617 = vld [vmem:[%s9 + $0x360] sm:$0xff]
  %v9618 = vld [vmem:[%s9 + $0x368] sm:$0xff]
  %v9619 = vld [vmem:[%s9 + $0x370] sm:$0xff]
  %v9620 = vld [vmem:[%s9 + $0x378] sm:$0xff]
  %v9621 = vld [vmem:[%s9 + $0x380] sm:$0xff]
  %v9622 = vld [vmem:[%s9 + $0x388] sm:$0xff]
  %v9623 = vld [vmem:[%s9 + $0x390] sm:$0xff]
  %v9624 = vld [vmem:[%s9 + $0x398] sm:$0xff]
  %v9625 = vld [vmem:[%s9 + $0x3a0] sm:$0xff]
  %v9626 = vld [vmem:[%s9 + $0x3a8] sm:$0xff]
  %v9627 = vld [vmem:[%s9 + $0x3b0] sm:$0xff]
  %v9628 = vld [vmem:[%s9 + $0x3b8] sm:$0xff]
  %v9629 = vld [vmem:[%s9 + $0x3c0] sm:$0xff]
  %v9630 = vld [vmem:[%s9 + $0x3c8] sm:$0xff]
  %v9631 = vld [vmem:[%s9 + $0x3d0] sm:$0xff]
  %v9632 = vld [vmem:[%s9 + $0x3d8] sm:$0xff]
  %v9633 = vld [vmem:[%s9 + $0x3e0] sm:$0xff]
  %v9634 = vld [vmem:[%s9 + $0x3e8] sm:$0xff]
  %v9635 = vld [vmem:[%s9 + $0x3f0] sm:$0xff]
  %v9636 = vld [vmem:[%s9 + $0x3f8] sm:$0xff]
  %v9637 = vld [vmem:[%s10] sm:$0x3]
  %v9639 = vlaneseq
  %v9640 = vshrl.u32 %v9639, 7
  %v9641 = vsub.s32 0, %v9640
  %v9642 = vrot.slane %v9637, %v9641
  %v9643 = vlaneseq
  %v9644 = vshrl.u32 %v9643, 7
  %v9645 = vsub.s32 1, %v9644
  %v9646 = vrot.slane %v9637, %v9645
  %v9777 = vunpack.c.l.b16 %v9509
  %v9778 = vunpack.c.h.b16 %v9509
  %v9779 = vunpack.c.l.b16 %v9510
  %v9780 = vunpack.c.h.b16 %v9510
  %v9781 = vunpack.c.l.b16 %v9511
  %v9782 = vunpack.c.h.b16 %v9511
  %v9783 = vunpack.c.l.b16 %v9512
  %v9784 = vunpack.c.h.b16 %v9512
  %v9785 = vunpack.c.l.b16 %v9513
  %v9786 = vunpack.c.h.b16 %v9513
  %v9787 = vunpack.c.l.b16 %v9514
  %v9788 = vunpack.c.h.b16 %v9514
  %v9789 = vunpack.c.l.b16 %v9515
  %v9790 = vunpack.c.h.b16 %v9515
  %v9791 = vunpack.c.l.b16 %v9516
  %v9792 = vunpack.c.h.b16 %v9516
  %v9793 = vunpack.c.l.b16 %v9517
  %v9794 = vunpack.c.h.b16 %v9517
  %v9795 = vunpack.c.l.b16 %v9518
  %v9796 = vunpack.c.h.b16 %v9518
  %v9797 = vunpack.c.l.b16 %v9519
  %v9798 = vunpack.c.h.b16 %v9519
  %v9799 = vunpack.c.l.b16 %v9520
  %v9800 = vunpack.c.h.b16 %v9520
  %v9801 = vunpack.c.l.b16 %v9521
  %v9802 = vunpack.c.h.b16 %v9521
  %v9803 = vunpack.c.l.b16 %v9522
  %v9804 = vunpack.c.h.b16 %v9522
  %v9805 = vunpack.c.l.b16 %v9523
  %v9806 = vunpack.c.h.b16 %v9523
  %v9807 = vunpack.c.l.b16 %v9524
  %v9808 = vunpack.c.h.b16 %v9524
  %v9809 = vunpack.c.l.b16 %v9525
  %v9810 = vunpack.c.h.b16 %v9525
  %v9811 = vunpack.c.l.b16 %v9526
  %v9812 = vunpack.c.h.b16 %v9526
  %v9813 = vunpack.c.l.b16 %v9527
  %v9814 = vunpack.c.h.b16 %v9527
  %v9815 = vunpack.c.l.b16 %v9528
  %v9816 = vunpack.c.h.b16 %v9528
  %v9817 = vunpack.c.l.b16 %v9529
  %v9818 = vunpack.c.h.b16 %v9529
  %v9819 = vunpack.c.l.b16 %v9530
  %v9820 = vunpack.c.h.b16 %v9530
  %v9821 = vunpack.c.l.b16 %v9531
  %v9822 = vunpack.c.h.b16 %v9531
  %v9823 = vunpack.c.l.b16 %v9532
  %v9824 = vunpack.c.h.b16 %v9532
  %v9825 = vunpack.c.l.b16 %v9533
  %v9826 = vunpack.c.h.b16 %v9533
  %v9827 = vunpack.c.l.b16 %v9534
  %v9828 = vunpack.c.h.b16 %v9534
  %v9829 = vunpack.c.l.b16 %v9535
  %v9830 = vunpack.c.h.b16 %v9535
  %v9831 = vunpack.c.l.b16 %v9536
  %v9832 = vunpack.c.h.b16 %v9536
  %v9833 = vunpack.c.l.b16 %v9537
  %v9834 = vunpack.c.h.b16 %v9537
  %v9835 = vunpack.c.l.b16 %v9538
  %v9836 = vunpack.c.h.b16 %v9538
  %v9837 = vunpack.c.l.b16 %v9539
  %v9838 = vunpack.c.h.b16 %v9539
  %v9839 = vunpack.c.l.b16 %v9540
  %v9840 = vunpack.c.h.b16 %v9540
  %v9841 = vunpack.c.l.b16 %v9541
  %v9842 = vunpack.c.h.b16 %v9541
  %v9843 = vunpack.c.l.b16 %v9542
  %v9844 = vunpack.c.h.b16 %v9542
  %v9845 = vunpack.c.l.b16 %v9543
  %v9846 = vunpack.c.h.b16 %v9543
  %v9847 = vunpack.c.l.b16 %v9544
  %v9848 = vunpack.c.h.b16 %v9544
  %v9849 = vunpack.c.l.b16 %v9545
  %v9850 = vunpack.c.h.b16 %v9545
  %v9851 = vunpack.c.l.b16 %v9546
  %v9852 = vunpack.c.h.b16 %v9546
  %v9853 = vunpack.c.l.b16 %v9547
  %v9854 = vunpack.c.h.b16 %v9547
  %v9855 = vunpack.c.l.b16 %v9548
  %v9856 = vunpack.c.h.b16 %v9548
  %v9857 = vunpack.c.l.b16 %v9549
  %v9858 = vunpack.c.h.b16 %v9549
  %v9859 = vunpack.c.l.b16 %v9550
  %v9860 = vunpack.c.h.b16 %v9550
  %v9861 = vunpack.c.l.b16 %v9551
  %v9862 = vunpack.c.h.b16 %v9551
  %v9863 = vunpack.c.l.b16 %v9552
  %v9864 = vunpack.c.h.b16 %v9552
  %v9865 = vunpack.c.l.b16 %v9553
  %v9866 = vunpack.c.h.b16 %v9553
  %v9867 = vunpack.c.l.b16 %v9554
  %v9868 = vunpack.c.h.b16 %v9554
  %v9869 = vunpack.c.l.b16 %v9555
  %v9870 = vunpack.c.h.b16 %v9555
  %v9871 = vunpack.c.l.b16 %v9556
  %v9872 = vunpack.c.h.b16 %v9556
  %v9873 = vunpack.c.l.b16 %v9557
  %v9874 = vunpack.c.h.b16 %v9557
  %v9875 = vunpack.c.l.b16 %v9558
  %v9876 = vunpack.c.h.b16 %v9558
  %v9877 = vunpack.c.l.b16 %v9559
  %v9878 = vunpack.c.h.b16 %v9559
  %v9879 = vunpack.c.l.b16 %v9560
  %v9880 = vunpack.c.h.b16 %v9560
  %v9881 = vunpack.c.l.b16 %v9561
  %v9882 = vunpack.c.h.b16 %v9561
  %v9883 = vunpack.c.l.b16 %v9562
  %v9884 = vunpack.c.h.b16 %v9562
  %v9885 = vunpack.c.l.b16 %v9563
  %v9886 = vunpack.c.h.b16 %v9563
  %v9887 = vunpack.c.l.b16 %v9564
  %v9888 = vunpack.c.h.b16 %v9564
  %v9889 = vunpack.c.l.b16 %v9565
  %v9890 = vunpack.c.h.b16 %v9565
  %v9891 = vunpack.c.l.b16 %v9566
  %v9892 = vunpack.c.h.b16 %v9566
  %v9893 = vunpack.c.l.b16 %v9567
  %v9894 = vunpack.c.h.b16 %v9567
  %v9895 = vunpack.c.l.b16 %v9568
  %v9896 = vunpack.c.h.b16 %v9568
  %v9897 = vunpack.c.l.b16 %v9569
  %v9898 = vunpack.c.h.b16 %v9569
  %v9899 = vunpack.c.l.b16 %v9570
  %v9900 = vunpack.c.h.b16 %v9570
  %v9901 = vunpack.c.l.b16 %v9571
  %v9902 = vunpack.c.h.b16 %v9571
  %v9903 = vunpack.c.l.b16 %v9572
  %v9904 = vunpack.c.h.b16 %v9572
  %v9905 = vunpack.c.l.b16 %v9573
  %v9906 = vunpack.c.h.b16 %v9573
  %v9907 = vunpack.c.l.b16 %v9574
  %v9908 = vunpack.c.h.b16 %v9574
  %v9909 = vunpack.c.l.b16 %v9575
  %v9910 = vunpack.c.h.b16 %v9575
  %v9911 = vunpack.c.l.b16 %v9576
  %v9912 = vunpack.c.h.b16 %v9576
  %v9913 = vunpack.c.l.b16 %v9577
  %v9914 = vunpack.c.h.b16 %v9577
  %v9915 = vunpack.c.l.b16 %v9578
  %v9916 = vunpack.c.h.b16 %v9578
  %v9917 = vunpack.c.l.b16 %v9579
  %v9918 = vunpack.c.h.b16 %v9579
  %v9919 = vunpack.c.l.b16 %v9580
  %v9920 = vunpack.c.h.b16 %v9580
  %v9921 = vunpack.c.l.b16 %v9581
  %v9922 = vunpack.c.h.b16 %v9581
  %v9923 = vunpack.c.l.b16 %v9582
  %v9924 = vunpack.c.h.b16 %v9582
  %v9925 = vunpack.c.l.b16 %v9583
  %v9926 = vunpack.c.h.b16 %v9583
  %v9927 = vunpack.c.l.b16 %v9584
  %v9928 = vunpack.c.h.b16 %v9584
  %v9929 = vunpack.c.l.b16 %v9585
  %v9930 = vunpack.c.h.b16 %v9585
  %v9931 = vunpack.c.l.b16 %v9586
  %v9932 = vunpack.c.h.b16 %v9586
  %v9933 = vunpack.c.l.b16 %v9587
  %v9934 = vunpack.c.h.b16 %v9587
  %v9935 = vunpack.c.l.b16 %v9588
  %v9936 = vunpack.c.h.b16 %v9588
  %v9937 = vunpack.c.l.b16 %v9589
  %v9938 = vunpack.c.h.b16 %v9589
  %v9939 = vunpack.c.l.b16 %v9590
  %v9940 = vunpack.c.h.b16 %v9590
  %v9941 = vunpack.c.l.b16 %v9591
  %v9942 = vunpack.c.h.b16 %v9591
  %v9943 = vunpack.c.l.b16 %v9592
  %v9944 = vunpack.c.h.b16 %v9592
  %v9945 = vunpack.c.l.b16 %v9593
  %v9946 = vunpack.c.h.b16 %v9593
  %v9947 = vunpack.c.l.b16 %v9594
  %v9948 = vunpack.c.h.b16 %v9594
  %v9949 = vunpack.c.l.b16 %v9595
  %v9950 = vunpack.c.h.b16 %v9595
  %v9951 = vunpack.c.l.b16 %v9596
  %v9952 = vunpack.c.h.b16 %v9596
  %v9953 = vunpack.c.l.b16 %v9597
  %v9954 = vunpack.c.h.b16 %v9597
  %v9955 = vunpack.c.l.b16 %v9598
  %v9956 = vunpack.c.h.b16 %v9598
  %v9957 = vunpack.c.l.b16 %v9599
  %v9958 = vunpack.c.h.b16 %v9599
  %v9959 = vunpack.c.l.b16 %v9600
  %v9960 = vunpack.c.h.b16 %v9600
  %v9961 = vunpack.c.l.b16 %v9601
  %v9962 = vunpack.c.h.b16 %v9601
  %v9963 = vunpack.c.l.b16 %v9602
  %v9964 = vunpack.c.h.b16 %v9602
  %v9965 = vunpack.c.l.b16 %v9603
  %v9966 = vunpack.c.h.b16 %v9603
  %v9967 = vunpack.c.l.b16 %v9604
  %v9968 = vunpack.c.h.b16 %v9604
  %v9969 = vunpack.c.l.b16 %v9605
  %v9970 = vunpack.c.h.b16 %v9605
  %v9971 = vunpack.c.l.b16 %v9606
  %v9972 = vunpack.c.h.b16 %v9606
  %v9973 = vunpack.c.l.b16 %v9607
  %v9974 = vunpack.c.h.b16 %v9607
  %v9975 = vunpack.c.l.b16 %v9608
  %v9976 = vunpack.c.h.b16 %v9608
  %v9977 = vunpack.c.l.b16 %v9609
  %v9978 = vunpack.c.h.b16 %v9609
  %v9979 = vunpack.c.l.b16 %v9610
  %v9980 = vunpack.c.h.b16 %v9610
  %v9981 = vunpack.c.l.b16 %v9611
  %v9982 = vunpack.c.h.b16 %v9611
  %v9983 = vunpack.c.l.b16 %v9612
  %v9984 = vunpack.c.h.b16 %v9612
  %v9985 = vunpack.c.l.b16 %v9613
  %v9986 = vunpack.c.h.b16 %v9613
  %v9987 = vunpack.c.l.b16 %v9614
  %v9988 = vunpack.c.h.b16 %v9614
  %v9989 = vunpack.c.l.b16 %v9615
  %v9990 = vunpack.c.h.b16 %v9615
  %v9991 = vunpack.c.l.b16 %v9616
  %v9992 = vunpack.c.h.b16 %v9616
  %v9993 = vunpack.c.l.b16 %v9617
  %v9994 = vunpack.c.h.b16 %v9617
  %v9995 = vunpack.c.l.b16 %v9618
  %v9996 = vunpack.c.h.b16 %v9618
  %v9997 = vunpack.c.l.b16 %v9619
  %v9998 = vunpack.c.h.b16 %v9619
  %v9999 = vunpack.c.l.b16 %v9620
  %v10000 = vunpack.c.h.b16 %v9620
  %v10001 = vunpack.c.l.b16 %v9621
  %v10002 = vunpack.c.h.b16 %v9621
  %v10003 = vunpack.c.l.b16 %v9622
  %v10004 = vunpack.c.h.b16 %v9622
  %v10005 = vunpack.c.l.b16 %v9623
  %v10006 = vunpack.c.h.b16 %v9623
  %v10007 = vunpack.c.l.b16 %v9624
  %v10008 = vunpack.c.h.b16 %v9624
  %v10009 = vunpack.c.l.b16 %v9625
  %v10010 = vunpack.c.h.b16 %v9625
  %v10011 = vunpack.c.l.b16 %v9626
  %v10012 = vunpack.c.h.b16 %v9626
  %v10013 = vunpack.c.l.b16 %v9627
  %v10014 = vunpack.c.h.b16 %v9627
  %v10015 = vunpack.c.l.b16 %v9628
  %v10016 = vunpack.c.h.b16 %v9628
  %v10017 = vunpack.c.l.b16 %v9629
  %v10018 = vunpack.c.h.b16 %v9629
  %v10019 = vunpack.c.l.b16 %v9630
  %v10020 = vunpack.c.h.b16 %v9630
  %v10021 = vunpack.c.l.b16 %v9631
  %v10022 = vunpack.c.h.b16 %v9631
  %v10023 = vunpack.c.l.b16 %v9632
  %v10024 = vunpack.c.h.b16 %v9632
  %v10025 = vunpack.c.l.b16 %v9633
  %v10026 = vunpack.c.h.b16 %v9633
  %v10027 = vunpack.c.l.b16 %v9634
  %v10028 = vunpack.c.h.b16 %v9634
  %v10029 = vunpack.c.l.b16 %v9635
  %v10030 = vunpack.c.h.b16 %v9635
  %v10031 = vunpack.c.l.b16 %v9636
  %v10032 = vunpack.c.h.b16 %v9636
  %v10033 = vpack.c.b16 %v9779, %v9777
  %v10034 = vpack.c.b16 %v9780, %v9778
  %v10035 = vpack.c.b16 %v9783, %v9781
  %v10036 = vpack.c.b16 %v9784, %v9782
  %v10037 = vpack.c.b16 %v9787, %v9785
  %v10038 = vpack.c.b16 %v9788, %v9786
  %v10039 = vpack.c.b16 %v9791, %v9789
  %v10040 = vpack.c.b16 %v9792, %v9790
  %v10041 = vpack.c.b16 %v9795, %v9793
  %v10042 = vpack.c.b16 %v9796, %v9794
  %v10043 = vpack.c.b16 %v9799, %v9797
  %v10044 = vpack.c.b16 %v9800, %v9798
  %v10045 = vpack.c.b16 %v9803, %v9801
  %v10046 = vpack.c.b16 %v9804, %v9802
  %v10047 = vpack.c.b16 %v9807, %v9805
  %v10048 = vpack.c.b16 %v9808, %v9806
  %v10049 = vpack.c.b16 %v9811, %v9809
  %v10050 = vpack.c.b16 %v9812, %v9810
  %v10051 = vpack.c.b16 %v9815, %v9813
  %v10052 = vpack.c.b16 %v9816, %v9814
  %v10053 = vpack.c.b16 %v9819, %v9817
  %v10054 = vpack.c.b16 %v9820, %v9818
  %v10055 = vpack.c.b16 %v9823, %v9821
  %v10056 = vpack.c.b16 %v9824, %v9822
  %v10057 = vpack.c.b16 %v9827, %v9825
  %v10058 = vpack.c.b16 %v9828, %v9826
  %v10059 = vpack.c.b16 %v9831, %v9829
  %v10060 = vpack.c.b16 %v9832, %v9830
  %v10061 = vpack.c.b16 %v9835, %v9833
  %v10062 = vpack.c.b16 %v9836, %v9834
  %v10063 = vpack.c.b16 %v9839, %v9837
  %v10064 = vpack.c.b16 %v9840, %v9838
  %v10065 = vpack.c.b16 %v9843, %v9841
  %v10066 = vpack.c.b16 %v9844, %v9842
  %v10067 = vpack.c.b16 %v9847, %v9845
  %v10068 = vpack.c.b16 %v9848, %v9846
  %v10069 = vpack.c.b16 %v9851, %v9849
  %v10070 = vpack.c.b16 %v9852, %v9850
  %v10071 = vpack.c.b16 %v9855, %v9853
  %v10072 = vpack.c.b16 %v9856, %v9854
  %v10073 = vpack.c.b16 %v9859, %v9857
  %v10074 = vpack.c.b16 %v9860, %v9858
  %v10075 = vpack.c.b16 %v9863, %v9861
  %v10076 = vpack.c.b16 %v9864, %v9862
  %v10077 = vpack.c.b16 %v9867, %v9865
  %v10078 = vpack.c.b16 %v9868, %v9866
  %v10079 = vpack.c.b16 %v9871, %v9869
  %v10080 = vpack.c.b16 %v9872, %v9870
  %v10081 = vpack.c.b16 %v9875, %v9873
  %v10082 = vpack.c.b16 %v9876, %v9874
  %v10083 = vpack.c.b16 %v9879, %v9877
  %v10084 = vpack.c.b16 %v9880, %v9878
  %v10085 = vpack.c.b16 %v9883, %v9881
  %v10086 = vpack.c.b16 %v9884, %v9882
  %v10087 = vpack.c.b16 %v9887, %v9885
  %v10088 = vpack.c.b16 %v9888, %v9886
  %v10089 = vpack.c.b16 %v9891, %v9889
  %v10090 = vpack.c.b16 %v9892, %v9890
  %v10091 = vpack.c.b16 %v9895, %v9893
  %v10092 = vpack.c.b16 %v9896, %v9894
  %v10093 = vpack.c.b16 %v9899, %v9897
  %v10094 = vpack.c.b16 %v9900, %v9898
  %v10095 = vpack.c.b16 %v9903, %v9901
  %v10096 = vpack.c.b16 %v9904, %v9902
  %v10097 = vpack.c.b16 %v9907, %v9905
  %v10098 = vpack.c.b16 %v9908, %v9906
  %v10099 = vpack.c.b16 %v9911, %v9909
  %v10100 = vpack.c.b16 %v9912, %v9910
  %v10101 = vpack.c.b16 %v9915, %v9913
  %v10102 = vpack.c.b16 %v9916, %v9914
  %v10103 = vpack.c.b16 %v9919, %v9917
  %v10104 = vpack.c.b16 %v9920, %v9918
  %v10105 = vpack.c.b16 %v9923, %v9921
  %v10106 = vpack.c.b16 %v9924, %v9922
  %v10107 = vpack.c.b16 %v9927, %v9925
  %v10108 = vpack.c.b16 %v9928, %v9926
  %v10109 = vpack.c.b16 %v9931, %v9929
  %v10110 = vpack.c.b16 %v9932, %v9930
  %v10111 = vpack.c.b16 %v9935, %v9933
  %v10112 = vpack.c.b16 %v9936, %v9934
  %v10113 = vpack.c.b16 %v9939, %v9937
  %v10114 = vpack.c.b16 %v9940, %v9938
  %v10115 = vpack.c.b16 %v9943, %v9941
  %v10116 = vpack.c.b16 %v9944, %v9942
  %v10117 = vpack.c.b16 %v9947, %v9945
  %v10118 = vpack.c.b16 %v9948, %v9946
  %v10119 = vpack.c.b16 %v9951, %v9949
  %v10120 = vpack.c.b16 %v9952, %v9950
  %v10121 = vpack.c.b16 %v9955, %v9953
  %v10122 = vpack.c.b16 %v9956, %v9954
  %v10123 = vpack.c.b16 %v9959, %v9957
  %v10124 = vpack.c.b16 %v9960, %v9958
  %v10125 = vpack.c.b16 %v9963, %v9961
  %v10126 = vpack.c.b16 %v9964, %v9962
  %v10127 = vpack.c.b16 %v9967, %v9965
  %v10128 = vpack.c.b16 %v9968, %v9966
  %v10129 = vpack.c.b16 %v9971, %v9969
  %v10130 = vpack.c.b16 %v9972, %v9970
  %v10131 = vpack.c.b16 %v9975, %v9973
  %v10132 = vpack.c.b16 %v9976, %v9974
  %v10133 = vpack.c.b16 %v9979, %v9977
  %v10134 = vpack.c.b16 %v9980, %v9978
  %v10135 = vpack.c.b16 %v9983, %v9981
  %v10136 = vpack.c.b16 %v9984, %v9982
  %v10137 = vpack.c.b16 %v9987, %v9985
  %v10138 = vpack.c.b16 %v9988, %v9986
  %v10139 = vpack.c.b16 %v9991, %v9989
  %v10140 = vpack.c.b16 %v9992, %v9990
  %v10141 = vpack.c.b16 %v9995, %v9993
  %v10142 = vpack.c.b16 %v9996, %v9994
  %v10143 = vpack.c.b16 %v9999, %v9997
  %v10144 = vpack.c.b16 %v10000, %v9998
  %v10145 = vpack.c.b16 %v10003, %v10001
  %v10146 = vpack.c.b16 %v10004, %v10002
  %v10147 = vpack.c.b16 %v10007, %v10005
  %v10148 = vpack.c.b16 %v10008, %v10006
  %v10149 = vpack.c.b16 %v10011, %v10009
  %v10150 = vpack.c.b16 %v10012, %v10010
  %v10151 = vpack.c.b16 %v10015, %v10013
  %v10152 = vpack.c.b16 %v10016, %v10014
  %v10153 = vpack.c.b16 %v10019, %v10017
  %v10154 = vpack.c.b16 %v10020, %v10018
  %v10155 = vpack.c.b16 %v10023, %v10021
  %v10156 = vpack.c.b16 %v10024, %v10022
  %v10157 = vpack.c.b16 %v10027, %v10025
  %v10158 = vpack.c.b16 %v10028, %v10026
  %v10159 = vpack.c.b16 %v10031, %v10029
  %v10160 = vpack.c.b16 %v10032, %v10030
  %10289 = vmatprep.subr.bf16.mxu0 %v10034
  %10290 = vmatpush1.bf16.msra.mxu0 %v10033
  %10291 = vmatprep.subr.bf16.mxu0 %v10036
  %10292 = vmatpush1.bf16.msra.mxu0 %v10035
  %10293 = vmatprep.subr.bf16.mxu0 %v10038
  %10294 = vmatpush1.bf16.msra.mxu0 %v10037
  %10295 = vmatprep.subr.bf16.mxu0 %v10040
  %10296 = vmatpush1.bf16.msra.mxu0 %v10039
  %10297 = vmatprep.subr.bf16.mxu0 %v10042
  %10298 = vmatpush1.bf16.msra.mxu0 %v10041
  %10299 = vmatprep.subr.bf16.mxu0 %v10044
  %10300 = vmatpush1.bf16.msra.mxu0 %v10043
  %10301 = vmatprep.subr.bf16.mxu0 %v10046
  %10302 = vmatpush1.bf16.msra.mxu0 %v10045
  %10303 = vmatprep.subr.bf16.mxu0 %v10048
  %10304 = vmatpush1.bf16.msra.mxu0 %v10047
  %10305 = vmatprep.subr.bf16.mxu0 %v10050
  %10306 = vmatpush1.bf16.msra.mxu0 %v10049
  %10307 = vmatprep.subr.bf16.mxu0 %v10052
  %10308 = vmatpush1.bf16.msra.mxu0 %v10051
  %10309 = vmatprep.subr.bf16.mxu0 %v10054
  %10310 = vmatpush1.bf16.msra.mxu0 %v10053
  %10311 = vmatprep.subr.bf16.mxu0 %v10056
  %10312 = vmatpush1.bf16.msra.mxu0 %v10055
  %10313 = vmatprep.subr.bf16.mxu0 %v10058
  %10314 = vmatpush1.bf16.msra.mxu0 %v10057
  %10315 = vmatprep.subr.bf16.mxu0 %v10060
  %10316 = vmatpush1.bf16.msra.mxu0 %v10059
  %10317 = vmatprep.subr.bf16.mxu0 %v10062
  %10318 = vmatpush1.bf16.msra.mxu0 %v10061
  %10319 = vmatprep.subr.bf16.mxu0 %v10064
  %10320 = vmatpush1.bf16.msra.mxu0 %v10063
  %10321 = vmatprep.mubr.bf16.mxu0 %v9382
  %10322 = vmatmul.mubr.bf16.gmra.mrb[0].mxu0 %v9381
  %v10323 = vpop.f32.mrb[0].mxu0
  %v10324 = vadd.f32 %v9642, %v10323
  %v10325 = vpop.f32.mrb[0].mxu0
  %v10326 = vadd.f32 %v9646, %v10325
  %v10327 = vpop.f32.mrb[0].mxu0
  %v10328 = vadd.f32 %v9642, %v10327
  %v10329 = vpop.f32.mrb[0].mxu0
  %v10330 = vadd.f32 %v9646, %v10329
  %10331 = vmatprep.mubr.bf16.mxu0 %v9390
  %10332 = vmatmul.mubr.bf16.gmra.mrb[0].mxu0 %v9389
  %v10333 = vpop.f32.mrb[0].mxu0
  %v10334 = vadd.f32 %v9642, %v10333
  %v10335 = vpop.f32.mrb[0].mxu0
  %v10336 = vadd.f32 %v9646, %v10335
  %v10337 = vpop.f32.mrb[0].mxu0
  %v10338 = vadd.f32 %v9642, %v10337
  %v10339 = vpop.f32.mrb[0].mxu0
  %v10340 = vadd.f32 %v9646, %v10339
  %10341 = vmatprep.mubr.bf16.mxu0 %v9398
  %10342 = vmatmul.mubr.bf16.gmra.mrb[0].mxu0 %v9397
  %v10343 = vpop.f32.mrb[0].mxu0
  %v10344 = vadd.f32 %v9642, %v10343
  %v10345 = vpop.f32.mrb[0].mxu0
  %v10346 = vadd.f32 %v9646, %v10345
  %v10347 = vpop.f32.mrb[0].mxu0
  %v10348 = vadd.f32 %v9642, %v10347
  %v10349 = vpop.f32.mrb[0].mxu0
  %v10350 = vadd.f32 %v9646, %v10349
  %10351 = vmatprep.mubr.bf16.mxu0 %v9406
  %10352 = vmatmul.mubr.bf16.gmra.mrb[0].mxu0 %v9405
  %v10353 = vpop.f32.mrb[0].mxu0
  %v10354 = vadd.f32 %v9642, %v10353
  %v10355 = vpop.f32.mrb[0].mxu0
  %v10356 = vadd.f32 %v9646, %v10355
  %v10357 = vpop.f32.mrb[0].mxu0
  %v10358 = vadd.f32 %v9642, %v10357
  %v10359 = vpop.f32.mrb[0].mxu0
  %v10360 = vadd.f32 %v9646, %v10359
  %10361 = vmatprep.mubr.bf16.mxu0 %v9414
  %10362 = vmatmul.mubr.bf16.gmra.mrb[0].mxu0 %v9413
  %v10363 = vpop.f32.mrb[0].mxu0
  %v10364 = vadd.f32 %v9642, %v10363
  %v10365 = vpop.f32.mrb[0].mxu0
  %v10366 = vadd.f32 %v9646, %v10365
  %v10367 = vpop.f32.mrb[0].mxu0
  %v10368 = vadd.f32 %v9642, %v10367
  %v10369 = vpop.f32.mrb[0].mxu0
  %v10370 = vadd.f32 %v9646, %v10369
  %10371 = vmatprep.mubr.bf16.mxu0 %v9422
  %10372 = vmatmul.mubr.bf16.gmra.mrb[0].mxu0 %v9421
  %v10373 = vpop.f32.mrb[0].mxu0
  %v10374 = vadd.f32 %v9642, %v10373
  %v10375 = vpop.f32.mrb[0].mxu0
  %v10376 = vadd.f32 %v9646, %v10375
  %v10377 = vpop.f32.mrb[0].mxu0
  %v10378 = vadd.f32 %v9642, %v10377
  %v10379 = vpop.f32.mrb[0].mxu0
  %v10380 = vadd.f32 %v9646, %v10379
  %10381 = vmatprep.mubr.bf16.mxu0 %v9430
  %10382 = vmatmul.mubr.bf16.gmra.mrb[0].mxu0 %v9429
  %v10383 = vpop.f32.mrb[0].mxu0
  %v10384 = vadd.f32 %v9642, %v10383
  %v10385 = vpop.f32.mrb[0].mxu0
  %v10386 = vadd.f32 %v9646, %v10385
  %v10387 = vpop.f32.mrb[0].mxu0
  %v10388 = vadd.f32 %v9642, %v10387
  %v10389 = vpop.f32.mrb[0].mxu0
  %v10390 = vadd.f32 %v9646, %v10389
  %10391 = vmatprep.mubr.bf16.mxu0 %v9438
  %10392 = vmatmul.mubr.bf16.gmra.mrb[0].mxu0 %v9437
  %v10393 = vpop.f32.mrb[0].mxu0
  %v10394 = vadd.f32 %v9642, %v10393
  %v10395 = vpop.f32.mrb[0].mxu0
  %v10396 = vadd.f32 %v9646, %v10395
  %v10397 = vpop.f32.mrb[0].mxu0
  %v10398 = vadd.f32 %v9642, %v10397
  %v10399 = vpop.f32.mrb[0].mxu0
  %v10400 = vadd.f32 %v9646, %v10399
  %10401 = vmatprep.mubr.bf16.mxu0 %v9446
  %10402 = vmatmul.mubr.bf16.gmra.mrb[0].mxu0 %v9445
  %v10403 = vpop.f32.mrb[0].mxu0
  %v10404 = vadd.f32 %v9642, %v10403
  %v10405 = vpop.f32.mrb[0].mxu0
  %v10406 = vadd.f32 %v9646, %v10405
  %v10407 = vpop.f32.mrb[0].mxu0
  %v10408 = vadd.f32 %v9642, %v10407
  %v10409 = vpop.f32.mrb[0].mxu0
  %v10410 = vadd.f32 %v9646, %v10409
  %10411 = vmatprep.mubr.bf16.mxu0 %v9454
  %10412 = vmatmul.mubr.bf16.gmra.mrb[0].mxu0 %v9453
  %v10413 = vpop.f32.mrb[0].mxu0
  %v10414 = vadd.f32 %v9642, %v10413
  %v10415 = vpop.f32.mrb[0].mxu0
  %v10416 = vadd.f32 %v9646, %v10415
  %v10417 = vpop.f32.mrb[0].mxu0
  %v10418 = vadd.f32 %v9642, %v10417
  %v10419 = vpop.f32.mrb[0].mxu0
  %v10420 = vadd.f32 %v9646, %v10419
  %10421 = vmatprep.mubr.bf16.mxu0 %v9462
  %10422 = vmatmul.mubr.bf16.gmra.mrb[0].mxu0 %v9461
  %v10423 = vpop.f32.mrb[0].mxu0
  %v10424 = vadd.f32 %v9642, %v10423
  %v10425 = vpop.f32.mrb[0].mxu0
  %v10426 = vadd.f32 %v9646, %v10425
  %v10427 = vpop.f32.mrb[0].mxu0
  %v10428 = vadd.f32 %v9642, %v10427
  %v10429 = vpop.f32.mrb[0].mxu0
  %v10430 = vadd.f32 %v9646, %v10429
  %10431 = vmatprep.mubr.bf16.mxu0 %v9470
  %10432 = vmatmul.mubr.bf16.gmra.mrb[0].mxu0 %v9469
  %v10433 = vpop.f32.mrb[0].mxu0
  %v10434 = vadd.f32 %v9642, %v10433
  %v10435 = vpop.f32.mrb[0].mxu0
  %v10436 = vadd.f32 %v9646, %v10435
  %v10437 = vpop.f32.mrb[0].mxu0
  %v10438 = vadd.f32 %v9642, %v10437
  %v10439 = vpop.f32.mrb[0].mxu0
  %v10440 = vadd.f32 %v9646, %v10439
  %10441 = vmatprep.mubr.bf16.mxu0 %v9478
  %10442 = vmatmul.mubr.bf16.gmra.mrb[0].mxu0 %v9477
  %v10443 = vpop.f32.mrb[0].mxu0
  %v10444 = vadd.f32 %v9642, %v10443
  %v10445 = vpop.f32.mrb[0].mxu0
  %v10446 = vadd.f32 %v9646, %v10445
  %v10447 = vpop.f32.mrb[0].mxu0
  %v10448 = vadd.f32 %v9642, %v10447
  %v10449 = vpop.f32.mrb[0].mxu0
  %v10450 = vadd.f32 %v9646, %v10449
  %10451 = vmatprep.mubr.bf16.mxu0 %v9486
  %10452 = vmatmul.mubr.bf16.gmra.mrb[0].mxu0 %v9485
  %v10453 = vpop.f32.mrb[0].mxu0
  %v10454 = vadd.f32 %v9642, %v10453
  %v10455 = vpop.f32.mrb[0].mxu0
  %v10456 = vadd.f32 %v9646, %v10455
  %v10457 = vpop.f32.mrb[0].mxu0
  %v10458 = vadd.f32 %v9642, %v10457
  %v10459 = vpop.f32.mrb[0].mxu0
  %v10460 = vadd.f32 %v9646, %v10459
  %10461 = vmatprep.mubr.bf16.mxu0 %v9494
  %10462 = vmatmul.mubr.bf16.gmra.mrb[0].mxu0 %v9493
  %v10463 = vpop.f32.mrb[0].mxu0
  %v10464 = vadd.f32 %v9642, %v10463
  %v10465 = vpop.f32.mrb[0].mxu0
  %v10466 = vadd.f32 %v9646, %v10465
  %v10467 = vpop.f32.mrb[0].mxu0
  %v10468 = vadd.f32 %v9642, %v10467
  %v10469 = vpop.f32.mrb[0].mxu0
  %v10470 = vadd.f32 %v9646, %v10469
  %10471 = vmatprep.mubr.bf16.mxu0 %v9502
  %10472 = vmatmul.mubr.bf16.gmra.mrb[0].mxu0 %v9501
  %v10473 = vpop.f32.mrb[0].mxu0
  %v10474 = vadd.f32 %v9642, %v10473
  %v10475 = vpop.f32.mrb[0].mxu0
  %v10476 = vadd.f32 %v9646, %v10475
  %v10477 = vpop.f32.mrb[0].mxu0
  %v10478 = vadd.f32 %v9642, %v10477
  %v10479 = vpop.f32.mrb[0].mxu0
  %v10480 = vadd.f32 %v9646, %v10479
  %10481 = vdwg.mxu0
  %10482 = vmatprep.subr.bf16.mxu0 %v10066
  %10483 = vmatpush1.bf16.msra.mxu0 %v10065
  %10484 = vmatprep.subr.bf16.mxu0 %v10068
  %10485 = vmatpush1.bf16.msra.mxu0 %v10067
  %10486 = vmatprep.subr.bf16.mxu0 %v10070
  %10487 = vmatpush1.bf16.msra.mxu0 %v10069
  %10488 = vmatprep.subr.bf16.mxu0 %v10072
  %10489 = vmatpush1.bf16.msra.mxu0 %v10071
  %10490 = vmatprep.subr.bf16.mxu0 %v10074
  %10491 = vmatpush1.bf16.msra.mxu0 %v10073
  %10492 = vmatprep.subr.bf16.mxu0 %v10076
  %10493 = vmatpush1.bf16.msra.mxu0 %v10075
  %10494 = vmatprep.subr.bf16.mxu0 %v10078
  %10495 = vmatpush1.bf16.msra.mxu0 %v10077
  %10496 = vmatprep.subr.bf16.mxu0 %v10080
  %10497 = vmatpush1.bf16.msra.mxu0 %v10079
  %10498 = vmatprep.subr.bf16.mxu0 %v10082
  %10499 = vmatpush1.bf16.msra.mxu0 %v10081
  %10500 = vmatprep.subr.bf16.mxu0 %v10084
  %10501 = vmatpush1.bf16.msra.mxu0 %v10083
  %10502 = vmatprep.subr.bf16.mxu0 %v10086
  %10503 = vmatpush1.bf16.msra.mxu0 %v10085
  %10504 = vmatprep.subr.bf16.mxu0 %v10088
  %10505 = vmatpush1.bf16.msra.mxu0 %v10087
  %10506 = vmatprep.subr.bf16.mxu0 %v10090
  %10507 = vmatpush1.bf16.msra.mxu0 %v10089
  %10508 = vmatprep.subr.bf16.mxu0 %v10092
  %10509 = vmatpush1.bf16.msra.mxu0 %v10091
  %10510 = vmatprep.subr.bf16.mxu0 %v10094
  %10511 = vmatpush1.bf16.msra.mxu0 %v10093
  %10512 = vmatprep.subr.bf16.mxu0 %v10096
  %10513 = vmatpush1.bf16.msra.mxu0 %v10095
  %10514 = vmatprep.mubr.bf16.mxu0 %v9384
  %10515 = vmatmul.mubr.bf16.gmra.mrb[0].mxu0 %v9383
  %v10516 = vpop.f32.mrb[0].mxu0
  %v10517 = vadd.f32 %v10324, %v10516
  %v10518 = vpop.f32.mrb[0].mxu0
  %v10519 = vadd.f32 %v10326, %v10518
  %v10520 = vpop.f32.mrb[0].mxu0
  %v10521 = vadd.f32 %v10328, %v10520
  %v10522 = vpop.f32.mrb[0].mxu0
  %v10523 = vadd.f32 %v10330, %v10522
  %10524 = vmatprep.mubr.bf16.mxu0 %v9392
  %10525 = vmatmul.mubr.bf16.gmra.mrb[0].mxu0 %v9391
  %v10526 = vpop.f32.mrb[0].mxu0
  %v10527 = vadd.f32 %v10334, %v10526
  %v10528 = vpop.f32.mrb[0].mxu0
  %v10529 = vadd.f32 %v10336, %v10528
  %v10530 = vpop.f32.mrb[0].mxu0
  %v10531 = vadd.f32 %v10338, %v10530
  %v10532 = vpop.f32.mrb[0].mxu0
  %v10533 = vadd.f32 %v10340, %v10532
  %10534 = vmatprep.mubr.bf16.mxu0 %v9400
  %10535 = vmatmul.mubr.bf16.gmra.mrb[0].mxu0 %v9399
  %v10536 = vpop.f32.mrb[0].mxu0
  %v10537 = vadd.f32 %v10344, %v10536
  %v10538 = vpop.f32.mrb[0].mxu0
  %v10539 = vadd.f32 %v10346, %v10538
  %v10540 = vpop.f32.mrb[0].mxu0
  %v10541 = vadd.f32 %v10348, %v10540
  %v10542 = vpop.f32.mrb[0].mxu0
  %v10543 = vadd.f32 %v10350, %v10542
  %10544 = vmatprep.mubr.bf16.mxu0 %v9408
  %10545 = vmatmul.mubr.bf16.gmra.mrb[0].mxu0 %v9407
  %v10546 = vpop.f32.mrb[0].mxu0
  %v10547 = vadd.f32 %v10354, %v10546
  %v10548 = vpop.f32.mrb[0].mxu0
  %v10549 = vadd.f32 %v10356, %v10548
  %v10550 = vpop.f32.mrb[0].mxu0
  %v10551 = vadd.f32 %v10358, %v10550
  %v10552 = vpop.f32.mrb[0].mxu0
  %v10553 = vadd.f32 %v10360, %v10552
  %10554 = vmatprep.mubr.bf16.mxu0 %v9416
  %10555 = vmatmul.mubr.bf16.gmra.mrb[0].mxu0 %v9415
  %v10556 = vpop.f32.mrb[0].mxu0
  %v10557 = vadd.f32 %v10364, %v10556
  %v10558 = vpop.f32.mrb[0].mxu0
  %v10559 = vadd.f32 %v10366, %v10558
  %v10560 = vpop.f32.mrb[0].mxu0
  %v10561 = vadd.f32 %v10368, %v10560
  %v10562 = vpop.f32.mrb[0].mxu0
  %v10563 = vadd.f32 %v10370, %v10562
  %10564 = vmatprep.mubr.bf16.mxu0 %v9424
  %10565 = vmatmul.mubr.bf16.gmra.mrb[0].mxu0 %v9423
  %v10566 = vpop.f32.mrb[0].mxu0
  %v10567 = vadd.f32 %v10374, %v10566
  %v10568 = vpop.f32.mrb[0].mxu0
  %v10569 = vadd.f32 %v10376, %v10568
  %v10570 = vpop.f32.mrb[0].mxu0
  %v10571 = vadd.f32 %v10378, %v10570
  %v10572 = vpop.f32.mrb[0].mxu0
  %v10573 = vadd.f32 %v10380, %v10572
  %10574 = vmatprep.mubr.bf16.mxu0 %v9432
  %10575 = vmatmul.mubr.bf16.gmra.mrb[0].mxu0 %v9431
  %v10576 = vpop.f32.mrb[0].mxu0
  %v10577 = vadd.f32 %v10384, %v10576
  %v10578 = vpop.f32.mrb[0].mxu0
  %v10579 = vadd.f32 %v10386, %v10578
  %v10580 = vpop.f32.mrb[0].mxu0
  %v10581 = vadd.f32 %v10388, %v10580
  %v10582 = vpop.f32.mrb[0].mxu0
  %v10583 = vadd.f32 %v10390, %v10582
  %10584 = vmatprep.mubr.bf16.mxu0 %v9440
  %10585 = vmatmul.mubr.bf16.gmra.mrb[0].mxu0 %v9439
  %v10586 = vpop.f32.mrb[0].mxu0
  %v10587 = vadd.f32 %v10394, %v10586
  %v10588 = vpop.f32.mrb[0].mxu0
  %v10589 = vadd.f32 %v10396, %v10588
  %v10590 = vpop.f32.mrb[0].mxu0
  %v10591 = vadd.f32 %v10398, %v10590
  %v10592 = vpop.f32.mrb[0].mxu0
  %v10593 = vadd.f32 %v10400, %v10592
  %10594 = vmatprep.mubr.bf16.mxu0 %v9448
  %10595 = vmatmul.mubr.bf16.gmra.mrb[0].mxu0 %v9447
  %v10596 = vpop.f32.mrb[0].mxu0
  %v10597 = vadd.f32 %v10404, %v10596
  %v10598 = vpop.f32.mrb[0].mxu0
  %v10599 = vadd.f32 %v10406, %v10598
  %v10600 = vpop.f32.mrb[0].mxu0
  %v10601 = vadd.f32 %v10408, %v10600
  %v10602 = vpop.f32.mrb[0].mxu0
  %v10603 = vadd.f32 %v10410, %v10602
  %10604 = vmatprep.mubr.bf16.mxu0 %v9456
  %10605 = vmatmul.mubr.bf16.gmra.mrb[0].mxu0 %v9455
  %v10606 = vpop.f32.mrb[0].mxu0
  %v10607 = vadd.f32 %v10414, %v10606
  %v10608 = vpop.f32.mrb[0].mxu0
  %v10609 = vadd.f32 %v10416, %v10608
  %v10610 = vpop.f32.mrb[0].mxu0
  %v10611 = vadd.f32 %v10418, %v10610
  %v10612 = vpop.f32.mrb[0].mxu0
  %v10613 = vadd.f32 %v10420, %v10612
  %10614 = vmatprep.mubr.bf16.mxu0 %v9464
  %10615 = vmatmul.mubr.bf16.gmra.mrb[0].mxu0 %v9463
  %v10616 = vpop.f32.mrb[0].mxu0
  %v10617 = vadd.f32 %v10424, %v10616
  %v10618 = vpop.f32.mrb[0].mxu0
  %v10619 = vadd.f32 %v10426, %v10618
  %v10620 = vpop.f32.mrb[0].mxu0
  %v10621 = vadd.f32 %v10428, %v10620
  %v10622 = vpop.f32.mrb[0].mxu0
  %v10623 = vadd.f32 %v10430, %v10622
  %10624 = vmatprep.mubr.bf16.mxu0 %v9472
  %10625 = vmatmul.mubr.bf16.gmra.mrb[0].mxu0 %v9471
  %v10626 = vpop.f32.mrb[0].mxu0
  %v10627 = vadd.f32 %v10434, %v10626
  %v10628 = vpop.f32.mrb[0].mxu0
  %v10629 = vadd.f32 %v10436, %v10628
  %v10630 = vpop.f32.mrb[0].mxu0
  %v10631 = vadd.f32 %v10438, %v10630
  %v10632 = vpop.f32.mrb[0].mxu0
  %v10633 = vadd.f32 %v10440, %v10632
  %10634 = vmatprep.mubr.bf16.mxu0 %v9480
  %10635 = vmatmul.mubr.bf16.gmra.mrb[0].mxu0 %v9479
  %v10636 = vpop.f32.mrb[0].mxu0
  %v10637 = vadd.f32 %v10444, %v10636
  %v10638 = vpop.f32.mrb[0].mxu0
  %v10639 = vadd.f32 %v10446, %v10638
  %v10640 = vpop.f32.mrb[0].mxu0
  %v10641 = vadd.f32 %v10448, %v10640
  %v10642 = vpop.f32.mrb[0].mxu0
  %v10643 = vadd.f32 %v10450, %v10642
  %10644 = vmatprep.mubr.bf16.mxu0 %v9488
  %10645 = vmatmul.mubr.bf16.gmra.mrb[0].mxu0 %v9487
  %v10646 = vpop.f32.mrb[0].mxu0
  %v10647 = vadd.f32 %v10454, %v10646
  %v10648 = vpop.f32.mrb[0].mxu0
  %v10649 = vadd.f32 %v10456, %v10648
  %v10650 = vpop.f32.mrb[0].mxu0
  %v10651 = vadd.f32 %v10458, %v10650
  %v10652 = vpop.f32.mrb[0].mxu0
  %v10653 = vadd.f32 %v10460, %v10652
  %10654 = vmatprep.mubr.bf16.mxu0 %v9496
  %10655 = vmatmul.mubr.bf16.gmra.mrb[0].mxu0 %v9495
  %v10656 = vpop.f32.mrb[0].mxu0
  %v10657 = vadd.f32 %v10464, %v10656
  %v10658 = vpop.f32.mrb[0].mxu0
  %v10659 = vadd.f32 %v10466, %v10658
  %v10660 = vpop.f32.mrb[0].mxu0
  %v10661 = vadd.f32 %v10468, %v10660
  %v10662 = vpop.f32.mrb[0].mxu0
  %v10663 = vadd.f32 %v10470, %v10662
  %10664 = vmatprep.mubr.bf16.mxu0 %v9504
  %10665 = vmatmul.mubr.bf16.gmra.mrb[0].mxu0 %v9503
  %v10666 = vpop.f32.mrb[0].mxu0
  %v10667 = vadd.f32 %v10474, %v10666
  %v10668 = vpop.f32.mrb[0].mxu0
  %v10669 = vadd.f32 %v10476, %v10668
  %v10670 = vpop.f32.mrb[0].mxu0
  %v10671 = vadd.f32 %v10478, %v10670
  %v10672 = vpop.f32.mrb[0].mxu0
  %v10673 = vadd.f32 %v10480, %v10672
  %10674 = vdwg.mxu0
  %10675 = vmatprep.subr.bf16.mxu0 %v10098
  %10676 = vmatpush1.bf16.msra.mxu0 %v10097
  %10677 = vmatprep.subr.bf16.mxu0 %v10100
  %10678 = vmatpush1.bf16.msra.mxu0 %v10099
  %10679 = vmatprep.subr.bf16.mxu0 %v10102
  %10680 = vmatpush1.bf16.msra.mxu0 %v10101
  %10681 = vmatprep.subr.bf16.mxu0 %v10104
  %10682 = vmatpush1.bf16.msra.mxu0 %v10103
  %10683 = vmatprep.subr.bf16.mxu0 %v10106
  %10684 = vmatpush1.bf16.msra.mxu0 %v10105
  %10685 = vmatprep.subr.bf16.mxu0 %v10108
  %10686 = vmatpush1.bf16.msra.mxu0 %v10107
  %10687 = vmatprep.subr.bf16.mxu0 %v10110
  %10688 = vmatpush1.bf16.msra.mxu0 %v10109
  %10689 = vmatprep.subr.bf16.mxu0 %v10112
  %10690 = vmatpush1.bf16.msra.mxu0 %v10111
  %10691 = vmatprep.subr.bf16.mxu0 %v10114
  %10692 = vmatpush1.bf16.msra.mxu0 %v10113
  %10693 = vmatprep.subr.bf16.mxu0 %v10116
  %10694 = vmatpush1.bf16.msra.mxu0 %v10115
  %10695 = vmatprep.subr.bf16.mxu0 %v10118
  %10696 = vmatpush1.bf16.msra.mxu0 %v10117
  %10697 = vmatprep.subr.bf16.mxu0 %v10120
  %10698 = vmatpush1.bf16.msra.mxu0 %v10119
  %10699 = vmatprep.subr.bf16.mxu0 %v10122
  %10700 = vmatpush1.bf16.msra.mxu0 %v10121
  %10701 = vmatprep.subr.bf16.mxu0 %v10124
  %10702 = vmatpush1.bf16.msra.mxu0 %v10123
  %10703 = vmatprep.subr.bf16.mxu0 %v10126
  %10704 = vmatpush1.bf16.msra.mxu0 %v10125
  %10705 = vmatprep.subr.bf16.mxu0 %v10128
  %10706 = vmatpush1.bf16.msra.mxu0 %v10127
  %10707 = vmatprep.mubr.bf16.mxu0 %v9386
  %10708 = vmatmul.mubr.bf16.gmra.mrb[0].mxu0 %v9385
  %v10709 = vpop.f32.mrb[0].mxu0
  %v10710 = vadd.f32 %v10517, %v10709
  %v10711 = vpop.f32.mrb[0].mxu0
  %v10712 = vadd.f32 %v10519, %v10711
  %v10713 = vpop.f32.mrb[0].mxu0
  %v10714 = vadd.f32 %v10521, %v10713
  %v10715 = vpop.f32.mrb[0].mxu0
  %v10716 = vadd.f32 %v10523, %v10715
  %10717 = vmatprep.mubr.bf16.mxu0 %v9394
  %10718 = vmatmul.mubr.bf16.gmra.mrb[0].mxu0 %v9393
  %v10719 = vpop.f32.mrb[0].mxu0
  %v10720 = vadd.f32 %v10527, %v10719
  %v10721 = vpop.f32.mrb[0].mxu0
  %v10722 = vadd.f32 %v10529, %v10721
  %v10723 = vpop.f32.mrb[0].mxu0
  %v10724 = vadd.f32 %v10531, %v10723
  %v10725 = vpop.f32.mrb[0].mxu0
  %v10726 = vadd.f32 %v10533, %v10725
  %10727 = vmatprep.mubr.bf16.mxu0 %v9402
  %10728 = vmatmul.mubr.bf16.gmra.mrb[0].mxu0 %v9401
  %v10729 = vpop.f32.mrb[0].mxu0
  %v10730 = vadd.f32 %v10537, %v10729
  %v10731 = vpop.f32.mrb[0].mxu0
  %v10732 = vadd.f32 %v10539, %v10731
  %v10733 = vpop.f32.mrb[0].mxu0
  %v10734 = vadd.f32 %v10541, %v10733
  %v10735 = vpop.f32.mrb[0].mxu0
  %v10736 = vadd.f32 %v10543, %v10735
  %10737 = vmatprep.mubr.bf16.mxu0 %v9410
  %10738 = vmatmul.mubr.bf16.gmra.mrb[0].mxu0 %v9409
  %v10739 = vpop.f32.mrb[0].mxu0
  %v10740 = vadd.f32 %v10547, %v10739
  %v10741 = vpop.f32.mrb[0].mxu0
  %v10742 = vadd.f32 %v10549, %v10741
  %v10743 = vpop.f32.mrb[0].mxu0
  %v10744 = vadd.f32 %v10551, %v10743
  %v10745 = vpop.f32.mrb[0].mxu0
  %v10746 = vadd.f32 %v10553, %v10745
  %10747 = vmatprep.mubr.bf16.mxu0 %v9418
  %10748 = vmatmul.mubr.bf16.gmra.mrb[0].mxu0 %v9417
  %v10749 = vpop.f32.mrb[0].mxu0
  %v10750 = vadd.f32 %v10557, %v10749
  %v10751 = vpop.f32.mrb[0].mxu0
  %v10752 = vadd.f32 %v10559, %v10751
  %v10753 = vpop.f32.mrb[0].mxu0
  %v10754 = vadd.f32 %v10561, %v10753
  %v10755 = vpop.f32.mrb[0].mxu0
  %v10756 = vadd.f32 %v10563, %v10755
  %10757 = vmatprep.mubr.bf16.mxu0 %v9426
  %10758 = vmatmul.mubr.bf16.gmra.mrb[0].mxu0 %v9425
  %v10759 = vpop.f32.mrb[0].mxu0
  %v10760 = vadd.f32 %v10567, %v10759
  %v10761 = vpop.f32.mrb[0].mxu0
  %v10762 = vadd.f32 %v10569, %v10761
  %v10763 = vpop.f32.mrb[0].mxu0
  %v10764 = vadd.f32 %v10571, %v10763
  %v10765 = vpop.f32.mrb[0].mxu0
  %v10766 = vadd.f32 %v10573, %v10765
  %10767 = vmatprep.mubr.bf16.mxu0 %v9434
  %10768 = vmatmul.mubr.bf16.gmra.mrb[0].mxu0 %v9433
  %v10769 = vpop.f32.mrb[0].mxu0
  %v10770 = vadd.f32 %v10577, %v10769
  %v10771 = vpop.f32.mrb[0].mxu0
  %v10772 = vadd.f32 %v10579, %v10771
  %v10773 = vpop.f32.mrb[0].mxu0
  %v10774 = vadd.f32 %v10581, %v10773
  %v10775 = vpop.f32.mrb[0].mxu0
  %v10776 = vadd.f32 %v10583, %v10775
  %10777 = vmatprep.mubr.bf16.mxu0 %v9442
  %10778 = vmatmul.mubr.bf16.gmra.mrb[0].mxu0 %v9441
  %v10779 = vpop.f32.mrb[0].mxu0
  %v10780 = vadd.f32 %v10587, %v10779
  %v10781 = vpop.f32.mrb[0].mxu0
  %v10782 = vadd.f32 %v10589, %v10781
  %v10783 = vpop.f32.mrb[0].mxu0
  %v10784 = vadd.f32 %v10591, %v10783
  %v10785 = vpop.f32.mrb[0].mxu0
  %v10786 = vadd.f32 %v10593, %v10785
  %10787 = vmatprep.mubr.bf16.mxu0 %v9450
  %10788 = vmatmul.mubr.bf16.gmra.mrb[0].mxu0 %v9449
  %v10789 = vpop.f32.mrb[0].mxu0
  %v10790 = vadd.f32 %v10597, %v10789
  %v10791 = vpop.f32.mrb[0].mxu0
  %v10792 = vadd.f32 %v10599, %v10791
  %v10793 = vpop.f32.mrb[0].mxu0
  %v10794 = vadd.f32 %v10601, %v10793
  %v10795 = vpop.f32.mrb[0].mxu0
  %v10796 = vadd.f32 %v10603, %v10795
  %10797 = vmatprep.mubr.bf16.mxu0 %v9458
  %10798 = vmatmul.mubr.bf16.gmra.mrb[0].mxu0 %v9457
  %v10799 = vpop.f32.mrb[0].mxu0
  %v10800 = vadd.f32 %v10607, %v10799
  %v10801 = vpop.f32.mrb[0].mxu0
  %v10802 = vadd.f32 %v10609, %v10801
  %v10803 = vpop.f32.mrb[0].mxu0
  %v10804 = vadd.f32 %v10611, %v10803
  %v10805 = vpop.f32.mrb[0].mxu0
  %v10806 = vadd.f32 %v10613, %v10805
  %10807 = vmatprep.mubr.bf16.mxu0 %v9466
  %10808 = vmatmul.mubr.bf16.gmra.mrb[0].mxu0 %v9465
  %v10809 = vpop.f32.mrb[0].mxu0
  %v10810 = vadd.f32 %v10617, %v10809
  %v10811 = vpop.f32.mrb[0].mxu0
  %v10812 = vadd.f32 %v10619, %v10811
  %v10813 = vpop.f32.mrb[0].mxu0
  %v10814 = vadd.f32 %v10621, %v10813
  %v10815 = vpop.f32.mrb[0].mxu0
  %v10816 = vadd.f32 %v10623, %v10815
  %10817 = vmatprep.mubr.bf16.mxu0 %v9474
  %10818 = vmatmul.mubr.bf16.gmra.mrb[0].mxu0 %v9473
  %v10819 = vpop.f32.mrb[0].mxu0
  %v10820 = vadd.f32 %v10627, %v10819
  %v10821 = vpop.f32.mrb[0].mxu0
  %v10822 = vadd.f32 %v10629, %v10821
  %v10823 = vpop.f32.mrb[0].mxu0
  %v10824 = vadd.f32 %v10631, %v10823
  %v10825 = vpop.f32.mrb[0].mxu0
  %v10826 = vadd.f32 %v10633, %v10825
  %10827 = vmatprep.mubr.bf16.mxu0 %v9482
  %10828 = vmatmul.mubr.bf16.gmra.mrb[0].mxu0 %v9481
  %v10829 = vpop.f32.mrb[0].mxu0
  %v10830 = vadd.f32 %v10637, %v10829
  %v10831 = vpop.f32.mrb[0].mxu0
  %v10832 = vadd.f32 %v10639, %v10831
  %v10833 = vpop.f32.mrb[0].mxu0
  %v10834 = vadd.f32 %v10641, %v10833
  %v10835 = vpop.f32.mrb[0].mxu0
  %v10836 = vadd.f32 %v10643, %v10835
  %10837 = vmatprep.mubr.bf16.mxu0 %v9490
  %10838 = vmatmul.mubr.bf16.gmra.mrb[0].mxu0 %v9489
  %v10839 = vpop.f32.mrb[0].mxu0
  %v10840 = vadd.f32 %v10647, %v10839
  %v10841 = vpop.f32.mrb[0].mxu0
  %v10842 = vadd.f32 %v10649, %v10841
  %v10843 = vpop.f32.mrb[0].mxu0
  %v10844 = vadd.f32 %v10651, %v10843
  %v10845 = vpop.f32.mrb[0].mxu0
  %v10846 = vadd.f32 %v10653, %v10845
  %10847 = vmatprep.mubr.bf16.mxu0 %v9498
  %10848 = vmatmul.mubr.bf16.gmra.mrb[0].mxu0 %v9497
  %v10849 = vpop.f32.mrb[0].mxu0
  %v10850 = vadd.f32 %v10657, %v10849
  %v10851 = vpop.f32.mrb[0].mxu0
  %v10852 = vadd.f32 %v10659, %v10851
  %v10853 = vpop.f32.mrb[0].mxu0
  %v10854 = vadd.f32 %v10661, %v10853
  %v10855 = vpop.f32.mrb[0].mxu0
  %v10856 = vadd.f32 %v10663, %v10855
  %10857 = vmatprep.mubr.bf16.mxu0 %v9506
  %10858 = vmatmul.mubr.bf16.gmra.mrb[0].mxu0 %v9505
  %v10859 = vpop.f32.mrb[0].mxu0
  %v10860 = vadd.f32 %v10667, %v10859
  %v10861 = vpop.f32.mrb[0].mxu0
  %v10862 = vadd.f32 %v10669, %v10861
  %v10863 = vpop.f32.mrb[0].mxu0
  %v10864 = vadd.f32 %v10671, %v10863
  %v10865 = vpop.f32.mrb[0].mxu0
  %v10866 = vadd.f32 %v10673, %v10865
  %10867 = vdwg.mxu0
  %10868 = vmatprep.subr.bf16.mxu0 %v10130
  %10869 = vmatpush1.bf16.msra.mxu0 %v10129
  %10870 = vmatprep.subr.bf16.mxu0 %v10132
  %10871 = vmatpush1.bf16.msra.mxu0 %v10131
  %10872 = vmatprep.subr.bf16.mxu0 %v10134
  %10873 = vmatpush1.bf16.msra.mxu0 %v10133
  %10874 = vmatprep.subr.bf16.mxu0 %v10136
  %10875 = vmatpush1.bf16.msra.mxu0 %v10135
  %10876 = vmatprep.subr.bf16.mxu0 %v10138
  %10877 = vmatpush1.bf16.msra.mxu0 %v10137
  %10878 = vmatprep.subr.bf16.mxu0 %v10140
  %10879 = vmatpush1.bf16.msra.mxu0 %v10139
  %10880 = vmatprep.subr.bf16.mxu0 %v10142
  %10881 = vmatpush1.bf16.msra.mxu0 %v10141
  %10882 = vmatprep.subr.bf16.mxu0 %v10144
  %10883 = vmatpush1.bf16.msra.mxu0 %v10143
  %10884 = vmatprep.subr.bf16.mxu0 %v10146
  %10885 = vmatpush1.bf16.msra.mxu0 %v10145
  %10886 = vmatprep.subr.bf16.mxu0 %v10148
  %10887 = vmatpush1.bf16.msra.mxu0 %v10147
  %10888 = vmatprep.subr.bf16.mxu0 %v10150
  %10889 = vmatpush1.bf16.msra.mxu0 %v10149
  %10890 = vmatprep.subr.bf16.mxu0 %v10152
  %10891 = vmatpush1.bf16.msra.mxu0 %v10151
  %10892 = vmatprep.subr.bf16.mxu0 %v10154
  %10893 = vmatpush1.bf16.msra.mxu0 %v10153
  %10894 = vmatprep.subr.bf16.mxu0 %v10156
  %10895 = vmatpush1.bf16.msra.mxu0 %v10155
  %10896 = vmatprep.subr.bf16.mxu0 %v10158
  %10897 = vmatpush1.bf16.msra.mxu0 %v10157
  %10898 = vmatprep.subr.bf16.mxu0 %v10160
  %10899 = vmatpush1.bf16.msra.mxu0 %v10159
  %10900 = vmatprep.mubr.bf16.mxu0 %v9388
  %10901 = vmatmul.mubr.bf16.gmra.mrb[0].mxu0 %v9387
  %v10902 = vpop.f32.mrb[0].mxu0
  %v10903 = vadd.f32 %v10710, %v10902
  %v10904 = vpop.f32.mrb[0].mxu0
  %v10905 = vadd.f32 %v10712, %v10904
  %v10906 = vpop.f32.mrb[0].mxu0
  %v10907 = vadd.f32 %v10714, %v10906
  %v10908 = vpop.f32.mrb[0].mxu0
  %v10909 = vadd.f32 %v10716, %v10908
  %10910 = vmatprep.mubr.bf16.mxu0 %v9396
  %10911 = vmatmul.mubr.bf16.gmra.mrb[0].mxu0 %v9395
  %v10912 = vpop.f32.mrb[0].mxu0
  %v10913 = vadd.f32 %v10720, %v10912
  %v10914 = vpop.f32.mrb[0].mxu0
  %v10915 = vadd.f32 %v10722, %v10914
  %v10916 = vpop.f32.mrb[0].mxu0
  %v10917 = vadd.f32 %v10724, %v10916
  %v10918 = vpop.f32.mrb[0].mxu0
  %v10919 = vadd.f32 %v10726, %v10918
  %10920 = vmatprep.mubr.bf16.mxu0 %v9404
  %10921 = vmatmul.mubr.bf16.gmra.mrb[0].mxu0 %v9403
  %v10922 = vpop.f32.mrb[0].mxu0
  %v10923 = vadd.f32 %v10730, %v10922
  %v10924 = vpop.f32.mrb[0].mxu0
  %v10925 = vadd.f32 %v10732, %v10924
  %v10926 = vpop.f32.mrb[0].mxu0
  %v10927 = vadd.f32 %v10734, %v10926
  %v10928 = vpop.f32.mrb[0].mxu0
  %v10929 = vadd.f32 %v10736, %v10928
  %10930 = vmatprep.mubr.bf16.mxu0 %v9412
  %10931 = vmatmul.mubr.bf16.gmra.mrb[0].mxu0 %v9411
  %v10932 = vpop.f32.mrb[0].mxu0
  %v10933 = vadd.f32 %v10740, %v10932
  %v10934 = vpop.f32.mrb[0].mxu0
  %v10935 = vadd.f32 %v10742, %v10934
  %v10936 = vpop.f32.mrb[0].mxu0
  %v10937 = vadd.f32 %v10744, %v10936
  %v10938 = vpop.f32.mrb[0].mxu0
  %v10939 = vadd.f32 %v10746, %v10938
  %10940 = vmatprep.mubr.bf16.mxu0 %v9420
  %10941 = vmatmul.mubr.bf16.gmra.mrb[0].mxu0 %v9419
  %v10942 = vpop.f32.mrb[0].mxu0
  %v10943 = vadd.f32 %v10750, %v10942
  %v10944 = vpop.f32.mrb[0].mxu0
  %v10945 = vadd.f32 %v10752, %v10944
  %v10946 = vpop.f32.mrb[0].mxu0
  %v10947 = vadd.f32 %v10754, %v10946
  %v10948 = vpop.f32.mrb[0].mxu0
  %v10949 = vadd.f32 %v10756, %v10948
  %10950 = vmatprep.mubr.bf16.mxu0 %v9428
  %10951 = vmatmul.mubr.bf16.gmra.mrb[0].mxu0 %v9427
  %v10952 = vpop.f32.mrb[0].mxu0
  %v10953 = vadd.f32 %v10760, %v10952
  %v10954 = vpop.f32.mrb[0].mxu0
  %v10955 = vadd.f32 %v10762, %v10954
  %v10956 = vpop.f32.mrb[0].mxu0
  %v10957 = vadd.f32 %v10764, %v10956
  %v10958 = vpop.f32.mrb[0].mxu0
  %v10959 = vadd.f32 %v10766, %v10958
  %10960 = vmatprep.mubr.bf16.mxu0 %v9436
  %10961 = vmatmul.mubr.bf16.gmra.mrb[0].mxu0 %v9435
  %v10962 = vpop.f32.mrb[0].mxu0
  %v10963 = vadd.f32 %v10770, %v10962
  %v10964 = vpop.f32.mrb[0].mxu0
  %v10965 = vadd.f32 %v10772, %v10964
  %v10966 = vpop.f32.mrb[0].mxu0
  %v10967 = vadd.f32 %v10774, %v10966
  %v10968 = vpop.f32.mrb[0].mxu0
  %v10969 = vadd.f32 %v10776, %v10968
  %10970 = vmatprep.mubr.bf16.mxu0 %v9444
  %10971 = vmatmul.mubr.bf16.gmra.mrb[0].mxu0 %v9443
  %v10972 = vpop.f32.mrb[0].mxu0
  %v10973 = vadd.f32 %v10780, %v10972
  %v10974 = vpop.f32.mrb[0].mxu0
  %v10975 = vadd.f32 %v10782, %v10974
  %v10976 = vpop.f32.mrb[0].mxu0
  %v10977 = vadd.f32 %v10784, %v10976
  %v10978 = vpop.f32.mrb[0].mxu0
  %v10979 = vadd.f32 %v10786, %v10978
  %10980 = vmatprep.mubr.bf16.mxu0 %v9452
  %10981 = vmatmul.mubr.bf16.gmra.mrb[0].mxu0 %v9451
  %v10982 = vpop.f32.mrb[0].mxu0
  %v10983 = vadd.f32 %v10790, %v10982
  %v10984 = vpop.f32.mrb[0].mxu0
  %v10985 = vadd.f32 %v10792, %v10984
  %v10986 = vpop.f32.mrb[0].mxu0
  %v10987 = vadd.f32 %v10794, %v10986
  %v10988 = vpop.f32.mrb[0].mxu0
  %v10989 = vadd.f32 %v10796, %v10988
  %10990 = vmatprep.mubr.bf16.mxu0 %v9460
  %10991 = vmatmul.mubr.bf16.gmra.mrb[0].mxu0 %v9459
  %v10992 = vpop.f32.mrb[0].mxu0
  %v10993 = vadd.f32 %v10800, %v10992
  %v10994 = vpop.f32.mrb[0].mxu0
  %v10995 = vadd.f32 %v10802, %v10994
  %v10996 = vpop.f32.mrb[0].mxu0
  %v10997 = vadd.f32 %v10804, %v10996
  %v10998 = vpop.f32.mrb[0].mxu0
  %v10999 = vadd.f32 %v10806, %v10998
  %11000 = vmatprep.mubr.bf16.mxu0 %v9468
  %11001 = vmatmul.mubr.bf16.gmra.mrb[0].mxu0 %v9467
  %v11002 = vpop.f32.mrb[0].mxu0
  %v11003 = vadd.f32 %v10810, %v11002
  %v11004 = vpop.f32.mrb[0].mxu0
  %v11005 = vadd.f32 %v10812, %v11004
  %v11006 = vpop.f32.mrb[0].mxu0
  %v11007 = vadd.f32 %v10814, %v11006
  %v11008 = vpop.f32.mrb[0].mxu0
  %v11009 = vadd.f32 %v10816, %v11008
  %11010 = vmatprep.mubr.bf16.mxu0 %v9476
  %11011 = vmatmul.mubr.bf16.gmra.mrb[0].mxu0 %v9475
  %v11012 = vpop.f32.mrb[0].mxu0
  %v11013 = vadd.f32 %v10820, %v11012
  %v11014 = vpop.f32.mrb[0].mxu0
  %v11015 = vadd.f32 %v10822, %v11014
  %v11016 = vpop.f32.mrb[0].mxu0
  %v11017 = vadd.f32 %v10824, %v11016
  %v11018 = vpop.f32.mrb[0].mxu0
  %v11019 = vadd.f32 %v10826, %v11018
  %11020 = vmatprep.mubr.bf16.mxu0 %v9484
  %11021 = vmatmul.mubr.bf16.gmra.mrb[0].mxu0 %v9483
  %v11022 = vpop.f32.mrb[0].mxu0
  %v11023 = vadd.f32 %v10830, %v11022
  %v11024 = vpop.f32.mrb[0].mxu0
  %v11025 = vadd.f32 %v10832, %v11024
  %v11026 = vpop.f32.mrb[0].mxu0
  %v11027 = vadd.f32 %v10834, %v11026
  %v11028 = vpop.f32.mrb[0].mxu0
  %v11029 = vadd.f32 %v10836, %v11028
  %11030 = vmatprep.mubr.bf16.mxu0 %v9492
  %11031 = vmatmul.mubr.bf16.gmra.mrb[0].mxu0 %v9491
  %v11032 = vpop.f32.mrb[0].mxu0
  %v11033 = vadd.f32 %v10840, %v11032
  %v11034 = vpop.f32.mrb[0].mxu0
  %v11035 = vadd.f32 %v10842, %v11034
  %v11036 = vpop.f32.mrb[0].mxu0
  %v11037 = vadd.f32 %v10844, %v11036
  %v11038 = vpop.f32.mrb[0].mxu0
  %v11039 = vadd.f32 %v10846, %v11038
  %11040 = vmatprep.mubr.bf16.mxu0 %v9500
  %11041 = vmatmul.mubr.bf16.gmra.mrb[0].mxu0 %v9499
  %v11042 = vpop.f32.mrb[0].mxu0
  %v11043 = vadd.f32 %v10850, %v11042
  %v11044 = vpop.f32.mrb[0].mxu0
  %v11045 = vadd.f32 %v10852, %v11044
  %v11046 = vpop.f32.mrb[0].mxu0
  %v11047 = vadd.f32 %v10854, %v11046
  %v11048 = vpop.f32.mrb[0].mxu0
  %v11049 = vadd.f32 %v10856, %v11048
  %11050 = vmatprep.mubr.bf16.mxu0 %v9508
  %11051 = vmatmul.mubr.bf16.gmra.mrb[0].mxu0 %v9507
  %v11052 = vpop.f32.mrb[0].mxu0
  %v11053 = vadd.f32 %v10860, %v11052
  %v11054 = vpop.f32.mrb[0].mxu0
  %v11055 = vadd.f32 %v10862, %v11054
  %v11056 = vpop.f32.mrb[0].mxu0
  %v11057 = vadd.f32 %v10864, %v11056
  %v11058 = vpop.f32.mrb[0].mxu0
  %v11059 = vadd.f32 %v10866, %v11058
  %11060 = vdwg.mxu0
  %v11061 = vxor.u32 %v10903, 2147483648
  %v11062 = vxor.u32 %v10905, 2147483648
  %v11063 = vxor.u32 %v10907, 2147483648
  %v11064 = vxor.u32 %v10909, 2147483648
  %v11065 = vxor.u32 %v10913, 2147483648
  %v11066 = vxor.u32 %v10915, 2147483648
  %v11067 = vxor.u32 %v10917, 2147483648
  %v11068 = vxor.u32 %v10919, 2147483648
  %v11069 = vxor.u32 %v10923, 2147483648
  %v11070 = vxor.u32 %v10925, 2147483648
  %v11071 = vxor.u32 %v10927, 2147483648
  %v11072 = vxor.u32 %v10929, 2147483648
  %v11073 = vxor.u32 %v10933, 2147483648
  %v11074 = vxor.u32 %v10935, 2147483648
  %v11075 = vxor.u32 %v10937, 2147483648
  %v11076 = vxor.u32 %v10939, 2147483648
  %v11077 = vxor.u32 %v10943, 2147483648
  %v11078 = vxor.u32 %v10945, 2147483648
  %v11079 = vxor.u32 %v10947, 2147483648
  %v11080 = vxor.u32 %v10949, 2147483648
  %v11081 = vxor.u32 %v10953, 2147483648
  %v11082 = vxor.u32 %v10955, 2147483648
  %v11083 = vxor.u32 %v10957, 2147483648
  %v11084 = vxor.u32 %v10959, 2147483648
  %v11085 = vxor.u32 %v10963, 2147483648
  %v11086 = vxor.u32 %v10965, 2147483648
  %v11087 = vxor.u32 %v10967, 2147483648
  %v11088 = vxor.u32 %v10969, 2147483648
  %v11089 = vxor.u32 %v10973, 2147483648
  %v11090 = vxor.u32 %v10975, 2147483648
  %v11091 = vxor.u32 %v10977, 2147483648
  %v11092 = vxor.u32 %v10979, 2147483648
  %v11093 = vxor.u32 %v10983, 2147483648
  %v11094 = vxor.u32 %v10985, 2147483648
  %v11095 = vxor.u32 %v10987, 2147483648
  %v11096 = vxor.u32 %v10989, 2147483648
  %v11097 = vxor.u32 %v10993, 2147483648
  %v11098 = vxor.u32 %v10995, 2147483648
  %v11099 = vxor.u32 %v10997, 2147483648
  %v11100 = vxor.u32 %v10999, 2147483648
  %v11101 = vxor.u32 %v11003, 2147483648
  %v11102 = vxor.u32 %v11005, 2147483648
  %v11103 = vxor.u32 %v11007, 2147483648
  %v11104 = vxor.u32 %v11009, 2147483648
  %v11105 = vxor.u32 %v11013, 2147483648
  %v11106 = vxor.u32 %v11015, 2147483648
  %v11107 = vxor.u32 %v11017, 2147483648
  %v11108 = vxor.u32 %v11019, 2147483648
  %v11109 = vxor.u32 %v11023, 2147483648
  %v11110 = vxor.u32 %v11025, 2147483648
  %v11111 = vxor.u32 %v11027, 2147483648
  %v11112 = vxor.u32 %v11029, 2147483648
  %v11113 = vxor.u32 %v11033, 2147483648
  %v11114 = vxor.u32 %v11035, 2147483648
  %v11115 = vxor.u32 %v11037, 2147483648
  %v11116 = vxor.u32 %v11039, 2147483648
  %v11117 = vxor.u32 %v11043, 2147483648
  %v11118 = vxor.u32 %v11045, 2147483648
  %v11119 = vxor.u32 %v11047, 2147483648
  %v11120 = vxor.u32 %v11049, 2147483648
  %v11121 = vxor.u32 %v11053, 2147483648
  %v11122 = vxor.u32 %v11055, 2147483648
  %v11123 = vxor.u32 %v11057, 2147483648
  %v11124 = vxor.u32 %v11059, 2147483648
  %v11125 = vmul.f32 %v11061, 1.442695
  %v11126 = vpow.pop %v11125
  %v11127 = vmul.f32 %v11062, 1.442695
  %v11128 = vpow.pop %v11127
  %v11129 = vmul.f32 %v11063, 1.442695
  %v11130 = vpow.pop %v11129
  %v11131 = vmul.f32 %v11064, 1.442695
  %v11132 = vpow.pop %v11131
  %v11133 = vmul.f32 %v11065, 1.442695
  %v11134 = vpow.pop %v11133
  %v11135 = vmul.f32 %v11066, 1.442695
  %v11136 = vpow.pop %v11135
  %v11137 = vmul.f32 %v11067, 1.442695
  %v11138 = vpow.pop %v11137
  %v11139 = vmul.f32 %v11068, 1.442695
  %v11140 = vpow.pop %v11139
  %v11141 = vmul.f32 %v11069, 1.442695
  %v11142 = vpow.pop %v11141
  %v11143 = vmul.f32 %v11070, 1.442695
  %v11144 = vpow.pop %v11143
  %v11145 = vmul.f32 %v11071, 1.442695
  %v11146 = vpow.pop %v11145
  %v11147 = vmul.f32 %v11072, 1.442695
  %v11148 = vpow.pop %v11147
  %v11149 = vmul.f32 %v11073, 1.442695
  %v11150 = vpow.pop %v11149
  %v11151 = vmul.f32 %v11074, 1.442695
  %v11152 = vpow.pop %v11151
  %v11153 = vmul.f32 %v11075, 1.442695
  %v11154 = vpow.pop %v11153
  %v11155 = vmul.f32 %v11076, 1.442695
  %v11156 = vpow.pop %v11155
  %v11157 = vmul.f32 %v11077, 1.442695
  %v11158 = vpow.pop %v11157
  %v11159 = vmul.f32 %v11078, 1.442695
  %v11160 = vpow.pop %v11159
  %v11161 = vmul.f32 %v11079, 1.442695
  %v11162 = vpow.pop %v11161
  %v11163 = vmul.f32 %v11080, 1.442695
  %v11164 = vpow.pop %v11163
  %v11165 = vmul.f32 %v11081, 1.442695
  %v11166 = vpow.pop %v11165
  %v11167 = vmul.f32 %v11082, 1.442695
  %v11168 = vpow.pop %v11167
  %v11169 = vmul.f32 %v11083, 1.442695
  %v11170 = vpow.pop %v11169
  %v11171 = vmul.f32 %v11084, 1.442695
  %v11172 = vpow.pop %v11171
  %v11173 = vmul.f32 %v11085, 1.442695
  %v11174 = vpow.pop %v11173
  %v11175 = vmul.f32 %v11086, 1.442695
  %v11176 = vpow.pop %v11175
  %v11177 = vmul.f32 %v11087, 1.442695
  %v11178 = vpow.pop %v11177
  %v11179 = vmul.f32 %v11088, 1.442695
  %v11180 = vpow.pop %v11179
  %v11181 = vmul.f32 %v11089, 1.442695
  %v11182 = vpow.pop %v11181
  %v11183 = vmul.f32 %v11090, 1.442695
  %v11184 = vpow.pop %v11183
  %v11185 = vmul.f32 %v11091, 1.442695
  %v11186 = vpow.pop %v11185
  %v11187 = vmul.f32 %v11092, 1.442695
  %v11188 = vpow.pop %v11187
  %v11189 = vmul.f32 %v11093, 1.442695
  %v11190 = vpow.pop %v11189
  %v11191 = vmul.f32 %v11094, 1.442695
  %v11192 = vpow.pop %v11191
  %v11193 = vmul.f32 %v11095, 1.442695
  %v11194 = vpow.pop %v11193
  %v11195 = vmul.f32 %v11096, 1.442695
  %v11196 = vpow.pop %v11195
  %v11197 = vmul.f32 %v11097, 1.442695
  %v11198 = vpow.pop %v11197
  %v11199 = vmul.f32 %v11098, 1.442695
  %v11200 = vpow.pop %v11199
  %v11201 = vmul.f32 %v11099, 1.442695
  %v11202 = vpow.pop %v11201
  %v11203 = vmul.f32 %v11100, 1.442695
  %v11204 = vpow.pop %v11203
  %v11205 = vmul.f32 %v11101, 1.442695
  %v11206 = vpow.pop %v11205
  %v11207 = vmul.f32 %v11102, 1.442695
  %v11208 = vpow.pop %v11207
  %v11209 = vmul.f32 %v11103, 1.442695
  %v11210 = vpow.pop %v11209
  %v11211 = vmul.f32 %v11104, 1.442695
  %v11212 = vpow.pop %v11211
  %v11213 = vmul.f32 %v11105, 1.442695
  %v11214 = vpow.pop %v11213
  %v11215 = vmul.f32 %v11106, 1.442695
  %v11216 = vpow.pop %v11215
  %v11217 = vmul.f32 %v11107, 1.442695
  %v11218 = vpow.pop %v11217
  %v11219 = vmul.f32 %v11108, 1.442695
  %v11220 = vpow.pop %v11219
  %v11221 = vmul.f32 %v11109, 1.442695
  %v11222 = vpow.pop %v11221
  %v11223 = vmul.f32 %v11110, 1.442695
  %v11224 = vpow.pop %v11223
  %v11225 = vmul.f32 %v11111, 1.442695
  %v11226 = vpow.pop %v11225
  %v11227 = vmul.f32 %v11112, 1.442695
  %v11228 = vpow.pop %v11227
  %v11229 = vmul.f32 %v11113, 1.442695
  %v11230 = vpow.pop %v11229
  %v11231 = vmul.f32 %v11114, 1.442695
  %v11232 = vpow.pop %v11231
  %v11233 = vmul.f32 %v11115, 1.442695
  %v11234 = vpow.pop %v11233
  %v11235 = vmul.f32 %v11116, 1.442695
  %v11236 = vpow.pop %v11235
  %v11237 = vmul.f32 %v11117, 1.442695
  %v11238 = vpow.pop %v11237
  %v11239 = vmul.f32 %v11118, 1.442695
  %v11240 = vpow.pop %v11239
  %v11241 = vmul.f32 %v11119, 1.442695
  %v11242 = vpow.pop %v11241
  %v11243 = vmul.f32 %v11120, 1.442695
  %v11244 = vpow.pop %v11243
  %v11245 = vmul.f32 %v11121, 1.442695
  %v11246 = vpow.pop %v11245
  %v11247 = vmul.f32 %v11122, 1.442695
  %v11248 = vpow.pop %v11247
  %v11249 = vmul.f32 %v11123, 1.442695
  %v11250 = vpow.pop %v11249
  %v11251 = vmul.f32 %v11124, 1.442695
  %v11252 = vpow.pop %v11251
  %v11253 = vadd.f32 %v11126, 1.0
  %v11254 = vadd.f32 %v11128, 1.0
  %v11255 = vadd.f32 %v11130, 1.0
  %v11256 = vadd.f32 %v11132, 1.0
  %v11257 = vadd.f32 %v11134, 1.0
  %v11258 = vadd.f32 %v11136, 1.0
  %v11259 = vadd.f32 %v11138, 1.0
  %v11260 = vadd.f32 %v11140, 1.0
  %v11261 = vadd.f32 %v11142, 1.0
  %v11262 = vadd.f32 %v11144, 1.0
  %v11263 = vadd.f32 %v11146, 1.0
  %v11264 = vadd.f32 %v11148, 1.0
  %v11265 = vadd.f32 %v11150, 1.0
  %v11266 = vadd.f32 %v11152, 1.0
  %v11267 = vadd.f32 %v11154, 1.0
  %v11268 = vadd.f32 %v11156, 1.0
  %v11269 = vadd.f32 %v11158, 1.0
  %v11270 = vadd.f32 %v11160, 1.0
  %v11271 = vadd.f32 %v11162, 1.0
  %v11272 = vadd.f32 %v11164, 1.0
  %v11273 = vadd.f32 %v11166, 1.0
  %v11274 = vadd.f32 %v11168, 1.0
  %v11275 = vadd.f32 %v11170, 1.0
  %v11276 = vadd.f32 %v11172, 1.0
  %v11277 = vadd.f32 %v11174, 1.0
  %v11278 = vadd.f32 %v11176, 1.0
  %v11279 = vadd.f32 %v11178, 1.0
  %v11280 = vadd.f32 %v11180, 1.0
  %v11281 = vadd.f32 %v11182, 1.0
  %v11282 = vadd.f32 %v11184, 1.0
  %v11283 = vadd.f32 %v11186, 1.0
  %v11284 = vadd.f32 %v11188, 1.0
  %v11285 = vadd.f32 %v11190, 1.0
  %v11286 = vadd.f32 %v11192, 1.0
  %v11287 = vadd.f32 %v11194, 1.0
  %v11288 = vadd.f32 %v11196, 1.0
  %v11289 = vadd.f32 %v11198, 1.0
  %v11290 = vadd.f32 %v11200, 1.0
  %v11291 = vadd.f32 %v11202, 1.0
  %v11292 = vadd.f32 %v11204, 1.0
  %v11293 = vadd.f32 %v11206, 1.0
  %v11294 = vadd.f32 %v11208, 1.0
  %v11295 = vadd.f32 %v11210, 1.0
  %v11296 = vadd.f32 %v11212, 1.0
  %v11297 = vadd.f32 %v11214, 1.0
  %v11298 = vadd.f32 %v11216, 1.0
  %v11299 = vadd.f32 %v11218, 1.0
  %v11300 = vadd.f32 %v11220, 1.0
  %v11301 = vadd.f32 %v11222, 1.0
  %v11302 = vadd.f32 %v11224, 1.0
  %v11303 = vadd.f32 %v11226, 1.0
  %v11304 = vadd.f32 %v11228, 1.0
  %v11305 = vadd.f32 %v11230, 1.0
  %v11306 = vadd.f32 %v11232, 1.0
  %v11307 = vadd.f32 %v11234, 1.0
  %v11308 = vadd.f32 %v11236, 1.0
  %v11309 = vadd.f32 %v11238, 1.0
  %v11310 = vadd.f32 %v11240, 1.0
  %v11311 = vadd.f32 %v11242, 1.0
  %v11312 = vadd.f32 %v11244, 1.0
  %v11313 = vadd.f32 %v11246, 1.0
  %v11314 = vadd.f32 %v11248, 1.0
  %v11315 = vadd.f32 %v11250, 1.0
  %v11316 = vadd.f32 %v11252, 1.0
  %v11317 = vrcp.pop %v11253
  %v11318 = vmul.f32 1.0, %v11317
  %v11319 = vrcp.pop %v11254
  %v11320 = vmul.f32 1.0, %v11319
  %v11321 = vrcp.pop %v11255
  %v11322 = vmul.f32 1.0, %v11321
  %v11323 = vrcp.pop %v11256
  %v11324 = vmul.f32 1.0, %v11323
  %v11325 = vrcp.pop %v11257
  %v11326 = vmul.f32 1.0, %v11325
  %v11327 = vrcp.pop %v11258
  %v11328 = vmul.f32 1.0, %v11327
  %v11329 = vrcp.pop %v11259
  %v11330 = vmul.f32 1.0, %v11329
  %v11331 = vrcp.pop %v11260
  %v11332 = vmul.f32 1.0, %v11331
  %v11333 = vrcp.pop %v11261
  %v11334 = vmul.f32 1.0, %v11333
  %v11335 = vrcp.pop %v11262
  %v11336 = vmul.f32 1.0, %v11335
  %v11337 = vrcp.pop %v11263
  %v11338 = vmul.f32 1.0, %v11337
  %v11339 = vrcp.pop %v11264
  %v11340 = vmul.f32 1.0, %v11339
  %v11341 = vrcp.pop %v11265
  %v11342 = vmul.f32 1.0, %v11341
  %v11343 = vrcp.pop %v11266
  %v11344 = vmul.f32 1.0, %v11343
  %v11345 = vrcp.pop %v11267
  %v11346 = vmul.f32 1.0, %v11345
  %v11347 = vrcp.pop %v11268
  %v11348 = vmul.f32 1.0, %v11347
  %v11349 = vrcp.pop %v11269
  %v11350 = vmul.f32 1.0, %v11349
  %v11351 = vrcp.pop %v11270
  %v11352 = vmul.f32 1.0, %v11351
  %v11353 = vrcp.pop %v11271
  %v11354 = vmul.f32 1.0, %v11353
  %v11355 = vrcp.pop %v11272
  %v11356 = vmul.f32 1.0, %v11355
  %v11357 = vrcp.pop %v11273
  %v11358 = vmul.f32 1.0, %v11357
  %v11359 = vrcp.pop %v11274
  %v11360 = vmul.f32 1.0, %v11359
  %v11361 = vrcp.pop %v11275
  %v11362 = vmul.f32 1.0, %v11361
  %v11363 = vrcp.pop %v11276
  %v11364 = vmul.f32 1.0, %v11363
  %v11365 = vrcp.pop %v11277
  %v11366 = vmul.f32 1.0, %v11365
  %v11367 = vrcp.pop %v11278
  %v11368 = vmul.f32 1.0, %v11367
  %v11369 = vrcp.pop %v11279
  %v11370 = vmul.f32 1.0, %v11369
  %v11371 = vrcp.pop %v11280
  %v11372 = vmul.f32 1.0, %v11371
  %v11373 = vrcp.pop %v11281
  %v11374 = vmul.f32 1.0, %v11373
  %v11375 = vrcp.pop %v11282
  %v11376 = vmul.f32 1.0, %v11375
  %v11377 = vrcp.pop %v11283
  %v11378 = vmul.f32 1.0, %v11377
  %v11379 = vrcp.pop %v11284
  %v11380 = vmul.f32 1.0, %v11379
  %v11381 = vrcp.pop %v11285
  %v11382 = vmul.f32 1.0, %v11381
  %v11383 = vrcp.pop %v11286
  %v11384 = vmul.f32 1.0, %v11383
  %v11385 = vrcp.pop %v11287
  %v11386 = vmul.f32 1.0, %v11385
  %v11387 = vrcp.pop %v11288
  %v11388 = vmul.f32 1.0, %v11387
  %v11389 = vrcp.pop %v11289
  %v11390 = vmul.f32 1.0, %v11389
  %v11391 = vrcp.pop %v11290
  %v11392 = vmul.f32 1.0, %v11391
  %v11393 = vrcp.pop %v11291
  %v11394 = vmul.f32 1.0, %v11393
  %v11395 = vrcp.pop %v11292
  %v11396 = vmul.f32 1.0, %v11395
  %v11397 = vrcp.pop %v11293
  %v11398 = vmul.f32 1.0, %v11397
  %v11399 = vrcp.pop %v11294
  %v11400 = vmul.f32 1.0, %v11399
  %v11401 = vrcp.pop %v11295
  %v11402 = vmul.f32 1.0, %v11401
  %v11403 = vrcp.pop %v11296
  %v11404 = vmul.f32 1.0, %v11403
  %v11405 = vrcp.pop %v11297
  %v11406 = vmul.f32 1.0, %v11405
  %v11407 = vrcp.pop %v11298
  %v11408 = vmul.f32 1.0, %v11407
  %v11409 = vrcp.pop %v11299
  %v11410 = vmul.f32 1.0, %v11409
  %v11411 = vrcp.pop %v11300
  %v11412 = vmul.f32 1.0, %v11411
  %v11413 = vrcp.pop %v11301
  %v11414 = vmul.f32 1.0, %v11413
  %v11415 = vrcp.pop %v11302
  %v11416 = vmul.f32 1.0, %v11415
  %v11417 = vrcp.pop %v11303
  %v11418 = vmul.f32 1.0, %v11417
  %v11419 = vrcp.pop %v11304
  %v11420 = vmul.f32 1.0, %v11419
  %v11421 = vrcp.pop %v11305
  %v11422 = vmul.f32 1.0, %v11421
  %v11423 = vrcp.pop %v11306
  %v11424 = vmul.f32 1.0, %v11423
  %v11425 = vrcp.pop %v11307
  %v11426 = vmul.f32 1.0, %v11425
  %v11427 = vrcp.pop %v11308
  %v11428 = vmul.f32 1.0, %v11427
  %v11429 = vrcp.pop %v11309
  %v11430 = vmul.f32 1.0, %v11429
  %v11431 = vrcp.pop %v11310
  %v11432 = vmul.f32 1.0, %v11431
  %v11433 = vrcp.pop %v11311
  %v11434 = vmul.f32 1.0, %v11433
  %v11435 = vrcp.pop %v11312
  %v11436 = vmul.f32 1.0, %v11435
  %v11437 = vrcp.pop %v11313
  %v11438 = vmul.f32 1.0, %v11437
  %v11439 = vrcp.pop %v11314
  %v11440 = vmul.f32 1.0, %v11439
  %v11441 = vrcp.pop %v11315
  %v11442 = vmul.f32 1.0, %v11441
  %v11443 = vrcp.pop %v11316
  %v11444 = vmul.f32 1.0, %v11443
  %v11445 = vpack.c.bf16 %v11322, %v11318
  %v11446 = vpack.c.bf16 %v11324, %v11320
  %v11447 = vpack.c.bf16 %v11330, %v11326
  %v11448 = vpack.c.bf16 %v11332, %v11328
  %v11449 = vpack.c.bf16 %v11338, %v11334
  %v11450 = vpack.c.bf16 %v11340, %v11336
  %v11451 = vpack.c.bf16 %v11346, %v11342
  %v11452 = vpack.c.bf16 %v11348, %v11344
  %v11453 = vpack.c.bf16 %v11354, %v11350
  %v11454 = vpack.c.bf16 %v11356, %v11352
  %v11455 = vpack.c.bf16 %v11362, %v11358
  %v11456 = vpack.c.bf16 %v11364, %v11360
  %v11457 = vpack.c.bf16 %v11370, %v11366
  %v11458 = vpack.c.bf16 %v11372, %v11368
  %v11459 = vpack.c.bf16 %v11378, %v11374
  %v11460 = vpack.c.bf16 %v11380, %v11376
  %v11461 = vpack.c.bf16 %v11386, %v11382
  %v11462 = vpack.c.bf16 %v11388, %v11384
  %v11463 = vpack.c.bf16 %v11394, %v11390
  %v11464 = vpack.c.bf16 %v11396, %v11392
  %v11465 = vpack.c.bf16 %v11402, %v11398
  %v11466 = vpack.c.bf16 %v11404, %v11400
  %v11467 = vpack.c.bf16 %v11410, %v11406
  %v11468 = vpack.c.bf16 %v11412, %v11408
  %v11469 = vpack.c.bf16 %v11418, %v11414
  %v11470 = vpack.c.bf16 %v11420, %v11416
  %v11471 = vpack.c.bf16 %v11426, %v11422
  %v11472 = vpack.c.bf16 %v11428, %v11424
  %v11473 = vpack.c.bf16 %v11434, %v11430
  %v11474 = vpack.c.bf16 %v11436, %v11432
  %v11475 = vpack.c.bf16 %v11442, %v11438
  %v11476 = vpack.c.bf16 %v11444, %v11440
  %v11509 = vunpack.c.l.b16 %v11445
  %v11510 = vunpack.c.l.b16 %v11446
  %v11511 = vunpack.c.h.b16 %v11445
  %v11512 = vunpack.c.h.b16 %v11446
  %v11513 = vunpack.c.l.b16 %v11447
  %v11514 = vunpack.c.l.b16 %v11448
  %v11515 = vunpack.c.h.b16 %v11447
  %v11516 = vunpack.c.h.b16 %v11448
  %v11517 = vunpack.c.l.b16 %v11449
  %v11518 = vunpack.c.l.b16 %v11450
  %v11519 = vunpack.c.h.b16 %v11449
  %v11520 = vunpack.c.h.b16 %v11450
  %v11521 = vunpack.c.l.b16 %v11451
  %v11522 = vunpack.c.l.b16 %v11452
  %v11523 = vunpack.c.h.b16 %v11451
  %v11524 = vunpack.c.h.b16 %v11452
  %v11525 = vunpack.c.l.b16 %v11453
  %v11526 = vunpack.c.l.b16 %v11454
  %v11527 = vunpack.c.h.b16 %v11453
  %v11528 = vunpack.c.h.b16 %v11454
  %v11529 = vunpack.c.l.b16 %v11455
  %v11530 = vunpack.c.l.b16 %v11456
  %v11531 = vunpack.c.h.b16 %v11455
  %v11532 = vunpack.c.h.b16 %v11456
  %v11533 = vunpack.c.l.b16 %v11457
  %v11534 = vunpack.c.l.b16 %v11458
  %v11535 = vunpack.c.h.b16 %v11457
  %v11536 = vunpack.c.h.b16 %v11458
  %v11537 = vunpack.c.l.b16 %v11459
  %v11538 = vunpack.c.l.b16 %v11460
  %v11539 = vunpack.c.h.b16 %v11459
  %v11540 = vunpack.c.h.b16 %v11460
  %v11541 = vunpack.c.l.b16 %v11461
  %v11542 = vunpack.c.l.b16 %v11462
  %v11543 = vunpack.c.h.b16 %v11461
  %v11544 = vunpack.c.h.b16 %v11462
  %v11545 = vunpack.c.l.b16 %v11463
  %v11546 = vunpack.c.l.b16 %v11464
  %v11547 = vunpack.c.h.b16 %v11463
  %v11548 = vunpack.c.h.b16 %v11464
  %v11549 = vunpack.c.l.b16 %v11465
  %v11550 = vunpack.c.l.b16 %v11466
  %v11551 = vunpack.c.h.b16 %v11465
  %v11552 = vunpack.c.h.b16 %v11466
  %v11553 = vunpack.c.l.b16 %v11467
  %v11554 = vunpack.c.l.b16 %v11468
  %v11555 = vunpack.c.h.b16 %v11467
  %v11556 = vunpack.c.h.b16 %v11468
  %v11557 = vunpack.c.l.b16 %v11469
  %v11558 = vunpack.c.l.b16 %v11470
  %v11559 = vunpack.c.h.b16 %v11469
  %v11560 = vunpack.c.h.b16 %v11470
  %v11561 = vunpack.c.l.b16 %v11471
  %v11562 = vunpack.c.l.b16 %v11472
  %v11563 = vunpack.c.h.b16 %v11471
  %v11564 = vunpack.c.h.b16 %v11472
  %v11565 = vunpack.c.l.b16 %v11473
  %v11566 = vunpack.c.l.b16 %v11474
  %v11567 = vunpack.c.h.b16 %v11473
  %v11568 = vunpack.c.h.b16 %v11474
  %v11569 = vunpack.c.l.b16 %v11475
  %v11570 = vunpack.c.l.b16 %v11476
  %v11571 = vunpack.c.h.b16 %v11475
  %v11572 = vunpack.c.h.b16 %v11476
  %v11573 = vpack.c.b16 %v11510, %v11509
  %v11574 = vpack.c.b16 %v11512, %v11511
  %v11575 = vpack.c.b16 %v11514, %v11513
  %v11576 = vpack.c.b16 %v11516, %v11515
  %v11577 = vpack.c.b16 %v11518, %v11517
  %v11578 = vpack.c.b16 %v11520, %v11519
  %v11579 = vpack.c.b16 %v11522, %v11521
  %v11580 = vpack.c.b16 %v11524, %v11523
  %v11581 = vpack.c.b16 %v11526, %v11525
  %v11582 = vpack.c.b16 %v11528, %v11527
  %v11583 = vpack.c.b16 %v11530, %v11529
  %v11584 = vpack.c.b16 %v11532, %v11531
  %v11585 = vpack.c.b16 %v11534, %v11533
  %v11586 = vpack.c.b16 %v11536, %v11535
  %v11587 = vpack.c.b16 %v11538, %v11537
  %v11588 = vpack.c.b16 %v11540, %v11539
  %v11589 = vpack.c.b16 %v11542, %v11541
  %v11590 = vpack.c.b16 %v11544, %v11543
  %v11591 = vpack.c.b16 %v11546, %v11545
  %v11592 = vpack.c.b16 %v11548, %v11547
  %v11593 = vpack.c.b16 %v11550, %v11549
  %v11594 = vpack.c.b16 %v11552, %v11551
  %v11595 = vpack.c.b16 %v11554, %v11553
  %v11596 = vpack.c.b16 %v11556, %v11555
  %v11597 = vpack.c.b16 %v11558, %v11557
  %v11598 = vpack.c.b16 %v11560, %v11559
  %v11599 = vpack.c.b16 %v11562, %v11561
  %v11600 = vpack.c.b16 %v11564, %v11563
  %v11601 = vpack.c.b16 %v11566, %v11565
  %v11602 = vpack.c.b16 %v11568, %v11567
  %v11603 = vpack.c.b16 %v11570, %v11569
  %v11604 = vpack.c.b16 %v11572, %v11571
  %11637 = vst [vmem:[%s11] sm:$0xff] %v11573
  %11638 = vst [vmem:[%s11 + $0x8] sm:$0xff] %v11574
  %11639 = vst [vmem:[%s11 + $0x10] sm:$0xff] %v11575
  %11640 = vst [vmem:[%s11 + $0x18] sm:$0xff] %v11576
  %11641 = vst [vmem:[%s11 + $0x20] sm:$0xff] %v11577
  %11642 = vst [vmem:[%s11 + $0x28] sm:$0xff] %v11578
  %11643 = vst [vmem:[%s11 + $0x30] sm:$0xff] %v11579
  %11644 = vst [vmem:[%s11 + $0x38] sm:$0xff] %v11580
  %11645 = vst [vmem:[%s11 + $0x40] sm:$0xff] %v11581
  %11646 = vst [vmem:[%s11 + $0x48] sm:$0xff] %v11582
  %11647 = vst [vmem:[%s11 + $0x50] sm:$0xff] %v11583
  %11648 = vst [vmem:[%s11 + $0x58] sm:$0xff] %v11584
  %11649 = vst [vmem:[%s11 + $0x60] sm:$0xff] %v11585
  %11650 = vst [vmem:[%s11 + $0x68] sm:$0xff] %v11586
  %11651 = vst [vmem:[%s11 + $0x70] sm:$0xff] %v11587
  %11652 = vst [vmem:[%s11 + $0x78] sm:$0xff] %v11588
  %11653 = vst [vmem:[%s11 + $0x80] sm:$0xff] %v11589
  %11654 = vst [vmem:[%s11 + $0x88] sm:$0xff] %v11590
  %11655 = vst [vmem:[%s11 + $0x90] sm:$0xff] %v11591
  %11656 = vst [vmem:[%s11 + $0x98] sm:$0xff] %v11592
  %11657 = vst [vmem:[%s11 + $0xa0] sm:$0xff] %v11593
  %11658 = vst [vmem:[%s11 + $0xa8] sm:$0xff] %v11594
  %11659 = vst [vmem:[%s11 + $0xb0] sm:$0xff] %v11595
  %11660 = vst [vmem:[%s11 + $0xb8] sm:$0xff] %v11596
  %11661 = vst [vmem:[%s11 + $0xc0] sm:$0xff] %v11597
  %11662 = vst [vmem:[%s11 + $0xc8] sm:$0xff] %v11598
  %11663 = vst [vmem:[%s11 + $0xd0] sm:$0xff] %v11599
  %11664 = vst [vmem:[%s11 + $0xd8] sm:$0xff] %v11600
  %11665 = vst [vmem:[%s11 + $0xe0] sm:$0xff] %v11601
  %11666 = vst [vmem:[%s11 + $0xe8] sm:$0xff] %v11602
  %11667 = vst [vmem:[%s11 + $0xf0] sm:$0xff] %v11603
  %11668 = vst [vmem:[%s11 + $0xf8] sm:$0xff] %v11604
  // Predicated region
  $region46: #{forward.3} parent=0 // pred_check
    _
  $region47: #{forward.3} parent=0 // pred_check_branch
    %11670 = sbr.rel (0) target = $region49
  $region48: #{forward.3} parent=0 // pred_region
    _
  $region49: #{forward.3} parent=0 // pred_fallthru
    _
  // Predicated region
  $region50: #{forward.3} parent=0 // pred_check
    _
  $region51: #{forward.3} parent=0 // pred_check_branch
    %11672 = sbr.rel (0) target = $region53
  $region52: #{forward.3} parent=0 // pred_region
    _
  $region53: #{forward.3} parent=0 // pred_fallthru
    _

</llo_original>
